<compile_context>
chip_gen: v5e
topology: v5e:2x2
jax: 0.10.0
libtpu: 0.0.40
codegen_flags: <defaults>
</compile_context>

<pallas_src>
import math
import functools

import jax
import jax.numpy as jnp
from jax import lax
from jax.experimental import pallas as pl
from jax.experimental.pallas import tpu as pltpu

LN_EPS = 1e-5  # PyTorch nn.LayerNorm default
NEG_INF = -1e30


# ----------------------------------------------------------------------------
# Fused whole-layer kernel: one batch element per grid step.
# Attention blocks (stacked along axis 0 of the weight tensors):
#   0 = visual self-attn, 1 = language self-attn, 2 = cross_lv, 3 = cross_vl
# FFN blocks: 0 = ffn_lv, 1 = ffn_vl
# ----------------------------------------------------------------------------
def _bi_encoder_kernel(n_heads,
                       vis_ref, pos_ref, text_ref, vneg_ref, tneg_ref,
                       aw_in_ref, ab_in_ref, aw_out_ref, ab_out_ref,
                       ag_ref, abt_ref,
                       fw1_ref, fb1_ref, fw2_ref, fb2_ref, fg_ref, fbt_ref,
                       vis_out_ref, text_out_ref, ctx_ref):
    D = vis_ref.shape[-1]
    dh = D // n_heads

    def layer_norm(x, g, b):
        mu = jnp.mean(x, axis=-1, keepdims=True)
        var = jnp.mean(jnp.square(x - mu), axis=-1, keepdims=True)
        return (x - mu) * lax.rsqrt(var + LN_EPS) * g + b

    def attention(idx, qx, kx, vx, neg):
        # Fused full-width in-projections (1/sqrt(dh) already folded into Wq, bq).
        qb = qx.astype(jnp.bfloat16)
        kb = kx.astype(jnp.bfloat16)
        vb = vx.astype(jnp.bfloat16)
        q = (jnp.dot(qb, aw_in_ref[idx, :, 0:D],
                     preferred_element_type=jnp.float32) + ab_in_ref[idx, :, 0:D]
             ).astype(jnp.bfloat16)
        k = (jnp.dot(kb, aw_in_ref[idx, :, D:2 * D],
                     preferred_element_type=jnp.float32) + ab_in_ref[idx, :, D:2 * D]
             ).astype(jnp.bfloat16)
        v = (jnp.dot(vb, aw_in_ref[idx, :, 2 * D:3 * D],
                     preferred_element_type=jnp.float32) + ab_in_ref[idx, :, 2 * D:3 * D]
             ).astype(jnp.bfloat16)
        lq = qx.shape[0]
        lk = kx.shape[0]
        # Hoisted broadcast of the additive key-padding mask (reused by every head).
        neg_full = jnp.broadcast_to(neg, (lq, lk))
        # Per-head softmax attention; head contexts are written into a
        # lane-contiguous VMEM scratch so the output projection is one matmul.
        for h in range(n_heads):                      # static unroll
            sl = slice(h * dh, (h + 1) * dh)
            s = lax.dot_general(q[:, sl], k[:, sl], (((1,), (1,)), ((), ())),
                                preferred_element_type=jnp.float32)
            s = s + neg_full                          # additive key-padding mask
            s = s - jnp.max(s, axis=-1, keepdims=True)
            e = jnp.exp(s)
            # EUP approximate reciprocal instead of a VPU divide.  Note: with the
            # additive -1e30 mask this never produces NaN even if every key of a
            # row is padded (the denominator stays >= 1 after max-subtraction).
            p = e * pl.reciprocal(jnp.sum(e, axis=-1, keepdims=True), approx=True)
            ctx_ref[0:lq, sl] = jnp.dot(p.astype(jnp.bfloat16), v[:, sl],
                                        preferred_element_type=jnp.float32)
        ctx = ctx_ref[0:lq, :].astype(jnp.bfloat16)
        return (jnp.dot(ctx, aw_out_ref[idx], preferred_element_type=jnp.float32)
                + ab_out_ref[idx])

    def mha_ln(idx, qx, kx, vx, res, neg):
        return layer_norm(res + attention(idx, qx, kx, vx, neg),
                          ag_ref[idx], abt_ref[idx])

    def ffn_ln(idx, x):
        h1 = jnp.dot(x.astype(jnp.bfloat16), fw1_ref[idx],
                     preferred_element_type=jnp.float32) + fb1_ref[idx]
        h1 = jnp.maximum(h1, 0.0)
        y = jnp.dot(h1.astype(jnp.bfloat16), fw2_ref[idx],
                    preferred_element_type=jnp.float32) + fb2_ref[idx]
        return layer_norm(x + y, fg_ref[idx], fbt_ref[idx])

    vis = vis_ref[0].astype(jnp.float32)
    pos = pos_ref[0].astype(jnp.float32)
    text = text_ref[0].astype(jnp.float32)
    vneg = vneg_ref[0]            # (1, V) additive mask: 0 or -1e30
    tneg = tneg_ref[0]            # (1, L)

    # 1) visual self-attention (PosTransformerEncoderLayerNoFFN): q = k = vis+pos, v = vis
    vp = vis + pos
    vis = mha_ln(0, vp, vp, vis, vis, vneg)
    # 2) language self-attention (TransformerEncoderLayerNoFFN)
    text = mha_ln(1, text, text, text, text, tneg)
    # 3) CrossAttentionLayer (dropouts identity in eval mode)
    vis_in, text_in = vis, text
    qv = vis_in + pos
    text = mha_ln(2, text_in, vis_in, vis_in, text_in, vneg)   # language -> vision
    text = ffn_ln(0, text)
    vis = mha_ln(3, qv, text_in, text_in, vis_in, tneg)        # vision -> language
    vis = ffn_ln(1, vis)

    vis_out_ref[0] = vis.astype(vis_out_ref.dtype)
    text_out_ref[0] = text.astype(text_out_ref.dtype)


# ----------------------------------------------------------------------------
# Wrapper: one pallas_call for the whole BiEncoderLayer forward (eval mode)
# ----------------------------------------------------------------------------
def bi_encoder_layer(vis, pos, vis_pad_mask, text, text_pad_mask, packed, n_heads):
    B, V, D = vis.shape
    L = text.shape[1]
    Dff = packed["fw1"].shape[2]

    vneg = jnp.where(vis_pad_mask, NEG_INF, 0.0).astype(jnp.float32).reshape(B, 1, V)
    tneg = jnp.where(text_pad_mask, NEG_INF, 0.0).astype(jnp.float32).reshape(B, 1, L)

    bmap = lambda b: (b, 0, 0)      # batched activations / masks
    cmap = lambda b: (0, 0, 0)      # weights: constant block across the grid

    kernel = functools.partial(_bi_encoder_kernel, n_heads)
    vis_out, text_out = pl.pallas_call(
        kernel,
        out_shape=(jax.ShapeDtypeStruct((B, V, D), vis.dtype),
                   jax.ShapeDtypeStruct((B, L, D), text.dtype)),
        grid=(B,),
        in_specs=[
            pl.BlockSpec((1, V, D), bmap),            # vis
            pl.BlockSpec((1, V, D), bmap),            # pos
            pl.BlockSpec((1, L, D), bmap),            # text
            pl.BlockSpec((1, 1, V), bmap),            # additive vis key mask
            pl.BlockSpec((1, 1, L), bmap),            # additive text key mask
            pl.BlockSpec((4, D, 3 * D), cmap),        # packed QKV weights (bf16)
            pl.BlockSpec((4, 1, 3 * D), cmap),        # packed QKV biases (f32)
            pl.BlockSpec((4, D, D), cmap),            # out-proj weights (bf16)
            pl.BlockSpec((4, 1, D), cmap),            # out-proj biases
            pl.BlockSpec((4, 1, D), cmap),            # attn LN gamma
            pl.BlockSpec((4, 1, D), cmap),            # attn LN beta
            pl.BlockSpec((2, D, Dff), cmap),          # FFN w1 (bf16)
            pl.BlockSpec((2, 1, Dff), cmap),          # FFN b1
            pl.BlockSpec((2, Dff, D), cmap),          # FFN w2 (bf16)
            pl.BlockSpec((2, 1, D), cmap),            # FFN b2
            pl.BlockSpec((2, 1, D), cmap),            # FFN LN gamma
            pl.BlockSpec((2, 1, D), cmap),            # FFN LN beta
        ],
        out_specs=(pl.BlockSpec((1, V, D), bmap), pl.BlockSpec((1, L, D), bmap)),
        scratch_shapes=[pltpu.VMEM((max(V, L), D), jnp.float32)],   # head-ctx assembly
        compiler_params=pltpu.CompilerParams(dimension_semantics=("parallel",)),
    )(vis, pos, text, vneg, tneg,
      packed["aw_in"], packed["ab_in"], packed["aw_out"], packed["ab_out"],
      packed["a_g"], packed["a_b"],
      packed["fw1"], packed["fb1"], packed["fw2"], packed["fb2"],
      packed["f_g"], packed["f_b"])
    return vis_out, text_out


# ----------------------------------------------------------------------------
# Parameters: torch-style per-block (for the reference) + packed kernel layout
# ----------------------------------------------------------------------------
def _round_bf16(x):
    # Keep master weights exactly representable in bf16 so the kernel's bf16 MXU
    # path introduces no weight-rounding error relative to the f32 reference.
    return x.astype(jnp.bfloat16).astype(jnp.float32)


def _init_mha(key, D):
    ks = jax.random.split(key, 8)
    std = 0.08
    return {
        "wq": _round_bf16(std * jax.random.normal(ks[0], (D, D), jnp.float32)),
        "wk": _round_bf16(std * jax.random.normal(ks[1], (D, D), jnp.float32)),
        "wv": _round_bf16(std * jax.random.normal(ks[2], (D, D), jnp.float32)),
        "wo": _round_bf16(std * jax.random.normal(ks[3], (D, D), jnp.float32)),
        "bq": 0.02 * jax.random.normal(ks[4], (D,), jnp.float32),
        "bk": 0.02 * jax.random.normal(ks[5], (D,), jnp.float32),
        "bv": 0.02 * jax.random.normal(ks[6], (D,), jnp.float32),
        "bo": 0.02 * jax.random.normal(ks[7], (D,), jnp.float32),
        "gamma": jnp.ones((D,), jnp.float32),
        "beta": jnp.zeros((D,), jnp.float32),
    }


def _init_ffn(key, D, Dff):
    ks = jax.random.split(key, 4)
    std = 0.08
    return {
        "w1": _round_bf16(std * jax.random.normal(ks[0], (D, Dff), jnp.float32)),
        "b1": 0.02 * jax.random.normal(ks[1], (Dff,), jnp.float32),
        "w2": _round_bf16(std * jax.random.normal(ks[2], (Dff, D), jnp.float32)),
        "b2": 0.02 * jax.random.normal(ks[3], (D,), jnp.float32),
        "gamma": jnp.ones((D,), jnp.float32),
        "beta": jnp.zeros((D,), jnp.float32),
    }


def init_params(key, D, H, Dff):
    ks = jax.random.split(key, 6)
    return {
        "self_vis": _init_mha(ks[0], D),
        "self_lang": _init_mha(ks[1], D),
        "cross_lv": _init_mha(ks[2], D),
        "ffn_lv": _init_ffn(ks[3], D, Dff),
        "cross_vl": _init_mha(ks[4], D),
        "ffn_vl": _init_ffn(ks[5], D, Dff),
    }


def pack_params(params, D, H):
    """Stack weights for the fused kernel: bf16 matmul operands, f32 bias/LN."""
    dh = D // H
    scale = 1.0 / math.sqrt(dh)          # folded into Wq / bq (exact for dh=16)
    att = [params[n] for n in ("self_vis", "self_lang", "cross_lv", "cross_vl")]
    ffn = [params[n] for n in ("ffn_lv", "ffn_vl")]
    bf16, f32 = jnp.bfloat16, jnp.float32
    return {
        "aw_in": jnp.stack([jnp.concatenate([p["wq"] * scale, p["wk"], p["wv"]], axis=1)
                            for p in att]).astype(bf16),
        "ab_in": jnp.stack([jnp.concatenate([p["bq"] * scale, p["bk"], p["bv"]])[None, :]
                            for p in att]).astype(f32),
        "aw_out": jnp.stack([p["wo"] for p in att]).astype(bf16),
        "ab_out": jnp.stack([p["bo"][None, :] for p in att]).astype(f32),
        "a_g": jnp.stack([p["gamma"][None, :] for p in att]).astype(f32),
        "a_b": jnp.stack([p["beta"][None, :] for p in att]).astype(f32),
        "fw1": jnp.stack([p["w1"] for p in ffn]).astype(bf16),
        "fb1": jnp.stack([p["b1"][None, :] for p in ffn]).astype(f32),
        "fw2": jnp.stack([p["w2"] for p in ffn]).astype(bf16),
        "fb2": jnp.stack([p["b2"][None, :] for p in ffn]).astype(f32),
        "f_g": jnp.stack([p["gamma"][None, :] for p in ffn]).astype(f32),
        "f_b": jnp.stack([p["beta"][None, :] for p in ffn]).astype(f32),
    }


# ----------------------------------------------------------------------------
# Pure-JAX f32 reference (same math as the PyTorch eval forward) for self-check
# ----------------------------------------------------------------------------
def _ref_mha(q, k, v, mask, p, H):
    D = q.shape[-1]
    dh = D // H
    Q = q @ p["wq"] + p["bq"]
    K = k @ p["wk"] + p["bk"]
    V = v @ p["wv"] + p["bv"]
    B, Lq, _ = Q.shape
    Lk = K.shape[1]
    Qh = Q.reshape(B, Lq, H, dh).transpose(0, 2, 1, 3)
    Kh = K.reshape(B, Lk, H, dh).transpose(0, 2, 1, 3)
    Vh = V.reshape(B, Lk, H, dh).transpose(0, 2, 1, 3)
    s = jnp.einsum("bhqd,bhkd->bhqk", Qh, Kh) / math.sqrt(dh)
    s = s + jnp.where(mask[:, None, None, :], NEG_INF, 0.0)
    a = jax.nn.softmax(s, axis=-1)
    o = jnp.einsum("bhqk,bhkd->bhqd", a, Vh).transpose(0, 2, 1, 3).reshape(B, Lq, D)
    return o @ p["wo"] + p["bo"]


def _ref_ln(x, g, b):
    mu = x.mean(-1, keepdims=True)
    var = ((x - mu) ** 2).mean(-1, keepdims=True)
    return (x - mu) / jnp.sqrt(var + LN_EPS) * g + b


def _ref_ffn_ln(x, pf):
    y = jnp.maximum(x @ pf["w1"] + pf["b1"], 0.0) @ pf["w2"] + pf["b2"]
    return _ref_ln(x + y, pf["gamma"], pf["beta"])


def ref_bi_encoder(vis, pos, vis_mask, text, text_mask, params, H):
    vp = vis + pos
    p = params["self_vis"]
    vis = _ref_ln(vis + _ref_mha(vp, vp, vis, vis_mask, p, H), p["gamma"], p["beta"])
    p = params["self_lang"]
    text = _ref_ln(text + _ref_mha(text, text, text, text_mask, p, H), p["gamma"], p["beta"])
    vis_in, text_in = vis, text
    qv = vis_in + pos
    p = params["cross_lv"]
    text = _ref_ln(text_in + _ref_mha(text_in, vis_in, vis_in, vis_mask, p, H),
                   p["gamma"], p["beta"])
    text = _ref_ffn_ln(text, params["ffn_lv"])
    p = params["cross_vl"]
    vis = _ref_ln(vis_in + _ref_mha(qv, text_in, text_in, text_mask, p, H),
                  p["gamma"], p["beta"])
    vis = _ref_ffn_ln(vis, params["ffn_vl"])
    return vis, text


if __name__ == "__main__":
    # Lane-dense small config (D multiple of 128, as in the real model where d_model=256).
    B, V, L, D, H, DFF = 2, 16, 8, 128, 8, 128
    key = jax.random.PRNGKey(0)
    ks = jax.random.split(key, 4)

    vis_feats = jax.random.normal(ks[0], (B, V, D), jnp.float32)
    pos_feats = jax.random.normal(ks[1], (B, V, D), jnp.float32)
    text_feats = jax.random.normal(ks[2], (B, L, D), jnp.float32)
    # True == padded (ignored) key; keep at least one valid key per row.
    padding_mask = jnp.zeros((B, V), jnp.bool_).at[1, 12:].set(True)
    text_padding_mask = jnp.zeros((B, L), jnp.bool_).at[1, 6:].set(True)

    params = init_params(ks[3], D, H, DFF)
    packed = pack_params(params, D, H)

    vis_out, text_out = bi_encoder_layer(
        vis_feats, pos_feats, padding_mask, text_feats, text_padding_mask, packed, H)
    jax.block_until_ready((vis_out, text_out))

    vis_ref, text_ref = ref_bi_encoder(
        vis_feats, pos_feats, padding_mask, text_feats, text_padding_mask, params, H)

    assert vis_out.shape == (B, V, D) and text_out.shape == (B, L, D)
    # Tolerance accounts for the intentional bf16 MXU inputs + approx reciprocal
    # in the kernel vs. the pure-f32 reference (structural bugs produce O(1) errors).
    assert jnp.allclose(vis_out, vis_ref, atol=1e-1, rtol=1e-1)
    assert jnp.allclose(text_out, text_ref, atol=1e-1, rtol=1e-1)

    print("KERNEL_OK")
</pallas_src>

<mosaic_0001>
module attributes {stable_mosaic.version = 11 : i64} {
  func.func @_bi_encoder_kernel(%arg0: i32, %arg1: memref<1x16x128xf32, #tpu.memory_space<vmem>>, %arg2: memref<1x16x128xf32, #tpu.memory_space<vmem>>, %arg3: memref<1x8x128xf32, #tpu.memory_space<vmem>>, %arg4: memref<1x1x16xf32, #tpu.memory_space<vmem>>, %arg5: memref<1x1x8xf32, #tpu.memory_space<vmem>>, %arg6: memref<4x128x384xbf16, #tpu.memory_space<vmem>>, %arg7: memref<4x1x384xf32, #tpu.memory_space<vmem>>, %arg8: memref<4x128x128xbf16, #tpu.memory_space<vmem>>, %arg9: memref<4x1x128xf32, #tpu.memory_space<vmem>>, %arg10: memref<4x1x128xf32, #tpu.memory_space<vmem>>, %arg11: memref<4x1x128xf32, #tpu.memory_space<vmem>>, %arg12: memref<2x128x128xbf16, #tpu.memory_space<vmem>>, %arg13: memref<2x1x128xf32, #tpu.memory_space<vmem>>, %arg14: memref<2x128x128xbf16, #tpu.memory_space<vmem>>, %arg15: memref<2x1x128xf32, #tpu.memory_space<vmem>>, %arg16: memref<2x1x128xf32, #tpu.memory_space<vmem>>, %arg17: memref<2x1x128xf32, #tpu.memory_space<vmem>>, %arg18: memref<1x16x128xf32, #tpu.memory_space<vmem>>, %arg19: memref<1x8x128xf32, #tpu.memory_space<vmem>>, %arg20: memref<16x128xf32, #tpu.memory_space<vmem>>) attributes {dimension_semantics = [#tpu.dimension_semantics<parallel>], iteration_bounds = array<i64: 2>, scalar_prefetch = 0 : i64, scratch_operands = 1 : i64, tpu.core_type = #tpu.core_type<tc>, window_params = [{transform_indices = @transform_0, window_bounds = array<i64: 1, 16, 128>}, {transform_indices = @transform_1, window_bounds = array<i64: 1, 16, 128>}, {transform_indices = @transform_2, window_bounds = array<i64: 1, 8, 128>}, {transform_indices = @transform_3, window_bounds = array<i64: 1, 1, 16>}, {transform_indices = @transform_4, window_bounds = array<i64: 1, 1, 8>}, {pipeline_mode = #tpu.pipeline_mode<synchronous>, transform_indices = @transform_5, window_bounds = array<i64: 4, 128, 384>}, {pipeline_mode = #tpu.pipeline_mode<synchronous>, transform_indices = @transform_6, window_bounds = array<i64: 4, 1, 384>}, {pipeline_mode = #tpu.pipeline_mode<synchronous>, transform_indices = @transform_7, window_bounds = array<i64: 4, 128, 128>}, {pipeline_mode = #tpu.pipeline_mode<synchronous>, transform_indices = @transform_8, window_bounds = array<i64: 4, 1, 128>}, {pipeline_mode = #tpu.pipeline_mode<synchronous>, transform_indices = @transform_9, window_bounds = array<i64: 4, 1, 128>}, {pipeline_mode = #tpu.pipeline_mode<synchronous>, transform_indices = @transform_10, window_bounds = array<i64: 4, 1, 128>}, {pipeline_mode = #tpu.pipeline_mode<synchronous>, transform_indices = @transform_11, window_bounds = array<i64: 2, 128, 128>}, {pipeline_mode = #tpu.pipeline_mode<synchronous>, transform_indices = @transform_12, window_bounds = array<i64: 2, 1, 128>}, {pipeline_mode = #tpu.pipeline_mode<synchronous>, transform_indices = @transform_13, window_bounds = array<i64: 2, 128, 128>}, {pipeline_mode = #tpu.pipeline_mode<synchronous>, transform_indices = @transform_14, window_bounds = array<i64: 2, 1, 128>}, {pipeline_mode = #tpu.pipeline_mode<synchronous>, transform_indices = @transform_15, window_bounds = array<i64: 2, 1, 128>}, {pipeline_mode = #tpu.pipeline_mode<synchronous>, transform_indices = @transform_16, window_bounds = array<i64: 2, 1, 128>}, {transform_indices = @transform_17, window_bounds = array<i64: 1, 16, 128>}, {transform_indices = @transform_18, window_bounds = array<i64: 1, 8, 128>}]} {
    %c0 = arith.constant 0 : index
    %c0_0 = arith.constant 0 : index
    %c0_1 = arith.constant 0 : index
    %0 = vector.load %arg1[%c0, %c0_0, %c0_1] : memref<1x16x128xf32, #tpu.memory_space<vmem>>, vector<1x16x128xf32>
    %1 = vector.shape_cast %0 : vector<1x16x128xf32> to vector<16x128xf32>
    %c0_2 = arith.constant 0 : index
    %c0_3 = arith.constant 0 : index
    %c0_4 = arith.constant 0 : index
    %2 = vector.load %arg2[%c0_2, %c0_3, %c0_4] : memref<1x16x128xf32, #tpu.memory_space<vmem>>, vector<1x16x128xf32>
    %3 = vector.shape_cast %2 : vector<1x16x128xf32> to vector<16x128xf32>
    %c0_5 = arith.constant 0 : index
    %c0_6 = arith.constant 0 : index
    %c0_7 = arith.constant 0 : index
    %4 = vector.load %arg3[%c0_5, %c0_6, %c0_7] : memref<1x8x128xf32, #tpu.memory_space<vmem>>, vector<1x8x128xf32>
    %5 = vector.shape_cast %4 : vector<1x8x128xf32> to vector<8x128xf32>
    %c0_8 = arith.constant 0 : index
    %c0_9 = arith.constant 0 : index
    %c0_10 = arith.constant 0 : index
    %6 = vector.load %arg4[%c0_8, %c0_9, %c0_10] : memref<1x1x16xf32, #tpu.memory_space<vmem>>, vector<1x1x16xf32>
    %7 = vector.shape_cast %6 : vector<1x1x16xf32> to vector<1x16xf32>
    %c0_11 = arith.constant 0 : index
    %c0_12 = arith.constant 0 : index
    %c0_13 = arith.constant 0 : index
    %8 = vector.load %arg5[%c0_11, %c0_12, %c0_13] : memref<1x1x8xf32, #tpu.memory_space<vmem>>, vector<1x1x8xf32>
    %9 = vector.shape_cast %8 : vector<1x1x8xf32> to vector<1x8xf32>
    %10 = arith.addf %1, %3 : vector<16x128xf32>
    %11 = arith.truncf %10 : vector<16x128xf32> to vector<16x128xbf16>
    %12 = arith.truncf %10 : vector<16x128xf32> to vector<16x128xbf16>
    %13 = arith.truncf %1 : vector<16x128xf32> to vector<16x128xbf16>
    %c0_14 = arith.constant 0 : index
    %c0_15 = arith.constant 0 : index
    %c0_16 = arith.constant 0 : index
    %14 = vector.load %arg6[%c0_14, %c0_15, %c0_16] : memref<4x128x384xbf16, #tpu.memory_space<vmem>>, vector<1x128x128xbf16>
    %15 = vector.shape_cast %14 : vector<1x128x128xbf16> to vector<128x128xbf16>
    %cst = arith.constant dense<0.000000e+00> : vector<16x128xf32>
    %16 = tpu.matmul %11, %15, %cst {dimension_numbers = #tpu.dot_dimension_numbers<[1], [0], [0], [1], [0, 0, 1, 1], [], []>} : vector<16x128xbf16>, vector<128x128xbf16>, vector<16x128xf32> -> vector<16x128xf32>
    %c0_17 = arith.constant 0 : index
    %c0_18 = arith.constant 0 : index
    %c0_19 = arith.constant 0 : index
    %17 = vector.load %arg7[%c0_17, %c0_18, %c0_19] : memref<4x1x384xf32, #tpu.memory_space<vmem>>, vector<1x1x128xf32>
    %18 = vector.shape_cast %17 : vector<1x1x128xf32> to vector<1x128xf32>
    %19 = vector.broadcast %18 : vector<1x128xf32> to vector<16x128xf32>
    %20 = arith.addf %16, %19 : vector<16x128xf32>
    %21 = arith.truncf %20 : vector<16x128xf32> to vector<16x128xbf16>
    %c0_20 = arith.constant 0 : index
    %c0_21 = arith.constant 0 : index
    %c128 = arith.constant 128 : index
    %22 = vector.load %arg6[%c0_20, %c0_21, %c128] : memref<4x128x384xbf16, #tpu.memory_space<vmem>>, vector<1x128x128xbf16>
    %23 = vector.shape_cast %22 : vector<1x128x128xbf16> to vector<128x128xbf16>
    %cst_22 = arith.constant dense<0.000000e+00> : vector<16x128xf32>
    %24 = tpu.matmul %12, %23, %cst_22 {dimension_numbers = #tpu.dot_dimension_numbers<[1], [0], [0], [1], [0, 0, 1, 1], [], []>} : vector<16x128xbf16>, vector<128x128xbf16>, vector<16x128xf32> -> vector<16x128xf32>
    %c0_23 = arith.constant 0 : index
    %c0_24 = arith.constant 0 : index
    %c128_25 = arith.constant 128 : index
    %25 = vector.load %arg7[%c0_23, %c0_24, %c128_25] : memref<4x1x384xf32, #tpu.memory_space<vmem>>, vector<1x1x128xf32>
    %26 = vector.shape_cast %25 : vector<1x1x128xf32> to vector<1x128xf32>
    %27 = vector.broadcast %26 : vector<1x128xf32> to vector<16x128xf32>
    %28 = arith.addf %24, %27 : vector<16x128xf32>
    %29 = arith.truncf %28 : vector<16x128xf32> to vector<16x128xbf16>
    %c0_26 = arith.constant 0 : index
    %c0_27 = arith.constant 0 : index
    %c256 = arith.constant 256 : index
    %30 = vector.load %arg6[%c0_26, %c0_27, %c256] : memref<4x128x384xbf16, #tpu.memory_space<vmem>>, vector<1x128x128xbf16>
    %31 = vector.shape_cast %30 : vector<1x128x128xbf16> to vector<128x128xbf16>
    %cst_28 = arith.constant dense<0.000000e+00> : vector<16x128xf32>
    %32 = tpu.matmul %13, %31, %cst_28 {dimension_numbers = #tpu.dot_dimension_numbers<[1], [0], [0], [1], [0, 0, 1, 1], [], []>} : vector<16x128xbf16>, vector<128x128xbf16>, vector<16x128xf32> -> vector<16x128xf32>
    %c0_29 = arith.constant 0 : index
    %c0_30 = arith.constant 0 : index
    %c256_31 = arith.constant 256 : index
    %33 = vector.load %arg7[%c0_29, %c0_30, %c256_31] : memref<4x1x384xf32, #tpu.memory_space<vmem>>, vector<1x1x128xf32>
    %34 = vector.shape_cast %33 : vector<1x1x128xf32> to vector<1x128xf32>
    %35 = vector.broadcast %34 : vector<1x128xf32> to vector<16x128xf32>
    %36 = arith.addf %32, %35 : vector<16x128xf32>
    %37 = arith.truncf %36 : vector<16x128xf32> to vector<16x128xbf16>
    %38 = vector.shape_cast %7 : vector<1x16xf32> to vector<1x16xf32>
    %39 = vector.broadcast %38 : vector<1x16xf32> to vector<16x16xf32>
    %40 = vector.extract_strided_slice %21 {offsets = [0, 0], sizes = [16, 16], strides = [1, 1]} : vector<16x128xbf16> to vector<16x16xbf16>
    %41 = vector.extract_strided_slice %29 {offsets = [0, 0], sizes = [16, 16], strides = [1, 1]} : vector<16x128xbf16> to vector<16x16xbf16>
    %cst_32 = arith.constant dense<0.000000e+00> : vector<16x16xf32>
    %42 = tpu.matmul %40, %41, %cst_32 {dimension_numbers = #tpu.dot_dimension_numbers<[1], [1], [0], [0], [0, 0, 1, 0], [], []>} : vector<16x16xbf16>, vector<16x16xbf16>, vector<16x16xf32> -> vector<16x16xf32>
    %43 = arith.addf %42, %39 : vector<16x16xf32>
    %cst_33 = arith.constant dense<0xFF800000> : vector<16xf32>
    %44 = vector.multi_reduction <maximumf>, %43, %cst_33 [1] : vector<16x16xf32> to vector<16xf32>
    %45 = vector.shape_cast %44 : vector<16xf32> to vector<16x1xf32>
    %46 = vector.broadcast %45 : vector<16x1xf32> to vector<16x16xf32>
    %47 = arith.subf %43, %46 : vector<16x16xf32>
    %48 = math.exp %47 : vector<16x16xf32>
    %cst_34 = arith.constant dense<0.000000e+00> : vector<16xf32>
    %49 = vector.multi_reduction <add>, %48, %cst_34 [1] : vector<16x16xf32> to vector<16xf32>
    %50 = vector.shape_cast %49 : vector<16xf32> to vector<16x1xf32>
    %51 = tpu.reciprocal %50 {approx = true} : vector<16x1xf32> -> vector<16x1xf32>
    %52 = vector.broadcast %51 : vector<16x1xf32> to vector<16x16xf32>
    %53 = arith.mulf %48, %52 : vector<16x16xf32>
    %54 = arith.truncf %53 : vector<16x16xf32> to vector<16x16xbf16>
    %55 = vector.extract_strided_slice %37 {offsets = [0, 0], sizes = [16, 16], strides = [1, 1]} : vector<16x128xbf16> to vector<16x16xbf16>
    %cst_35 = arith.constant dense<0.000000e+00> : vector<16x16xf32>
    %56 = tpu.matmul %54, %55, %cst_35 {dimension_numbers = #tpu.dot_dimension_numbers<[1], [0], [0], [1], [0, 0, 1, 1], [], []>} : vector<16x16xbf16>, vector<16x16xbf16>, vector<16x16xf32> -> vector<16x16xf32>
    %c0_36 = arith.constant 0 : index
    %c0_37 = arith.constant 0 : index
    %57 = vector.load %arg20[%c0_36, %c0_37] : memref<16x128xf32, #tpu.memory_space<vmem>>, vector<16x16xf32>
    tpu.vector_store %arg20[%c0_36, %c0_37], %56 {strides = array<i32>} : memref<16x128xf32, #tpu.memory_space<vmem>>, vector<16x16xf32>,
    %58 = vector.extract_strided_slice %21 {offsets = [0, 16], sizes = [16, 16], strides = [1, 1]} : vector<16x128xbf16> to vector<16x16xbf16>
    %59 = vector.extract_strided_slice %29 {offsets = [0, 16], sizes = [16, 16], strides = [1, 1]} : vector<16x128xbf16> to vector<16x16xbf16>
    %cst_38 = arith.constant dense<0.000000e+00> : vector<16x16xf32>
    %60 = tpu.matmul %58, %59, %cst_38 {dimension_numbers = #tpu.dot_dimension_numbers<[1], [1], [0], [0], [0, 0, 1, 0], [], []>} : vector<16x16xbf16>, vector<16x16xbf16>, vector<16x16xf32> -> vector<16x16xf32>
    %61 = arith.addf %60, %39 : vector<16x16xf32>
    %cst_39 = arith.constant dense<0xFF800000> : vector<16xf32>
    %62 = vector.multi_reduction <maximumf>, %61, %cst_39 [1] : vector<16x16xf32> to vector<16xf32>
    %63 = vector.shape_cast %62 : vector<16xf32> to vector<16x1xf32>
    %64 = vector.broadcast %63 : vector<16x1xf32> to vector<16x16xf32>
    %65 = arith.subf %61, %64 : vector<16x16xf32>
    %66 = math.exp %65 : vector<16x16xf32>
    %cst_40 = arith.constant dense<0.000000e+00> : vector<16xf32>
    %67 = vector.multi_reduction <add>, %66, %cst_40 [1] : vector<16x16xf32> to vector<16xf32>
    %68 = vector.shape_cast %67 : vector<16xf32> to vector<16x1xf32>
    %69 = tpu.reciprocal %68 {approx = true} : vector<16x1xf32> -> vector<16x1xf32>
    %70 = vector.broadcast %69 : vector<16x1xf32> to vector<16x16xf32>
    %71 = arith.mulf %66, %70 : vector<16x16xf32>
    %72 = arith.truncf %71 : vector<16x16xf32> to vector<16x16xbf16>
    %73 = vector.extract_strided_slice %37 {offsets = [0, 16], sizes = [16, 16], strides = [1, 1]} : vector<16x128xbf16> to vector<16x16xbf16>
    %cst_41 = arith.constant dense<0.000000e+00> : vector<16x16xf32>
    %74 = tpu.matmul %72, %73, %cst_41 {dimension_numbers = #tpu.dot_dimension_numbers<[1], [0], [0], [1], [0, 0, 1, 1], [], []>} : vector<16x16xbf16>, vector<16x16xbf16>, vector<16x16xf32> -> vector<16x16xf32>
    %c0_42 = arith.constant 0 : index
    %c16 = arith.constant 16 : index
    %75 = vector.load %arg20[%c0_42, %c16] : memref<16x128xf32, #tpu.memory_space<vmem>>, vector<16x16xf32>
    tpu.vector_store %arg20[%c0_42, %c16], %74 {strides = array<i32>} : memref<16x128xf32, #tpu.memory_space<vmem>>, vector<16x16xf32>,
    %76 = vector.extract_strided_slice %21 {offsets = [0, 32], sizes = [16, 16], strides = [1, 1]} : vector<16x128xbf16> to vector<16x16xbf16>
    %77 = vector.extract_strided_slice %29 {offsets = [0, 32], sizes = [16, 16], strides = [1, 1]} : vector<16x128xbf16> to vector<16x16xbf16>
    %cst_43 = arith.constant dense<0.000000e+00> : vector<16x16xf32>
    %78 = tpu.matmul %76, %77, %cst_43 {dimension_numbers = #tpu.dot_dimension_numbers<[1], [1], [0], [0], [0, 0, 1, 0], [], []>} : vector<16x16xbf16>, vector<16x16xbf16>, vector<16x16xf32> -> vector<16x16xf32>
    %79 = arith.addf %78, %39 : vector<16x16xf32>
    %cst_44 = arith.constant dense<0xFF800000> : vector<16xf32>
    %80 = vector.multi_reduction <maximumf>, %79, %cst_44 [1] : vector<16x16xf32> to vector<16xf32>
    %81 = vector.shape_cast %80 : vector<16xf32> to vector<16x1xf32>
    %82 = vector.broadcast %81 : vector<16x1xf32> to vector<16x16xf32>
    %83 = arith.subf %79, %82 : vector<16x16xf32>
    %84 = math.exp %83 : vector<16x16xf32>
    %cst_45 = arith.constant dense<0.000000e+00> : vector<16xf32>
    %85 = vector.multi_reduction <add>, %84, %cst_45 [1] : vector<16x16xf32> to vector<16xf32>
    %86 = vector.shape_cast %85 : vector<16xf32> to vector<16x1xf32>
    %87 = tpu.reciprocal %86 {approx = true} : vector<16x1xf32> -> vector<16x1xf32>
    %88 = vector.broadcast %87 : vector<16x1xf32> to vector<16x16xf32>
    %89 = arith.mulf %84, %88 : vector<16x16xf32>
    %90 = arith.truncf %89 : vector<16x16xf32> to vector<16x16xbf16>
    %91 = vector.extract_strided_slice %37 {offsets = [0, 32], sizes = [16, 16], strides = [1, 1]} : vector<16x128xbf16> to vector<16x16xbf16>
    %cst_46 = arith.constant dense<0.000000e+00> : vector<16x16xf32>
    %92 = tpu.matmul %90, %91, %cst_46 {dimension_numbers = #tpu.dot_dimension_numbers<[1], [0], [0], [1], [0, 0, 1, 1], [], []>} : vector<16x16xbf16>, vector<16x16xbf16>, vector<16x16xf32> -> vector<16x16xf32>
    %c0_47 = arith.constant 0 : index
    %c32 = arith.constant 32 : index
    %93 = vector.load %arg20[%c0_47, %c32] : memref<16x128xf32, #tpu.memory_space<vmem>>, vector<16x16xf32>
    tpu.vector_store %arg20[%c0_47, %c32], %92 {strides = array<i32>} : memref<16x128xf32, #tpu.memory_space<vmem>>, vector<16x16xf32>,
    %94 = vector.extract_strided_slice %21 {offsets = [0, 48], sizes = [16, 16], strides = [1, 1]} : vector<16x128xbf16> to vector<16x16xbf16>
    %95 = vector.extract_strided_slice %29 {offsets = [0, 48], sizes = [16, 16], strides = [1, 1]} : vector<16x128xbf16> to vector<16x16xbf16>
    %cst_48 = arith.constant dense<0.000000e+00> : vector<16x16xf32>
    %96 = tpu.matmul %94, %95, %cst_48 {dimension_numbers = #tpu.dot_dimension_numbers<[1], [1], [0], [0], [0, 0, 1, 0], [], []>} : vector<16x16xbf16>, vector<16x16xbf16>, vector<16x16xf32> -> vector<16x16xf32>
    %97 = arith.addf %96, %39 : vector<16x16xf32>
    %cst_49 = arith.constant dense<0xFF800000> : vector<16xf32>
    %98 = vector.multi_reduction <maximumf>, %97, %cst_49 [1] : vector<16x16xf32> to vector<16xf32>
    %99 = vector.shape_cast %98 : vector<16xf32> to vector<16x1xf32>
    %100 = vector.broadcast %99 : vector<16x1xf32> to vector<16x16xf32>
    %101 = arith.subf %97, %100 : vector<16x16xf32>
    %102 = math.exp %101 : vector<16x16xf32>
    %cst_50 = arith.constant dense<0.000000e+00> : vector<16xf32>
    %103 = vector.multi_reduction <add>, %102, %cst_50 [1] : vector<16x16xf32> to vector<16xf32>
    %104 = vector.shape_cast %103 : vector<16xf32> to vector<16x1xf32>
    %105 = tpu.reciprocal %104 {approx = true} : vector<16x1xf32> -> vector<16x1xf32>
    %106 = vector.broadcast %105 : vector<16x1xf32> to vector<16x16xf32>
    %107 = arith.mulf %102, %106 : vector<16x16xf32>
    %108 = arith.truncf %107 : vector<16x16xf32> to vector<16x16xbf16>
    %109 = vector.extract_strided_slice %37 {offsets = [0, 48], sizes = [16, 16], strides = [1, 1]} : vector<16x128xbf16> to vector<16x16xbf16>
    %cst_51 = arith.constant dense<0.000000e+00> : vector<16x16xf32>
    %110 = tpu.matmul %108, %109, %cst_51 {dimension_numbers = #tpu.dot_dimension_numbers<[1], [0], [0], [1], [0, 0, 1, 1], [], []>} : vector<16x16xbf16>, vector<16x16xbf16>, vector<16x16xf32> -> vector<16x16xf32>
    %c0_52 = arith.constant 0 : index
    %c48 = arith.constant 48 : index
    %111 = vector.load %arg20[%c0_52, %c48] : memref<16x128xf32, #tpu.memory_space<vmem>>, vector<16x16xf32>
    tpu.vector_store %arg20[%c0_52, %c48], %110 {strides = array<i32>} : memref<16x128xf32, #tpu.memory_space<vmem>>, vector<16x16xf32>,
    %112 = vector.extract_strided_slice %21 {offsets = [0, 64], sizes = [16, 16], strides = [1, 1]} : vector<16x128xbf16> to vector<16x16xbf16>
    %113 = vector.extract_strided_slice %29 {offsets = [0, 64], sizes = [16, 16], strides = [1, 1]} : vector<16x128xbf16> to vector<16x16xbf16>
    %cst_53 = arith.constant dense<0.000000e+00> : vector<16x16xf32>
    %114 = tpu.matmul %112, %113, %cst_53 {dimension_numbers = #tpu.dot_dimension_numbers<[1], [1], [0], [0], [0, 0, 1, 0], [], []>} : vector<16x16xbf16>, vector<16x16xbf16>, vector<16x16xf32> -> vector<16x16xf32>
    %115 = arith.addf %114, %39 : vector<16x16xf32>
    %cst_54 = arith.constant dense<0xFF800000> : vector<16xf32>
    %116 = vector.multi_reduction <maximumf>, %115, %cst_54 [1] : vector<16x16xf32> to vector<16xf32>
    %117 = vector.shape_cast %116 : vector<16xf32> to vector<16x1xf32>
    %118 = vector.broadcast %117 : vector<16x1xf32> to vector<16x16xf32>
    %119 = arith.subf %115, %118 : vector<16x16xf32>
    %120 = math.exp %119 : vector<16x16xf32>
    %cst_55 = arith.constant dense<0.000000e+00> : vector<16xf32>
    %121 = vector.multi_reduction <add>, %120, %cst_55 [1] : vector<16x16xf32> to vector<16xf32>
    %122 = vector.shape_cast %121 : vector<16xf32> to vector<16x1xf32>
    %123 = tpu.reciprocal %122 {approx = true} : vector<16x1xf32> -> vector<16x1xf32>
    %124 = vector.broadcast %123 : vector<16x1xf32> to vector<16x16xf32>
    %125 = arith.mulf %120, %124 : vector<16x16xf32>
    %126 = arith.truncf %125 : vector<16x16xf32> to vector<16x16xbf16>
    %127 = vector.extract_strided_slice %37 {offsets = [0, 64], sizes = [16, 16], strides = [1, 1]} : vector<16x128xbf16> to vector<16x16xbf16>
    %cst_56 = arith.constant dense<0.000000e+00> : vector<16x16xf32>
    %128 = tpu.matmul %126, %127, %cst_56 {dimension_numbers = #tpu.dot_dimension_numbers<[1], [0], [0], [1], [0, 0, 1, 1], [], []>} : vector<16x16xbf16>, vector<16x16xbf16>, vector<16x16xf32> -> vector<16x16xf32>
    %c0_57 = arith.constant 0 : index
    %c64 = arith.constant 64 : index
    %129 = vector.load %arg20[%c0_57, %c64] : memref<16x128xf32, #tpu.memory_space<vmem>>, vector<16x16xf32>
    tpu.vector_store %arg20[%c0_57, %c64], %128 {strides = array<i32>} : memref<16x128xf32, #tpu.memory_space<vmem>>, vector<16x16xf32>,
    %130 = vector.extract_strided_slice %21 {offsets = [0, 80], sizes = [16, 16], strides = [1, 1]} : vector<16x128xbf16> to vector<16x16xbf16>
    %131 = vector.extract_strided_slice %29 {offsets = [0, 80], sizes = [16, 16], strides = [1, 1]} : vector<16x128xbf16> to vector<16x16xbf16>
    %cst_58 = arith.constant dense<0.000000e+00> : vector<16x16xf32>
    %132 = tpu.matmul %130, %131, %cst_58 {dimension_numbers = #tpu.dot_dimension_numbers<[1], [1], [0], [0], [0, 0, 1, 0], [], []>} : vector<16x16xbf16>, vector<16x16xbf16>, vector<16x16xf32> -> vector<16x16xf32>
    %133 = arith.addf %132, %39 : vector<16x16xf32>
    %cst_59 = arith.constant dense<0xFF800000> : vector<16xf32>
    %134 = vector.multi_reduction <maximumf>, %133, %cst_59 [1] : vector<16x16xf32> to vector<16xf32>
    %135 = vector.shape_cast %134 : vector<16xf32> to vector<16x1xf32>
    %136 = vector.broadcast %135 : vector<16x1xf32> to vector<16x16xf32>
    %137 = arith.subf %133, %136 : vector<16x16xf32>
    %138 = math.exp %137 : vector<16x16xf32>
    %cst_60 = arith.constant dense<0.000000e+00> : vector<16xf32>
    %139 = vector.multi_reduction <add>, %138, %cst_60 [1] : vector<16x16xf32> to vector<16xf32>
    %140 = vector.shape_cast %139 : vector<16xf32> to vector<16x1xf32>
    %141 = tpu.reciprocal %140 {approx = true} : vector<16x1xf32> -> vector<16x1xf32>
    %142 = vector.broadcast %141 : vector<16x1xf32> to vector<16x16xf32>
    %143 = arith.mulf %138, %142 : vector<16x16xf32>
    %144 = arith.truncf %143 : vector<16x16xf32> to vector<16x16xbf16>
    %145 = vector.extract_strided_slice %37 {offsets = [0, 80], sizes = [16, 16], strides = [1, 1]} : vector<16x128xbf16> to vector<16x16xbf16>
    %cst_61 = arith.constant dense<0.000000e+00> : vector<16x16xf32>
    %146 = tpu.matmul %144, %145, %cst_61 {dimension_numbers = #tpu.dot_dimension_numbers<[1], [0], [0], [1], [0, 0, 1, 1], [], []>} : vector<16x16xbf16>, vector<16x16xbf16>, vector<16x16xf32> -> vector<16x16xf32>
    %c0_62 = arith.constant 0 : index
    %c80 = arith.constant 80 : index
    %147 = vector.load %arg20[%c0_62, %c80] : memref<16x128xf32, #tpu.memory_space<vmem>>, vector<16x16xf32>
    tpu.vector_store %arg20[%c0_62, %c80], %146 {strides = array<i32>} : memref<16x128xf32, #tpu.memory_space<vmem>>, vector<16x16xf32>,
    %148 = vector.extract_strided_slice %21 {offsets = [0, 96], sizes = [16, 16], strides = [1, 1]} : vector<16x128xbf16> to vector<16x16xbf16>
    %149 = vector.extract_strided_slice %29 {offsets = [0, 96], sizes = [16, 16], strides = [1, 1]} : vector<16x128xbf16> to vector<16x16xbf16>
    %cst_63 = arith.constant dense<0.000000e+00> : vector<16x16xf32>
    %150 = tpu.matmul %148, %149, %cst_63 {dimension_numbers = #tpu.dot_dimension_numbers<[1], [1], [0], [0], [0, 0, 1, 0], [], []>} : vector<16x16xbf16>, vector<16x16xbf16>, vector<16x16xf32> -> vector<16x16xf32>
    %151 = arith.addf %150, %39 : vector<16x16xf32>
    %cst_64 = arith.constant dense<0xFF800000> : vector<16xf32>
    %152 = vector.multi_reduction <maximumf>, %151, %cst_64 [1] : vector<16x16xf32> to vector<16xf32>
    %153 = vector.shape_cast %152 : vector<16xf32> to vector<16x1xf32>
    %154 = vector.broadcast %153 : vector<16x1xf32> to vector<16x16xf32>
    %155 = arith.subf %151, %154 : vector<16x16xf32>
    %156 = math.exp %155 : vector<16x16xf32>
    %cst_65 = arith.constant dense<0.000000e+00> : vector<16xf32>
    %157 = vector.multi_reduction <add>, %156, %cst_65 [1] : vector<16x16xf32> to vector<16xf32>
    %158 = vector.shape_cast %157 : vector<16xf32> to vector<16x1xf32>
    %159 = tpu.reciprocal %158 {approx = true} : vector<16x1xf32> -> vector<16x1xf32>
    %160 = vector.broadcast %159 : vector<16x1xf32> to vector<16x16xf32>
    %161 = arith.mulf %156, %160 : vector<16x16xf32>
    %162 = arith.truncf %161 : vector<16x16xf32> to vector<16x16xbf16>
    %163 = vector.extract_strided_slice %37 {offsets = [0, 96], sizes = [16, 16], strides = [1, 1]} : vector<16x128xbf16> to vector<16x16xbf16>
    %cst_66 = arith.constant dense<0.000000e+00> : vector<16x16xf32>
    %164 = tpu.matmul %162, %163, %cst_66 {dimension_numbers = #tpu.dot_dimension_numbers<[1], [0], [0], [1], [0, 0, 1, 1], [], []>} : vector<16x16xbf16>, vector<16x16xbf16>, vector<16x16xf32> -> vector<16x16xf32>
    %c0_67 = arith.constant 0 : index
    %c96 = arith.constant 96 : index
    %165 = vector.load %arg20[%c0_67, %c96] : memref<16x128xf32, #tpu.memory_space<vmem>>, vector<16x16xf32>
    tpu.vector_store %arg20[%c0_67, %c96], %164 {strides = array<i32>} : memref<16x128xf32, #tpu.memory_space<vmem>>, vector<16x16xf32>,
    %166 = vector.extract_strided_slice %21 {offsets = [0, 112], sizes = [16, 16], strides = [1, 1]} : vector<16x128xbf16> to vector<16x16xbf16>
    %167 = vector.extract_strided_slice %29 {offsets = [0, 112], sizes = [16, 16], strides = [1, 1]} : vector<16x128xbf16> to vector<16x16xbf16>
    %cst_68 = arith.constant dense<0.000000e+00> : vector<16x16xf32>
    %168 = tpu.matmul %166, %167, %cst_68 {dimension_numbers = #tpu.dot_dimension_numbers<[1], [1], [0], [0], [0, 0, 1, 0], [], []>} : vector<16x16xbf16>, vector<16x16xbf16>, vector<16x16xf32> -> vector<16x16xf32>
    %169 = arith.addf %168, %39 : vector<16x16xf32>
    %cst_69 = arith.constant dense<0xFF800000> : vector<16xf32>
    %170 = vector.multi_reduction <maximumf>, %169, %cst_69 [1] : vector<16x16xf32> to vector<16xf32>
    %171 = vector.shape_cast %170 : vector<16xf32> to vector<16x1xf32>
    %172 = vector.broadcast %171 : vector<16x1xf32> to vector<16x16xf32>
    %173 = arith.subf %169, %172 : vector<16x16xf32>
    %174 = math.exp %173 : vector<16x16xf32>
    %cst_70 = arith.constant dense<0.000000e+00> : vector<16xf32>
    %175 = vector.multi_reduction <add>, %174, %cst_70 [1] : vector<16x16xf32> to vector<16xf32>
    %176 = vector.shape_cast %175 : vector<16xf32> to vector<16x1xf32>
    %177 = tpu.reciprocal %176 {approx = true} : vector<16x1xf32> -> vector<16x1xf32>
    %178 = vector.broadcast %177 : vector<16x1xf32> to vector<16x16xf32>
    %179 = arith.mulf %174, %178 : vector<16x16xf32>
    %180 = arith.truncf %179 : vector<16x16xf32> to vector<16x16xbf16>
    %181 = vector.extract_strided_slice %37 {offsets = [0, 112], sizes = [16, 16], strides = [1, 1]} : vector<16x128xbf16> to vector<16x16xbf16>
    %cst_71 = arith.constant dense<0.000000e+00> : vector<16x16xf32>
    %182 = tpu.matmul %180, %181, %cst_71 {dimension_numbers = #tpu.dot_dimension_numbers<[1], [0], [0], [1], [0, 0, 1, 1], [], []>} : vector<16x16xbf16>, vector<16x16xbf16>, vector<16x16xf32> -> vector<16x16xf32>
    %c0_72 = arith.constant 0 : index
    %c112 = arith.constant 112 : index
    %183 = vector.load %arg20[%c0_72, %c112] : memref<16x128xf32, #tpu.memory_space<vmem>>, vector<16x16xf32>
    tpu.vector_store %arg20[%c0_72, %c112], %182 {strides = array<i32>} : memref<16x128xf32, #tpu.memory_space<vmem>>, vector<16x16xf32>,
    %c0_73 = arith.constant 0 : index
    %c0_74 = arith.constant 0 : index
    %184 = vector.load %arg20[%c0_73, %c0_74] : memref<16x128xf32, #tpu.memory_space<vmem>>, vector<16x128xf32>
    %185 = arith.truncf %184 : vector<16x128xf32> to vector<16x128xbf16>
    %c0_75 = arith.constant 0 : index
    %c0_76 = arith.constant 0 : index
    %c0_77 = arith.constant 0 : index
    %186 = vector.load %arg8[%c0_75, %c0_76, %c0_77] : memref<4x128x128xbf16, #tpu.memory_space<vmem>>, vector<1x128x128xbf16>
    %187 = vector.shape_cast %186 : vector<1x128x128xbf16> to vector<128x128xbf16>
    %cst_78 = arith.constant dense<0.000000e+00> : vector<16x128xf32>
    %188 = tpu.matmul %185, %187, %cst_78 {dimension_numbers = #tpu.dot_dimension_numbers<[1], [0], [0], [1], [0, 0, 1, 1], [], []>} : vector<16x128xbf16>, vector<128x128xbf16>, vector<16x128xf32> -> vector<16x128xf32>
    %c0_79 = arith.constant 0 : index
    %c0_80 = arith.constant 0 : index
    %c0_81 = arith.constant 0 : index
    %189 = vector.load %arg9[%c0_79, %c0_80, %c0_81] : memref<4x1x128xf32, #tpu.memory_space<vmem>>, vector<1x1x128xf32>
    %190 = vector.shape_cast %189 : vector<1x1x128xf32> to vector<1x128xf32>
    %191 = vector.broadcast %190 : vector<1x128xf32> to vector<16x128xf32>
    %192 = arith.addf %188, %191 : vector<16x128xf32>
    %193 = arith.addf %1, %192 : vector<16x128xf32>
    %c0_82 = arith.constant 0 : index
    %c0_83 = arith.constant 0 : index
    %c0_84 = arith.constant 0 : index
    %194 = vector.load %arg10[%c0_82, %c0_83, %c0_84] : memref<4x1x128xf32, #tpu.memory_space<vmem>>, vector<1x1x128xf32>
    %195 = vector.shape_cast %194 : vector<1x1x128xf32> to vector<1x128xf32>
    %c0_85 = arith.constant 0 : index
    %c0_86 = arith.constant 0 : index
    %c0_87 = arith.constant 0 : index
    %196 = vector.load %arg11[%c0_85, %c0_86, %c0_87] : memref<4x1x128xf32, #tpu.memory_space<vmem>>, vector<1x1x128xf32>
    %197 = vector.shape_cast %196 : vector<1x1x128xf32> to vector<1x128xf32>
    %cst_88 = arith.constant dense<0.000000e+00> : vector<16xf32>
    %198 = vector.multi_reduction <add>, %193, %cst_88 [1] : vector<16x128xf32> to vector<16xf32>
    %199 = vector.shape_cast %198 : vector<16xf32> to vector<16x1xf32>
    %cst_89 = arith.constant 1.280000e+02 : f32
    %200 = vector.broadcast %cst_89 : f32 to vector<16x1xf32>
    %201 = arith.divf %199, %200 : vector<16x1xf32>
    %202 = vector.broadcast %201 : vector<16x1xf32> to vector<16x128xf32>
    %203 = arith.subf %193, %202 : vector<16x128xf32>
    %204 = arith.mulf %203, %203 : vector<16x128xf32>
    %cst_90 = arith.constant dense<0.000000e+00> : vector<16xf32>
    %205 = vector.multi_reduction <add>, %204, %cst_90 [1] : vector<16x128xf32> to vector<16xf32>
    %206 = vector.shape_cast %205 : vector<16xf32> to vector<16x1xf32>
    %cst_91 = arith.constant 1.280000e+02 : f32
    %207 = vector.broadcast %cst_91 : f32 to vector<16x1xf32>
    %208 = arith.divf %206, %207 : vector<16x1xf32>
    %209 = vector.broadcast %201 : vector<16x1xf32> to vector<16x128xf32>
    %210 = arith.subf %193, %209 : vector<16x128xf32>
    %cst_92 = arith.constant 9.99999974E-6 : f32
    %211 = vector.broadcast %cst_92 : f32 to vector<16x1xf32>
    %212 = arith.addf %208, %211 : vector<16x1xf32>
    %213 = math.rsqrt %212 : vector<16x1xf32>
    %214 = vector.broadcast %213 : vector<16x1xf32> to vector<16x128xf32>
    %215 = arith.mulf %210, %214 : vector<16x128xf32>
    %216 = vector.broadcast %195 : vector<1x128xf32> to vector<16x128xf32>
    %217 = arith.mulf %215, %216 : vector<16x128xf32>
    %218 = vector.broadcast %197 : vector<1x128xf32> to vector<16x128xf32>
    %219 = arith.addf %217, %218 : vector<16x128xf32>
    %220 = arith.truncf %5 : vector<8x128xf32> to vector<8x128xbf16>
    %221 = arith.truncf %5 : vector<8x128xf32> to vector<8x128xbf16>
    %222 = arith.truncf %5 : vector<8x128xf32> to vector<8x128xbf16>
    %c1 = arith.constant 1 : index
    %c0_93 = arith.constant 0 : index
    %c0_94 = arith.constant 0 : index
    %223 = vector.load %arg6[%c1, %c0_93, %c0_94] : memref<4x128x384xbf16, #tpu.memory_space<vmem>>, vector<1x128x128xbf16>
    %224 = vector.shape_cast %223 : vector<1x128x128xbf16> to vector<128x128xbf16>
    %cst_95 = arith.constant dense<0.000000e+00> : vector<8x128xf32>
    %225 = tpu.matmul %220, %224, %cst_95 {dimension_numbers = #tpu.dot_dimension_numbers<[1], [0], [0], [1], [0, 0, 1, 1], [], []>} : vector<8x128xbf16>, vector<128x128xbf16>, vector<8x128xf32> -> vector<8x128xf32>
    %c1_96 = arith.constant 1 : index
    %c0_97 = arith.constant 0 : index
    %c0_98 = arith.constant 0 : index
    %226 = vector.load %arg7[%c1_96, %c0_97, %c0_98] : memref<4x1x384xf32, #tpu.memory_space<vmem>>, vector<1x1x128xf32>
    %227 = vector.shape_cast %226 : vector<1x1x128xf32> to vector<1x128xf32>
    %228 = vector.broadcast %227 : vector<1x128xf32> to vector<8x128xf32>
    %229 = arith.addf %225, %228 : vector<8x128xf32>
    %230 = arith.truncf %229 : vector<8x128xf32> to vector<8x128xbf16>
    %c1_99 = arith.constant 1 : index
    %c0_100 = arith.constant 0 : index
    %c128_101 = arith.constant 128 : index
    %231 = vector.load %arg6[%c1_99, %c0_100, %c128_101] : memref<4x128x384xbf16, #tpu.memory_space<vmem>>, vector<1x128x128xbf16>
    %232 = vector.shape_cast %231 : vector<1x128x128xbf16> to vector<128x128xbf16>
    %cst_102 = arith.constant dense<0.000000e+00> : vector<8x128xf32>
    %233 = tpu.matmul %221, %232, %cst_102 {dimension_numbers = #tpu.dot_dimension_numbers<[1], [0], [0], [1], [0, 0, 1, 1], [], []>} : vector<8x128xbf16>, vector<128x128xbf16>, vector<8x128xf32> -> vector<8x128xf32>
    %c1_103 = arith.constant 1 : index
    %c0_104 = arith.constant 0 : index
    %c128_105 = arith.constant 128 : index
    %234 = vector.load %arg7[%c1_103, %c0_104, %c128_105] : memref<4x1x384xf32, #tpu.memory_space<vmem>>, vector<1x1x128xf32>
    %235 = vector.shape_cast %234 : vector<1x1x128xf32> to vector<1x128xf32>
    %236 = vector.broadcast %235 : vector<1x128xf32> to vector<8x128xf32>
    %237 = arith.addf %233, %236 : vector<8x128xf32>
    %238 = arith.truncf %237 : vector<8x128xf32> to vector<8x128xbf16>
    %c1_106 = arith.constant 1 : index
    %c0_107 = arith.constant 0 : index
    %c256_108 = arith.constant 256 : index
    %239 = vector.load %arg6[%c1_106, %c0_107, %c256_108] : memref<4x128x384xbf16, #tpu.memory_space<vmem>>, vector<1x128x128xbf16>
    %240 = vector.shape_cast %239 : vector<1x128x128xbf16> to vector<128x128xbf16>
    %cst_109 = arith.constant dense<0.000000e+00> : vector<8x128xf32>
    %241 = tpu.matmul %222, %240, %cst_109 {dimension_numbers = #tpu.dot_dimension_numbers<[1], [0], [0], [1], [0, 0, 1, 1], [], []>} : vector<8x128xbf16>, vector<128x128xbf16>, vector<8x128xf32> -> vector<8x128xf32>
    %c1_110 = arith.constant 1 : index
    %c0_111 = arith.constant 0 : index
    %c256_112 = arith.constant 256 : index
    %242 = vector.load %arg7[%c1_110, %c0_111, %c256_112] : memref<4x1x384xf32, #tpu.memory_space<vmem>>, vector<1x1x128xf32>
    %243 = vector.shape_cast %242 : vector<1x1x128xf32> to vector<1x128xf32>
    %244 = vector.broadcast %243 : vector<1x128xf32> to vector<8x128xf32>
    %245 = arith.addf %241, %244 : vector<8x128xf32>
    %246 = arith.truncf %245 : vector<8x128xf32> to vector<8x128xbf16>
    %247 = vector.shape_cast %9 : vector<1x8xf32> to vector<1x8xf32>
    %248 = vector.broadcast %247 : vector<1x8xf32> to vector<8x8xf32>
    %249 = vector.extract_strided_slice %230 {offsets = [0, 0], sizes = [8, 16], strides = [1, 1]} : vector<8x128xbf16> to vector<8x16xbf16>
    %250 = vector.extract_strided_slice %238 {offsets = [0, 0], sizes = [8, 16], strides = [1, 1]} : vector<8x128xbf16> to vector<8x16xbf16>
    %cst_113 = arith.constant dense<0.000000e+00> : vector<8x8xf32>
    %251 = tpu.matmul %249, %250, %cst_113 {dimension_numbers = #tpu.dot_dimension_numbers<[1], [1], [0], [0], [0, 0, 1, 0], [], []>} : vector<8x16xbf16>, vector<8x16xbf16>, vector<8x8xf32> -> vector<8x8xf32>
    %252 = arith.addf %251, %248 : vector<8x8xf32>
    %cst_114 = arith.constant dense<0xFF800000> : vector<8xf32>
    %253 = vector.multi_reduction <maximumf>, %252, %cst_114 [1] : vector<8x8xf32> to vector<8xf32>
    %254 = vector.shape_cast %253 : vector<8xf32> to vector<8x1xf32>
    %255 = vector.broadcast %254 : vector<8x1xf32> to vector<8x8xf32>
    %256 = arith.subf %252, %255 : vector<8x8xf32>
    %257 = math.exp %256 : vector<8x8xf32>
    %cst_115 = arith.constant dense<0.000000e+00> : vector<8xf32>
    %258 = vector.multi_reduction <add>, %257, %cst_115 [1] : vector<8x8xf32> to vector<8xf32>
    %259 = vector.shape_cast %258 : vector<8xf32> to vector<8x1xf32>
    %260 = tpu.reciprocal %259 {approx = true} : vector<8x1xf32> -> vector<8x1xf32>
    %261 = vector.broadcast %260 : vector<8x1xf32> to vector<8x8xf32>
    %262 = arith.mulf %257, %261 : vector<8x8xf32>
    %263 = arith.truncf %262 : vector<8x8xf32> to vector<8x8xbf16>
    %264 = vector.extract_strided_slice %246 {offsets = [0, 0], sizes = [8, 16], strides = [1, 1]} : vector<8x128xbf16> to vector<8x16xbf16>
    %cst_116 = arith.constant dense<0.000000e+00> : vector<8x16xf32>
    %265 = tpu.matmul %263, %264, %cst_116 {dimension_numbers = #tpu.dot_dimension_numbers<[1], [0], [0], [1], [0, 0, 1, 1], [], []>} : vector<8x8xbf16>, vector<8x16xbf16>, vector<8x16xf32> -> vector<8x16xf32>
    %c0_117 = arith.constant 0 : index
    %c0_118 = arith.constant 0 : index
    %266 = vector.load %arg20[%c0_117, %c0_118] : memref<16x128xf32, #tpu.memory_space<vmem>>, vector<8x16xf32>
    tpu.vector_store %arg20[%c0_117, %c0_118], %265 {strides = array<i32>} : memref<16x128xf32, #tpu.memory_space<vmem>>, vector<8x16xf32>,
    %267 = vector.extract_strided_slice %230 {offsets = [0, 16], sizes = [8, 16], strides = [1, 1]} : vector<8x128xbf16> to vector<8x16xbf16>
    %268 = vector.extract_strided_slice %238 {offsets = [0, 16], sizes = [8, 16], strides = [1, 1]} : vector<8x128xbf16> to vector<8x16xbf16>
    %cst_119 = arith.constant dense<0.000000e+00> : vector<8x8xf32>
    %269 = tpu.matmul %267, %268, %cst_119 {dimension_numbers = #tpu.dot_dimension_numbers<[1], [1], [0], [0], [0, 0, 1, 0], [], []>} : vector<8x16xbf16>, vector<8x16xbf16>, vector<8x8xf32> -> vector<8x8xf32>
    %270 = arith.addf %269, %248 : vector<8x8xf32>
    %cst_120 = arith.constant dense<0xFF800000> : vector<8xf32>
    %271 = vector.multi_reduction <maximumf>, %270, %cst_120 [1] : vector<8x8xf32> to vector<8xf32>
    %272 = vector.shape_cast %271 : vector<8xf32> to vector<8x1xf32>
    %273 = vector.broadcast %272 : vector<8x1xf32> to vector<8x8xf32>
    %274 = arith.subf %270, %273 : vector<8x8xf32>
    %275 = math.exp %274 : vector<8x8xf32>
    %cst_121 = arith.constant dense<0.000000e+00> : vector<8xf32>
    %276 = vector.multi_reduction <add>, %275, %cst_121 [1] : vector<8x8xf32> to vector<8xf32>
    %277 = vector.shape_cast %276 : vector<8xf32> to vector<8x1xf32>
    %278 = tpu.reciprocal %277 {approx = true} : vector<8x1xf32> -> vector<8x1xf32>
    %279 = vector.broadcast %278 : vector<8x1xf32> to vector<8x8xf32>
    %280 = arith.mulf %275, %279 : vector<8x8xf32>
    %281 = arith.truncf %280 : vector<8x8xf32> to vector<8x8xbf16>
    %282 = vector.extract_strided_slice %246 {offsets = [0, 16], sizes = [8, 16], strides = [1, 1]} : vector<8x128xbf16> to vector<8x16xbf16>
    %cst_122 = arith.constant dense<0.000000e+00> : vector<8x16xf32>
    %283 = tpu.matmul %281, %282, %cst_122 {dimension_numbers = #tpu.dot_dimension_numbers<[1], [0], [0], [1], [0, 0, 1, 1], [], []>} : vector<8x8xbf16>, vector<8x16xbf16>, vector<8x16xf32> -> vector<8x16xf32>
    %c0_123 = arith.constant 0 : index
    %c16_124 = arith.constant 16 : index
    %284 = vector.load %arg20[%c0_123, %c16_124] : memref<16x128xf32, #tpu.memory_space<vmem>>, vector<8x16xf32>
    tpu.vector_store %arg20[%c0_123, %c16_124], %283 {strides = array<i32>} : memref<16x128xf32, #tpu.memory_space<vmem>>, vector<8x16xf32>,
    %285 = vector.extract_strided_slice %230 {offsets = [0, 32], sizes = [8, 16], strides = [1, 1]} : vector<8x128xbf16> to vector<8x16xbf16>
    %286 = vector.extract_strided_slice %238 {offsets = [0, 32], sizes = [8, 16], strides = [1, 1]} : vector<8x128xbf16> to vector<8x16xbf16>
    %cst_125 = arith.constant dense<0.000000e+00> : vector<8x8xf32>
    %287 = tpu.matmul %285, %286, %cst_125 {dimension_numbers = #tpu.dot_dimension_numbers<[1], [1], [0], [0], [0, 0, 1, 0], [], []>} : vector<8x16xbf16>, vector<8x16xbf16>, vector<8x8xf32> -> vector<8x8xf32>
    %288 = arith.addf %287, %248 : vector<8x8xf32>
    %cst_126 = arith.constant dense<0xFF800000> : vector<8xf32>
    %289 = vector.multi_reduction <maximumf>, %288, %cst_126 [1] : vector<8x8xf32> to vector<8xf32>
    %290 = vector.shape_cast %289 : vector<8xf32> to vector<8x1xf32>
    %291 = vector.broadcast %290 : vector<8x1xf32> to vector<8x8xf32>
    %292 = arith.subf %288, %291 : vector<8x8xf32>
    %293 = math.exp %292 : vector<8x8xf32>
    %cst_127 = arith.constant dense<0.000000e+00> : vector<8xf32>
    %294 = vector.multi_reduction <add>, %293, %cst_127 [1] : vector<8x8xf32> to vector<8xf32>
    %295 = vector.shape_cast %294 : vector<8xf32> to vector<8x1xf32>
    %296 = tpu.reciprocal %295 {approx = true} : vector<8x1xf32> -> vector<8x1xf32>
    %297 = vector.broadcast %296 : vector<8x1xf32> to vector<8x8xf32>
    %298 = arith.mulf %293, %297 : vector<8x8xf32>
    %299 = arith.truncf %298 : vector<8x8xf32> to vector<8x8xbf16>
    %300 = vector.extract_strided_slice %246 {offsets = [0, 32], sizes = [8, 16], strides = [1, 1]} : vector<8x128xbf16> to vector<8x16xbf16>
    %cst_128 = arith.constant dense<0.000000e+00> : vector<8x16xf32>
    %301 = tpu.matmul %299, %300, %cst_128 {dimension_numbers = #tpu.dot_dimension_numbers<[1], [0], [0], [1], [0, 0, 1, 1], [], []>} : vector<8x8xbf16>, vector<8x16xbf16>, vector<8x16xf32> -> vector<8x16xf32>
    %c0_129 = arith.constant 0 : index
    %c32_130 = arith.constant 32 : index
    %302 = vector.load %arg20[%c0_129, %c32_130] : memref<16x128xf32, #tpu.memory_space<vmem>>, vector<8x16xf32>
    tpu.vector_store %arg20[%c0_129, %c32_130], %301 {strides = array<i32>} : memref<16x128xf32, #tpu.memory_space<vmem>>, vector<8x16xf32>,
    %303 = vector.extract_strided_slice %230 {offsets = [0, 48], sizes = [8, 16], strides = [1, 1]} : vector<8x128xbf16> to vector<8x16xbf16>
    %304 = vector.extract_strided_slice %238 {offsets = [0, 48], sizes = [8, 16], strides = [1, 1]} : vector<8x128xbf16> to vector<8x16xbf16>
    %cst_131 = arith.constant dense<0.000000e+00> : vector<8x8xf32>
    %305 = tpu.matmul %303, %304, %cst_131 {dimension_numbers = #tpu.dot_dimension_numbers<[1], [1], [0], [0], [0, 0, 1, 0], [], []>} : vector<8x16xbf16>, vector<8x16xbf16>, vector<8x8xf32> -> vector<8x8xf32>
    %306 = arith.addf %305, %248 : vector<8x8xf32>
    %cst_132 = arith.constant dense<0xFF800000> : vector<8xf32>
    %307 = vector.multi_reduction <maximumf>, %306, %cst_132 [1] : vector<8x8xf32> to vector<8xf32>
    %308 = vector.shape_cast %307 : vector<8xf32> to vector<8x1xf32>
    %309 = vector.broadcast %308 : vector<8x1xf32> to vector<8x8xf32>
    %310 = arith.subf %306, %309 : vector<8x8xf32>
    %311 = math.exp %310 : vector<8x8xf32>
    %cst_133 = arith.constant dense<0.000000e+00> : vector<8xf32>
    %312 = vector.multi_reduction <add>, %311, %cst_133 [1] : vector<8x8xf32> to vector<8xf32>
    %313 = vector.shape_cast %312 : vector<8xf32> to vector<8x1xf32>
    %314 = tpu.reciprocal %313 {approx = true} : vector<8x1xf32> -> vector<8x1xf32>
    %315 = vector.broadcast %314 : vector<8x1xf32> to vector<8x8xf32>
    %316 = arith.mulf %311, %315 : vector<8x8xf32>
    %317 = arith.truncf %316 : vector<8x8xf32> to vector<8x8xbf16>
    %318 = vector.extract_strided_slice %246 {offsets = [0, 48], sizes = [8, 16], strides = [1, 1]} : vector<8x128xbf16> to vector<8x16xbf16>
    %cst_134 = arith.constant dense<0.000000e+00> : vector<8x16xf32>
    %319 = tpu.matmul %317, %318, %cst_134 {dimension_numbers = #tpu.dot_dimension_numbers<[1], [0], [0], [1], [0, 0, 1, 1], [], []>} : vector<8x8xbf16>, vector<8x16xbf16>, vector<8x16xf32> -> vector<8x16xf32>
    %c0_135 = arith.constant 0 : index
    %c48_136 = arith.constant 48 : index
    %320 = vector.load %arg20[%c0_135, %c48_136] : memref<16x128xf32, #tpu.memory_space<vmem>>, vector<8x16xf32>
    tpu.vector_store %arg20[%c0_135, %c48_136], %319 {strides = array<i32>} : memref<16x128xf32, #tpu.memory_space<vmem>>, vector<8x16xf32>,
    %321 = vector.extract_strided_slice %230 {offsets = [0, 64], sizes = [8, 16], strides = [1, 1]} : vector<8x128xbf16> to vector<8x16xbf16>
    %322 = vector.extract_strided_slice %238 {offsets = [0, 64], sizes = [8, 16], strides = [1, 1]} : vector<8x128xbf16> to vector<8x16xbf16>
    %cst_137 = arith.constant dense<0.000000e+00> : vector<8x8xf32>
    %323 = tpu.matmul %321, %322, %cst_137 {dimension_numbers = #tpu.dot_dimension_numbers<[1], [1], [0], [0], [0, 0, 1, 0], [], []>} : vector<8x16xbf16>, vector<8x16xbf16>, vector<8x8xf32> -> vector<8x8xf32>
    %324 = arith.addf %323, %248 : vector<8x8xf32>
    %cst_138 = arith.constant dense<0xFF800000> : vector<8xf32>
    %325 = vector.multi_reduction <maximumf>, %324, %cst_138 [1] : vector<8x8xf32> to vector<8xf32>
    %326 = vector.shape_cast %325 : vector<8xf32> to vector<8x1xf32>
    %327 = vector.broadcast %326 : vector<8x1xf32> to vector<8x8xf32>
    %328 = arith.subf %324, %327 : vector<8x8xf32>
    %329 = math.exp %328 : vector<8x8xf32>
    %cst_139 = arith.constant dense<0.000000e+00> : vector<8xf32>
    %330 = vector.multi_reduction <add>, %329, %cst_139 [1] : vector<8x8xf32> to vector<8xf32>
    %331 = vector.shape_cast %330 : vector<8xf32> to vector<8x1xf32>
    %332 = tpu.reciprocal %331 {approx = true} : vector<8x1xf32> -> vector<8x1xf32>
    %333 = vector.broadcast %332 : vector<8x1xf32> to vector<8x8xf32>
    %334 = arith.mulf %329, %333 : vector<8x8xf32>
    %335 = arith.truncf %334 : vector<8x8xf32> to vector<8x8xbf16>
    %336 = vector.extract_strided_slice %246 {offsets = [0, 64], sizes = [8, 16], strides = [1, 1]} : vector<8x128xbf16> to vector<8x16xbf16>
    %cst_140 = arith.constant dense<0.000000e+00> : vector<8x16xf32>
    %337 = tpu.matmul %335, %336, %cst_140 {dimension_numbers = #tpu.dot_dimension_numbers<[1], [0], [0], [1], [0, 0, 1, 1], [], []>} : vector<8x8xbf16>, vector<8x16xbf16>, vector<8x16xf32> -> vector<8x16xf32>
    %c0_141 = arith.constant 0 : index
    %c64_142 = arith.constant 64 : index
    %338 = vector.load %arg20[%c0_141, %c64_142] : memref<16x128xf32, #tpu.memory_space<vmem>>, vector<8x16xf32>
    tpu.vector_store %arg20[%c0_141, %c64_142], %337 {strides = array<i32>} : memref<16x128xf32, #tpu.memory_space<vmem>>, vector<8x16xf32>,
    %339 = vector.extract_strided_slice %230 {offsets = [0, 80], sizes = [8, 16], strides = [1, 1]} : vector<8x128xbf16> to vector<8x16xbf16>
    %340 = vector.extract_strided_slice %238 {offsets = [0, 80], sizes = [8, 16], strides = [1, 1]} : vector<8x128xbf16> to vector<8x16xbf16>
    %cst_143 = arith.constant dense<0.000000e+00> : vector<8x8xf32>
    %341 = tpu.matmul %339, %340, %cst_143 {dimension_numbers = #tpu.dot_dimension_numbers<[1], [1], [0], [0], [0, 0, 1, 0], [], []>} : vector<8x16xbf16>, vector<8x16xbf16>, vector<8x8xf32> -> vector<8x8xf32>
    %342 = arith.addf %341, %248 : vector<8x8xf32>
    %cst_144 = arith.constant dense<0xFF800000> : vector<8xf32>
    %343 = vector.multi_reduction <maximumf>, %342, %cst_144 [1] : vector<8x8xf32> to vector<8xf32>
    %344 = vector.shape_cast %343 : vector<8xf32> to vector<8x1xf32>
    %345 = vector.broadcast %344 : vector<8x1xf32> to vector<8x8xf32>
    %346 = arith.subf %342, %345 : vector<8x8xf32>
    %347 = math.exp %346 : vector<8x8xf32>
    %cst_145 = arith.constant dense<0.000000e+00> : vector<8xf32>
    %348 = vector.multi_reduction <add>, %347, %cst_145 [1] : vector<8x8xf32> to vector<8xf32>
    %349 = vector.shape_cast %348 : vector<8xf32> to vector<8x1xf32>
    %350 = tpu.reciprocal %349 {approx = true} : vector<8x1xf32> -> vector<8x1xf32>
    %351 = vector.broadcast %350 : vector<8x1xf32> to vector<8x8xf32>
    %352 = arith.mulf %347, %351 : vector<8x8xf32>
    %353 = arith.truncf %352 : vector<8x8xf32> to vector<8x8xbf16>
    %354 = vector.extract_strided_slice %246 {offsets = [0, 80], sizes = [8, 16], strides = [1, 1]} : vector<8x128xbf16> to vector<8x16xbf16>
    %cst_146 = arith.constant dense<0.000000e+00> : vector<8x16xf32>
    %355 = tpu.matmul %353, %354, %cst_146 {dimension_numbers = #tpu.dot_dimension_numbers<[1], [0], [0], [1], [0, 0, 1, 1], [], []>} : vector<8x8xbf16>, vector<8x16xbf16>, vector<8x16xf32> -> vector<8x16xf32>
    %c0_147 = arith.constant 0 : index
    %c80_148 = arith.constant 80 : index
    %356 = vector.load %arg20[%c0_147, %c80_148] : memref<16x128xf32, #tpu.memory_space<vmem>>, vector<8x16xf32>
    tpu.vector_store %arg20[%c0_147, %c80_148], %355 {strides = array<i32>} : memref<16x128xf32, #tpu.memory_space<vmem>>, vector<8x16xf32>,
    %357 = vector.extract_strided_slice %230 {offsets = [0, 96], sizes = [8, 16], strides = [1, 1]} : vector<8x128xbf16> to vector<8x16xbf16>
    %358 = vector.extract_strided_slice %238 {offsets = [0, 96], sizes = [8, 16], strides = [1, 1]} : vector<8x128xbf16> to vector<8x16xbf16>
    %cst_149 = arith.constant dense<0.000000e+00> : vector<8x8xf32>
    %359 = tpu.matmul %357, %358, %cst_149 {dimension_numbers = #tpu.dot_dimension_numbers<[1], [1], [0], [0], [0, 0, 1, 0], [], []>} : vector<8x16xbf16>, vector<8x16xbf16>, vector<8x8xf32> -> vector<8x8xf32>
    %360 = arith.addf %359, %248 : vector<8x8xf32>
    %cst_150 = arith.constant dense<0xFF800000> : vector<8xf32>
    %361 = vector.multi_reduction <maximumf>, %360, %cst_150 [1] : vector<8x8xf32> to vector<8xf32>
    %362 = vector.shape_cast %361 : vector<8xf32> to vector<8x1xf32>
    %363 = vector.broadcast %362 : vector<8x1xf32> to vector<8x8xf32>
    %364 = arith.subf %360, %363 : vector<8x8xf32>
    %365 = math.exp %364 : vector<8x8xf32>
    %cst_151 = arith.constant dense<0.000000e+00> : vector<8xf32>
    %366 = vector.multi_reduction <add>, %365, %cst_151 [1] : vector<8x8xf32> to vector<8xf32>
    %367 = vector.shape_cast %366 : vector<8xf32> to vector<8x1xf32>
    %368 = tpu.reciprocal %367 {approx = true} : vector<8x1xf32> -> vector<8x1xf32>
    %369 = vector.broadcast %368 : vector<8x1xf32> to vector<8x8xf32>
    %370 = arith.mulf %365, %369 : vector<8x8xf32>
    %371 = arith.truncf %370 : vector<8x8xf32> to vector<8x8xbf16>
    %372 = vector.extract_strided_slice %246 {offsets = [0, 96], sizes = [8, 16], strides = [1, 1]} : vector<8x128xbf16> to vector<8x16xbf16>
    %cst_152 = arith.constant dense<0.000000e+00> : vector<8x16xf32>
    %373 = tpu.matmul %371, %372, %cst_152 {dimension_numbers = #tpu.dot_dimension_numbers<[1], [0], [0], [1], [0, 0, 1, 1], [], []>} : vector<8x8xbf16>, vector<8x16xbf16>, vector<8x16xf32> -> vector<8x16xf32>
    %c0_153 = arith.constant 0 : index
    %c96_154 = arith.constant 96 : index
    %374 = vector.load %arg20[%c0_153, %c96_154] : memref<16x128xf32, #tpu.memory_space<vmem>>, vector<8x16xf32>
    tpu.vector_store %arg20[%c0_153, %c96_154], %373 {strides = array<i32>} : memref<16x128xf32, #tpu.memory_space<vmem>>, vector<8x16xf32>,
    %375 = vector.extract_strided_slice %230 {offsets = [0, 112], sizes = [8, 16], strides = [1, 1]} : vector<8x128xbf16> to vector<8x16xbf16>
    %376 = vector.extract_strided_slice %238 {offsets = [0, 112], sizes = [8, 16], strides = [1, 1]} : vector<8x128xbf16> to vector<8x16xbf16>
    %cst_155 = arith.constant dense<0.000000e+00> : vector<8x8xf32>
    %377 = tpu.matmul %375, %376, %cst_155 {dimension_numbers = #tpu.dot_dimension_numbers<[1], [1], [0], [0], [0, 0, 1, 0], [], []>} : vector<8x16xbf16>, vector<8x16xbf16>, vector<8x8xf32> -> vector<8x8xf32>
    %378 = arith.addf %377, %248 : vector<8x8xf32>
    %cst_156 = arith.constant dense<0xFF800000> : vector<8xf32>
    %379 = vector.multi_reduction <maximumf>, %378, %cst_156 [1] : vector<8x8xf32> to vector<8xf32>
    %380 = vector.shape_cast %379 : vector<8xf32> to vector<8x1xf32>
    %381 = vector.broadcast %380 : vector<8x1xf32> to vector<8x8xf32>
    %382 = arith.subf %378, %381 : vector<8x8xf32>
    %383 = math.exp %382 : vector<8x8xf32>
    %cst_157 = arith.constant dense<0.000000e+00> : vector<8xf32>
    %384 = vector.multi_reduction <add>, %383, %cst_157 [1] : vector<8x8xf32> to vector<8xf32>
    %385 = vector.shape_cast %384 : vector<8xf32> to vector<8x1xf32>
    %386 = tpu.reciprocal %385 {approx = true} : vector<8x1xf32> -> vector<8x1xf32>
    %387 = vector.broadcast %386 : vector<8x1xf32> to vector<8x8xf32>
    %388 = arith.mulf %383, %387 : vector<8x8xf32>
    %389 = arith.truncf %388 : vector<8x8xf32> to vector<8x8xbf16>
    %390 = vector.extract_strided_slice %246 {offsets = [0, 112], sizes = [8, 16], strides = [1, 1]} : vector<8x128xbf16> to vector<8x16xbf16>
    %cst_158 = arith.constant dense<0.000000e+00> : vector<8x16xf32>
    %391 = tpu.matmul %389, %390, %cst_158 {dimension_numbers = #tpu.dot_dimension_numbers<[1], [0], [0], [1], [0, 0, 1, 1], [], []>} : vector<8x8xbf16>, vector<8x16xbf16>, vector<8x16xf32> -> vector<8x16xf32>
    %c0_159 = arith.constant 0 : index
    %c112_160 = arith.constant 112 : index
    %392 = vector.load %arg20[%c0_159, %c112_160] : memref<16x128xf32, #tpu.memory_space<vmem>>, vector<8x16xf32>
    tpu.vector_store %arg20[%c0_159, %c112_160], %391 {strides = array<i32>} : memref<16x128xf32, #tpu.memory_space<vmem>>, vector<8x16xf32>,
    %c0_161 = arith.constant 0 : index
    %c0_162 = arith.constant 0 : index
    %393 = vector.load %arg20[%c0_161, %c0_162] : memref<16x128xf32, #tpu.memory_space<vmem>>, vector<8x128xf32>
    %394 = arith.truncf %393 : vector<8x128xf32> to vector<8x128xbf16>
    %c1_163 = arith.constant 1 : index
    %c0_164 = arith.constant 0 : index
    %c0_165 = arith.constant 0 : index
    %395 = vector.load %arg8[%c1_163, %c0_164, %c0_165] : memref<4x128x128xbf16, #tpu.memory_space<vmem>>, vector<1x128x128xbf16>
    %396 = vector.shape_cast %395 : vector<1x128x128xbf16> to vector<128x128xbf16>
    %cst_166 = arith.constant dense<0.000000e+00> : vector<8x128xf32>
    %397 = tpu.matmul %394, %396, %cst_166 {dimension_numbers = #tpu.dot_dimension_numbers<[1], [0], [0], [1], [0, 0, 1, 1], [], []>} : vector<8x128xbf16>, vector<128x128xbf16>, vector<8x128xf32> -> vector<8x128xf32>
    %c1_167 = arith.constant 1 : index
    %c0_168 = arith.constant 0 : index
    %c0_169 = arith.constant 0 : index
    %398 = vector.load %arg9[%c1_167, %c0_168, %c0_169] : memref<4x1x128xf32, #tpu.memory_space<vmem>>, vector<1x1x128xf32>
    %399 = vector.shape_cast %398 : vector<1x1x128xf32> to vector<1x128xf32>
    %400 = vector.broadcast %399 : vector<1x128xf32> to vector<8x128xf32>
    %401 = arith.addf %397, %400 : vector<8x128xf32>
    %402 = arith.addf %5, %401 : vector<8x128xf32>
    %c1_170 = arith.constant 1 : index
    %c0_171 = arith.constant 0 : index
    %c0_172 = arith.constant 0 : index
    %403 = vector.load %arg10[%c1_170, %c0_171, %c0_172] : memref<4x1x128xf32, #tpu.memory_space<vmem>>, vector<1x1x128xf32>
    %404 = vector.shape_cast %403 : vector<1x1x128xf32> to vector<1x128xf32>
    %c1_173 = arith.constant 1 : index
    %c0_174 = arith.constant 0 : index
    %c0_175 = arith.constant 0 : index
    %405 = vector.load %arg11[%c1_173, %c0_174, %c0_175] : memref<4x1x128xf32, #tpu.memory_space<vmem>>, vector<1x1x128xf32>
    %406 = vector.shape_cast %405 : vector<1x1x128xf32> to vector<1x128xf32>
    %cst_176 = arith.constant dense<0.000000e+00> : vector<8xf32>
    %407 = vector.multi_reduction <add>, %402, %cst_176 [1] : vector<8x128xf32> to vector<8xf32>
    %408 = vector.shape_cast %407 : vector<8xf32> to vector<8x1xf32>
    %cst_177 = arith.constant 1.280000e+02 : f32
    %409 = vector.broadcast %cst_177 : f32 to vector<8x1xf32>
    %410 = arith.divf %408, %409 : vector<8x1xf32>
    %411 = vector.broadcast %410 : vector<8x1xf32> to vector<8x128xf32>
    %412 = arith.subf %402, %411 : vector<8x128xf32>
    %413 = arith.mulf %412, %412 : vector<8x128xf32>
    %cst_178 = arith.constant dense<0.000000e+00> : vector<8xf32>
    %414 = vector.multi_reduction <add>, %413, %cst_178 [1] : vector<8x128xf32> to vector<8xf32>
    %415 = vector.shape_cast %414 : vector<8xf32> to vector<8x1xf32>
    %cst_179 = arith.constant 1.280000e+02 : f32
    %416 = vector.broadcast %cst_179 : f32 to vector<8x1xf32>
    %417 = arith.divf %415, %416 : vector<8x1xf32>
    %418 = vector.broadcast %410 : vector<8x1xf32> to vector<8x128xf32>
    %419 = arith.subf %402, %418 : vector<8x128xf32>
    %cst_180 = arith.constant 9.99999974E-6 : f32
    %420 = vector.broadcast %cst_180 : f32 to vector<8x1xf32>
    %421 = arith.addf %417, %420 : vector<8x1xf32>
    %422 = math.rsqrt %421 : vector<8x1xf32>
    %423 = vector.broadcast %422 : vector<8x1xf32> to vector<8x128xf32>
    %424 = arith.mulf %419, %423 : vector<8x128xf32>
    %425 = vector.broadcast %404 : vector<1x128xf32> to vector<8x128xf32>
    %426 = arith.mulf %424, %425 : vector<8x128xf32>
    %427 = vector.broadcast %406 : vector<1x128xf32> to vector<8x128xf32>
    %428 = arith.addf %426, %427 : vector<8x128xf32>
    %429 = arith.addf %219, %3 : vector<16x128xf32>
    %430 = arith.truncf %428 : vector<8x128xf32> to vector<8x128xbf16>
    %431 = arith.truncf %219 : vector<16x128xf32> to vector<16x128xbf16>
    %432 = arith.truncf %219 : vector<16x128xf32> to vector<16x128xbf16>
    %c2 = arith.constant 2 : index
    %c0_181 = arith.constant 0 : index
    %c0_182 = arith.constant 0 : index
    %433 = vector.load %arg6[%c2, %c0_181, %c0_182] : memref<4x128x384xbf16, #tpu.memory_space<vmem>>, vector<1x128x128xbf16>
    %434 = vector.shape_cast %433 : vector<1x128x128xbf16> to vector<128x128xbf16>
    %cst_183 = arith.constant dense<0.000000e+00> : vector<8x128xf32>
    %435 = tpu.matmul %430, %434, %cst_183 {dimension_numbers = #tpu.dot_dimension_numbers<[1], [0], [0], [1], [0, 0, 1, 1], [], []>} : vector<8x128xbf16>, vector<128x128xbf16>, vector<8x128xf32> -> vector<8x128xf32>
    %c2_184 = arith.constant 2 : index
    %c0_185 = arith.constant 0 : index
    %c0_186 = arith.constant 0 : index
    %436 = vector.load %arg7[%c2_184, %c0_185, %c0_186] : memref<4x1x384xf32, #tpu.memory_space<vmem>>, vector<1x1x128xf32>
    %437 = vector.shape_cast %436 : vector<1x1x128xf32> to vector<1x128xf32>
    %438 = vector.broadcast %437 : vector<1x128xf32> to vector<8x128xf32>
    %439 = arith.addf %435, %438 : vector<8x128xf32>
    %440 = arith.truncf %439 : vector<8x128xf32> to vector<8x128xbf16>
    %c2_187 = arith.constant 2 : index
    %c0_188 = arith.constant 0 : index
    %c128_189 = arith.constant 128 : index
    %441 = vector.load %arg6[%c2_187, %c0_188, %c128_189] : memref<4x128x384xbf16, #tpu.memory_space<vmem>>, vector<1x128x128xbf16>
    %442 = vector.shape_cast %441 : vector<1x128x128xbf16> to vector<128x128xbf16>
    %cst_190 = arith.constant dense<0.000000e+00> : vector<16x128xf32>
    %443 = tpu.matmul %431, %442, %cst_190 {dimension_numbers = #tpu.dot_dimension_numbers<[1], [0], [0], [1], [0, 0, 1, 1], [], []>} : vector<16x128xbf16>, vector<128x128xbf16>, vector<16x128xf32> -> vector<16x128xf32>
    %c2_191 = arith.constant 2 : index
    %c0_192 = arith.constant 0 : index
    %c128_193 = arith.constant 128 : index
    %444 = vector.load %arg7[%c2_191, %c0_192, %c128_193] : memref<4x1x384xf32, #tpu.memory_space<vmem>>, vector<1x1x128xf32>
    %445 = vector.shape_cast %444 : vector<1x1x128xf32> to vector<1x128xf32>
    %446 = vector.broadcast %445 : vector<1x128xf32> to vector<16x128xf32>
    %447 = arith.addf %443, %446 : vector<16x128xf32>
    %448 = arith.truncf %447 : vector<16x128xf32> to vector<16x128xbf16>
    %c2_194 = arith.constant 2 : index
    %c0_195 = arith.constant 0 : index
    %c256_196 = arith.constant 256 : index
    %449 = vector.load %arg6[%c2_194, %c0_195, %c256_196] : memref<4x128x384xbf16, #tpu.memory_space<vmem>>, vector<1x128x128xbf16>
    %450 = vector.shape_cast %449 : vector<1x128x128xbf16> to vector<128x128xbf16>
    %cst_197 = arith.constant dense<0.000000e+00> : vector<16x128xf32>
    %451 = tpu.matmul %432, %450, %cst_197 {dimension_numbers = #tpu.dot_dimension_numbers<[1], [0], [0], [1], [0, 0, 1, 1], [], []>} : vector<16x128xbf16>, vector<128x128xbf16>, vector<16x128xf32> -> vector<16x128xf32>
    %c2_198 = arith.constant 2 : index
    %c0_199 = arith.constant 0 : index
    %c256_200 = arith.constant 256 : index
    %452 = vector.load %arg7[%c2_198, %c0_199, %c256_200] : memref<4x1x384xf32, #tpu.memory_space<vmem>>, vector<1x1x128xf32>
    %453 = vector.shape_cast %452 : vector<1x1x128xf32> to vector<1x128xf32>
    %454 = vector.broadcast %453 : vector<1x128xf32> to vector<16x128xf32>
    %455 = arith.addf %451, %454 : vector<16x128xf32>
    %456 = arith.truncf %455 : vector<16x128xf32> to vector<16x128xbf16>
    %457 = vector.shape_cast %7 : vector<1x16xf32> to vector<1x16xf32>
    %458 = vector.broadcast %457 : vector<1x16xf32> to vector<8x16xf32>
    %459 = vector.extract_strided_slice %440 {offsets = [0, 0], sizes = [8, 16], strides = [1, 1]} : vector<8x128xbf16> to vector<8x16xbf16>
    %460 = vector.extract_strided_slice %448 {offsets = [0, 0], sizes = [16, 16], strides = [1, 1]} : vector<16x128xbf16> to vector<16x16xbf16>
    %cst_201 = arith.constant dense<0.000000e+00> : vector<8x16xf32>
    %461 = tpu.matmul %459, %460, %cst_201 {dimension_numbers = #tpu.dot_dimension_numbers<[1], [1], [0], [0], [0, 0, 1, 0], [], []>} : vector<8x16xbf16>, vector<16x16xbf16>, vector<8x16xf32> -> vector<8x16xf32>
    %462 = arith.addf %461, %458 : vector<8x16xf32>
    %cst_202 = arith.constant dense<0xFF800000> : vector<8xf32>
    %463 = vector.multi_reduction <maximumf>, %462, %cst_202 [1] : vector<8x16xf32> to vector<8xf32>
    %464 = vector.shape_cast %463 : vector<8xf32> to vector<8x1xf32>
    %465 = vector.broadcast %464 : vector<8x1xf32> to vector<8x16xf32>
    %466 = arith.subf %462, %465 : vector<8x16xf32>
    %467 = math.exp %466 : vector<8x16xf32>
    %cst_203 = arith.constant dense<0.000000e+00> : vector<8xf32>
    %468 = vector.multi_reduction <add>, %467, %cst_203 [1] : vector<8x16xf32> to vector<8xf32>
    %469 = vector.shape_cast %468 : vector<8xf32> to vector<8x1xf32>
    %470 = tpu.reciprocal %469 {approx = true} : vector<8x1xf32> -> vector<8x1xf32>
    %471 = vector.broadcast %470 : vector<8x1xf32> to vector<8x16xf32>
    %472 = arith.mulf %467, %471 : vector<8x16xf32>
    %473 = arith.truncf %472 : vector<8x16xf32> to vector<8x16xbf16>
    %474 = vector.extract_strided_slice %456 {offsets = [0, 0], sizes = [16, 16], strides = [1, 1]} : vector<16x128xbf16> to vector<16x16xbf16>
    %cst_204 = arith.constant dense<0.000000e+00> : vector<8x16xf32>
    %475 = tpu.matmul %473, %474, %cst_204 {dimension_numbers = #tpu.dot_dimension_numbers<[1], [0], [0], [1], [0, 0, 1, 1], [], []>} : vector<8x16xbf16>, vector<16x16xbf16>, vector<8x16xf32> -> vector<8x16xf32>
    %c0_205 = arith.constant 0 : index
    %c0_206 = arith.constant 0 : index
    %476 = vector.load %arg20[%c0_205, %c0_206] : memref<16x128xf32, #tpu.memory_space<vmem>>, vector<8x16xf32>
    tpu.vector_store %arg20[%c0_205, %c0_206], %475 {strides = array<i32>} : memref<16x128xf32, #tpu.memory_space<vmem>>, vector<8x16xf32>,
    %477 = vector.extract_strided_slice %440 {offsets = [0, 16], sizes = [8, 16], strides = [1, 1]} : vector<8x128xbf16> to vector<8x16xbf16>
    %478 = vector.extract_strided_slice %448 {offsets = [0, 16], sizes = [16, 16], strides = [1, 1]} : vector<16x128xbf16> to vector<16x16xbf16>
    %cst_207 = arith.constant dense<0.000000e+00> : vector<8x16xf32>
    %479 = tpu.matmul %477, %478, %cst_207 {dimension_numbers = #tpu.dot_dimension_numbers<[1], [1], [0], [0], [0, 0, 1, 0], [], []>} : vector<8x16xbf16>, vector<16x16xbf16>, vector<8x16xf32> -> vector<8x16xf32>
    %480 = arith.addf %479, %458 : vector<8x16xf32>
    %cst_208 = arith.constant dense<0xFF800000> : vector<8xf32>
    %481 = vector.multi_reduction <maximumf>, %480, %cst_208 [1] : vector<8x16xf32> to vector<8xf32>
    %482 = vector.shape_cast %481 : vector<8xf32> to vector<8x1xf32>
    %483 = vector.broadcast %482 : vector<8x1xf32> to vector<8x16xf32>
    %484 = arith.subf %480, %483 : vector<8x16xf32>
    %485 = math.exp %484 : vector<8x16xf32>
    %cst_209 = arith.constant dense<0.000000e+00> : vector<8xf32>
    %486 = vector.multi_reduction <add>, %485, %cst_209 [1] : vector<8x16xf32> to vector<8xf32>
    %487 = vector.shape_cast %486 : vector<8xf32> to vector<8x1xf32>
    %488 = tpu.reciprocal %487 {approx = true} : vector<8x1xf32> -> vector<8x1xf32>
    %489 = vector.broadcast %488 : vector<8x1xf32> to vector<8x16xf32>
    %490 = arith.mulf %485, %489 : vector<8x16xf32>
    %491 = arith.truncf %490 : vector<8x16xf32> to vector<8x16xbf16>
    %492 = vector.extract_strided_slice %456 {offsets = [0, 16], sizes = [16, 16], strides = [1, 1]} : vector<16x128xbf16> to vector<16x16xbf16>
    %cst_210 = arith.constant dense<0.000000e+00> : vector<8x16xf32>
    %493 = tpu.matmul %491, %492, %cst_210 {dimension_numbers = #tpu.dot_dimension_numbers<[1], [0], [0], [1], [0, 0, 1, 1], [], []>} : vector<8x16xbf16>, vector<16x16xbf16>, vector<8x16xf32> -> vector<8x16xf32>
    %c0_211 = arith.constant 0 : index
    %c16_212 = arith.constant 16 : index
    %494 = vector.load %arg20[%c0_211, %c16_212] : memref<16x128xf32, #tpu.memory_space<vmem>>, vector<8x16xf32>
    tpu.vector_store %arg20[%c0_211, %c16_212], %493 {strides = array<i32>} : memref<16x128xf32, #tpu.memory_space<vmem>>, vector<8x16xf32>,
    %495 = vector.extract_strided_slice %440 {offsets = [0, 32], sizes = [8, 16], strides = [1, 1]} : vector<8x128xbf16> to vector<8x16xbf16>
    %496 = vector.extract_strided_slice %448 {offsets = [0, 32], sizes = [16, 16], strides = [1, 1]} : vector<16x128xbf16> to vector<16x16xbf16>
    %cst_213 = arith.constant dense<0.000000e+00> : vector<8x16xf32>
    %497 = tpu.matmul %495, %496, %cst_213 {dimension_numbers = #tpu.dot_dimension_numbers<[1], [1], [0], [0], [0, 0, 1, 0], [], []>} : vector<8x16xbf16>, vector<16x16xbf16>, vector<8x16xf32> -> vector<8x16xf32>
    %498 = arith.addf %497, %458 : vector<8x16xf32>
    %cst_214 = arith.constant dense<0xFF800000> : vector<8xf32>
    %499 = vector.multi_reduction <maximumf>, %498, %cst_214 [1] : vector<8x16xf32> to vector<8xf32>
    %500 = vector.shape_cast %499 : vector<8xf32> to vector<8x1xf32>
    %501 = vector.broadcast %500 : vector<8x1xf32> to vector<8x16xf32>
    %502 = arith.subf %498, %501 : vector<8x16xf32>
    %503 = math.exp %502 : vector<8x16xf32>
    %cst_215 = arith.constant dense<0.000000e+00> : vector<8xf32>
    %504 = vector.multi_reduction <add>, %503, %cst_215 [1] : vector<8x16xf32> to vector<8xf32>
    %505 = vector.shape_cast %504 : vector<8xf32> to vector<8x1xf32>
    %506 = tpu.reciprocal %505 {approx = true} : vector<8x1xf32> -> vector<8x1xf32>
    %507 = vector.broadcast %506 : vector<8x1xf32> to vector<8x16xf32>
    %508 = arith.mulf %503, %507 : vector<8x16xf32>
    %509 = arith.truncf %508 : vector<8x16xf32> to vector<8x16xbf16>
    %510 = vector.extract_strided_slice %456 {offsets = [0, 32], sizes = [16, 16], strides = [1, 1]} : vector<16x128xbf16> to vector<16x16xbf16>
    %cst_216 = arith.constant dense<0.000000e+00> : vector<8x16xf32>
    %511 = tpu.matmul %509, %510, %cst_216 {dimension_numbers = #tpu.dot_dimension_numbers<[1], [0], [0], [1], [0, 0, 1, 1], [], []>} : vector<8x16xbf16>, vector<16x16xbf16>, vector<8x16xf32> -> vector<8x16xf32>
    %c0_217 = arith.constant 0 : index
    %c32_218 = arith.constant 32 : index
    %512 = vector.load %arg20[%c0_217, %c32_218] : memref<16x128xf32, #tpu.memory_space<vmem>>, vector<8x16xf32>
    tpu.vector_store %arg20[%c0_217, %c32_218], %511 {strides = array<i32>} : memref<16x128xf32, #tpu.memory_space<vmem>>, vector<8x16xf32>,
    %513 = vector.extract_strided_slice %440 {offsets = [0, 48], sizes = [8, 16], strides = [1, 1]} : vector<8x128xbf16> to vector<8x16xbf16>
    %514 = vector.extract_strided_slice %448 {offsets = [0, 48], sizes = [16, 16], strides = [1, 1]} : vector<16x128xbf16> to vector<16x16xbf16>
    %cst_219 = arith.constant dense<0.000000e+00> : vector<8x16xf32>
    %515 = tpu.matmul %513, %514, %cst_219 {dimension_numbers = #tpu.dot_dimension_numbers<[1], [1], [0], [0], [0, 0, 1, 0], [], []>} : vector<8x16xbf16>, vector<16x16xbf16>, vector<8x16xf32> -> vector<8x16xf32>
    %516 = arith.addf %515, %458 : vector<8x16xf32>
    %cst_220 = arith.constant dense<0xFF800000> : vector<8xf32>
    %517 = vector.multi_reduction <maximumf>, %516, %cst_220 [1] : vector<8x16xf32> to vector<8xf32>
    %518 = vector.shape_cast %517 : vector<8xf32> to vector<8x1xf32>
    %519 = vector.broadcast %518 : vector<8x1xf32> to vector<8x16xf32>
    %520 = arith.subf %516, %519 : vector<8x16xf32>
    %521 = math.exp %520 : vector<8x16xf32>
    %cst_221 = arith.constant dense<0.000000e+00> : vector<8xf32>
    %522 = vector.multi_reduction <add>, %521, %cst_221 [1] : vector<8x16xf32> to vector<8xf32>
    %523 = vector.shape_cast %522 : vector<8xf32> to vector<8x1xf32>
    %524 = tpu.reciprocal %523 {approx = true} : vector<8x1xf32> -> vector<8x1xf32>
    %525 = vector.broadcast %524 : vector<8x1xf32> to vector<8x16xf32>
    %526 = arith.mulf %521, %525 : vector<8x16xf32>
    %527 = arith.truncf %526 : vector<8x16xf32> to vector<8x16xbf16>
    %528 = vector.extract_strided_slice %456 {offsets = [0, 48], sizes = [16, 16], strides = [1, 1]} : vector<16x128xbf16> to vector<16x16xbf16>
    %cst_222 = arith.constant dense<0.000000e+00> : vector<8x16xf32>
    %529 = tpu.matmul %527, %528, %cst_222 {dimension_numbers = #tpu.dot_dimension_numbers<[1], [0], [0], [1], [0, 0, 1, 1], [], []>} : vector<8x16xbf16>, vector<16x16xbf16>, vector<8x16xf32> -> vector<8x16xf32>
    %c0_223 = arith.constant 0 : index
    %c48_224 = arith.constant 48 : index
    %530 = vector.load %arg20[%c0_223, %c48_224] : memref<16x128xf32, #tpu.memory_space<vmem>>, vector<8x16xf32>
    tpu.vector_store %arg20[%c0_223, %c48_224], %529 {strides = array<i32>} : memref<16x128xf32, #tpu.memory_space<vmem>>, vector<8x16xf32>,
    %531 = vector.extract_strided_slice %440 {offsets = [0, 64], sizes = [8, 16], strides = [1, 1]} : vector<8x128xbf16> to vector<8x16xbf16>
    %532 = vector.extract_strided_slice %448 {offsets = [0, 64], sizes = [16, 16], strides = [1, 1]} : vector<16x128xbf16> to vector<16x16xbf16>
    %cst_225 = arith.constant dense<0.000000e+00> : vector<8x16xf32>
    %533 = tpu.matmul %531, %532, %cst_225 {dimension_numbers = #tpu.dot_dimension_numbers<[1], [1], [0], [0], [0, 0, 1, 0], [], []>} : vector<8x16xbf16>, vector<16x16xbf16>, vector<8x16xf32> -> vector<8x16xf32>
    %534 = arith.addf %533, %458 : vector<8x16xf32>
    %cst_226 = arith.constant dense<0xFF800000> : vector<8xf32>
    %535 = vector.multi_reduction <maximumf>, %534, %cst_226 [1] : vector<8x16xf32> to vector<8xf32>
    %536 = vector.shape_cast %535 : vector<8xf32> to vector<8x1xf32>
    %537 = vector.broadcast %536 : vector<8x1xf32> to vector<8x16xf32>
    %538 = arith.subf %534, %537 : vector<8x16xf32>
    %539 = math.exp %538 : vector<8x16xf32>
    %cst_227 = arith.constant dense<0.000000e+00> : vector<8xf32>
    %540 = vector.multi_reduction <add>, %539, %cst_227 [1] : vector<8x16xf32> to vector<8xf32>
    %541 = vector.shape_cast %540 : vector<8xf32> to vector<8x1xf32>
    %542 = tpu.reciprocal %541 {approx = true} : vector<8x1xf32> -> vector<8x1xf32>
    %543 = vector.broadcast %542 : vector<8x1xf32> to vector<8x16xf32>
    %544 = arith.mulf %539, %543 : vector<8x16xf32>
    %545 = arith.truncf %544 : vector<8x16xf32> to vector<8x16xbf16>
    %546 = vector.extract_strided_slice %456 {offsets = [0, 64], sizes = [16, 16], strides = [1, 1]} : vector<16x128xbf16> to vector<16x16xbf16>
    %cst_228 = arith.constant dense<0.000000e+00> : vector<8x16xf32>
    %547 = tpu.matmul %545, %546, %cst_228 {dimension_numbers = #tpu.dot_dimension_numbers<[1], [0], [0], [1], [0, 0, 1, 1], [], []>} : vector<8x16xbf16>, vector<16x16xbf16>, vector<8x16xf32> -> vector<8x16xf32>
    %c0_229 = arith.constant 0 : index
    %c64_230 = arith.constant 64 : index
    %548 = vector.load %arg20[%c0_229, %c64_230] : memref<16x128xf32, #tpu.memory_space<vmem>>, vector<8x16xf32>
    tpu.vector_store %arg20[%c0_229, %c64_230], %547 {strides = array<i32>} : memref<16x128xf32, #tpu.memory_space<vmem>>, vector<8x16xf32>,
    %549 = vector.extract_strided_slice %440 {offsets = [0, 80], sizes = [8, 16], strides = [1, 1]} : vector<8x128xbf16> to vector<8x16xbf16>
    %550 = vector.extract_strided_slice %448 {offsets = [0, 80], sizes = [16, 16], strides = [1, 1]} : vector<16x128xbf16> to vector<16x16xbf16>
    %cst_231 = arith.constant dense<0.000000e+00> : vector<8x16xf32>
    %551 = tpu.matmul %549, %550, %cst_231 {dimension_numbers = #tpu.dot_dimension_numbers<[1], [1], [0], [0], [0, 0, 1, 0], [], []>} : vector<8x16xbf16>, vector<16x16xbf16>, vector<8x16xf32> -> vector<8x16xf32>
    %552 = arith.addf %551, %458 : vector<8x16xf32>
    %cst_232 = arith.constant dense<0xFF800000> : vector<8xf32>
    %553 = vector.multi_reduction <maximumf>, %552, %cst_232 [1] : vector<8x16xf32> to vector<8xf32>
    %554 = vector.shape_cast %553 : vector<8xf32> to vector<8x1xf32>
    %555 = vector.broadcast %554 : vector<8x1xf32> to vector<8x16xf32>
    %556 = arith.subf %552, %555 : vector<8x16xf32>
    %557 = math.exp %556 : vector<8x16xf32>
    %cst_233 = arith.constant dense<0.000000e+00> : vector<8xf32>
    %558 = vector.multi_reduction <add>, %557, %cst_233 [1] : vector<8x16xf32> to vector<8xf32>
    %559 = vector.shape_cast %558 : vector<8xf32> to vector<8x1xf32>
    %560 = tpu.reciprocal %559 {approx = true} : vector<8x1xf32> -> vector<8x1xf32>
    %561 = vector.broadcast %560 : vector<8x1xf32> to vector<8x16xf32>
    %562 = arith.mulf %557, %561 : vector<8x16xf32>
    %563 = arith.truncf %562 : vector<8x16xf32> to vector<8x16xbf16>
    %564 = vector.extract_strided_slice %456 {offsets = [0, 80], sizes = [16, 16], strides = [1, 1]} : vector<16x128xbf16> to vector<16x16xbf16>
    %cst_234 = arith.constant dense<0.000000e+00> : vector<8x16xf32>
    %565 = tpu.matmul %563, %564, %cst_234 {dimension_numbers = #tpu.dot_dimension_numbers<[1], [0], [0], [1], [0, 0, 1, 1], [], []>} : vector<8x16xbf16>, vector<16x16xbf16>, vector<8x16xf32> -> vector<8x16xf32>
    %c0_235 = arith.constant 0 : index
    %c80_236 = arith.constant 80 : index
    %566 = vector.load %arg20[%c0_235, %c80_236] : memref<16x128xf32, #tpu.memory_space<vmem>>, vector<8x16xf32>
    tpu.vector_store %arg20[%c0_235, %c80_236], %565 {strides = array<i32>} : memref<16x128xf32, #tpu.memory_space<vmem>>, vector<8x16xf32>,
    %567 = vector.extract_strided_slice %440 {offsets = [0, 96], sizes = [8, 16], strides = [1, 1]} : vector<8x128xbf16> to vector<8x16xbf16>
    %568 = vector.extract_strided_slice %448 {offsets = [0, 96], sizes = [16, 16], strides = [1, 1]} : vector<16x128xbf16> to vector<16x16xbf16>
    %cst_237 = arith.constant dense<0.000000e+00> : vector<8x16xf32>
    %569 = tpu.matmul %567, %568, %cst_237 {dimension_numbers = #tpu.dot_dimension_numbers<[1], [1], [0], [0], [0, 0, 1, 0], [], []>} : vector<8x16xbf16>, vector<16x16xbf16>, vector<8x16xf32> -> vector<8x16xf32>
    %570 = arith.addf %569, %458 : vector<8x16xf32>
    %cst_238 = arith.constant dense<0xFF800000> : vector<8xf32>
    %571 = vector.multi_reduction <maximumf>, %570, %cst_238 [1] : vector<8x16xf32> to vector<8xf32>
    %572 = vector.shape_cast %571 : vector<8xf32> to vector<8x1xf32>
    %573 = vector.broadcast %572 : vector<8x1xf32> to vector<8x16xf32>
    %574 = arith.subf %570, %573 : vector<8x16xf32>
    %575 = math.exp %574 : vector<8x16xf32>
    %cst_239 = arith.constant dense<0.000000e+00> : vector<8xf32>
    %576 = vector.multi_reduction <add>, %575, %cst_239 [1] : vector<8x16xf32> to vector<8xf32>
    %577 = vector.shape_cast %576 : vector<8xf32> to vector<8x1xf32>
    %578 = tpu.reciprocal %577 {approx = true} : vector<8x1xf32> -> vector<8x1xf32>
    %579 = vector.broadcast %578 : vector<8x1xf32> to vector<8x16xf32>
    %580 = arith.mulf %575, %579 : vector<8x16xf32>
    %581 = arith.truncf %580 : vector<8x16xf32> to vector<8x16xbf16>
    %582 = vector.extract_strided_slice %456 {offsets = [0, 96], sizes = [16, 16], strides = [1, 1]} : vector<16x128xbf16> to vector<16x16xbf16>
    %cst_240 = arith.constant dense<0.000000e+00> : vector<8x16xf32>
    %583 = tpu.matmul %581, %582, %cst_240 {dimension_numbers = #tpu.dot_dimension_numbers<[1], [0], [0], [1], [0, 0, 1, 1], [], []>} : vector<8x16xbf16>, vector<16x16xbf16>, vector<8x16xf32> -> vector<8x16xf32>
    %c0_241 = arith.constant 0 : index
    %c96_242 = arith.constant 96 : index
    %584 = vector.load %arg20[%c0_241, %c96_242] : memref<16x128xf32, #tpu.memory_space<vmem>>, vector<8x16xf32>
    tpu.vector_store %arg20[%c0_241, %c96_242], %583 {strides = array<i32>} : memref<16x128xf32, #tpu.memory_space<vmem>>, vector<8x16xf32>,
    %585 = vector.extract_strided_slice %440 {offsets = [0, 112], sizes = [8, 16], strides = [1, 1]} : vector<8x128xbf16> to vector<8x16xbf16>
    %586 = vector.extract_strided_slice %448 {offsets = [0, 112], sizes = [16, 16], strides = [1, 1]} : vector<16x128xbf16> to vector<16x16xbf16>
    %cst_243 = arith.constant dense<0.000000e+00> : vector<8x16xf32>
    %587 = tpu.matmul %585, %586, %cst_243 {dimension_numbers = #tpu.dot_dimension_numbers<[1], [1], [0], [0], [0, 0, 1, 0], [], []>} : vector<8x16xbf16>, vector<16x16xbf16>, vector<8x16xf32> -> vector<8x16xf32>
    %588 = arith.addf %587, %458 : vector<8x16xf32>
    %cst_244 = arith.constant dense<0xFF800000> : vector<8xf32>
    %589 = vector.multi_reduction <maximumf>, %588, %cst_244 [1] : vector<8x16xf32> to vector<8xf32>
    %590 = vector.shape_cast %589 : vector<8xf32> to vector<8x1xf32>
    %591 = vector.broadcast %590 : vector<8x1xf32> to vector<8x16xf32>
    %592 = arith.subf %588, %591 : vector<8x16xf32>
    %593 = math.exp %592 : vector<8x16xf32>
    %cst_245 = arith.constant dense<0.000000e+00> : vector<8xf32>
    %594 = vector.multi_reduction <add>, %593, %cst_245 [1] : vector<8x16xf32> to vector<8xf32>
    %595 = vector.shape_cast %594 : vector<8xf32> to vector<8x1xf32>
    %596 = tpu.reciprocal %595 {approx = true} : vector<8x1xf32> -> vector<8x1xf32>
    %597 = vector.broadcast %596 : vector<8x1xf32> to vector<8x16xf32>
    %598 = arith.mulf %593, %597 : vector<8x16xf32>
    %599 = arith.truncf %598 : vector<8x16xf32> to vector<8x16xbf16>
    %600 = vector.extract_strided_slice %456 {offsets = [0, 112], sizes = [16, 16], strides = [1, 1]} : vector<16x128xbf16> to vector<16x16xbf16>
    %cst_246 = arith.constant dense<0.000000e+00> : vector<8x16xf32>
    %601 = tpu.matmul %599, %600, %cst_246 {dimension_numbers = #tpu.dot_dimension_numbers<[1], [0], [0], [1], [0, 0, 1, 1], [], []>} : vector<8x16xbf16>, vector<16x16xbf16>, vector<8x16xf32> -> vector<8x16xf32>
    %c0_247 = arith.constant 0 : index
    %c112_248 = arith.constant 112 : index
    %602 = vector.load %arg20[%c0_247, %c112_248] : memref<16x128xf32, #tpu.memory_space<vmem>>, vector<8x16xf32>
    tpu.vector_store %arg20[%c0_247, %c112_248], %601 {strides = array<i32>} : memref<16x128xf32, #tpu.memory_space<vmem>>, vector<8x16xf32>,
    %c0_249 = arith.constant 0 : index
    %c0_250 = arith.constant 0 : index
    %603 = vector.load %arg20[%c0_249, %c0_250] : memref<16x128xf32, #tpu.memory_space<vmem>>, vector<8x128xf32>
    %604 = arith.truncf %603 : vector<8x128xf32> to vector<8x128xbf16>
    %c2_251 = arith.constant 2 : index
    %c0_252 = arith.constant 0 : index
    %c0_253 = arith.constant 0 : index
    %605 = vector.load %arg8[%c2_251, %c0_252, %c0_253] : memref<4x128x128xbf16, #tpu.memory_space<vmem>>, vector<1x128x128xbf16>
    %606 = vector.shape_cast %605 : vector<1x128x128xbf16> to vector<128x128xbf16>
    %cst_254 = arith.constant dense<0.000000e+00> : vector<8x128xf32>
    %607 = tpu.matmul %604, %606, %cst_254 {dimension_numbers = #tpu.dot_dimension_numbers<[1], [0], [0], [1], [0, 0, 1, 1], [], []>} : vector<8x128xbf16>, vector<128x128xbf16>, vector<8x128xf32> -> vector<8x128xf32>
    %c2_255 = arith.constant 2 : index
    %c0_256 = arith.constant 0 : index
    %c0_257 = arith.constant 0 : index
    %608 = vector.load %arg9[%c2_255, %c0_256, %c0_257] : memref<4x1x128xf32, #tpu.memory_space<vmem>>, vector<1x1x128xf32>
    %609 = vector.shape_cast %608 : vector<1x1x128xf32> to vector<1x128xf32>
    %610 = vector.broadcast %609 : vector<1x128xf32> to vector<8x128xf32>
    %611 = arith.addf %607, %610 : vector<8x128xf32>
    %612 = arith.addf %428, %611 : vector<8x128xf32>
    %c2_258 = arith.constant 2 : index
    %c0_259 = arith.constant 0 : index
    %c0_260 = arith.constant 0 : index
    %613 = vector.load %arg10[%c2_258, %c0_259, %c0_260] : memref<4x1x128xf32, #tpu.memory_space<vmem>>, vector<1x1x128xf32>
    %614 = vector.shape_cast %613 : vector<1x1x128xf32> to vector<1x128xf32>
    %c2_261 = arith.constant 2 : index
    %c0_262 = arith.constant 0 : index
    %c0_263 = arith.constant 0 : index
    %615 = vector.load %arg11[%c2_261, %c0_262, %c0_263] : memref<4x1x128xf32, #tpu.memory_space<vmem>>, vector<1x1x128xf32>
    %616 = vector.shape_cast %615 : vector<1x1x128xf32> to vector<1x128xf32>
    %cst_264 = arith.constant dense<0.000000e+00> : vector<8xf32>
    %617 = vector.multi_reduction <add>, %612, %cst_264 [1] : vector<8x128xf32> to vector<8xf32>
    %618 = vector.shape_cast %617 : vector<8xf32> to vector<8x1xf32>
    %cst_265 = arith.constant 1.280000e+02 : f32
    %619 = vector.broadcast %cst_265 : f32 to vector<8x1xf32>
    %620 = arith.divf %618, %619 : vector<8x1xf32>
    %621 = vector.broadcast %620 : vector<8x1xf32> to vector<8x128xf32>
    %622 = arith.subf %612, %621 : vector<8x128xf32>
    %623 = arith.mulf %622, %622 : vector<8x128xf32>
    %cst_266 = arith.constant dense<0.000000e+00> : vector<8xf32>
    %624 = vector.multi_reduction <add>, %623, %cst_266 [1] : vector<8x128xf32> to vector<8xf32>
    %625 = vector.shape_cast %624 : vector<8xf32> to vector<8x1xf32>
    %cst_267 = arith.constant 1.280000e+02 : f32
    %626 = vector.broadcast %cst_267 : f32 to vector<8x1xf32>
    %627 = arith.divf %625, %626 : vector<8x1xf32>
    %628 = vector.broadcast %620 : vector<8x1xf32> to vector<8x128xf32>
    %629 = arith.subf %612, %628 : vector<8x128xf32>
    %cst_268 = arith.constant 9.99999974E-6 : f32
    %630 = vector.broadcast %cst_268 : f32 to vector<8x1xf32>
    %631 = arith.addf %627, %630 : vector<8x1xf32>
    %632 = math.rsqrt %631 : vector<8x1xf32>
    %633 = vector.broadcast %632 : vector<8x1xf32> to vector<8x128xf32>
    %634 = arith.mulf %629, %633 : vector<8x128xf32>
    %635 = vector.broadcast %614 : vector<1x128xf32> to vector<8x128xf32>
    %636 = arith.mulf %634, %635 : vector<8x128xf32>
    %637 = vector.broadcast %616 : vector<1x128xf32> to vector<8x128xf32>
    %638 = arith.addf %636, %637 : vector<8x128xf32>
    %639 = arith.truncf %638 : vector<8x128xf32> to vector<8x128xbf16>
    %c0_269 = arith.constant 0 : index
    %c0_270 = arith.constant 0 : index
    %c0_271 = arith.constant 0 : index
    %640 = vector.load %arg12[%c0_269, %c0_270, %c0_271] : memref<2x128x128xbf16, #tpu.memory_space<vmem>>, vector<1x128x128xbf16>
    %641 = vector.shape_cast %640 : vector<1x128x128xbf16> to vector<128x128xbf16>
    %cst_272 = arith.constant dense<0.000000e+00> : vector<8x128xf32>
    %642 = tpu.matmul %639, %641, %cst_272 {dimension_numbers = #tpu.dot_dimension_numbers<[1], [0], [0], [1], [0, 0, 1, 1], [], []>} : vector<8x128xbf16>, vector<128x128xbf16>, vector<8x128xf32> -> vector<8x128xf32>
    %c0_273 = arith.constant 0 : index
    %c0_274 = arith.constant 0 : index
    %c0_275 = arith.constant 0 : index
    %643 = vector.load %arg13[%c0_273, %c0_274, %c0_275] : memref<2x1x128xf32, #tpu.memory_space<vmem>>, vector<1x1x128xf32>
    %644 = vector.shape_cast %643 : vector<1x1x128xf32> to vector<1x128xf32>
    %645 = vector.broadcast %644 : vector<1x128xf32> to vector<8x128xf32>
    %646 = arith.addf %642, %645 : vector<8x128xf32>
    %cst_276 = arith.constant 0.000000e+00 : f32
    %647 = vector.broadcast %cst_276 : f32 to vector<8x128xf32>
    %648 = arith.maximumf %646, %647 : vector<8x128xf32>
    %649 = arith.truncf %648 : vector<8x128xf32> to vector<8x128xbf16>
    %c0_277 = arith.constant 0 : index
    %c0_278 = arith.constant 0 : index
    %c0_279 = arith.constant 0 : index
    %650 = vector.load %arg14[%c0_277, %c0_278, %c0_279] : memref<2x128x128xbf16, #tpu.memory_space<vmem>>, vector<1x128x128xbf16>
    %651 = vector.shape_cast %650 : vector<1x128x128xbf16> to vector<128x128xbf16>
    %cst_280 = arith.constant dense<0.000000e+00> : vector<8x128xf32>
    %652 = tpu.matmul %649, %651, %cst_280 {dimension_numbers = #tpu.dot_dimension_numbers<[1], [0], [0], [1], [0, 0, 1, 1], [], []>} : vector<8x128xbf16>, vector<128x128xbf16>, vector<8x128xf32> -> vector<8x128xf32>
    %c0_281 = arith.constant 0 : index
    %c0_282 = arith.constant 0 : index
    %c0_283 = arith.constant 0 : index
    %653 = vector.load %arg15[%c0_281, %c0_282, %c0_283] : memref<2x1x128xf32, #tpu.memory_space<vmem>>, vector<1x1x128xf32>
    %654 = vector.shape_cast %653 : vector<1x1x128xf32> to vector<1x128xf32>
    %655 = vector.broadcast %654 : vector<1x128xf32> to vector<8x128xf32>
    %656 = arith.addf %652, %655 : vector<8x128xf32>
    %657 = arith.addf %638, %656 : vector<8x128xf32>
    %c0_284 = arith.constant 0 : index
    %c0_285 = arith.constant 0 : index
    %c0_286 = arith.constant 0 : index
    %658 = vector.load %arg16[%c0_284, %c0_285, %c0_286] : memref<2x1x128xf32, #tpu.memory_space<vmem>>, vector<1x1x128xf32>
    %659 = vector.shape_cast %658 : vector<1x1x128xf32> to vector<1x128xf32>
    %c0_287 = arith.constant 0 : index
    %c0_288 = arith.constant 0 : index
    %c0_289 = arith.constant 0 : index
    %660 = vector.load %arg17[%c0_287, %c0_288, %c0_289] : memref<2x1x128xf32, #tpu.memory_space<vmem>>, vector<1x1x128xf32>
    %661 = vector.shape_cast %660 : vector<1x1x128xf32> to vector<1x128xf32>
    %cst_290 = arith.constant dense<0.000000e+00> : vector<8xf32>
    %662 = vector.multi_reduction <add>, %657, %cst_290 [1] : vector<8x128xf32> to vector<8xf32>
    %663 = vector.shape_cast %662 : vector<8xf32> to vector<8x1xf32>
    %cst_291 = arith.constant 1.280000e+02 : f32
    %664 = vector.broadcast %cst_291 : f32 to vector<8x1xf32>
    %665 = arith.divf %663, %664 : vector<8x1xf32>
    %666 = vector.broadcast %665 : vector<8x1xf32> to vector<8x128xf32>
    %667 = arith.subf %657, %666 : vector<8x128xf32>
    %668 = arith.mulf %667, %667 : vector<8x128xf32>
    %cst_292 = arith.constant dense<0.000000e+00> : vector<8xf32>
    %669 = vector.multi_reduction <add>, %668, %cst_292 [1] : vector<8x128xf32> to vector<8xf32>
    %670 = vector.shape_cast %669 : vector<8xf32> to vector<8x1xf32>
    %cst_293 = arith.constant 1.280000e+02 : f32
    %671 = vector.broadcast %cst_293 : f32 to vector<8x1xf32>
    %672 = arith.divf %670, %671 : vector<8x1xf32>
    %673 = vector.broadcast %665 : vector<8x1xf32> to vector<8x128xf32>
    %674 = arith.subf %657, %673 : vector<8x128xf32>
    %cst_294 = arith.constant 9.99999974E-6 : f32
    %675 = vector.broadcast %cst_294 : f32 to vector<8x1xf32>
    %676 = arith.addf %672, %675 : vector<8x1xf32>
    %677 = math.rsqrt %676 : vector<8x1xf32>
    %678 = vector.broadcast %677 : vector<8x1xf32> to vector<8x128xf32>
    %679 = arith.mulf %674, %678 : vector<8x128xf32>
    %680 = vector.broadcast %659 : vector<1x128xf32> to vector<8x128xf32>
    %681 = arith.mulf %679, %680 : vector<8x128xf32>
    %682 = vector.broadcast %661 : vector<1x128xf32> to vector<8x128xf32>
    %683 = arith.addf %681, %682 : vector<8x128xf32>
    %684 = arith.truncf %429 : vector<16x128xf32> to vector<16x128xbf16>
    %685 = arith.truncf %428 : vector<8x128xf32> to vector<8x128xbf16>
    %686 = arith.truncf %428 : vector<8x128xf32> to vector<8x128xbf16>
    %c3 = arith.constant 3 : index
    %c0_295 = arith.constant 0 : index
    %c0_296 = arith.constant 0 : index
    %687 = vector.load %arg6[%c3, %c0_295, %c0_296] : memref<4x128x384xbf16, #tpu.memory_space<vmem>>, vector<1x128x128xbf16>
    %688 = vector.shape_cast %687 : vector<1x128x128xbf16> to vector<128x128xbf16>
    %cst_297 = arith.constant dense<0.000000e+00> : vector<16x128xf32>
    %689 = tpu.matmul %684, %688, %cst_297 {dimension_numbers = #tpu.dot_dimension_numbers<[1], [0], [0], [1], [0, 0, 1, 1], [], []>} : vector<16x128xbf16>, vector<128x128xbf16>, vector<16x128xf32> -> vector<16x128xf32>
    %c3_298 = arith.constant 3 : index
    %c0_299 = arith.constant 0 : index
    %c0_300 = arith.constant 0 : index
    %690 = vector.load %arg7[%c3_298, %c0_299, %c0_300] : memref<4x1x384xf32, #tpu.memory_space<vmem>>, vector<1x1x128xf32>
    %691 = vector.shape_cast %690 : vector<1x1x128xf32> to vector<1x128xf32>
    %692 = vector.broadcast %691 : vector<1x128xf32> to vector<16x128xf32>
    %693 = arith.addf %689, %692 : vector<16x128xf32>
    %694 = arith.truncf %693 : vector<16x128xf32> to vector<16x128xbf16>
    %c3_301 = arith.constant 3 : index
    %c0_302 = arith.constant 0 : index
    %c128_303 = arith.constant 128 : index
    %695 = vector.load %arg6[%c3_301, %c0_302, %c128_303] : memref<4x128x384xbf16, #tpu.memory_space<vmem>>, vector<1x128x128xbf16>
    %696 = vector.shape_cast %695 : vector<1x128x128xbf16> to vector<128x128xbf16>
    %cst_304 = arith.constant dense<0.000000e+00> : vector<8x128xf32>
    %697 = tpu.matmul %685, %696, %cst_304 {dimension_numbers = #tpu.dot_dimension_numbers<[1], [0], [0], [1], [0, 0, 1, 1], [], []>} : vector<8x128xbf16>, vector<128x128xbf16>, vector<8x128xf32> -> vector<8x128xf32>
    %c3_305 = arith.constant 3 : index
    %c0_306 = arith.constant 0 : index
    %c128_307 = arith.constant 128 : index
    %698 = vector.load %arg7[%c3_305, %c0_306, %c128_307] : memref<4x1x384xf32, #tpu.memory_space<vmem>>, vector<1x1x128xf32>
    %699 = vector.shape_cast %698 : vector<1x1x128xf32> to vector<1x128xf32>
    %700 = vector.broadcast %699 : vector<1x128xf32> to vector<8x128xf32>
    %701 = arith.addf %697, %700 : vector<8x128xf32>
    %702 = arith.truncf %701 : vector<8x128xf32> to vector<8x128xbf16>
    %c3_308 = arith.constant 3 : index
    %c0_309 = arith.constant 0 : index
    %c256_310 = arith.constant 256 : index
    %703 = vector.load %arg6[%c3_308, %c0_309, %c256_310] : memref<4x128x384xbf16, #tpu.memory_space<vmem>>, vector<1x128x128xbf16>
    %704 = vector.shape_cast %703 : vector<1x128x128xbf16> to vector<128x128xbf16>
    %cst_311 = arith.constant dense<0.000000e+00> : vector<8x128xf32>
    %705 = tpu.matmul %686, %704, %cst_311 {dimension_numbers = #tpu.dot_dimension_numbers<[1], [0], [0], [1], [0, 0, 1, 1], [], []>} : vector<8x128xbf16>, vector<128x128xbf16>, vector<8x128xf32> -> vector<8x128xf32>
    %c3_312 = arith.constant 3 : index
    %c0_313 = arith.constant 0 : index
    %c256_314 = arith.constant 256 : index
    %706 = vector.load %arg7[%c3_312, %c0_313, %c256_314] : memref<4x1x384xf32, #tpu.memory_space<vmem>>, vector<1x1x128xf32>
    %707 = vector.shape_cast %706 : vector<1x1x128xf32> to vector<1x128xf32>
    %708 = vector.broadcast %707 : vector<1x128xf32> to vector<8x128xf32>
    %709 = arith.addf %705, %708 : vector<8x128xf32>
    %710 = arith.truncf %709 : vector<8x128xf32> to vector<8x128xbf16>
    %711 = vector.shape_cast %9 : vector<1x8xf32> to vector<1x8xf32>
    %712 = vector.broadcast %711 : vector<1x8xf32> to vector<16x8xf32>
    %713 = vector.extract_strided_slice %694 {offsets = [0, 0], sizes = [16, 16], strides = [1, 1]} : vector<16x128xbf16> to vector<16x16xbf16>
    %714 = vector.extract_strided_slice %702 {offsets = [0, 0], sizes = [8, 16], strides = [1, 1]} : vector<8x128xbf16> to vector<8x16xbf16>
    %cst_315 = arith.constant dense<0.000000e+00> : vector<16x8xf32>
    %715 = tpu.matmul %713, %714, %cst_315 {dimension_numbers = #tpu.dot_dimension_numbers<[1], [1], [0], [0], [0, 0, 1, 0], [], []>} : vector<16x16xbf16>, vector<8x16xbf16>, vector<16x8xf32> -> vector<16x8xf32>
    %716 = arith.addf %715, %712 : vector<16x8xf32>
    %cst_316 = arith.constant dense<0xFF800000> : vector<16xf32>
    %717 = vector.multi_reduction <maximumf>, %716, %cst_316 [1] : vector<16x8xf32> to vector<16xf32>
    %718 = vector.shape_cast %717 : vector<16xf32> to vector<16x1xf32>
    %719 = vector.broadcast %718 : vector<16x1xf32> to vector<16x8xf32>
    %720 = arith.subf %716, %719 : vector<16x8xf32>
    %721 = math.exp %720 : vector<16x8xf32>
    %cst_317 = arith.constant dense<0.000000e+00> : vector<16xf32>
    %722 = vector.multi_reduction <add>, %721, %cst_317 [1] : vector<16x8xf32> to vector<16xf32>
    %723 = vector.shape_cast %722 : vector<16xf32> to vector<16x1xf32>
    %724 = tpu.reciprocal %723 {approx = true} : vector<16x1xf32> -> vector<16x1xf32>
    %725 = vector.broadcast %724 : vector<16x1xf32> to vector<16x8xf32>
    %726 = arith.mulf %721, %725 : vector<16x8xf32>
    %727 = arith.truncf %726 : vector<16x8xf32> to vector<16x8xbf16>
    %728 = vector.extract_strided_slice %710 {offsets = [0, 0], sizes = [8, 16], strides = [1, 1]} : vector<8x128xbf16> to vector<8x16xbf16>
    %cst_318 = arith.constant dense<0.000000e+00> : vector<16x16xf32>
    %729 = tpu.matmul %727, %728, %cst_318 {dimension_numbers = #tpu.dot_dimension_numbers<[1], [0], [0], [1], [0, 0, 1, 1], [], []>} : vector<16x8xbf16>, vector<8x16xbf16>, vector<16x16xf32> -> vector<16x16xf32>
    %c0_319 = arith.constant 0 : index
    %c0_320 = arith.constant 0 : index
    %730 = vector.load %arg20[%c0_319, %c0_320] : memref<16x128xf32, #tpu.memory_space<vmem>>, vector<16x16xf32>
    tpu.vector_store %arg20[%c0_319, %c0_320], %729 {strides = array<i32>} : memref<16x128xf32, #tpu.memory_space<vmem>>, vector<16x16xf32>,
    %731 = vector.extract_strided_slice %694 {offsets = [0, 16], sizes = [16, 16], strides = [1, 1]} : vector<16x128xbf16> to vector<16x16xbf16>
    %732 = vector.extract_strided_slice %702 {offsets = [0, 16], sizes = [8, 16], strides = [1, 1]} : vector<8x128xbf16> to vector<8x16xbf16>
    %cst_321 = arith.constant dense<0.000000e+00> : vector<16x8xf32>
    %733 = tpu.matmul %731, %732, %cst_321 {dimension_numbers = #tpu.dot_dimension_numbers<[1], [1], [0], [0], [0, 0, 1, 0], [], []>} : vector<16x16xbf16>, vector<8x16xbf16>, vector<16x8xf32> -> vector<16x8xf32>
    %734 = arith.addf %733, %712 : vector<16x8xf32>
    %cst_322 = arith.constant dense<0xFF800000> : vector<16xf32>
    %735 = vector.multi_reduction <maximumf>, %734, %cst_322 [1] : vector<16x8xf32> to vector<16xf32>
    %736 = vector.shape_cast %735 : vector<16xf32> to vector<16x1xf32>
    %737 = vector.broadcast %736 : vector<16x1xf32> to vector<16x8xf32>
    %738 = arith.subf %734, %737 : vector<16x8xf32>
    %739 = math.exp %738 : vector<16x8xf32>
    %cst_323 = arith.constant dense<0.000000e+00> : vector<16xf32>
    %740 = vector.multi_reduction <add>, %739, %cst_323 [1] : vector<16x8xf32> to vector<16xf32>
    %741 = vector.shape_cast %740 : vector<16xf32> to vector<16x1xf32>
    %742 = tpu.reciprocal %741 {approx = true} : vector<16x1xf32> -> vector<16x1xf32>
    %743 = vector.broadcast %742 : vector<16x1xf32> to vector<16x8xf32>
    %744 = arith.mulf %739, %743 : vector<16x8xf32>
    %745 = arith.truncf %744 : vector<16x8xf32> to vector<16x8xbf16>
    %746 = vector.extract_strided_slice %710 {offsets = [0, 16], sizes = [8, 16], strides = [1, 1]} : vector<8x128xbf16> to vector<8x16xbf16>
    %cst_324 = arith.constant dense<0.000000e+00> : vector<16x16xf32>
    %747 = tpu.matmul %745, %746, %cst_324 {dimension_numbers = #tpu.dot_dimension_numbers<[1], [0], [0], [1], [0, 0, 1, 1], [], []>} : vector<16x8xbf16>, vector<8x16xbf16>, vector<16x16xf32> -> vector<16x16xf32>
    %c0_325 = arith.constant 0 : index
    %c16_326 = arith.constant 16 : index
    %748 = vector.load %arg20[%c0_325, %c16_326] : memref<16x128xf32, #tpu.memory_space<vmem>>, vector<16x16xf32>
    tpu.vector_store %arg20[%c0_325, %c16_326], %747 {strides = array<i32>} : memref<16x128xf32, #tpu.memory_space<vmem>>, vector<16x16xf32>,
    %749 = vector.extract_strided_slice %694 {offsets = [0, 32], sizes = [16, 16], strides = [1, 1]} : vector<16x128xbf16> to vector<16x16xbf16>
    %750 = vector.extract_strided_slice %702 {offsets = [0, 32], sizes = [8, 16], strides = [1, 1]} : vector<8x128xbf16> to vector<8x16xbf16>
    %cst_327 = arith.constant dense<0.000000e+00> : vector<16x8xf32>
    %751 = tpu.matmul %749, %750, %cst_327 {dimension_numbers = #tpu.dot_dimension_numbers<[1], [1], [0], [0], [0, 0, 1, 0], [], []>} : vector<16x16xbf16>, vector<8x16xbf16>, vector<16x8xf32> -> vector<16x8xf32>
    %752 = arith.addf %751, %712 : vector<16x8xf32>
    %cst_328 = arith.constant dense<0xFF800000> : vector<16xf32>
    %753 = vector.multi_reduction <maximumf>, %752, %cst_328 [1] : vector<16x8xf32> to vector<16xf32>
    %754 = vector.shape_cast %753 : vector<16xf32> to vector<16x1xf32>
    %755 = vector.broadcast %754 : vector<16x1xf32> to vector<16x8xf32>
    %756 = arith.subf %752, %755 : vector<16x8xf32>
    %757 = math.exp %756 : vector<16x8xf32>
    %cst_329 = arith.constant dense<0.000000e+00> : vector<16xf32>
    %758 = vector.multi_reduction <add>, %757, %cst_329 [1] : vector<16x8xf32> to vector<16xf32>
    %759 = vector.shape_cast %758 : vector<16xf32> to vector<16x1xf32>
    %760 = tpu.reciprocal %759 {approx = true} : vector<16x1xf32> -> vector<16x1xf32>
    %761 = vector.broadcast %760 : vector<16x1xf32> to vector<16x8xf32>
    %762 = arith.mulf %757, %761 : vector<16x8xf32>
    %763 = arith.truncf %762 : vector<16x8xf32> to vector<16x8xbf16>
    %764 = vector.extract_strided_slice %710 {offsets = [0, 32], sizes = [8, 16], strides = [1, 1]} : vector<8x128xbf16> to vector<8x16xbf16>
    %cst_330 = arith.constant dense<0.000000e+00> : vector<16x16xf32>
    %765 = tpu.matmul %763, %764, %cst_330 {dimension_numbers = #tpu.dot_dimension_numbers<[1], [0], [0], [1], [0, 0, 1, 1], [], []>} : vector<16x8xbf16>, vector<8x16xbf16>, vector<16x16xf32> -> vector<16x16xf32>
    %c0_331 = arith.constant 0 : index
    %c32_332 = arith.constant 32 : index
    %766 = vector.load %arg20[%c0_331, %c32_332] : memref<16x128xf32, #tpu.memory_space<vmem>>, vector<16x16xf32>
    tpu.vector_store %arg20[%c0_331, %c32_332], %765 {strides = array<i32>} : memref<16x128xf32, #tpu.memory_space<vmem>>, vector<16x16xf32>,
    %767 = vector.extract_strided_slice %694 {offsets = [0, 48], sizes = [16, 16], strides = [1, 1]} : vector<16x128xbf16> to vector<16x16xbf16>
    %768 = vector.extract_strided_slice %702 {offsets = [0, 48], sizes = [8, 16], strides = [1, 1]} : vector<8x128xbf16> to vector<8x16xbf16>
    %cst_333 = arith.constant dense<0.000000e+00> : vector<16x8xf32>
    %769 = tpu.matmul %767, %768, %cst_333 {dimension_numbers = #tpu.dot_dimension_numbers<[1], [1], [0], [0], [0, 0, 1, 0], [], []>} : vector<16x16xbf16>, vector<8x16xbf16>, vector<16x8xf32> -> vector<16x8xf32>
    %770 = arith.addf %769, %712 : vector<16x8xf32>
    %cst_334 = arith.constant dense<0xFF800000> : vector<16xf32>
    %771 = vector.multi_reduction <maximumf>, %770, %cst_334 [1] : vector<16x8xf32> to vector<16xf32>
    %772 = vector.shape_cast %771 : vector<16xf32> to vector<16x1xf32>
    %773 = vector.broadcast %772 : vector<16x1xf32> to vector<16x8xf32>
    %774 = arith.subf %770, %773 : vector<16x8xf32>
    %775 = math.exp %774 : vector<16x8xf32>
    %cst_335 = arith.constant dense<0.000000e+00> : vector<16xf32>
    %776 = vector.multi_reduction <add>, %775, %cst_335 [1] : vector<16x8xf32> to vector<16xf32>
    %777 = vector.shape_cast %776 : vector<16xf32> to vector<16x1xf32>
    %778 = tpu.reciprocal %777 {approx = true} : vector<16x1xf32> -> vector<16x1xf32>
    %779 = vector.broadcast %778 : vector<16x1xf32> to vector<16x8xf32>
    %780 = arith.mulf %775, %779 : vector<16x8xf32>
    %781 = arith.truncf %780 : vector<16x8xf32> to vector<16x8xbf16>
    %782 = vector.extract_strided_slice %710 {offsets = [0, 48], sizes = [8, 16], strides = [1, 1]} : vector<8x128xbf16> to vector<8x16xbf16>
    %cst_336 = arith.constant dense<0.000000e+00> : vector<16x16xf32>
    %783 = tpu.matmul %781, %782, %cst_336 {dimension_numbers = #tpu.dot_dimension_numbers<[1], [0], [0], [1], [0, 0, 1, 1], [], []>} : vector<16x8xbf16>, vector<8x16xbf16>, vector<16x16xf32> -> vector<16x16xf32>
    %c0_337 = arith.constant 0 : index
    %c48_338 = arith.constant 48 : index
    %784 = vector.load %arg20[%c0_337, %c48_338] : memref<16x128xf32, #tpu.memory_space<vmem>>, vector<16x16xf32>
    tpu.vector_store %arg20[%c0_337, %c48_338], %783 {strides = array<i32>} : memref<16x128xf32, #tpu.memory_space<vmem>>, vector<16x16xf32>,
    %785 = vector.extract_strided_slice %694 {offsets = [0, 64], sizes = [16, 16], strides = [1, 1]} : vector<16x128xbf16> to vector<16x16xbf16>
    %786 = vector.extract_strided_slice %702 {offsets = [0, 64], sizes = [8, 16], strides = [1, 1]} : vector<8x128xbf16> to vector<8x16xbf16>
    %cst_339 = arith.constant dense<0.000000e+00> : vector<16x8xf32>
    %787 = tpu.matmul %785, %786, %cst_339 {dimension_numbers = #tpu.dot_dimension_numbers<[1], [1], [0], [0], [0, 0, 1, 0], [], []>} : vector<16x16xbf16>, vector<8x16xbf16>, vector<16x8xf32> -> vector<16x8xf32>
    %788 = arith.addf %787, %712 : vector<16x8xf32>
    %cst_340 = arith.constant dense<0xFF800000> : vector<16xf32>
    %789 = vector.multi_reduction <maximumf>, %788, %cst_340 [1] : vector<16x8xf32> to vector<16xf32>
    %790 = vector.shape_cast %789 : vector<16xf32> to vector<16x1xf32>
    %791 = vector.broadcast %790 : vector<16x1xf32> to vector<16x8xf32>
    %792 = arith.subf %788, %791 : vector<16x8xf32>
    %793 = math.exp %792 : vector<16x8xf32>
    %cst_341 = arith.constant dense<0.000000e+00> : vector<16xf32>
    %794 = vector.multi_reduction <add>, %793, %cst_341 [1] : vector<16x8xf32> to vector<16xf32>
    %795 = vector.shape_cast %794 : vector<16xf32> to vector<16x1xf32>
    %796 = tpu.reciprocal %795 {approx = true} : vector<16x1xf32> -> vector<16x1xf32>
    %797 = vector.broadcast %796 : vector<16x1xf32> to vector<16x8xf32>
    %798 = arith.mulf %793, %797 : vector<16x8xf32>
    %799 = arith.truncf %798 : vector<16x8xf32> to vector<16x8xbf16>
    %800 = vector.extract_strided_slice %710 {offsets = [0, 64], sizes = [8, 16], strides = [1, 1]} : vector<8x128xbf16> to vector<8x16xbf16>
    %cst_342 = arith.constant dense<0.000000e+00> : vector<16x16xf32>
    %801 = tpu.matmul %799, %800, %cst_342 {dimension_numbers = #tpu.dot_dimension_numbers<[1], [0], [0], [1], [0, 0, 1, 1], [], []>} : vector<16x8xbf16>, vector<8x16xbf16>, vector<16x16xf32> -> vector<16x16xf32>
    %c0_343 = arith.constant 0 : index
    %c64_344 = arith.constant 64 : index
    %802 = vector.load %arg20[%c0_343, %c64_344] : memref<16x128xf32, #tpu.memory_space<vmem>>, vector<16x16xf32>
    tpu.vector_store %arg20[%c0_343, %c64_344], %801 {strides = array<i32>} : memref<16x128xf32, #tpu.memory_space<vmem>>, vector<16x16xf32>,
    %803 = vector.extract_strided_slice %694 {offsets = [0, 80], sizes = [16, 16], strides = [1, 1]} : vector<16x128xbf16> to vector<16x16xbf16>
    %804 = vector.extract_strided_slice %702 {offsets = [0, 80], sizes = [8, 16], strides = [1, 1]} : vector<8x128xbf16> to vector<8x16xbf16>
    %cst_345 = arith.constant dense<0.000000e+00> : vector<16x8xf32>
    %805 = tpu.matmul %803, %804, %cst_345 {dimension_numbers = #tpu.dot_dimension_numbers<[1], [1], [0], [0], [0, 0, 1, 0], [], []>} : vector<16x16xbf16>, vector<8x16xbf16>, vector<16x8xf32> -> vector<16x8xf32>
    %806 = arith.addf %805, %712 : vector<16x8xf32>
    %cst_346 = arith.constant dense<0xFF800000> : vector<16xf32>
    %807 = vector.multi_reduction <maximumf>, %806, %cst_346 [1] : vector<16x8xf32> to vector<16xf32>
    %808 = vector.shape_cast %807 : vector<16xf32> to vector<16x1xf32>
    %809 = vector.broadcast %808 : vector<16x1xf32> to vector<16x8xf32>
    %810 = arith.subf %806, %809 : vector<16x8xf32>
    %811 = math.exp %810 : vector<16x8xf32>
    %cst_347 = arith.constant dense<0.000000e+00> : vector<16xf32>
    %812 = vector.multi_reduction <add>, %811, %cst_347 [1] : vector<16x8xf32> to vector<16xf32>
    %813 = vector.shape_cast %812 : vector<16xf32> to vector<16x1xf32>
    %814 = tpu.reciprocal %813 {approx = true} : vector<16x1xf32> -> vector<16x1xf32>
    %815 = vector.broadcast %814 : vector<16x1xf32> to vector<16x8xf32>
    %816 = arith.mulf %811, %815 : vector<16x8xf32>
    %817 = arith.truncf %816 : vector<16x8xf32> to vector<16x8xbf16>
    %818 = vector.extract_strided_slice %710 {offsets = [0, 80], sizes = [8, 16], strides = [1, 1]} : vector<8x128xbf16> to vector<8x16xbf16>
    %cst_348 = arith.constant dense<0.000000e+00> : vector<16x16xf32>
    %819 = tpu.matmul %817, %818, %cst_348 {dimension_numbers = #tpu.dot_dimension_numbers<[1], [0], [0], [1], [0, 0, 1, 1], [], []>} : vector<16x8xbf16>, vector<8x16xbf16>, vector<16x16xf32> -> vector<16x16xf32>
    %c0_349 = arith.constant 0 : index
    %c80_350 = arith.constant 80 : index
    %820 = vector.load %arg20[%c0_349, %c80_350] : memref<16x128xf32, #tpu.memory_space<vmem>>, vector<16x16xf32>
    tpu.vector_store %arg20[%c0_349, %c80_350], %819 {strides = array<i32>} : memref<16x128xf32, #tpu.memory_space<vmem>>, vector<16x16xf32>,
    %821 = vector.extract_strided_slice %694 {offsets = [0, 96], sizes = [16, 16], strides = [1, 1]} : vector<16x128xbf16> to vector<16x16xbf16>
    %822 = vector.extract_strided_slice %702 {offsets = [0, 96], sizes = [8, 16], strides = [1, 1]} : vector<8x128xbf16> to vector<8x16xbf16>
    %cst_351 = arith.constant dense<0.000000e+00> : vector<16x8xf32>
    %823 = tpu.matmul %821, %822, %cst_351 {dimension_numbers = #tpu.dot_dimension_numbers<[1], [1], [0], [0], [0, 0, 1, 0], [], []>} : vector<16x16xbf16>, vector<8x16xbf16>, vector<16x8xf32> -> vector<16x8xf32>
    %824 = arith.addf %823, %712 : vector<16x8xf32>
    %cst_352 = arith.constant dense<0xFF800000> : vector<16xf32>
    %825 = vector.multi_reduction <maximumf>, %824, %cst_352 [1] : vector<16x8xf32> to vector<16xf32>
    %826 = vector.shape_cast %825 : vector<16xf32> to vector<16x1xf32>
    %827 = vector.broadcast %826 : vector<16x1xf32> to vector<16x8xf32>
    %828 = arith.subf %824, %827 : vector<16x8xf32>
    %829 = math.exp %828 : vector<16x8xf32>
    %cst_353 = arith.constant dense<0.000000e+00> : vector<16xf32>
    %830 = vector.multi_reduction <add>, %829, %cst_353 [1] : vector<16x8xf32> to vector<16xf32>
    %831 = vector.shape_cast %830 : vector<16xf32> to vector<16x1xf32>
    %832 = tpu.reciprocal %831 {approx = true} : vector<16x1xf32> -> vector<16x1xf32>
    %833 = vector.broadcast %832 : vector<16x1xf32> to vector<16x8xf32>
    %834 = arith.mulf %829, %833 : vector<16x8xf32>
    %835 = arith.truncf %834 : vector<16x8xf32> to vector<16x8xbf16>
    %836 = vector.extract_strided_slice %710 {offsets = [0, 96], sizes = [8, 16], strides = [1, 1]} : vector<8x128xbf16> to vector<8x16xbf16>
    %cst_354 = arith.constant dense<0.000000e+00> : vector<16x16xf32>
    %837 = tpu.matmul %835, %836, %cst_354 {dimension_numbers = #tpu.dot_dimension_numbers<[1], [0], [0], [1], [0, 0, 1, 1], [], []>} : vector<16x8xbf16>, vector<8x16xbf16>, vector<16x16xf32> -> vector<16x16xf32>
    %c0_355 = arith.constant 0 : index
    %c96_356 = arith.constant 96 : index
    %838 = vector.load %arg20[%c0_355, %c96_356] : memref<16x128xf32, #tpu.memory_space<vmem>>, vector<16x16xf32>
    tpu.vector_store %arg20[%c0_355, %c96_356], %837 {strides = array<i32>} : memref<16x128xf32, #tpu.memory_space<vmem>>, vector<16x16xf32>,
    %839 = vector.extract_strided_slice %694 {offsets = [0, 112], sizes = [16, 16], strides = [1, 1]} : vector<16x128xbf16> to vector<16x16xbf16>
    %840 = vector.extract_strided_slice %702 {offsets = [0, 112], sizes = [8, 16], strides = [1, 1]} : vector<8x128xbf16> to vector<8x16xbf16>
    %cst_357 = arith.constant dense<0.000000e+00> : vector<16x8xf32>
    %841 = tpu.matmul %839, %840, %cst_357 {dimension_numbers = #tpu.dot_dimension_numbers<[1], [1], [0], [0], [0, 0, 1, 0], [], []>} : vector<16x16xbf16>, vector<8x16xbf16>, vector<16x8xf32> -> vector<16x8xf32>
    %842 = arith.addf %841, %712 : vector<16x8xf32>
    %cst_358 = arith.constant dense<0xFF800000> : vector<16xf32>
    %843 = vector.multi_reduction <maximumf>, %842, %cst_358 [1] : vector<16x8xf32> to vector<16xf32>
    %844 = vector.shape_cast %843 : vector<16xf32> to vector<16x1xf32>
    %845 = vector.broadcast %844 : vector<16x1xf32> to vector<16x8xf32>
    %846 = arith.subf %842, %845 : vector<16x8xf32>
    %847 = math.exp %846 : vector<16x8xf32>
    %cst_359 = arith.constant dense<0.000000e+00> : vector<16xf32>
    %848 = vector.multi_reduction <add>, %847, %cst_359 [1] : vector<16x8xf32> to vector<16xf32>
    %849 = vector.shape_cast %848 : vector<16xf32> to vector<16x1xf32>
    %850 = tpu.reciprocal %849 {approx = true} : vector<16x1xf32> -> vector<16x1xf32>
    %851 = vector.broadcast %850 : vector<16x1xf32> to vector<16x8xf32>
    %852 = arith.mulf %847, %851 : vector<16x8xf32>
    %853 = arith.truncf %852 : vector<16x8xf32> to vector<16x8xbf16>
    %854 = vector.extract_strided_slice %710 {offsets = [0, 112], sizes = [8, 16], strides = [1, 1]} : vector<8x128xbf16> to vector<8x16xbf16>
    %cst_360 = arith.constant dense<0.000000e+00> : vector<16x16xf32>
    %855 = tpu.matmul %853, %854, %cst_360 {dimension_numbers = #tpu.dot_dimension_numbers<[1], [0], [0], [1], [0, 0, 1, 1], [], []>} : vector<16x8xbf16>, vector<8x16xbf16>, vector<16x16xf32> -> vector<16x16xf32>
    %c0_361 = arith.constant 0 : index
    %c112_362 = arith.constant 112 : index
    %856 = vector.load %arg20[%c0_361, %c112_362] : memref<16x128xf32, #tpu.memory_space<vmem>>, vector<16x16xf32>
    tpu.vector_store %arg20[%c0_361, %c112_362], %855 {strides = array<i32>} : memref<16x128xf32, #tpu.memory_space<vmem>>, vector<16x16xf32>,
    %c0_363 = arith.constant 0 : index
    %c0_364 = arith.constant 0 : index
    %857 = vector.load %arg20[%c0_363, %c0_364] : memref<16x128xf32, #tpu.memory_space<vmem>>, vector<16x128xf32>
    %858 = arith.truncf %857 : vector<16x128xf32> to vector<16x128xbf16>
    %c3_365 = arith.constant 3 : index
    %c0_366 = arith.constant 0 : index
    %c0_367 = arith.constant 0 : index
    %859 = vector.load %arg8[%c3_365, %c0_366, %c0_367] : memref<4x128x128xbf16, #tpu.memory_space<vmem>>, vector<1x128x128xbf16>
    %860 = vector.shape_cast %859 : vector<1x128x128xbf16> to vector<128x128xbf16>
    %cst_368 = arith.constant dense<0.000000e+00> : vector<16x128xf32>
    %861 = tpu.matmul %858, %860, %cst_368 {dimension_numbers = #tpu.dot_dimension_numbers<[1], [0], [0], [1], [0, 0, 1, 1], [], []>} : vector<16x128xbf16>, vector<128x128xbf16>, vector<16x128xf32> -> vector<16x128xf32>
    %c3_369 = arith.constant 3 : index
    %c0_370 = arith.constant 0 : index
    %c0_371 = arith.constant 0 : index
    %862 = vector.load %arg9[%c3_369, %c0_370, %c0_371] : memref<4x1x128xf32, #tpu.memory_space<vmem>>, vector<1x1x128xf32>
    %863 = vector.shape_cast %862 : vector<1x1x128xf32> to vector<1x128xf32>
    %864 = vector.broadcast %863 : vector<1x128xf32> to vector<16x128xf32>
    %865 = arith.addf %861, %864 : vector<16x128xf32>
    %866 = arith.addf %219, %865 : vector<16x128xf32>
    %c3_372 = arith.constant 3 : index
    %c0_373 = arith.constant 0 : index
    %c0_374 = arith.constant 0 : index
    %867 = vector.load %arg10[%c3_372, %c0_373, %c0_374] : memref<4x1x128xf32, #tpu.memory_space<vmem>>, vector<1x1x128xf32>
    %868 = vector.shape_cast %867 : vector<1x1x128xf32> to vector<1x128xf32>
    %c3_375 = arith.constant 3 : index
    %c0_376 = arith.constant 0 : index
    %c0_377 = arith.constant 0 : index
    %869 = vector.load %arg11[%c3_375, %c0_376, %c0_377] : memref<4x1x128xf32, #tpu.memory_space<vmem>>, vector<1x1x128xf32>
    %870 = vector.shape_cast %869 : vector<1x1x128xf32> to vector<1x128xf32>
    %cst_378 = arith.constant dense<0.000000e+00> : vector<16xf32>
    %871 = vector.multi_reduction <add>, %866, %cst_378 [1] : vector<16x128xf32> to vector<16xf32>
    %872 = vector.shape_cast %871 : vector<16xf32> to vector<16x1xf32>
    %cst_379 = arith.constant 1.280000e+02 : f32
    %873 = vector.broadcast %cst_379 : f32 to vector<16x1xf32>
    %874 = arith.divf %872, %873 : vector<16x1xf32>
    %875 = vector.broadcast %874 : vector<16x1xf32> to vector<16x128xf32>
    %876 = arith.subf %866, %875 : vector<16x128xf32>
    %877 = arith.mulf %876, %876 : vector<16x128xf32>
    %cst_380 = arith.constant dense<0.000000e+00> : vector<16xf32>
    %878 = vector.multi_reduction <add>, %877, %cst_380 [1] : vector<16x128xf32> to vector<16xf32>
    %879 = vector.shape_cast %878 : vector<16xf32> to vector<16x1xf32>
    %cst_381 = arith.constant 1.280000e+02 : f32
    %880 = vector.broadcast %cst_381 : f32 to vector<16x1xf32>
    %881 = arith.divf %879, %880 : vector<16x1xf32>
    %882 = vector.broadcast %874 : vector<16x1xf32> to vector<16x128xf32>
    %883 = arith.subf %866, %882 : vector<16x128xf32>
    %cst_382 = arith.constant 9.99999974E-6 : f32
    %884 = vector.broadcast %cst_382 : f32 to vector<16x1xf32>
    %885 = arith.addf %881, %884 : vector<16x1xf32>
    %886 = math.rsqrt %885 : vector<16x1xf32>
    %887 = vector.broadcast %886 : vector<16x1xf32> to vector<16x128xf32>
    %888 = arith.mulf %883, %887 : vector<16x128xf32>
    %889 = vector.broadcast %868 : vector<1x128xf32> to vector<16x128xf32>
    %890 = arith.mulf %888, %889 : vector<16x128xf32>
    %891 = vector.broadcast %870 : vector<1x128xf32> to vector<16x128xf32>
    %892 = arith.addf %890, %891 : vector<16x128xf32>
    %893 = arith.truncf %892 : vector<16x128xf32> to vector<16x128xbf16>
    %c1_383 = arith.constant 1 : index
    %c0_384 = arith.constant 0 : index
    %c0_385 = arith.constant 0 : index
    %894 = vector.load %arg12[%c1_383, %c0_384, %c0_385] : memref<2x128x128xbf16, #tpu.memory_space<vmem>>, vector<1x128x128xbf16>
    %895 = vector.shape_cast %894 : vector<1x128x128xbf16> to vector<128x128xbf16>
    %cst_386 = arith.constant dense<0.000000e+00> : vector<16x128xf32>
    %896 = tpu.matmul %893, %895, %cst_386 {dimension_numbers = #tpu.dot_dimension_numbers<[1], [0], [0], [1], [0, 0, 1, 1], [], []>} : vector<16x128xbf16>, vector<128x128xbf16>, vector<16x128xf32> -> vector<16x128xf32>
    %c1_387 = arith.constant 1 : index
    %c0_388 = arith.constant 0 : index
    %c0_389 = arith.constant 0 : index
    %897 = vector.load %arg13[%c1_387, %c0_388, %c0_389] : memref<2x1x128xf32, #tpu.memory_space<vmem>>, vector<1x1x128xf32>
    %898 = vector.shape_cast %897 : vector<1x1x128xf32> to vector<1x128xf32>
    %899 = vector.broadcast %898 : vector<1x128xf32> to vector<16x128xf32>
    %900 = arith.addf %896, %899 : vector<16x128xf32>
    %cst_390 = arith.constant 0.000000e+00 : f32
    %901 = vector.broadcast %cst_390 : f32 to vector<16x128xf32>
    %902 = arith.maximumf %900, %901 : vector<16x128xf32>
    %903 = arith.truncf %902 : vector<16x128xf32> to vector<16x128xbf16>
    %c1_391 = arith.constant 1 : index
    %c0_392 = arith.constant 0 : index
    %c0_393 = arith.constant 0 : index
    %904 = vector.load %arg14[%c1_391, %c0_392, %c0_393] : memref<2x128x128xbf16, #tpu.memory_space<vmem>>, vector<1x128x128xbf16>
    %905 = vector.shape_cast %904 : vector<1x128x128xbf16> to vector<128x128xbf16>
    %cst_394 = arith.constant dense<0.000000e+00> : vector<16x128xf32>
    %906 = tpu.matmul %903, %905, %cst_394 {dimension_numbers = #tpu.dot_dimension_numbers<[1], [0], [0], [1], [0, 0, 1, 1], [], []>} : vector<16x128xbf16>, vector<128x128xbf16>, vector<16x128xf32> -> vector<16x128xf32>
    %c1_395 = arith.constant 1 : index
    %c0_396 = arith.constant 0 : index
    %c0_397 = arith.constant 0 : index
    %907 = vector.load %arg15[%c1_395, %c0_396, %c0_397] : memref<2x1x128xf32, #tpu.memory_space<vmem>>, vector<1x1x128xf32>
    %908 = vector.shape_cast %907 : vector<1x1x128xf32> to vector<1x128xf32>
    %909 = vector.broadcast %908 : vector<1x128xf32> to vector<16x128xf32>
    %910 = arith.addf %906, %909 : vector<16x128xf32>
    %911 = arith.addf %892, %910 : vector<16x128xf32>
    %c1_398 = arith.constant 1 : index
    %c0_399 = arith.constant 0 : index
    %c0_400 = arith.constant 0 : index
    %912 = vector.load %arg16[%c1_398, %c0_399, %c0_400] : memref<2x1x128xf32, #tpu.memory_space<vmem>>, vector<1x1x128xf32>
    %913 = vector.shape_cast %912 : vector<1x1x128xf32> to vector<1x128xf32>
    %c1_401 = arith.constant 1 : index
    %c0_402 = arith.constant 0 : index
    %c0_403 = arith.constant 0 : index
    %914 = vector.load %arg17[%c1_401, %c0_402, %c0_403] : memref<2x1x128xf32, #tpu.memory_space<vmem>>, vector<1x1x128xf32>
    %915 = vector.shape_cast %914 : vector<1x1x128xf32> to vector<1x128xf32>
    %cst_404 = arith.constant dense<0.000000e+00> : vector<16xf32>
    %916 = vector.multi_reduction <add>, %911, %cst_404 [1] : vector<16x128xf32> to vector<16xf32>
    %917 = vector.shape_cast %916 : vector<16xf32> to vector<16x1xf32>
    %cst_405 = arith.constant 1.280000e+02 : f32
    %918 = vector.broadcast %cst_405 : f32 to vector<16x1xf32>
    %919 = arith.divf %917, %918 : vector<16x1xf32>
    %920 = vector.broadcast %919 : vector<16x1xf32> to vector<16x128xf32>
    %921 = arith.subf %911, %920 : vector<16x128xf32>
    %922 = arith.mulf %921, %921 : vector<16x128xf32>
    %cst_406 = arith.constant dense<0.000000e+00> : vector<16xf32>
    %923 = vector.multi_reduction <add>, %922, %cst_406 [1] : vector<16x128xf32> to vector<16xf32>
    %924 = vector.shape_cast %923 : vector<16xf32> to vector<16x1xf32>
    %cst_407 = arith.constant 1.280000e+02 : f32
    %925 = vector.broadcast %cst_407 : f32 to vector<16x1xf32>
    %926 = arith.divf %924, %925 : vector<16x1xf32>
    %927 = vector.broadcast %919 : vector<16x1xf32> to vector<16x128xf32>
    %928 = arith.subf %911, %927 : vector<16x128xf32>
    %cst_408 = arith.constant 9.99999974E-6 : f32
    %929 = vector.broadcast %cst_408 : f32 to vector<16x1xf32>
    %930 = arith.addf %926, %929 : vector<16x1xf32>
    %931 = math.rsqrt %930 : vector<16x1xf32>
    %932 = vector.broadcast %931 : vector<16x1xf32> to vector<16x128xf32>
    %933 = arith.mulf %928, %932 : vector<16x128xf32>
    %934 = vector.broadcast %913 : vector<1x128xf32> to vector<16x128xf32>
    %935 = arith.mulf %933, %934 : vector<16x128xf32>
    %936 = vector.broadcast %915 : vector<1x128xf32> to vector<16x128xf32>
    %937 = arith.addf %935, %936 : vector<16x128xf32>
    %c0_409 = arith.constant 0 : index
    %c0_410 = arith.constant 0 : index
    %c0_411 = arith.constant 0 : index
    %938 = vector.load %arg18[%c0_409, %c0_410, %c0_411] : memref<1x16x128xf32, #tpu.memory_space<vmem>>, vector<1x16x128xf32>
    %939 = vector.shape_cast %938 : vector<1x16x128xf32> to vector<16x128xf32>
    %940 = vector.shape_cast %937 : vector<16x128xf32> to vector<1x16x128xf32>
    tpu.vector_store %arg18[%c0_409, %c0_410, %c0_411], %940 {strides = array<i32>} : memref<1x16x128xf32, #tpu.memory_space<vmem>>, vector<1x16x128xf32>,
    %c0_412 = arith.constant 0 : index
    %c0_413 = arith.constant 0 : index
    %c0_414 = arith.constant 0 : index
    %941 = vector.load %arg19[%c0_412, %c0_413, %c0_414] : memref<1x8x128xf32, #tpu.memory_space<vmem>>, vector<1x8x128xf32>
    %942 = vector.shape_cast %941 : vector<1x8x128xf32> to vector<8x128xf32>
    %943 = vector.shape_cast %683 : vector<8x128xf32> to vector<1x8x128xf32>
    tpu.vector_store %arg19[%c0_412, %c0_413, %c0_414], %943 {strides = array<i32>} : memref<1x8x128xf32, #tpu.memory_space<vmem>>, vector<1x8x128xf32>,
    return
  }
  func.func @transform_0(%arg0: i32) -> (i32, i32, i32) {
    %c0_i32 = arith.constant 0 : i32
    %c0_i32_0 = arith.constant 0 : i32
    %c0_i32_1 = arith.constant 0 : i32
    return %arg0, %c0_i32, %c0_i32_0 : i32, i32, i32
  }
  func.func @transform_1(%arg0: i32) -> (i32, i32, i32) {
    %c0_i32 = arith.constant 0 : i32
    %c0_i32_0 = arith.constant 0 : i32
    %c0_i32_1 = arith.constant 0 : i32
    return %arg0, %c0_i32, %c0_i32_0 : i32, i32, i32
  }
  func.func @transform_2(%arg0: i32) -> (i32, i32, i32) {
    %c0_i32 = arith.constant 0 : i32
    %c0_i32_0 = arith.constant 0 : i32
    %c0_i32_1 = arith.constant 0 : i32
    return %arg0, %c0_i32, %c0_i32_0 : i32, i32, i32
  }
  func.func @transform_3(%arg0: i32) -> (i32, i32, i32) {
    %c0_i32 = arith.constant 0 : i32
    %c0_i32_0 = arith.constant 0 : i32
    %c0_i32_1 = arith.constant 0 : i32
    return %arg0, %c0_i32, %c0_i32_0 : i32, i32, i32
  }
  func.func @transform_4(%arg0: i32) -> (i32, i32, i32) {
    %c0_i32 = arith.constant 0 : i32
    %c0_i32_0 = arith.constant 0 : i32
    %c0_i32_1 = arith.constant 0 : i32
    return %arg0, %c0_i32, %c0_i32_0 : i32, i32, i32
  }
  func.func @transform_5(%arg0: i32) -> (i32, i32, i32) {
    %c0_i32 = arith.constant 0 : i32
    %c0_i32_0 = arith.constant 0 : i32
    %c0_i32_1 = arith.constant 0 : i32
    %c0_i32_2 = arith.constant 0 : i32
    return %c0_i32, %c0_i32_0, %c0_i32_1 : i32, i32, i32
  }
  func.func @transform_6(%arg0: i32) -> (i32, i32, i32) {
    %c0_i32 = arith.constant 0 : i32
    %c0_i32_0 = arith.constant 0 : i32
    %c0_i32_1 = arith.constant 0 : i32
    %c0_i32_2 = arith.constant 0 : i32
    return %c0_i32, %c0_i32_0, %c0_i32_1 : i32, i32, i32
  }
  func.func @transform_7(%arg0: i32) -> (i32, i32, i32) {
    %c0_i32 = arith.constant 0 : i32
    %c0_i32_0 = arith.constant 0 : i32
    %c0_i32_1 = arith.constant 0 : i32
    %c0_i32_2 = arith.constant 0 : i32
    return %c0_i32, %c0_i32_0, %c0_i32_1 : i32, i32, i32
  }
  func.func @transform_8(%arg0: i32) -> (i32, i32, i32) {
    %c0_i32 = arith.constant 0 : i32
    %c0_i32_0 = arith.constant 0 : i32
    %c0_i32_1 = arith.constant 0 : i32
    %c0_i32_2 = arith.constant 0 : i32
    return %c0_i32, %c0_i32_0, %c0_i32_1 : i32, i32, i32
  }
  func.func @transform_9(%arg0: i32) -> (i32, i32, i32) {
    %c0_i32 = arith.constant 0 : i32
    %c0_i32_0 = arith.constant 0 : i32
    %c0_i32_1 = arith.constant 0 : i32
    %c0_i32_2 = arith.constant 0 : i32
    return %c0_i32, %c0_i32_0, %c0_i32_1 : i32, i32, i32
  }
  func.func @transform_10(%arg0: i32) -> (i32, i32, i32) {
    %c0_i32 = arith.constant 0 : i32
    %c0_i32_0 = arith.constant 0 : i32
    %c0_i32_1 = arith.constant 0 : i32
    %c0_i32_2 = arith.constant 0 : i32
    return %c0_i32, %c0_i32_0, %c0_i32_1 : i32, i32, i32
  }
  func.func @transform_11(%arg0: i32) -> (i32, i32, i32) {
    %c0_i32 = arith.constant 0 : i32
    %c0_i32_0 = arith.constant 0 : i32
    %c0_i32_1 = arith.constant 0 : i32
    %c0_i32_2 = arith.constant 0 : i32
    return %c0_i32, %c0_i32_0, %c0_i32_1 : i32, i32, i32
  }
  func.func @transform_12(%arg0: i32) -> (i32, i32, i32) {
    %c0_i32 = arith.constant 0 : i32
    %c0_i32_0 = arith.constant 0 : i32
    %c0_i32_1 = arith.constant 0 : i32
    %c0_i32_2 = arith.constant 0 : i32
    return %c0_i32, %c0_i32_0, %c0_i32_1 : i32, i32, i32
  }
  func.func @transform_13(%arg0: i32) -> (i32, i32, i32) {
    %c0_i32 = arith.constant 0 : i32
    %c0_i32_0 = arith.constant 0 : i32
    %c0_i32_1 = arith.constant 0 : i32
    %c0_i32_2 = arith.constant 0 : i32
    return %c0_i32, %c0_i32_0, %c0_i32_1 : i32, i32, i32
  }
  func.func @transform_14(%arg0: i32) -> (i32, i32, i32) {
    %c0_i32 = arith.constant 0 : i32
    %c0_i32_0 = arith.constant 0 : i32
    %c0_i32_1 = arith.constant 0 : i32
    %c0_i32_2 = arith.constant 0 : i32
    return %c0_i32, %c0_i32_0, %c0_i32_1 : i32, i32, i32
  }
  func.func @transform_15(%arg0: i32) -> (i32, i32, i32) {
    %c0_i32 = arith.constant 0 : i32
    %c0_i32_0 = arith.constant 0 : i32
    %c0_i32_1 = arith.constant 0 : i32
    %c0_i32_2 = arith.constant 0 : i32
    return %c0_i32, %c0_i32_0, %c0_i32_1 : i32, i32, i32
  }
  func.func @transform_16(%arg0: i32) -> (i32, i32, i32) {
    %c0_i32 = arith.constant 0 : i32
    %c0_i32_0 = arith.constant 0 : i32
    %c0_i32_1 = arith.constant 0 : i32
    %c0_i32_2 = arith.constant 0 : i32
    return %c0_i32, %c0_i32_0, %c0_i32_1 : i32, i32, i32
  }
  func.func @transform_17(%arg0: i32) -> (i32, i32, i32) {
    %c0_i32 = arith.constant 0 : i32
    %c0_i32_0 = arith.constant 0 : i32
    %c0_i32_1 = arith.constant 0 : i32
    return %arg0, %c0_i32, %c0_i32_0 : i32, i32, i32
  }
  func.func @transform_18(%arg0: i32) -> (i32, i32, i32) {
    %c0_i32 = arith.constant 0 : i32
    %c0_i32_0 = arith.constant 0 : i32
    %c0_i32_1 = arith.constant 0 : i32
    return %arg0, %c0_i32, %c0_i32_0 : i32, i32, i32
  }
}

</mosaic_0001>

<llo_original>
// kernel: tpu_custom_call.1
$region0: #{tpu_custom_call.1}
  #allocation0 [shape = 'u32[]', space=smem, size = 0x4, offset = 0x4, fixed_abs, tag = 'smem constant byte address 0x4 - core index']
  #allocation1 [shape = 'u32[72,128]{1,0:T(1,128)}', space=vmem, size = 0x9000, scoped, tag = 'internal scratch']
  #allocation2 [shape = 'f32[16,128]{1,0:T(8,128)}', space=vmem, size = 0x2000, scoped, tag = 'scratch operand']
  %s0 = inlined_call_operand.hbm [shape: f32[2,16,128], index: 0, kind: input, shape index: {}]
  %s1 = inlined_call_operand.hbm [shape: f32[2,16,128], index: 1, kind: input, shape index: {}]
  %s2 = inlined_call_operand.hbm [shape: f32[2,8,128], index: 2, kind: input, shape index: {}]
  %s3 = inlined_call_operand.hbm [shape: f32[2,1,16], index: 3, kind: input, shape index: {}]
  %s4 = inlined_call_operand.hbm [shape: f32[2,1,8], index: 4, kind: input, shape index: {}]
  %s5 = inlined_call_operand.hbm [shape: bf16[4,128,384], index: 5, kind: input, shape index: {}]
  %s6 = inlined_call_operand.hbm [shape: f32[4,1,384], index: 6, kind: input, shape index: {}]
  %s7 = inlined_call_operand.hbm [shape: bf16[4,128,128], index: 7, kind: input, shape index: {}]
  %s8 = inlined_call_operand.vmem [shape: f32[4,1,128], index: 8, kind: input, shape index: {}]
  %s9 = inlined_call_operand.vmem [shape: f32[4,1,128], index: 9, kind: input, shape index: {}]
  %s10 = inlined_call_operand.hbm [shape: f32[4,1,128], index: 10, kind: input, shape index: {}]
  %s11 = inlined_call_operand.hbm [shape: bf16[2,128,128], index: 11, kind: input, shape index: {}]
  %s12 = inlined_call_operand.vmem [shape: f32[2,1,128], index: 12, kind: input, shape index: {}]
  %s13 = inlined_call_operand.hbm [shape: bf16[2,128,128], index: 13, kind: input, shape index: {}]
  %s14 = inlined_call_operand.vmem [shape: f32[2,1,128], index: 14, kind: input, shape index: {}]
  %s15 = inlined_call_operand.vmem [shape: f32[2,1,128], index: 15, kind: input, shape index: {}]
  %s16 = inlined_call_operand.hbm [shape: f32[2,1,128], index: 16, kind: input, shape index: {}]
  %s17 = inlined_call_operand.hbm [shape: f32[2,16,128], index: 17, kind: output, shape index: {0}]
  %s18 = inlined_call_operand.hbm [shape: f32[2,8,128], index: 18, kind: output, shape index: {1}]
  %19 = xla_tuple %s17, %s18
  %s20 = sld [smem:[#allocation0]]
  $region157: #{tpu_custom_call.1} parent=0
    _
  %s22 = ssub.s32 1, %s20
  %s23 = scalar_select 0, %s22, %s20
  $region1: #{tpu_custom_call.1} parent=0
    #allocation3 [shape = 'u8[16384]{0}', space=vmem, size = 0x4000, scoped, tag = 'input window, operand 0']
    #allocation4 [shape = 's32[2]{0}', space=sflag, size = 0x8, scoped, tag = 'scoped memory for tpu_custom_call.1']
    #allocation5 [shape = 's32[2]{0}', space=sflag, size = 0x8, scoped, tag = 'scoped memory for tpu_custom_call.1']
    #allocation6 [shape = 'u8[16384]{0}', space=vmem, size = 0x4000, scoped, tag = 'input window, operand 1']
    #allocation7 [shape = 's32[2]{0}', space=sflag, size = 0x8, scoped, tag = 'scoped memory for tpu_custom_call.1']
    #allocation8 [shape = 'u8[8192]{0}', space=vmem, size = 0x2000, scoped, tag = 'input window, operand 2']
    #allocation9 [shape = 'u8[1024]{0}', space=vmem, size = 0x400, scoped, tag = 'input window, operand 3']
    #allocation10 [shape = 's32[2]{0}', space=sflag, size = 0x8, scoped, tag = 'scoped memory for tpu_custom_call.1']
    #allocation11 [shape = 'u8[1024]{0}', space=vmem, size = 0x400, scoped, tag = 'input window, operand 4']
    #allocation12 [shape = 'u8[393216]{0}', space=vmem, size = 0x60000, scoped, tag = 'input window, operand 5, single buffered']
    #allocation13 [shape = 's32[1]{0}', space=sflag, size = 0x4, scoped, tag = 'scoped memory for tpu_custom_call.1']
    #allocation14 [shape = 'u8[6144]{0}', space=vmem, size = 0x1800, scoped, tag = 'input window, operand 6, single buffered']
    #allocation15 [shape = 'u8[131072]{0}', space=vmem, size = 0x20000, scoped, tag = 'input window, operand 7, single buffered']
    #allocation16 [shape = 's32[1]{0}', space=sflag, size = 0x4, scoped, tag = 'scoped memory for tpu_custom_call.1']
    #allocation17 [shape = 'u8[2048]{0}', space=vmem, size = 0x800, scoped, tag = 'input window, operand 10, single buffered']
    #allocation18 [shape = 'u8[65536]{0}', space=vmem, size = 0x10000, scoped, tag = 'input window, operand 11, single buffered']
    #allocation19 [shape = 's32[1]{0}', space=sflag, size = 0x4, scoped, tag = 'scoped memory for tpu_custom_call.1']
    #allocation20 [shape = 'u8[65536]{0}', space=vmem, size = 0x10000, scoped, tag = 'input window, operand 13, single buffered']
    #allocation21 [shape = 'u8[1024]{0}', space=vmem, size = 0x400, scoped, tag = 'input window, operand 16, single buffered']
    #allocation22 [shape = 's32[1]{0}', space=sflag, size = 0x4, scoped, tag = 'scoped memory for tpu_custom_call.1']
    #allocation23 [shape = 'u8[16384]{0}', space=vmem, size = 0x4000, scoped, tag = 'output window, operand 0']
    #allocation24 [shape = 'u8[8192]{0}', space=vmem, size = 0x2000, scoped, tag = 'output window, operand 1']
    #allocation25 [shape = 's32[2]{0}', space=sflag, size = 0x8, scoped, tag = 'scoped memory for tpu_custom_call.1']
    %24 = vsyncpa [#allocation4], 0
    %s25 = scalar_lea.sflag [#allocation4], 1
    %26 = vsyncpa %s25, 0
    %27 = vsyncpa [#allocation7], 0
    %s28 = scalar_lea.sflag [#allocation7], 1
    %29 = vsyncpa %s28, 0
    %30 = vsyncpa [#allocation10], 0
    %s31 = scalar_lea.sflag [#allocation10], 1
    %32 = vsyncpa %s31, 0
    %33 = vsyncpa [#allocation13], 0
    %34 = vsyncpa [#allocation16], 0
    %35 = vsyncpa [#allocation19], 0
    %36 = vsyncpa [#allocation22], 0
    %37 = vsyncpa [#allocation5], 0
    %s38 = scalar_lea.sflag [#allocation5], 1
    %39 = vsyncpa %s38, 0
    %40 = vsyncpa [#allocation25], 0
    %s41 = scalar_lea.sflag [#allocation25], 1
    %42 = vsyncpa %s41, 0
    loop: start=0, step=1, limit=4
    $region2: #{tpu_custom_call.1} parent=1 // loop_pre_header
      _
    $region3: #{tpu_custom_call.1} parent=1 // loop_header
      %s44 = sphi 0, %s48
      %p45 = scmp.ge.s32.totalorder %s44, 4
      %s54 = sphi 0, %s56
      %s57 = sphi 0, %s54
      %s58 = sphi 0, %s57
      %s74 = sphi 0, %s58
      %s80 = sphi 0, %s82
      %s83 = sphi 0, %s80
      %s84 = sphi 0, %s83
      %s100 = sphi 0, %s84
      %s106 = sphi 0, %s108
      %s109 = sphi 0, %s106
      %s110 = sphi 0, %s109
      %s126 = sphi 0, %s110
      %s132 = sphi 0, %s134
      %s135 = sphi 0, %s132
      %s136 = sphi 0, %s135
      %s152 = sphi 0, %s136
      %s158 = sphi 0, %s160
      %s161 = sphi 0, %s158
      %s162 = sphi 0, %s161
      %s178 = sphi 0, %s162
      %s182 = sphi 0, %s182
      %s184 = sphi 0, %s182
      %s185 = sphi 0, %s184
      %s199 = sphi 0, %s185
      %s203 = sphi 0, %s203
      %s205 = sphi 0, %s203
      %s206 = sphi 0, %s205
      %s220 = sphi 0, %s206
      %s224 = sphi 0, %s224
      %s226 = sphi 0, %s224
      %s227 = sphi 0, %s226
      %s241 = sphi 0, %s227
      %s245 = sphi 0, %s245
      %s247 = sphi 0, %s245
      %s248 = sphi 0, %s247
      %s262 = sphi 0, %s248
      %s266 = sphi 0, %s266
      %s268 = sphi 0, %s266
      %s269 = sphi 0, %s268
      %s283 = sphi 0, %s269
      %s287 = sphi 0, %s287
      %s289 = sphi 0, %s287
      %s290 = sphi 0, %s289
      %s304 = sphi 0, %s290
      %s308 = sphi 0, %s308
      %s310 = sphi 0, %s308
      %s311 = sphi 0, %s310
      %s325 = sphi 0, %s311
      %s329 = sphi 0, %s329
      %s331 = sphi 0, %s329
      %s332 = sphi 0, %s331
      %s346 = sphi 0, %s332
      %s350 = sphi 0, %s350
      %s352 = sphi 0, %s350
      %s353 = sphi 0, %s352
      %s367 = sphi 0, %s353
      %s371 = sphi 0, %s371
      %s373 = sphi 0, %s371
      %s374 = sphi 0, %s373
      %s388 = sphi 0, %s374
      %s392 = sphi 0, %s392
      %s394 = sphi 0, %s392
      %s395 = sphi 0, %s394
      %s409 = sphi 0, %s395
      %s413 = sphi 0, %s413
      %s415 = sphi 0, %s413
      %s416 = sphi 0, %s415
      %s430 = sphi 0, %s416
      %s436 = sphi 0, %s438
      %s439 = sphi 0, %s436
      %s440 = sphi 0, %s439
      %s456 = sphi 0, %s440
      %s462 = sphi 0, %s464
      %s465 = sphi 0, %s462
      %s466 = sphi 0, %s465
      %s482 = sphi 0, %s466
    $region4: #{tpu_custom_call.1} parent=1 // loop_header_branch
      %47 = sbr.rel (%p45) target = $region8
    $region5: #{tpu_custom_call.1} parent=1 // loop_body
      %s49 = ssub.s32 %s44, 1
      %s50 = ssub.s32 %s44, 2
      %s51 = sadd.s32 %s44, 1
      %s52 = ssub.s32 %s44, %s51
      %p53 = scmp.eq.s32.totalorder %s52, 0
      %s55 = sadd.s32 %s54, 1
      %s56 = scalar_select %p53, %s54, %s55
      %p59 = pneg %p53
      %p60 = scmp.eq.s32.totalorder %s44, 1
      %p61 = por %p59, %p60
      %p62 = scmp.ne.s32.totalorder %s54, %s57
      %p63 = scmp.eq.s32.totalorder %s44, 0
      %p64 = por %p62, %p63
      %p65 = scmp.ne.s32.totalorder %s54, %s57
      %p66 = scmp.eq.s32.totalorder %s49, 1
      %p67 = por %p65, %p66
      %p68 = scmp.ne.s32.totalorder %s57, %s58
      %p69 = scmp.eq.s32.totalorder %s49, 0
      %p70 = por %p68, %p69
      %p71 = scmp.ne.s32.totalorder %s57, %s58
      %p72 = scmp.eq.s32.totalorder %s50, 1
      %p73 = por %p71, %p72
      %p75 = scmp.ne.s32.totalorder %s58, %s74
      %p76 = scmp.eq.s32.totalorder %s50, 0
      %p77 = por %p75, %p76
      %s78 = ssub.s32 %s44, %s51
      %p79 = scmp.eq.s32.totalorder %s78, 0
      %s81 = sadd.s32 %s80, 1
      %s82 = scalar_select %p79, %s80, %s81
      %p85 = pneg %p79
      %p86 = scmp.eq.s32.totalorder %s44, 1
      %p87 = por %p85, %p86
      %p88 = scmp.ne.s32.totalorder %s80, %s83
      %p89 = scmp.eq.s32.totalorder %s44, 0
      %p90 = por %p88, %p89
      %p91 = scmp.ne.s32.totalorder %s80, %s83
      %p92 = scmp.eq.s32.totalorder %s49, 1
      %p93 = por %p91, %p92
      %p94 = scmp.ne.s32.totalorder %s83, %s84
      %p95 = scmp.eq.s32.totalorder %s49, 0
      %p96 = por %p94, %p95
      %p97 = scmp.ne.s32.totalorder %s83, %s84
      %p98 = scmp.eq.s32.totalorder %s50, 1
      %p99 = por %p97, %p98
      %p101 = scmp.ne.s32.totalorder %s84, %s100
      %p102 = scmp.eq.s32.totalorder %s50, 0
      %p103 = por %p101, %p102
      %s104 = ssub.s32 %s44, %s51
      %p105 = scmp.eq.s32.totalorder %s104, 0
      %s107 = sadd.s32 %s106, 1
      %s108 = scalar_select %p105, %s106, %s107
      %p111 = pneg %p105
      %p112 = scmp.eq.s32.totalorder %s44, 1
      %p113 = por %p111, %p112
      %p114 = scmp.ne.s32.totalorder %s106, %s109
      %p115 = scmp.eq.s32.totalorder %s44, 0
      %p116 = por %p114, %p115
      %p117 = scmp.ne.s32.totalorder %s106, %s109
      %p118 = scmp.eq.s32.totalorder %s49, 1
      %p119 = por %p117, %p118
      %p120 = scmp.ne.s32.totalorder %s109, %s110
      %p121 = scmp.eq.s32.totalorder %s49, 0
      %p122 = por %p120, %p121
      %p123 = scmp.ne.s32.totalorder %s109, %s110
      %p124 = scmp.eq.s32.totalorder %s50, 1
      %p125 = por %p123, %p124
      %p127 = scmp.ne.s32.totalorder %s110, %s126
      %p128 = scmp.eq.s32.totalorder %s50, 0
      %p129 = por %p127, %p128
      %s130 = ssub.s32 %s44, %s51
      %p131 = scmp.eq.s32.totalorder %s130, 0
      %s133 = sadd.s32 %s132, 1
      %s134 = scalar_select %p131, %s132, %s133
      %p137 = pneg %p131
      %p138 = scmp.eq.s32.totalorder %s44, 1
      %p139 = por %p137, %p138
      %p140 = scmp.ne.s32.totalorder %s132, %s135
      %p141 = scmp.eq.s32.totalorder %s44, 0
      %p142 = por %p140, %p141
      %p143 = scmp.ne.s32.totalorder %s132, %s135
      %p144 = scmp.eq.s32.totalorder %s49, 1
      %p145 = por %p143, %p144
      %p146 = scmp.ne.s32.totalorder %s135, %s136
      %p147 = scmp.eq.s32.totalorder %s49, 0
      %p148 = por %p146, %p147
      %p149 = scmp.ne.s32.totalorder %s135, %s136
      %p150 = scmp.eq.s32.totalorder %s50, 1
      %p151 = por %p149, %p150
      %p153 = scmp.ne.s32.totalorder %s136, %s152
      %p154 = scmp.eq.s32.totalorder %s50, 0
      %p155 = por %p153, %p154
      %s156 = ssub.s32 %s44, %s51
      %p157 = scmp.eq.s32.totalorder %s156, 0
      %s159 = sadd.s32 %s158, 1
      %s160 = scalar_select %p157, %s158, %s159
      %p163 = pneg %p157
      %p164 = scmp.eq.s32.totalorder %s44, 1
      %p165 = por %p163, %p164
      %p166 = scmp.ne.s32.totalorder %s158, %s161
      %p167 = scmp.eq.s32.totalorder %s44, 0
      %p168 = por %p166, %p167
      %p169 = scmp.ne.s32.totalorder %s158, %s161
      %p170 = scmp.eq.s32.totalorder %s49, 1
      %p171 = por %p169, %p170
      %p172 = scmp.ne.s32.totalorder %s161, %s162
      %p173 = scmp.eq.s32.totalorder %s49, 0
      %p174 = por %p172, %p173
      %p175 = scmp.ne.s32.totalorder %s161, %s162
      %p176 = scmp.eq.s32.totalorder %s50, 1
      %p177 = por %p175, %p176
      %p179 = scmp.ne.s32.totalorder %s162, %s178
      %p180 = scmp.eq.s32.totalorder %s50, 0
      %p181 = por %p179, %p180
      %s183 = sadd.s32 %s182, 1
      %p186 = scmp.eq.s32.totalorder %s44, 1
      %p187 = scmp.ne.s32.totalorder %s182, %s184
      %p188 = scmp.eq.s32.totalorder %s44, 0
      %p189 = por %p187, %p188
      %p190 = scmp.ne.s32.totalorder %s182, %s184
      %p191 = scmp.eq.s32.totalorder %s49, 1
      %p192 = por %p190, %p191
      %p193 = scmp.ne.s32.totalorder %s184, %s185
      %p194 = scmp.eq.s32.totalorder %s49, 0
      %p195 = por %p193, %p194
      %p196 = scmp.ne.s32.totalorder %s184, %s185
      %p197 = scmp.eq.s32.totalorder %s50, 1
      %p198 = por %p196, %p197
      %p200 = scmp.ne.s32.totalorder %s185, %s199
      %p201 = scmp.eq.s32.totalorder %s50, 0
      %p202 = por %p200, %p201
      %s204 = sadd.s32 %s203, 1
      %p207 = scmp.eq.s32.totalorder %s44, 1
      %p208 = scmp.ne.s32.totalorder %s203, %s205
      %p209 = scmp.eq.s32.totalorder %s44, 0
      %p210 = por %p208, %p209
      %p211 = scmp.ne.s32.totalorder %s203, %s205
      %p212 = scmp.eq.s32.totalorder %s49, 1
      %p213 = por %p211, %p212
      %p214 = scmp.ne.s32.totalorder %s205, %s206
      %p215 = scmp.eq.s32.totalorder %s49, 0
      %p216 = por %p214, %p215
      %p217 = scmp.ne.s32.totalorder %s205, %s206
      %p218 = scmp.eq.s32.totalorder %s50, 1
      %p219 = por %p217, %p218
      %p221 = scmp.ne.s32.totalorder %s206, %s220
      %p222 = scmp.eq.s32.totalorder %s50, 0
      %p223 = por %p221, %p222
      %s225 = sadd.s32 %s224, 1
      %p228 = scmp.eq.s32.totalorder %s44, 1
      %p229 = scmp.ne.s32.totalorder %s224, %s226
      %p230 = scmp.eq.s32.totalorder %s44, 0
      %p231 = por %p229, %p230
      %p232 = scmp.ne.s32.totalorder %s224, %s226
      %p233 = scmp.eq.s32.totalorder %s49, 1
      %p234 = por %p232, %p233
      %p235 = scmp.ne.s32.totalorder %s226, %s227
      %p236 = scmp.eq.s32.totalorder %s49, 0
      %p237 = por %p235, %p236
      %p238 = scmp.ne.s32.totalorder %s226, %s227
      %p239 = scmp.eq.s32.totalorder %s50, 1
      %p240 = por %p238, %p239
      %p242 = scmp.ne.s32.totalorder %s227, %s241
      %p243 = scmp.eq.s32.totalorder %s50, 0
      %p244 = por %p242, %p243
      %s246 = sadd.s32 %s245, 1
      %p249 = scmp.eq.s32.totalorder %s44, 1
      %p250 = scmp.ne.s32.totalorder %s245, %s247
      %p251 = scmp.eq.s32.totalorder %s44, 0
      %p252 = por %p250, %p251
      %p253 = scmp.ne.s32.totalorder %s245, %s247
      %p254 = scmp.eq.s32.totalorder %s49, 1
      %p255 = por %p253, %p254
      %p256 = scmp.ne.s32.totalorder %s247, %s248
      %p257 = scmp.eq.s32.totalorder %s49, 0
      %p258 = por %p256, %p257
      %p259 = scmp.ne.s32.totalorder %s247, %s248
      %p260 = scmp.eq.s32.totalorder %s50, 1
      %p261 = por %p259, %p260
      %p263 = scmp.ne.s32.totalorder %s248, %s262
      %p264 = scmp.eq.s32.totalorder %s50, 0
      %p265 = por %p263, %p264
      %s267 = sadd.s32 %s266, 1
      %p270 = scmp.eq.s32.totalorder %s44, 1
      %p271 = scmp.ne.s32.totalorder %s266, %s268
      %p272 = scmp.eq.s32.totalorder %s44, 0
      %p273 = por %p271, %p272
      %p274 = scmp.ne.s32.totalorder %s266, %s268
      %p275 = scmp.eq.s32.totalorder %s49, 1
      %p276 = por %p274, %p275
      %p277 = scmp.ne.s32.totalorder %s268, %s269
      %p278 = scmp.eq.s32.totalorder %s49, 0
      %p279 = por %p277, %p278
      %p280 = scmp.ne.s32.totalorder %s268, %s269
      %p281 = scmp.eq.s32.totalorder %s50, 1
      %p282 = por %p280, %p281
      %p284 = scmp.ne.s32.totalorder %s269, %s283
      %p285 = scmp.eq.s32.totalorder %s50, 0
      %p286 = por %p284, %p285
      %s288 = sadd.s32 %s287, 1
      %p291 = scmp.eq.s32.totalorder %s44, 1
      %p292 = scmp.ne.s32.totalorder %s287, %s289
      %p293 = scmp.eq.s32.totalorder %s44, 0
      %p294 = por %p292, %p293
      %p295 = scmp.ne.s32.totalorder %s287, %s289
      %p296 = scmp.eq.s32.totalorder %s49, 1
      %p297 = por %p295, %p296
      %p298 = scmp.ne.s32.totalorder %s289, %s290
      %p299 = scmp.eq.s32.totalorder %s49, 0
      %p300 = por %p298, %p299
      %p301 = scmp.ne.s32.totalorder %s289, %s290
      %p302 = scmp.eq.s32.totalorder %s50, 1
      %p303 = por %p301, %p302
      %p305 = scmp.ne.s32.totalorder %s290, %s304
      %p306 = scmp.eq.s32.totalorder %s50, 0
      %p307 = por %p305, %p306
      %s309 = sadd.s32 %s308, 1
      %p312 = scmp.eq.s32.totalorder %s44, 1
      %p313 = scmp.ne.s32.totalorder %s308, %s310
      %p314 = scmp.eq.s32.totalorder %s44, 0
      %p315 = por %p313, %p314
      %p316 = scmp.ne.s32.totalorder %s308, %s310
      %p317 = scmp.eq.s32.totalorder %s49, 1
      %p318 = por %p316, %p317
      %p319 = scmp.ne.s32.totalorder %s310, %s311
      %p320 = scmp.eq.s32.totalorder %s49, 0
      %p321 = por %p319, %p320
      %p322 = scmp.ne.s32.totalorder %s310, %s311
      %p323 = scmp.eq.s32.totalorder %s50, 1
      %p324 = por %p322, %p323
      %p326 = scmp.ne.s32.totalorder %s311, %s325
      %p327 = scmp.eq.s32.totalorder %s50, 0
      %p328 = por %p326, %p327
      %s330 = sadd.s32 %s329, 1
      %p333 = scmp.eq.s32.totalorder %s44, 1
      %p334 = scmp.ne.s32.totalorder %s329, %s331
      %p335 = scmp.eq.s32.totalorder %s44, 0
      %p336 = por %p334, %p335
      %p337 = scmp.ne.s32.totalorder %s329, %s331
      %p338 = scmp.eq.s32.totalorder %s49, 1
      %p339 = por %p337, %p338
      %p340 = scmp.ne.s32.totalorder %s331, %s332
      %p341 = scmp.eq.s32.totalorder %s49, 0
      %p342 = por %p340, %p341
      %p343 = scmp.ne.s32.totalorder %s331, %s332
      %p344 = scmp.eq.s32.totalorder %s50, 1
      %p345 = por %p343, %p344
      %p347 = scmp.ne.s32.totalorder %s332, %s346
      %p348 = scmp.eq.s32.totalorder %s50, 0
      %p349 = por %p347, %p348
      %s351 = sadd.s32 %s350, 1
      %p354 = scmp.eq.s32.totalorder %s44, 1
      %p355 = scmp.ne.s32.totalorder %s350, %s352
      %p356 = scmp.eq.s32.totalorder %s44, 0
      %p357 = por %p355, %p356
      %p358 = scmp.ne.s32.totalorder %s350, %s352
      %p359 = scmp.eq.s32.totalorder %s49, 1
      %p360 = por %p358, %p359
      %p361 = scmp.ne.s32.totalorder %s352, %s353
      %p362 = scmp.eq.s32.totalorder %s49, 0
      %p363 = por %p361, %p362
      %p364 = scmp.ne.s32.totalorder %s352, %s353
      %p365 = scmp.eq.s32.totalorder %s50, 1
      %p366 = por %p364, %p365
      %p368 = scmp.ne.s32.totalorder %s353, %s367
      %p369 = scmp.eq.s32.totalorder %s50, 0
      %p370 = por %p368, %p369
      %s372 = sadd.s32 %s371, 1
      %p375 = scmp.eq.s32.totalorder %s44, 1
      %p376 = scmp.ne.s32.totalorder %s371, %s373
      %p377 = scmp.eq.s32.totalorder %s44, 0
      %p378 = por %p376, %p377
      %p379 = scmp.ne.s32.totalorder %s371, %s373
      %p380 = scmp.eq.s32.totalorder %s49, 1
      %p381 = por %p379, %p380
      %p382 = scmp.ne.s32.totalorder %s373, %s374
      %p383 = scmp.eq.s32.totalorder %s49, 0
      %p384 = por %p382, %p383
      %p385 = scmp.ne.s32.totalorder %s373, %s374
      %p386 = scmp.eq.s32.totalorder %s50, 1
      %p387 = por %p385, %p386
      %p389 = scmp.ne.s32.totalorder %s374, %s388
      %p390 = scmp.eq.s32.totalorder %s50, 0
      %p391 = por %p389, %p390
      %s393 = sadd.s32 %s392, 1
      %p396 = scmp.eq.s32.totalorder %s44, 1
      %p397 = scmp.ne.s32.totalorder %s392, %s394
      %p398 = scmp.eq.s32.totalorder %s44, 0
      %p399 = por %p397, %p398
      %p400 = scmp.ne.s32.totalorder %s392, %s394
      %p401 = scmp.eq.s32.totalorder %s49, 1
      %p402 = por %p400, %p401
      %p403 = scmp.ne.s32.totalorder %s394, %s395
      %p404 = scmp.eq.s32.totalorder %s49, 0
      %p405 = por %p403, %p404
      %p406 = scmp.ne.s32.totalorder %s394, %s395
      %p407 = scmp.eq.s32.totalorder %s50, 1
      %p408 = por %p406, %p407
      %p410 = scmp.ne.s32.totalorder %s395, %s409
      %p411 = scmp.eq.s32.totalorder %s50, 0
      %p412 = por %p410, %p411
      %s414 = sadd.s32 %s413, 1
      %p417 = scmp.eq.s32.totalorder %s44, 1
      %p418 = scmp.ne.s32.totalorder %s413, %s415
      %p419 = scmp.eq.s32.totalorder %s44, 0
      %p420 = por %p418, %p419
      %p421 = scmp.ne.s32.totalorder %s413, %s415
      %p422 = scmp.eq.s32.totalorder %s49, 1
      %p423 = por %p421, %p422
      %p424 = scmp.ne.s32.totalorder %s415, %s416
      %p425 = scmp.eq.s32.totalorder %s49, 0
      %p426 = por %p424, %p425
      %p427 = scmp.ne.s32.totalorder %s415, %s416
      %p428 = scmp.eq.s32.totalorder %s50, 1
      %p429 = por %p427, %p428
      %p431 = scmp.ne.s32.totalorder %s416, %s430
      %p432 = scmp.eq.s32.totalorder %s50, 0
      %p433 = por %p431, %p432
      %s434 = ssub.s32 %s44, %s51
      %p435 = scmp.eq.s32.totalorder %s434, 0
      %s437 = sadd.s32 %s436, 1
      %s438 = scalar_select %p435, %s436, %s437
      %p441 = pneg %p435
      %p442 = scmp.eq.s32.totalorder %s44, 1
      %p443 = por %p441, %p442
      %p444 = scmp.ne.s32.totalorder %s436, %s439
      %p445 = scmp.eq.s32.totalorder %s44, 0
      %p446 = por %p444, %p445
      %p447 = scmp.ne.s32.totalorder %s436, %s439
      %p448 = scmp.eq.s32.totalorder %s49, 1
      %p449 = por %p447, %p448
      %p450 = scmp.ne.s32.totalorder %s439, %s440
      %p451 = scmp.eq.s32.totalorder %s49, 0
      %p452 = por %p450, %p451
      %p453 = scmp.ne.s32.totalorder %s439, %s440
      %p454 = scmp.eq.s32.totalorder %s50, 1
      %p455 = por %p453, %p454
      %p457 = scmp.ne.s32.totalorder %s440, %s456
      %p458 = scmp.eq.s32.totalorder %s50, 0
      %p459 = por %p457, %p458
      %s460 = ssub.s32 %s44, %s51
      %p461 = scmp.eq.s32.totalorder %s460, 0
      %s463 = sadd.s32 %s462, 1
      %s464 = scalar_select %p461, %s462, %s463
      %p467 = pneg %p461
      %p468 = scmp.eq.s32.totalorder %s44, 1
      %p469 = por %p467, %p468
      %p470 = scmp.ne.s32.totalorder %s462, %s465
      %p471 = scmp.eq.s32.totalorder %s44, 0
      %p472 = por %p470, %p471
      %p473 = scmp.ne.s32.totalorder %s462, %s465
      %p474 = scmp.eq.s32.totalorder %s49, 1
      %p475 = por %p473, %p474
      %p476 = scmp.ne.s32.totalorder %s465, %s466
      %p477 = scmp.eq.s32.totalorder %s49, 0
      %p478 = por %p476, %p477
      %p479 = scmp.ne.s32.totalorder %s465, %s466
      %p480 = scmp.eq.s32.totalorder %s50, 1
      %p481 = por %p479, %p480
      %p483 = scmp.ne.s32.totalorder %s466, %s482
      %p484 = scmp.eq.s32.totalorder %s50, 0
      %p485 = por %p483, %p484
      %p486 = scmp.le.s32.totalorder 1, %s44
      %p487 = scmp.lt.s32.totalorder %s44, 3
      %p488 = pnand %p486, %p487
      %p489 = pneg %p488
      // Predicated region
      $region9: #{tpu_custom_call.1} parent=5 // pred_check
        _
      $region10: #{tpu_custom_call.1} parent=5 // pred_check_branch
        %491 = sbr.rel (%p488) target = $region12
      $region11: #{tpu_custom_call.1} parent=5 // pred_region
        %s492 = ssub.s32 %s44, 1
        // Predicated region
        $region13: #{tpu_custom_call.1} parent=11 // pred_check
          %p493 = pneg %p195
        $region14: #{tpu_custom_call.1} parent=11 // pred_check_branch
          %495 = sbr.rel (%p493) target = $region16
        $region15: #{tpu_custom_call.1} parent=11 // pred_region
          %497 = vsyncadd [#allocation13], 0
          %s498 = sshll.u32 %s5, 4
          %s499 = int_to_ptr.hbm [resolvable:$true] %s498
          %s500 = sshll.u32 [#allocation12], 4
          %s501 = int_to_ptr.vmem [resolvable:$true] %s500
          %506 = dma.hbm_to_vmem [thread:$0]  %s499, 12288, %s501, [#allocation13], 192, 192, 12
        $region16: #{tpu_custom_call.1} parent=11 // pred_fallthru
          _
        // Predicated region
        $region17: #{tpu_custom_call.1} parent=11 // pred_check
          %p507 = pneg %p216
        $region18: #{tpu_custom_call.1} parent=11 // pred_check_branch
          %509 = sbr.rel (%p507) target = $region20
        $region19: #{tpu_custom_call.1} parent=11 // pred_region
          %511 = vsyncadd [#allocation13], 0
          %s512 = sshll.u32 %s6, 4
          %s513 = int_to_ptr.hbm [resolvable:$true] %s512
          %s514 = sshll.u32 [#allocation14], 4
          %s515 = int_to_ptr.vmem [resolvable:$true] %s514
          %520 = dma.hbm_to_vmem [thread:$0]  %s513, 192, %s515, [#allocation13], 48, 48, 3
        $region20: #{tpu_custom_call.1} parent=11 // pred_fallthru
          _
        // Predicated region
        $region21: #{tpu_custom_call.1} parent=11 // pred_check
          %p521 = pneg %p237
        $region22: #{tpu_custom_call.1} parent=11 // pred_check_branch
          %523 = sbr.rel (%p521) target = $region24
        $region23: #{tpu_custom_call.1} parent=11 // pred_region
          %525 = vsyncadd [#allocation16], 0
          %s526 = sshll.u32 %s7, 4
          %s527 = int_to_ptr.hbm [resolvable:$true] %s526
          %s528 = sshll.u32 [#allocation15], 4
          %s529 = int_to_ptr.vmem [resolvable:$true] %s528
          %534 = dma.hbm_to_vmem [thread:$0]  %s527, 4096, %s529, [#allocation16], 64, 64, 4
        $region24: #{tpu_custom_call.1} parent=11 // pred_fallthru
          _
        // Predicated region
        $region25: #{tpu_custom_call.1} parent=11 // pred_check
          %p535 = pneg %p258
        $region26: #{tpu_custom_call.1} parent=11 // pred_check_branch
          %537 = sbr.rel (%p535) target = $region28
        $region27: #{tpu_custom_call.1} parent=11 // pred_region
          _
        $region28: #{tpu_custom_call.1} parent=11 // pred_fallthru
          _
        // Predicated region
        $region29: #{tpu_custom_call.1} parent=11 // pred_check
          %p538 = pneg %p279
        $region30: #{tpu_custom_call.1} parent=11 // pred_check_branch
          %540 = sbr.rel (%p538) target = $region32
        $region31: #{tpu_custom_call.1} parent=11 // pred_region
          _
        $region32: #{tpu_custom_call.1} parent=11 // pred_fallthru
          _
        // Predicated region
        $region33: #{tpu_custom_call.1} parent=11 // pred_check
          %p541 = pneg %p300
        $region34: #{tpu_custom_call.1} parent=11 // pred_check_branch
          %543 = sbr.rel (%p541) target = $region36
        $region35: #{tpu_custom_call.1} parent=11 // pred_region
          %545 = vsyncadd [#allocation16], 0
          %s546 = sshll.u32 %s10, 4
          %s547 = int_to_ptr.hbm [resolvable:$true] %s546
          %s548 = sshll.u32 [#allocation17], 4
          %s549 = int_to_ptr.vmem [resolvable:$true] %s548
          %554 = dma.hbm_to_vmem [thread:$0]  %s547, 64, %s549, [#allocation16], 16, 16, 1
        $region36: #{tpu_custom_call.1} parent=11 // pred_fallthru
          _
        // Predicated region
        $region37: #{tpu_custom_call.1} parent=11 // pred_check
          %p555 = pneg %p321
        $region38: #{tpu_custom_call.1} parent=11 // pred_check_branch
          %557 = sbr.rel (%p555) target = $region40
        $region39: #{tpu_custom_call.1} parent=11 // pred_region
          %559 = vsyncadd [#allocation19], 0
          %s560 = sshll.u32 %s11, 4
          %s561 = int_to_ptr.hbm [resolvable:$true] %s560
          %s562 = sshll.u32 [#allocation18], 4
          %s563 = int_to_ptr.vmem [resolvable:$true] %s562
          %568 = dma.hbm_to_vmem [thread:$0]  %s561, 2048, %s563, [#allocation19], 64, 64, 4
        $region40: #{tpu_custom_call.1} parent=11 // pred_fallthru
          _
        // Predicated region
        $region41: #{tpu_custom_call.1} parent=11 // pred_check
          %p569 = pneg %p342
        $region42: #{tpu_custom_call.1} parent=11 // pred_check_branch
          %571 = sbr.rel (%p569) target = $region44
        $region43: #{tpu_custom_call.1} parent=11 // pred_region
          _
        $region44: #{tpu_custom_call.1} parent=11 // pred_fallthru
          _
        // Predicated region
        $region45: #{tpu_custom_call.1} parent=11 // pred_check
          %p572 = pneg %p363
        $region46: #{tpu_custom_call.1} parent=11 // pred_check_branch
          %574 = sbr.rel (%p572) target = $region48
        $region47: #{tpu_custom_call.1} parent=11 // pred_region
          %576 = vsyncadd [#allocation19], 0
          %s577 = sshll.u32 %s13, 4
          %s578 = int_to_ptr.hbm [resolvable:$true] %s577
          %s579 = sshll.u32 [#allocation20], 4
          %s580 = int_to_ptr.vmem [resolvable:$true] %s579
          %585 = dma.hbm_to_vmem [thread:$0]  %s578, 2048, %s580, [#allocation19], 64, 64, 4
        $region48: #{tpu_custom_call.1} parent=11 // pred_fallthru
          _
        // Predicated region
        $region49: #{tpu_custom_call.1} parent=11 // pred_check
          %p586 = pneg %p384
        $region50: #{tpu_custom_call.1} parent=11 // pred_check_branch
          %588 = sbr.rel (%p586) target = $region52
        $region51: #{tpu_custom_call.1} parent=11 // pred_region
          _
        $region52: #{tpu_custom_call.1} parent=11 // pred_fallthru
          _
        // Predicated region
        $region53: #{tpu_custom_call.1} parent=11 // pred_check
          %p589 = pneg %p405
        $region54: #{tpu_custom_call.1} parent=11 // pred_check_branch
          %591 = sbr.rel (%p589) target = $region56
        $region55: #{tpu_custom_call.1} parent=11 // pred_region
          _
        $region56: #{tpu_custom_call.1} parent=11 // pred_fallthru
          _
        // Predicated region
        $region57: #{tpu_custom_call.1} parent=11 // pred_check
          %p592 = pneg %p426
        $region58: #{tpu_custom_call.1} parent=11 // pred_check_branch
          %594 = sbr.rel (%p592) target = $region60
        $region59: #{tpu_custom_call.1} parent=11 // pred_region
          %596 = vsyncadd [#allocation22], 0
          %s597 = sshll.u32 %s16, 4
          %s598 = int_to_ptr.hbm [resolvable:$true] %s597
          %s599 = sshll.u32 [#allocation21], 4
          %s600 = int_to_ptr.vmem [resolvable:$true] %s599
          %605 = dma.hbm_to_vmem [thread:$0]  %s598, 32, %s600, [#allocation22], 16, 16, 1
        $region60: #{tpu_custom_call.1} parent=11 // pred_fallthru
          _
      $region12: #{tpu_custom_call.1} parent=5 // pred_fallthru
        _
      %p606 = scmp.lt.s32.totalorder %s44, 2
      // Predicated region
      $region61: #{tpu_custom_call.1} parent=5 // pred_check
        %p607 = pneg %p606
      $region62: #{tpu_custom_call.1} parent=5 // pred_check_branch
        %609 = sbr.rel (%p607) target = $region64
      $region63: #{tpu_custom_call.1} parent=5 // pred_region
        // Predicated region
        $region65: #{tpu_custom_call.1} parent=63 // pred_check
          %p610 = pneg %p64
        $region66: #{tpu_custom_call.1} parent=63 // pred_check_branch
          %612 = sbr.rel (%p610) target = $region68
        $region67: #{tpu_custom_call.1} parent=63 // pred_region
          %s613 = sand.u32 %s54, 1
          %s614 = scalar_lea.sflag [#allocation4], %s613
          %s615 = sand.u32 %s54, 1
          %s616 = smul.addr %s615, 16
          %s617 = scalar_lea.vmem [#allocation3], %s616
          %619 = vsyncadd %s614, 0
          %s620 = smul.addr %s44, 2
          %s621 = smul.addr %s620, 8
          %s622 = scalar_lea.hbm %s0, %s621
          %s623 = sshll.u32 %s622, 4
          %s624 = int_to_ptr.hbm [resolvable:$true] %s623
          %s625 = sshll.u32 %s617, 4
          %s626 = int_to_ptr.vmem [resolvable:$true] %s625
          %631 = dma.hbm_to_vmem [thread:$0]  %s624, 256, %s626, %s614, 128, 128, 8
        $region68: #{tpu_custom_call.1} parent=63 // pred_fallthru
          _
        // Predicated region
        $region69: #{tpu_custom_call.1} parent=63 // pred_check
          %p632 = pneg %p90
        $region70: #{tpu_custom_call.1} parent=63 // pred_check_branch
          %634 = sbr.rel (%p632) target = $region72
        $region71: #{tpu_custom_call.1} parent=63 // pred_region
          %s635 = sand.u32 %s44, 1
          %s636 = scalar_lea.sflag [#allocation7], %s635
          %s637 = sand.u32 %s80, 1
          %s638 = smul.addr %s637, 16
          %s639 = scalar_lea.vmem [#allocation6], %s638
          %641 = vsyncadd %s636, 0
          %s642 = smul.addr %s44, 2
          %s643 = smul.addr %s642, 8
          %s644 = scalar_lea.hbm %s1, %s643
          %s645 = sshll.u32 %s644, 4
          %s646 = int_to_ptr.hbm [resolvable:$true] %s645
          %s647 = sshll.u32 %s639, 4
          %s648 = int_to_ptr.vmem [resolvable:$true] %s647
          %653 = dma.hbm_to_vmem [thread:$0]  %s646, 256, %s648, %s636, 128, 128, 8
        $region72: #{tpu_custom_call.1} parent=63 // pred_fallthru
          _
        // Predicated region
        $region73: #{tpu_custom_call.1} parent=63 // pred_check
          %p654 = pneg %p116
        $region74: #{tpu_custom_call.1} parent=63 // pred_check_branch
          %656 = sbr.rel (%p654) target = $region76
        $region75: #{tpu_custom_call.1} parent=63 // pred_region
          %s657 = sand.u32 %s44, 1
          %s658 = scalar_lea.sflag [#allocation7], %s657
          %s659 = sand.u32 %s106, 1
          %s660 = smul.addr %s659, 8
          %s661 = scalar_lea.vmem [#allocation8], %s660
          %663 = vsyncadd %s658, 0
          %s664 = smul.addr %s44, 8
          %s665 = scalar_lea.hbm %s2, %s664
          %s667 = sshll.u32 %s665, 4
          %s668 = int_to_ptr.hbm [resolvable:$true] %s667
          %s669 = sshll.u32 %s661, 4
          %s670 = int_to_ptr.vmem [resolvable:$true] %s669
          %672 = dma.hbm_to_vmem [thread:$0]  %s668, 128, %s670, %s658
        $region76: #{tpu_custom_call.1} parent=63 // pred_fallthru
          _
        // Predicated region
        $region77: #{tpu_custom_call.1} parent=63 // pred_check
          %p673 = pneg %p142
        $region78: #{tpu_custom_call.1} parent=63 // pred_check_branch
          %675 = sbr.rel (%p673) target = $region80
        $region79: #{tpu_custom_call.1} parent=63 // pred_region
          %s676 = sand.u32 %s44, 1
          %s677 = scalar_lea.sflag [#allocation10], %s676
          %s678 = sand.u32 %s132, 1
          %s679 = scalar_lea.vmem [#allocation9], %s678
          %681 = vsyncadd %s677, 0
          %s682 = scalar_lea.hbm %s3, %s44
          %s684 = sshll.u32 %s682, 4
          %s685 = int_to_ptr.hbm [resolvable:$true] %s684
          %s686 = sshll.u32 %s679, 4
          %s687 = int_to_ptr.vmem [resolvable:$true] %s686
          %689 = dma.hbm_to_vmem [thread:$0]  %s685, 16, %s687, %s677
        $region80: #{tpu_custom_call.1} parent=63 // pred_fallthru
          _
        // Predicated region
        $region81: #{tpu_custom_call.1} parent=63 // pred_check
          %p690 = pneg %p168
        $region82: #{tpu_custom_call.1} parent=63 // pred_check_branch
          %692 = sbr.rel (%p690) target = $region84
        $region83: #{tpu_custom_call.1} parent=63 // pred_region
          %s693 = sand.u32 %s44, 1
          %s694 = scalar_lea.sflag [#allocation10], %s693
          %s695 = sand.u32 %s158, 1
          %s696 = scalar_lea.vmem [#allocation11], %s695
          %698 = vsyncadd %s694, 0
          %s699 = scalar_lea.hbm %s4, %s44
          %s701 = sshll.u32 %s699, 4
          %s702 = int_to_ptr.hbm [resolvable:$true] %s701
          %s703 = sshll.u32 %s696, 4
          %s704 = int_to_ptr.vmem [resolvable:$true] %s703
          %706 = dma.hbm_to_vmem [thread:$0]  %s702, 16, %s704, %s694
        $region84: #{tpu_custom_call.1} parent=63 // pred_fallthru
          _
      $region64: #{tpu_custom_call.1} parent=5 // pred_fallthru
        _
      %p707 = scmp.le.s32.totalorder 1, %s44
      %p708 = scmp.lt.s32.totalorder %s44, 3
      %p709 = pnand %p707, %p708
      %p710 = pneg %p709
      // Predicated region
      $region85: #{tpu_custom_call.1} parent=5 // pred_check
        _
      $region86: #{tpu_custom_call.1} parent=5 // pred_check_branch
        %712 = sbr.rel (%p709) target = $region88
      $region87: #{tpu_custom_call.1} parent=5 // pred_region
        %s713 = ssub.s32 %s44, 1
        %s714 = sand.u32 %s57, 1
        %s715 = scalar_lea.sflag [#allocation4], %s714
        %s716 = sand.u32 %s57, 1
        %s717 = smul.addr %s716, 16
        %s718 = scalar_lea.vmem [#allocation3], %s717
        // Predicated region
        $region89: #{tpu_custom_call.1} parent=87 // pred_check
          %p719 = pneg %p70
        $region90: #{tpu_custom_call.1} parent=87 // pred_check_branch
          %721 = sbr.rel (%p719) target = $region92
        $region91: #{tpu_custom_call.1} parent=87 // pred_region
          %723 = dma.done %s715, 256
        $region92: #{tpu_custom_call.1} parent=87 // pred_fallthru
          _
        %s724 = sand.u32 %s49, 1
        %s725 = scalar_lea.sflag [#allocation7], %s724
        %s726 = sand.u32 %s83, 1
        %s727 = smul.addr %s726, 16
        %s728 = scalar_lea.vmem [#allocation6], %s727
        // Predicated region
        $region93: #{tpu_custom_call.1} parent=87 // pred_check
          %p729 = pneg %p96
        $region94: #{tpu_custom_call.1} parent=87 // pred_check_branch
          %731 = sbr.rel (%p729) target = $region96
        $region95: #{tpu_custom_call.1} parent=87 // pred_region
          %733 = dma.done %s725, 256
        $region96: #{tpu_custom_call.1} parent=87 // pred_fallthru
          _
        %s734 = sand.u32 %s49, 1
        %s735 = scalar_lea.sflag [#allocation7], %s734
        %s736 = sand.u32 %s109, 1
        %s737 = smul.addr %s736, 8
        %s738 = scalar_lea.vmem [#allocation8], %s737
        // Predicated region
        $region97: #{tpu_custom_call.1} parent=87 // pred_check
          %p739 = pneg %p122
        $region98: #{tpu_custom_call.1} parent=87 // pred_check_branch
          %741 = sbr.rel (%p739) target = $region100
        $region99: #{tpu_custom_call.1} parent=87 // pred_region
          %743 = dma.done %s735, 128
        $region100: #{tpu_custom_call.1} parent=87 // pred_fallthru
          _
        %s744 = sand.u32 %s49, 1
        %s745 = scalar_lea.sflag [#allocation10], %s744
        %s746 = sand.u32 %s135, 1
        %s747 = scalar_lea.vmem [#allocation9], %s746
        // Predicated region
        $region101: #{tpu_custom_call.1} parent=87 // pred_check
          %p748 = pneg %p148
        $region102: #{tpu_custom_call.1} parent=87 // pred_check_branch
          %750 = sbr.rel (%p748) target = $region104
        $region103: #{tpu_custom_call.1} parent=87 // pred_region
          %752 = dma.done %s745, 16
        $region104: #{tpu_custom_call.1} parent=87 // pred_fallthru
          _
        %s753 = sand.u32 %s49, 1
        %s754 = scalar_lea.sflag [#allocation10], %s753
        %s755 = sand.u32 %s161, 1
        %s756 = scalar_lea.vmem [#allocation11], %s755
        // Predicated region
        $region105: #{tpu_custom_call.1} parent=87 // pred_check
          %p757 = pneg %p174
        $region106: #{tpu_custom_call.1} parent=87 // pred_check_branch
          %759 = sbr.rel (%p757) target = $region108
        $region107: #{tpu_custom_call.1} parent=87 // pred_region
          %761 = dma.done %s754, 16
        $region108: #{tpu_custom_call.1} parent=87 // pred_fallthru
          _
        // Predicated region
        $region109: #{tpu_custom_call.1} parent=87 // pred_check
          %p762 = pneg %p195
        $region110: #{tpu_custom_call.1} parent=87 // pred_check_branch
          %764 = sbr.rel (%p762) target = $region112
        $region111: #{tpu_custom_call.1} parent=87 // pred_region
          %766 = dma.done [#allocation13], 12288
        $region112: #{tpu_custom_call.1} parent=87 // pred_fallthru
          _
        // Predicated region
        $region113: #{tpu_custom_call.1} parent=87 // pred_check
          %p767 = pneg %p216
        $region114: #{tpu_custom_call.1} parent=87 // pred_check_branch
          %769 = sbr.rel (%p767) target = $region116
        $region115: #{tpu_custom_call.1} parent=87 // pred_region
          %771 = dma.done [#allocation13], 192
        $region116: #{tpu_custom_call.1} parent=87 // pred_fallthru
          _
        // Predicated region
        $region117: #{tpu_custom_call.1} parent=87 // pred_check
          %p772 = pneg %p237
        $region118: #{tpu_custom_call.1} parent=87 // pred_check_branch
          %774 = sbr.rel (%p772) target = $region120
        $region119: #{tpu_custom_call.1} parent=87 // pred_region
          %776 = dma.done [#allocation16], 4096
        $region120: #{tpu_custom_call.1} parent=87 // pred_fallthru
          _
        // Predicated region
        $region121: #{tpu_custom_call.1} parent=87 // pred_check
          %p777 = pneg %p300
        $region122: #{tpu_custom_call.1} parent=87 // pred_check_branch
          %779 = sbr.rel (%p777) target = $region124
        $region123: #{tpu_custom_call.1} parent=87 // pred_region
          %781 = dma.done [#allocation16], 64
        $region124: #{tpu_custom_call.1} parent=87 // pred_fallthru
          _
        // Predicated region
        $region125: #{tpu_custom_call.1} parent=87 // pred_check
          %p782 = pneg %p321
        $region126: #{tpu_custom_call.1} parent=87 // pred_check_branch
          %784 = sbr.rel (%p782) target = $region128
        $region127: #{tpu_custom_call.1} parent=87 // pred_region
          %786 = dma.done [#allocation19], 2048
        $region128: #{tpu_custom_call.1} parent=87 // pred_fallthru
          _
        // Predicated region
        $region129: #{tpu_custom_call.1} parent=87 // pred_check
          %p787 = pneg %p363
        $region130: #{tpu_custom_call.1} parent=87 // pred_check_branch
          %789 = sbr.rel (%p787) target = $region132
        $region131: #{tpu_custom_call.1} parent=87 // pred_region
          %791 = dma.done [#allocation19], 2048
        $region132: #{tpu_custom_call.1} parent=87 // pred_fallthru
          _
        // Predicated region
        $region133: #{tpu_custom_call.1} parent=87 // pred_check
          %p792 = pneg %p426
        $region134: #{tpu_custom_call.1} parent=87 // pred_check_branch
          %794 = sbr.rel (%p792) target = $region136
        $region135: #{tpu_custom_call.1} parent=87 // pred_region
          %796 = dma.done [#allocation22], 32
        $region136: #{tpu_custom_call.1} parent=87 // pred_fallthru
          _
        %s797 = sand.u32 %s57, 1
        %s798 = scalar_lea.sflag [#allocation4], %s797
        %s799 = sand.u32 %s57, 1
        %s800 = smul.addr %s799, 16
        %s801 = scalar_lea.vmem [#allocation3], %s800
        %p802 = pneg %p70
        %p803 = pneg %p67
        %s804 = sand.u32 %s49, 1
        %s805 = scalar_lea.sflag [#allocation7], %s804
        %s806 = sand.u32 %s83, 1
        %s807 = smul.addr %s806, 16
        %s808 = scalar_lea.vmem [#allocation6], %s807
        %p809 = pneg %p96
        %p810 = pneg %p93
        %s811 = sand.u32 %s49, 1
        %s812 = scalar_lea.sflag [#allocation7], %s811
        %s813 = sand.u32 %s109, 1
        %s814 = smul.addr %s813, 8
        %s815 = scalar_lea.vmem [#allocation8], %s814
        %p816 = pneg %p122
        %p817 = pneg %p119
        %s818 = sand.u32 %s49, 1
        %s819 = scalar_lea.sflag [#allocation10], %s818
        %s820 = sand.u32 %s135, 1
        %s821 = scalar_lea.vmem [#allocation9], %s820
        %p822 = pneg %p148
        %p823 = pneg %p145
        %s824 = sand.u32 %s49, 1
        %s825 = scalar_lea.sflag [#allocation10], %s824
        %s826 = sand.u32 %s161, 1
        %s827 = scalar_lea.vmem [#allocation11], %s826
        %p828 = pneg %p174
        %p829 = pneg %p171
        %p830 = pneg %p195
        %p831 = pneg %p192
        %p832 = pneg %p216
        %p833 = pneg %p213
        %p834 = pneg %p237
        %p835 = pneg %p234
        %p836 = pneg %p258
        %p837 = pneg %p255
        %p838 = pneg %p279
        %p839 = pneg %p276
        %p840 = pneg %p300
        %p841 = pneg %p297
        %p842 = pneg %p321
        %p843 = pneg %p318
        %p844 = pneg %p342
        %p845 = pneg %p339
        %p846 = pneg %p363
        %p847 = pneg %p360
        %p848 = pneg %p384
        %p849 = pneg %p381
        %p850 = pneg %p405
        %p851 = pneg %p402
        %p852 = pneg %p426
        %p853 = pneg %p423
        %p854 = pneg %p452
        %p855 = pneg %p449
        %s856 = sand.u32 %s439, 1
        %s857 = scalar_lea.sflag [#allocation5], %s856
        %s858 = sand.u32 %s439, 1
        %s859 = smul.addr %s858, 16
        %s860 = scalar_lea.vmem [#allocation23], %s859
        %p861 = pneg %p478
        %p862 = pneg %p475
        %s863 = sand.u32 %s465, 1
        %s864 = scalar_lea.sflag [#allocation25], %s863
        %s865 = sand.u32 %s465, 1
        %s866 = smul.addr %s865, 8
        %s867 = scalar_lea.vmem [#allocation24], %s866
        %v869 = vld [vmem:[%s718] sm:$0xff]
        %v870 = vld [vmem:[%s718 + $0x8] sm:$0xff]
        %v871 = vld [vmem:[%s728] sm:$0xff]
        %v872 = vld [vmem:[%s728 + $0x8] sm:$0xff]
        %v873 = vld [vmem:[%s738] sm:$0xff]
        %v874 = vld [vmem:[%s747] sm:$0x1]
        %v875 = vld [vmem:[%s756] sm:$0x1]
        %v876 = vadd.f32 %v869, %v871
        %v877 = vadd.f32 %v870, %v872
        %v878 = vpack.c.bf16 %v877, %v876
        %v879 = vpack.c.bf16 %v870, %v869
        %v880 = vld [vmem:[#allocation12] sm:$0xf]
        %v881 = vld [vmem:[#allocation12 + $0xc] sm:$0xf]
        %v882 = vld [vmem:[#allocation12 + $0x18] sm:$0xf]
        %v883 = vld [vmem:[#allocation12 + $0x24] sm:$0xf]
        %v884 = vld [vmem:[#allocation12 + $0x30] sm:$0xf]
        %v885 = vld [vmem:[#allocation12 + $0x3c] sm:$0xf]
        %v886 = vld [vmem:[#allocation12 + $0x48] sm:$0xf]
        %v887 = vld [vmem:[#allocation12 + $0x54] sm:$0xf]
        %v888 = vld [vmem:[#allocation12 + $0x60] sm:$0xf]
        %v889 = vld [vmem:[#allocation12 + $0x6c] sm:$0xf]
        %v890 = vld [vmem:[#allocation12 + $0x78] sm:$0xf]
        %v891 = vld [vmem:[#allocation12 + $0x84] sm:$0xf]
        %v892 = vld [vmem:[#allocation12 + $0x90] sm:$0xf]
        %v893 = vld [vmem:[#allocation12 + $0x9c] sm:$0xf]
        %v894 = vld [vmem:[#allocation12 + $0xa8] sm:$0xf]
        %v895 = vld [vmem:[#allocation12 + $0xb4] sm:$0xf]
        %v896 = vld [vmem:[#allocation14] sm:$0x1]
        %v898 = vperm.slane %v896, 0
        %v916 = vunpack.c.l.b16 %v880
        %v917 = vunpack.c.l.b16 %v881
        %v918 = vunpack.c.l.b16 %v882
        %v919 = vunpack.c.l.b16 %v883
        %v920 = vunpack.c.l.b16 %v884
        %v921 = vunpack.c.l.b16 %v885
        %v922 = vunpack.c.l.b16 %v886
        %v923 = vunpack.c.l.b16 %v887
        %v924 = vunpack.c.l.b16 %v888
        %v925 = vunpack.c.l.b16 %v889
        %v926 = vunpack.c.l.b16 %v890
        %v927 = vunpack.c.l.b16 %v891
        %v928 = vunpack.c.l.b16 %v892
        %v929 = vunpack.c.l.b16 %v893
        %v930 = vunpack.c.l.b16 %v894
        %v931 = vunpack.c.l.b16 %v895
        %v932 = vpack.c.b16 %v917, %v916
        %v933 = vpack.c.b16 %v919, %v918
        %v934 = vpack.c.b16 %v921, %v920
        %v935 = vpack.c.b16 %v923, %v922
        %v936 = vpack.c.b16 %v925, %v924
        %v937 = vpack.c.b16 %v927, %v926
        %v938 = vpack.c.b16 %v929, %v928
        %v939 = vpack.c.b16 %v931, %v930
        %948 = vmatpush.bf16.msra.mxu0 %v939
        %949 = vmatpush.bf16.msra.mxu0 %v938
        %950 = vmatpush.bf16.msra.mxu0 %v937
        %951 = vmatpush.bf16.msra.mxu0 %v936
        %952 = vmatpush.bf16.msra.mxu0 %v935
        %953 = vmatpush.bf16.msra.mxu0 %v934
        %954 = vmatpush.bf16.msra.mxu0 %v933
        %955 = vmatpush.bf16.msra.mxu0 %v932
        %956 = vmatmul.bf16.gmra.mxu0 %v878
        %v957 = vpop.f32.mrf.mxu0
        %v958 = vadd.f32 %v898, %v957
        %v959 = vpop.f32.mrf.mxu0
        %v960 = vadd.f32 %v898, %v959
        %961 = vdwg.mxu0
        %v962 = vpack.c.bf16 %v958, %v958
        %v963 = vpack.c.bf16 %v960, %v960
        %v964 = vld [vmem:[#allocation12 + $0x4] sm:$0xf]
        %v965 = vld [vmem:[#allocation12 + $0x10] sm:$0xf]
        %v966 = vld [vmem:[#allocation12 + $0x1c] sm:$0xf]
        %v967 = vld [vmem:[#allocation12 + $0x28] sm:$0xf]
        %v968 = vld [vmem:[#allocation12 + $0x34] sm:$0xf]
        %v969 = vld [vmem:[#allocation12 + $0x40] sm:$0xf]
        %v970 = vld [vmem:[#allocation12 + $0x4c] sm:$0xf]
        %v971 = vld [vmem:[#allocation12 + $0x58] sm:$0xf]
        %v972 = vld [vmem:[#allocation12 + $0x64] sm:$0xf]
        %v973 = vld [vmem:[#allocation12 + $0x70] sm:$0xf]
        %v974 = vld [vmem:[#allocation12 + $0x7c] sm:$0xf]
        %v975 = vld [vmem:[#allocation12 + $0x88] sm:$0xf]
        %v976 = vld [vmem:[#allocation12 + $0x94] sm:$0xf]
        %v977 = vld [vmem:[#allocation12 + $0xa0] sm:$0xf]
        %v978 = vld [vmem:[#allocation12 + $0xac] sm:$0xf]
        %v979 = vld [vmem:[#allocation12 + $0xb8] sm:$0xf]
        %v980 = vld [vmem:[#allocation14 + $0x1] sm:$0x1]
        %v982 = vperm.slane %v980, 0
        %v1000 = vunpack.c.l.b16 %v964
        %v1001 = vunpack.c.l.b16 %v965
        %v1002 = vunpack.c.l.b16 %v966
        %v1003 = vunpack.c.l.b16 %v967
        %v1004 = vunpack.c.l.b16 %v968
        %v1005 = vunpack.c.l.b16 %v969
        %v1006 = vunpack.c.l.b16 %v970
        %v1007 = vunpack.c.l.b16 %v971
        %v1008 = vunpack.c.l.b16 %v972
        %v1009 = vunpack.c.l.b16 %v973
        %v1010 = vunpack.c.l.b16 %v974
        %v1011 = vunpack.c.l.b16 %v975
        %v1012 = vunpack.c.l.b16 %v976
        %v1013 = vunpack.c.l.b16 %v977
        %v1014 = vunpack.c.l.b16 %v978
        %v1015 = vunpack.c.l.b16 %v979
        %v1016 = vpack.c.b16 %v1001, %v1000
        %v1017 = vpack.c.b16 %v1003, %v1002
        %v1018 = vpack.c.b16 %v1005, %v1004
        %v1019 = vpack.c.b16 %v1007, %v1006
        %v1020 = vpack.c.b16 %v1009, %v1008
        %v1021 = vpack.c.b16 %v1011, %v1010
        %v1022 = vpack.c.b16 %v1013, %v1012
        %v1023 = vpack.c.b16 %v1015, %v1014
        %1032 = vmatpush.bf16.msra.mxu0 %v1023
        %1033 = vmatpush.bf16.msra.mxu0 %v1022
        %1034 = vmatpush.bf16.msra.mxu0 %v1021
        %1035 = vmatpush.bf16.msra.mxu0 %v1020
        %1036 = vmatpush.bf16.msra.mxu0 %v1019
        %1037 = vmatpush.bf16.msra.mxu0 %v1018
        %1038 = vmatpush.bf16.msra.mxu0 %v1017
        %1039 = vmatpush.bf16.msra.mxu0 %v1016
        %1040 = vmatmul.bf16.gmra.mxu0 %v878
        %v1041 = vpop.f32.mrf.mxu0
        %v1042 = vadd.f32 %v982, %v1041
        %v1043 = vpop.f32.mrf.mxu0
        %v1044 = vadd.f32 %v982, %v1043
        %1045 = vdwg.mxu0
        %v1046 = vpack.c.bf16 %v1042, %v1042
        %v1047 = vpack.c.bf16 %v1044, %v1044
        %v1048 = vld [vmem:[#allocation12 + $0x8] sm:$0xf]
        %v1049 = vld [vmem:[#allocation12 + $0x14] sm:$0xf]
        %v1050 = vld [vmem:[#allocation12 + $0x20] sm:$0xf]
        %v1051 = vld [vmem:[#allocation12 + $0x2c] sm:$0xf]
        %v1052 = vld [vmem:[#allocation12 + $0x38] sm:$0xf]
        %v1053 = vld [vmem:[#allocation12 + $0x44] sm:$0xf]
        %v1054 = vld [vmem:[#allocation12 + $0x50] sm:$0xf]
        %v1055 = vld [vmem:[#allocation12 + $0x5c] sm:$0xf]
        %v1056 = vld [vmem:[#allocation12 + $0x68] sm:$0xf]
        %v1057 = vld [vmem:[#allocation12 + $0x74] sm:$0xf]
        %v1058 = vld [vmem:[#allocation12 + $0x80] sm:$0xf]
        %v1059 = vld [vmem:[#allocation12 + $0x8c] sm:$0xf]
        %v1060 = vld [vmem:[#allocation12 + $0x98] sm:$0xf]
        %v1061 = vld [vmem:[#allocation12 + $0xa4] sm:$0xf]
        %v1062 = vld [vmem:[#allocation12 + $0xb0] sm:$0xf]
        %v1063 = vld [vmem:[#allocation12 + $0xbc] sm:$0xf]
        %v1064 = vld [vmem:[#allocation14 + $0x2] sm:$0x1]
        %v1066 = vperm.slane %v1064, 0
        %v1084 = vunpack.c.l.b16 %v1048
        %v1085 = vunpack.c.l.b16 %v1049
        %v1086 = vunpack.c.l.b16 %v1050
        %v1087 = vunpack.c.l.b16 %v1051
        %v1088 = vunpack.c.l.b16 %v1052
        %v1089 = vunpack.c.l.b16 %v1053
        %v1090 = vunpack.c.l.b16 %v1054
        %v1091 = vunpack.c.l.b16 %v1055
        %v1092 = vunpack.c.l.b16 %v1056
        %v1093 = vunpack.c.l.b16 %v1057
        %v1094 = vunpack.c.l.b16 %v1058
        %v1095 = vunpack.c.l.b16 %v1059
        %v1096 = vunpack.c.l.b16 %v1060
        %v1097 = vunpack.c.l.b16 %v1061
        %v1098 = vunpack.c.l.b16 %v1062
        %v1099 = vunpack.c.l.b16 %v1063
        %v1100 = vpack.c.b16 %v1085, %v1084
        %v1101 = vpack.c.b16 %v1087, %v1086
        %v1102 = vpack.c.b16 %v1089, %v1088
        %v1103 = vpack.c.b16 %v1091, %v1090
        %v1104 = vpack.c.b16 %v1093, %v1092
        %v1105 = vpack.c.b16 %v1095, %v1094
        %v1106 = vpack.c.b16 %v1097, %v1096
        %v1107 = vpack.c.b16 %v1099, %v1098
        %1116 = vmatpush.bf16.msra.mxu0 %v1107
        %1117 = vmatpush.bf16.msra.mxu0 %v1106
        %1118 = vmatpush.bf16.msra.mxu0 %v1105
        %1119 = vmatpush.bf16.msra.mxu0 %v1104
        %1120 = vmatpush.bf16.msra.mxu0 %v1103
        %1121 = vmatpush.bf16.msra.mxu0 %v1102
        %1122 = vmatpush.bf16.msra.mxu0 %v1101
        %1123 = vmatpush.bf16.msra.mxu0 %v1100
        %1124 = vmatmul.bf16.gmra.mxu0 %v879
        %v1125 = vpop.f32.mrf.mxu0
        %v1126 = vadd.f32 %v1066, %v1125
        %v1127 = vpop.f32.mrf.mxu0
        %v1128 = vadd.f32 %v1066, %v1127
        %1129 = vdwg.mxu0
        %v1130 = vpack.c.bf16 %v1126, %v1126
        %v1131 = vpack.c.bf16 %v1128, %v1128
        %v1133 = vperm.slane %v874, 0
        %v1137 = vunpack.c.l.b16 %v962
        %v1138 = vunpack.c.l.b16 %v963
        %v1139 = vpack.c.b16 %v1138, %v1137
        %v1142 = vunpack.c.l.b16 %v1046
        %v1143 = vunpack.c.l.b16 %v1047
        %v1144 = vpack.c.b16 %v1143, %v1142
        %vm1145 = vcmask 130048
        %v1147 = vsel %vm1145, %v1139, 0
        %v1150 = vsel %vm1145, %v1144, 0
        %1152 = vmatpush.bf16.xpose.msra.mxu0 0
        %1153 = vmatpush.bf16.xpose.msra.mxu0 0
        %1154 = vmatpush.bf16.xpose.msra.mxu0 0
        %1155 = vmatpush.bf16.xpose.msra.mxu0 0
        %1156 = vmatpush.bf16.xpose.msra.mxu0 0
        %1157 = vmatpush.bf16.xpose.msra.mxu0 0
        %1158 = vmatpush.bf16.xpose.msra.mxu0 0
        %1159 = vmatpush.bf16.xpose.msra.mxu0 %v1150
        %1160 = vmatmul.bf16.gmra.mxu0 %v1147
        %v1161 = vpop.f32.mrf.mxu0
        %v1162 = vadd.f32 %v1133, %v1161
        %v1163 = vpop.f32.mrf.mxu0
        %v1164 = vadd.f32 %v1133, %v1163
        %1165 = vdwg.mxu0
        %v1166 = vsel %vm1145, %v1162, -inf
        %1167 = vmax.xlane.f32.xlu0 %v1166
        %v1168 = vpop.xlane.xlu0 %1167
        %v1169 = vsel %vm1145, %v1164, -inf
        %1170 = vmax.xlane.f32.xlu0 %v1169
        %v1171 = vpop.xlane.xlu0 %1170
        %v1172 = vsub.f32 %v1162, %v1168
        %v1173 = vsub.f32 %v1164, %v1171
        %v1174 = vmul.f32 %v1172, 1.442695
        %v1175 = vpow.pop %v1174
        %v1176 = vmul.f32 %v1173, 1.442695
        %v1177 = vpow.pop %v1176
        %v1178 = vsel %vm1145, %v1175, 0.0
        %1179 = vadd.xlane.f32.xlu0 %v1178
        %v1180 = vpop.xlane.xlu0 %1179
        %v1181 = vsel %vm1145, %v1177, 0.0
        %1182 = vadd.xlane.f32.xlu0 %v1181
        %v1183 = vpop.xlane.xlu0 %1182
        %v1184 = vrcp.pop %v1180
        %v1185 = vrcp.pop %v1183
        %v1186 = vmul.f32 %v1175, %v1184
        %v1187 = vmul.f32 %v1177, %v1185
        %v1188 = vpack.c.bf16 %v1187, %v1186
        %v1191 = vunpack.c.l.b16 %v1130
        %v1192 = vunpack.c.l.b16 %v1131
        %v1193 = vpack.c.b16 %v1192, %v1191
        %v1196 = vsel %vm1145, %v1188, 0
        %1198 = vmatpush.bf16.msra.mxu0 0
        %1199 = vmatpush.bf16.msra.mxu0 0
        %1200 = vmatpush.bf16.msra.mxu0 0
        %1201 = vmatpush.bf16.msra.mxu0 0
        %1202 = vmatpush.bf16.msra.mxu0 0
        %1203 = vmatpush.bf16.msra.mxu0 0
        %1204 = vmatpush.bf16.msra.mxu0 0
        %1205 = vmatpush.bf16.msra.mxu0 %v1193
        %1206 = vmatmul.bf16.gmra.mxu0 %v1196
        %v1207 = vpop.f32.mrf.mxu0
        %v1208 = vadd.f32 0.0, %v1207
        %v1209 = vpop.f32.mrf.mxu0
        %v1210 = vadd.f32 0.0, %v1209
        %1211 = vdwg.mxu0
        %1212 = vst.msk [vmem:[#allocation2] sm:$0xff] %vm1145, %v1208
        %1213 = vst.msk [vmem:[#allocation2 + $0x8] sm:$0xff] %vm1145, %v1210
        %1214 = vrot.lane.b32.xlu0 %v1139, 112
        %v1215 = vpop.permute.xlu0 %1214
        %1216 = vrot.lane.b32.xlu0 %v1144, 112
        %v1217 = vpop.permute.xlu0 %1216
        %v1219 = vsel %vm1145, %v1215, 0
        %v1222 = vsel %vm1145, %v1217, 0
        %1224 = vmatpush.bf16.xpose.msra.mxu0 0
        %1225 = vmatpush.bf16.xpose.msra.mxu0 0
        %1226 = vmatpush.bf16.xpose.msra.mxu0 0
        %1227 = vmatpush.bf16.xpose.msra.mxu0 0
        %1228 = vmatpush.bf16.xpose.msra.mxu0 0
        %1229 = vmatpush.bf16.xpose.msra.mxu0 0
        %1230 = vmatpush.bf16.xpose.msra.mxu0 0
        %1231 = vmatpush.bf16.xpose.msra.mxu0 %v1222
        %1232 = vmatmul.bf16.gmra.mxu0 %v1219
        %v1233 = vpop.f32.mrf.mxu0
        %v1234 = vadd.f32 %v1133, %v1233
        %v1235 = vpop.f32.mrf.mxu0
        %v1236 = vadd.f32 %v1133, %v1235
        %1237 = vdwg.mxu0
        %v1238 = vsel %vm1145, %v1234, -inf
        %1239 = vmax.xlane.f32.xlu0 %v1238
        %v1240 = vpop.xlane.xlu0 %1239
        %v1241 = vsel %vm1145, %v1236, -inf
        %1242 = vmax.xlane.f32.xlu0 %v1241
        %v1243 = vpop.xlane.xlu0 %1242
        %v1244 = vsub.f32 %v1234, %v1240
        %v1245 = vsub.f32 %v1236, %v1243
        %v1246 = vmul.f32 %v1244, 1.442695
        %v1247 = vpow.pop %v1246
        %v1248 = vmul.f32 %v1245, 1.442695
        %v1249 = vpow.pop %v1248
        %v1250 = vsel %vm1145, %v1247, 0.0
        %1251 = vadd.xlane.f32.xlu0 %v1250
        %v1252 = vpop.xlane.xlu0 %1251
        %v1253 = vsel %vm1145, %v1249, 0.0
        %1254 = vadd.xlane.f32.xlu0 %v1253
        %v1255 = vpop.xlane.xlu0 %1254
        %v1256 = vrcp.pop %v1252
        %v1257 = vrcp.pop %v1255
        %v1258 = vmul.f32 %v1247, %v1256
        %v1259 = vmul.f32 %v1249, %v1257
        %v1260 = vpack.c.bf16 %v1259, %v1258
        %1261 = vrot.lane.b32.xlu0 %v1193, 112
        %v1262 = vpop.permute.xlu0 %1261
        %v1265 = vsel %vm1145, %v1260, 0
        %1267 = vmatpush.bf16.msra.mxu0 0
        %1268 = vmatpush.bf16.msra.mxu0 0
        %1269 = vmatpush.bf16.msra.mxu0 0
        %1270 = vmatpush.bf16.msra.mxu0 0
        %1271 = vmatpush.bf16.msra.mxu0 0
        %1272 = vmatpush.bf16.msra.mxu0 0
        %1273 = vmatpush.bf16.msra.mxu0 0
        %1274 = vmatpush.bf16.msra.mxu0 %v1262
        %1275 = vmatmul.bf16.gmra.mxu0 %v1265
        %v1276 = vpop.f32.mrf.mxu0
        %v1277 = vadd.f32 0.0, %v1276
        %v1278 = vpop.f32.mrf.mxu0
        %v1279 = vadd.f32 0.0, %v1278
        %1280 = vdwg.mxu0
        %1283 = vrot.lane.b32.xlu0 %v1277, 16
        %v1284 = vpop.permute.xlu0 %1283
        %1285 = vrot.lane.b32.xlu0 %v1279, 16
        %v1286 = vpop.permute.xlu0 %1285
        %vm1289 = vcmask 261248
        %1290 = vst.msk [vmem:[#allocation2] sm:$0xff] %vm1289, %v1284
        %1291 = vst.msk [vmem:[#allocation2 + $0x8] sm:$0xff] %vm1289, %v1286
        %1292 = vrot.lane.b32.xlu0 %v1139, 96
        %v1293 = vpop.permute.xlu0 %1292
        %1294 = vrot.lane.b32.xlu0 %v1144, 96
        %v1295 = vpop.permute.xlu0 %1294
        %v1297 = vsel %vm1145, %v1293, 0
        %v1300 = vsel %vm1145, %v1295, 0
        %1302 = vmatpush.bf16.xpose.msra.mxu0 0
        %1303 = vmatpush.bf16.xpose.msra.mxu0 0
        %1304 = vmatpush.bf16.xpose.msra.mxu0 0
        %1305 = vmatpush.bf16.xpose.msra.mxu0 0
        %1306 = vmatpush.bf16.xpose.msra.mxu0 0
        %1307 = vmatpush.bf16.xpose.msra.mxu0 0
        %1308 = vmatpush.bf16.xpose.msra.mxu0 0
        %1309 = vmatpush.bf16.xpose.msra.mxu0 %v1300
        %1310 = vmatmul.bf16.gmra.mxu0 %v1297
        %v1311 = vpop.f32.mrf.mxu0
        %v1312 = vadd.f32 %v1133, %v1311
        %v1313 = vpop.f32.mrf.mxu0
        %v1314 = vadd.f32 %v1133, %v1313
        %1315 = vdwg.mxu0
        %v1316 = vsel %vm1145, %v1312, -inf
        %1317 = vmax.xlane.f32.xlu0 %v1316
        %v1318 = vpop.xlane.xlu0 %1317
        %v1319 = vsel %vm1145, %v1314, -inf
        %1320 = vmax.xlane.f32.xlu0 %v1319
        %v1321 = vpop.xlane.xlu0 %1320
        %v1322 = vsub.f32 %v1312, %v1318
        %v1323 = vsub.f32 %v1314, %v1321
        %v1324 = vmul.f32 %v1322, 1.442695
        %v1325 = vpow.pop %v1324
        %v1326 = vmul.f32 %v1323, 1.442695
        %v1327 = vpow.pop %v1326
        %v1328 = vsel %vm1145, %v1325, 0.0
        %1329 = vadd.xlane.f32.xlu0 %v1328
        %v1330 = vpop.xlane.xlu0 %1329
        %v1331 = vsel %vm1145, %v1327, 0.0
        %1332 = vadd.xlane.f32.xlu0 %v1331
        %v1333 = vpop.xlane.xlu0 %1332
        %v1334 = vrcp.pop %v1330
        %v1335 = vrcp.pop %v1333
        %v1336 = vmul.f32 %v1325, %v1334
        %v1337 = vmul.f32 %v1327, %v1335
        %v1338 = vpack.c.bf16 %v1337, %v1336
        %1339 = vrot.lane.b32.xlu0 %v1193, 96
        %v1340 = vpop.permute.xlu0 %1339
        %v1343 = vsel %vm1145, %v1338, 0
        %1345 = vmatpush.bf16.msra.mxu0 0
        %1346 = vmatpush.bf16.msra.mxu0 0
        %1347 = vmatpush.bf16.msra.mxu0 0
        %1348 = vmatpush.bf16.msra.mxu0 0
        %1349 = vmatpush.bf16.msra.mxu0 0
        %1350 = vmatpush.bf16.msra.mxu0 0
        %1351 = vmatpush.bf16.msra.mxu0 0
        %1352 = vmatpush.bf16.msra.mxu0 %v1340
        %1353 = vmatmul.bf16.gmra.mxu0 %v1343
        %v1354 = vpop.f32.mrf.mxu0
        %v1355 = vadd.f32 0.0, %v1354
        %v1356 = vpop.f32.mrf.mxu0
        %v1357 = vadd.f32 0.0, %v1356
        %1358 = vdwg.mxu0
        %1361 = vrot.lane.b32.xlu0 %v1355, 32
        %v1362 = vpop.permute.xlu0 %1361
        %1363 = vrot.lane.b32.xlu0 %v1357, 32
        %v1364 = vpop.permute.xlu0 %1363
        %vm1367 = vcmask 392448
        %1368 = vst.msk [vmem:[#allocation2] sm:$0xff] %vm1367, %v1362
        %1369 = vst.msk [vmem:[#allocation2 + $0x8] sm:$0xff] %vm1367, %v1364
        %1370 = vrot.lane.b32.xlu0 %v1139, 80
        %v1371 = vpop.permute.xlu0 %1370
        %1372 = vrot.lane.b32.xlu0 %v1144, 80
        %v1373 = vpop.permute.xlu0 %1372
        %v1375 = vsel %vm1145, %v1371, 0
        %v1378 = vsel %vm1145, %v1373, 0
        %1380 = vmatpush.bf16.xpose.msra.mxu0 0
        %1381 = vmatpush.bf16.xpose.msra.mxu0 0
        %1382 = vmatpush.bf16.xpose.msra.mxu0 0
        %1383 = vmatpush.bf16.xpose.msra.mxu0 0
        %1384 = vmatpush.bf16.xpose.msra.mxu0 0
        %1385 = vmatpush.bf16.xpose.msra.mxu0 0
        %1386 = vmatpush.bf16.xpose.msra.mxu0 0
        %1387 = vmatpush.bf16.xpose.msra.mxu0 %v1378
        %1388 = vmatmul.bf16.gmra.mxu0 %v1375
        %v1389 = vpop.f32.mrf.mxu0
        %v1390 = vadd.f32 %v1133, %v1389
        %v1391 = vpop.f32.mrf.mxu0
        %v1392 = vadd.f32 %v1133, %v1391
        %1393 = vdwg.mxu0
        %v1394 = vsel %vm1145, %v1390, -inf
        %1395 = vmax.xlane.f32.xlu0 %v1394
        %v1396 = vpop.xlane.xlu0 %1395
        %v1397 = vsel %vm1145, %v1392, -inf
        %1398 = vmax.xlane.f32.xlu0 %v1397
        %v1399 = vpop.xlane.xlu0 %1398
        %v1400 = vsub.f32 %v1390, %v1396
        %v1401 = vsub.f32 %v1392, %v1399
        %v1402 = vmul.f32 %v1400, 1.442695
        %v1403 = vpow.pop %v1402
        %v1404 = vmul.f32 %v1401, 1.442695
        %v1405 = vpow.pop %v1404
        %v1406 = vsel %vm1145, %v1403, 0.0
        %1407 = vadd.xlane.f32.xlu0 %v1406
        %v1408 = vpop.xlane.xlu0 %1407
        %v1409 = vsel %vm1145, %v1405, 0.0
        %1410 = vadd.xlane.f32.xlu0 %v1409
        %v1411 = vpop.xlane.xlu0 %1410
        %v1412 = vrcp.pop %v1408
        %v1413 = vrcp.pop %v1411
        %v1414 = vmul.f32 %v1403, %v1412
        %v1415 = vmul.f32 %v1405, %v1413
        %v1416 = vpack.c.bf16 %v1415, %v1414
        %1417 = vrot.lane.b32.xlu0 %v1193, 80
        %v1418 = vpop.permute.xlu0 %1417
        %v1421 = vsel %vm1145, %v1416, 0
        %1423 = vmatpush.bf16.msra.mxu0 0
        %1424 = vmatpush.bf16.msra.mxu0 0
        %1425 = vmatpush.bf16.msra.mxu0 0
        %1426 = vmatpush.bf16.msra.mxu0 0
        %1427 = vmatpush.bf16.msra.mxu0 0
        %1428 = vmatpush.bf16.msra.mxu0 0
        %1429 = vmatpush.bf16.msra.mxu0 0
        %1430 = vmatpush.bf16.msra.mxu0 %v1418
        %1431 = vmatmul.bf16.gmra.mxu0 %v1421
        %v1432 = vpop.f32.mrf.mxu0
        %v1433 = vadd.f32 0.0, %v1432
        %v1434 = vpop.f32.mrf.mxu0
        %v1435 = vadd.f32 0.0, %v1434
        %1436 = vdwg.mxu0
        %1439 = vrot.lane.b32.xlu0 %v1433, 48
        %v1440 = vpop.permute.xlu0 %1439
        %1441 = vrot.lane.b32.xlu0 %v1435, 48
        %v1442 = vpop.permute.xlu0 %1441
        %vm1445 = vcmask 523648
        %1446 = vst.msk [vmem:[#allocation2] sm:$0xff] %vm1445, %v1440
        %1447 = vst.msk [vmem:[#allocation2 + $0x8] sm:$0xff] %vm1445, %v1442
        %1448 = vrot.lane.b32.xlu0 %v1139, 64
        %v1449 = vpop.permute.xlu0 %1448
        %1450 = vrot.lane.b32.xlu0 %v1144, 64
        %v1451 = vpop.permute.xlu0 %1450
        %v1453 = vsel %vm1145, %v1449, 0
        %v1456 = vsel %vm1145, %v1451, 0
        %1458 = vmatpush.bf16.xpose.msra.mxu0 0
        %1459 = vmatpush.bf16.xpose.msra.mxu0 0
        %1460 = vmatpush.bf16.xpose.msra.mxu0 0
        %1461 = vmatpush.bf16.xpose.msra.mxu0 0
        %1462 = vmatpush.bf16.xpose.msra.mxu0 0
        %1463 = vmatpush.bf16.xpose.msra.mxu0 0
        %1464 = vmatpush.bf16.xpose.msra.mxu0 0
        %1465 = vmatpush.bf16.xpose.msra.mxu0 %v1456
        %1466 = vmatmul.bf16.gmra.mxu0 %v1453
        %v1467 = vpop.f32.mrf.mxu0
        %v1468 = vadd.f32 %v1133, %v1467
        %v1469 = vpop.f32.mrf.mxu0
        %v1470 = vadd.f32 %v1133, %v1469
        %1471 = vdwg.mxu0
        %v1472 = vsel %vm1145, %v1468, -inf
        %1473 = vmax.xlane.f32.xlu0 %v1472
        %v1474 = vpop.xlane.xlu0 %1473
        %v1475 = vsel %vm1145, %v1470, -inf
        %1476 = vmax.xlane.f32.xlu0 %v1475
        %v1477 = vpop.xlane.xlu0 %1476
        %v1478 = vsub.f32 %v1468, %v1474
        %v1479 = vsub.f32 %v1470, %v1477
        %v1480 = vmul.f32 %v1478, 1.442695
        %v1481 = vpow.pop %v1480
        %v1482 = vmul.f32 %v1479, 1.442695
        %v1483 = vpow.pop %v1482
        %v1484 = vsel %vm1145, %v1481, 0.0
        %1485 = vadd.xlane.f32.xlu0 %v1484
        %v1486 = vpop.xlane.xlu0 %1485
        %v1487 = vsel %vm1145, %v1483, 0.0
        %1488 = vadd.xlane.f32.xlu0 %v1487
        %v1489 = vpop.xlane.xlu0 %1488
        %v1490 = vrcp.pop %v1486
        %v1491 = vrcp.pop %v1489
        %v1492 = vmul.f32 %v1481, %v1490
        %v1493 = vmul.f32 %v1483, %v1491
        %v1494 = vpack.c.bf16 %v1493, %v1492
        %1495 = vrot.lane.b32.xlu0 %v1193, 64
        %v1496 = vpop.permute.xlu0 %1495
        %v1499 = vsel %vm1145, %v1494, 0
        %1501 = vmatpush.bf16.msra.mxu0 0
        %1502 = vmatpush.bf16.msra.mxu0 0
        %1503 = vmatpush.bf16.msra.mxu0 0
        %1504 = vmatpush.bf16.msra.mxu0 0
        %1505 = vmatpush.bf16.msra.mxu0 0
        %1506 = vmatpush.bf16.msra.mxu0 0
        %1507 = vmatpush.bf16.msra.mxu0 0
        %1508 = vmatpush.bf16.msra.mxu0 %v1496
        %1509 = vmatmul.bf16.gmra.mxu0 %v1499
        %v1510 = vpop.f32.mrf.mxu0
        %v1511 = vadd.f32 0.0, %v1510
        %v1512 = vpop.f32.mrf.mxu0
        %v1513 = vadd.f32 0.0, %v1512
        %1514 = vdwg.mxu0
        %1517 = vrot.lane.b32.xlu0 %v1511, 64
        %v1518 = vpop.permute.xlu0 %1517
        %1519 = vrot.lane.b32.xlu0 %v1513, 64
        %v1520 = vpop.permute.xlu0 %1519
        %vm1523 = vcmask 654848
        %1524 = vst.msk [vmem:[#allocation2] sm:$0xff] %vm1523, %v1518
        %1525 = vst.msk [vmem:[#allocation2 + $0x8] sm:$0xff] %vm1523, %v1520
        %1526 = vrot.lane.b32.xlu0 %v1139, 48
        %v1527 = vpop.permute.xlu0 %1526
        %1528 = vrot.lane.b32.xlu0 %v1144, 48
        %v1529 = vpop.permute.xlu0 %1528
        %v1531 = vsel %vm1145, %v1527, 0
        %v1534 = vsel %vm1145, %v1529, 0
        %1536 = vmatpush.bf16.xpose.msra.mxu0 0
        %1537 = vmatpush.bf16.xpose.msra.mxu0 0
        %1538 = vmatpush.bf16.xpose.msra.mxu0 0
        %1539 = vmatpush.bf16.xpose.msra.mxu0 0
        %1540 = vmatpush.bf16.xpose.msra.mxu0 0
        %1541 = vmatpush.bf16.xpose.msra.mxu0 0
        %1542 = vmatpush.bf16.xpose.msra.mxu0 0
        %1543 = vmatpush.bf16.xpose.msra.mxu0 %v1534
        %1544 = vmatmul.bf16.gmra.mxu0 %v1531
        %v1545 = vpop.f32.mrf.mxu0
        %v1546 = vadd.f32 %v1133, %v1545
        %v1547 = vpop.f32.mrf.mxu0
        %v1548 = vadd.f32 %v1133, %v1547
        %1549 = vdwg.mxu0
        %v1550 = vsel %vm1145, %v1546, -inf
        %1551 = vmax.xlane.f32.xlu0 %v1550
        %v1552 = vpop.xlane.xlu0 %1551
        %v1553 = vsel %vm1145, %v1548, -inf
        %1554 = vmax.xlane.f32.xlu0 %v1553
        %v1555 = vpop.xlane.xlu0 %1554
        %v1556 = vsub.f32 %v1546, %v1552
        %v1557 = vsub.f32 %v1548, %v1555
        %v1558 = vmul.f32 %v1556, 1.442695
        %v1559 = vpow.pop %v1558
        %v1560 = vmul.f32 %v1557, 1.442695
        %v1561 = vpow.pop %v1560
        %v1562 = vsel %vm1145, %v1559, 0.0
        %1563 = vadd.xlane.f32.xlu0 %v1562
        %v1564 = vpop.xlane.xlu0 %1563
        %v1565 = vsel %vm1145, %v1561, 0.0
        %1566 = vadd.xlane.f32.xlu0 %v1565
        %v1567 = vpop.xlane.xlu0 %1566
        %v1568 = vrcp.pop %v1564
        %v1569 = vrcp.pop %v1567
        %v1570 = vmul.f32 %v1559, %v1568
        %v1571 = vmul.f32 %v1561, %v1569
        %v1572 = vpack.c.bf16 %v1571, %v1570
        %1573 = vrot.lane.b32.xlu0 %v1193, 48
        %v1574 = vpop.permute.xlu0 %1573
        %v1577 = vsel %vm1145, %v1572, 0
        %1579 = vmatpush.bf16.msra.mxu0 0
        %1580 = vmatpush.bf16.msra.mxu0 0
        %1581 = vmatpush.bf16.msra.mxu0 0
        %1582 = vmatpush.bf16.msra.mxu0 0
        %1583 = vmatpush.bf16.msra.mxu0 0
        %1584 = vmatpush.bf16.msra.mxu0 0
        %1585 = vmatpush.bf16.msra.mxu0 0
        %1586 = vmatpush.bf16.msra.mxu0 %v1574
        %1587 = vmatmul.bf16.gmra.mxu0 %v1577
        %v1588 = vpop.f32.mrf.mxu0
        %v1589 = vadd.f32 0.0, %v1588
        %v1590 = vpop.f32.mrf.mxu0
        %v1591 = vadd.f32 0.0, %v1590
        %1592 = vdwg.mxu0
        %1595 = vrot.lane.b32.xlu0 %v1589, 80
        %v1596 = vpop.permute.xlu0 %1595
        %1597 = vrot.lane.b32.xlu0 %v1591, 80
        %v1598 = vpop.permute.xlu0 %1597
        %vm1601 = vcmask 786048
        %1602 = vst.msk [vmem:[#allocation2] sm:$0xff] %vm1601, %v1596
        %1603 = vst.msk [vmem:[#allocation2 + $0x8] sm:$0xff] %vm1601, %v1598
        %1604 = vrot.lane.b32.xlu0 %v1139, 32
        %v1605 = vpop.permute.xlu0 %1604
        %1606 = vrot.lane.b32.xlu0 %v1144, 32
        %v1607 = vpop.permute.xlu0 %1606
        %v1609 = vsel %vm1145, %v1605, 0
        %v1612 = vsel %vm1145, %v1607, 0
        %1614 = vmatpush.bf16.xpose.msra.mxu0 0
        %1615 = vmatpush.bf16.xpose.msra.mxu0 0
        %1616 = vmatpush.bf16.xpose.msra.mxu0 0
        %1617 = vmatpush.bf16.xpose.msra.mxu0 0
        %1618 = vmatpush.bf16.xpose.msra.mxu0 0
        %1619 = vmatpush.bf16.xpose.msra.mxu0 0
        %1620 = vmatpush.bf16.xpose.msra.mxu0 0
        %1621 = vmatpush.bf16.xpose.msra.mxu0 %v1612
        %1622 = vmatmul.bf16.gmra.mxu0 %v1609
        %v1623 = vpop.f32.mrf.mxu0
        %v1624 = vadd.f32 %v1133, %v1623
        %v1625 = vpop.f32.mrf.mxu0
        %v1626 = vadd.f32 %v1133, %v1625
        %1627 = vdwg.mxu0
        %v1628 = vsel %vm1145, %v1624, -inf
        %1629 = vmax.xlane.f32.xlu0 %v1628
        %v1630 = vpop.xlane.xlu0 %1629
        %v1631 = vsel %vm1145, %v1626, -inf
        %1632 = vmax.xlane.f32.xlu0 %v1631
        %v1633 = vpop.xlane.xlu0 %1632
        %v1634 = vsub.f32 %v1624, %v1630
        %v1635 = vsub.f32 %v1626, %v1633
        %v1636 = vmul.f32 %v1634, 1.442695
        %v1637 = vpow.pop %v1636
        %v1638 = vmul.f32 %v1635, 1.442695
        %v1639 = vpow.pop %v1638
        %v1640 = vsel %vm1145, %v1637, 0.0
        %1641 = vadd.xlane.f32.xlu0 %v1640
        %v1642 = vpop.xlane.xlu0 %1641
        %v1643 = vsel %vm1145, %v1639, 0.0
        %1644 = vadd.xlane.f32.xlu0 %v1643
        %v1645 = vpop.xlane.xlu0 %1644
        %v1646 = vrcp.pop %v1642
        %v1647 = vrcp.pop %v1645
        %v1648 = vmul.f32 %v1637, %v1646
        %v1649 = vmul.f32 %v1639, %v1647
        %v1650 = vpack.c.bf16 %v1649, %v1648
        %1651 = vrot.lane.b32.xlu0 %v1193, 32
        %v1652 = vpop.permute.xlu0 %1651
        %v1655 = vsel %vm1145, %v1650, 0
        %1657 = vmatpush.bf16.msra.mxu0 0
        %1658 = vmatpush.bf16.msra.mxu0 0
        %1659 = vmatpush.bf16.msra.mxu0 0
        %1660 = vmatpush.bf16.msra.mxu0 0
        %1661 = vmatpush.bf16.msra.mxu0 0
        %1662 = vmatpush.bf16.msra.mxu0 0
        %1663 = vmatpush.bf16.msra.mxu0 0
        %1664 = vmatpush.bf16.msra.mxu0 %v1652
        %1665 = vmatmul.bf16.gmra.mxu0 %v1655
        %v1666 = vpop.f32.mrf.mxu0
        %v1667 = vadd.f32 0.0, %v1666
        %v1668 = vpop.f32.mrf.mxu0
        %v1669 = vadd.f32 0.0, %v1668
        %1670 = vdwg.mxu0
        %1673 = vrot.lane.b32.xlu0 %v1667, 96
        %v1674 = vpop.permute.xlu0 %1673
        %1675 = vrot.lane.b32.xlu0 %v1669, 96
        %v1676 = vpop.permute.xlu0 %1675
        %vm1679 = vcmask 917248
        %1680 = vst.msk [vmem:[#allocation2] sm:$0xff] %vm1679, %v1674
        %1681 = vst.msk [vmem:[#allocation2 + $0x8] sm:$0xff] %vm1679, %v1676
        %1682 = vrot.lane.b32.xlu0 %v1139, 16
        %v1683 = vpop.permute.xlu0 %1682
        %1684 = vrot.lane.b32.xlu0 %v1144, 16
        %v1685 = vpop.permute.xlu0 %1684
        %v1687 = vsel %vm1145, %v1683, 0
        %v1690 = vsel %vm1145, %v1685, 0
        %1692 = vmatpush.bf16.xpose.msra.mxu0 0
        %1693 = vmatpush.bf16.xpose.msra.mxu0 0
        %1694 = vmatpush.bf16.xpose.msra.mxu0 0
        %1695 = vmatpush.bf16.xpose.msra.mxu0 0
        %1696 = vmatpush.bf16.xpose.msra.mxu0 0
        %1697 = vmatpush.bf16.xpose.msra.mxu0 0
        %1698 = vmatpush.bf16.xpose.msra.mxu0 0
        %1699 = vmatpush.bf16.xpose.msra.mxu0 %v1690
        %1700 = vmatmul.bf16.gmra.mxu0 %v1687
        %v1701 = vpop.f32.mrf.mxu0
        %v1702 = vadd.f32 %v1133, %v1701
        %v1703 = vpop.f32.mrf.mxu0
        %v1704 = vadd.f32 %v1133, %v1703
        %1705 = vdwg.mxu0
        %v1706 = vsel %vm1145, %v1702, -inf
        %1707 = vmax.xlane.f32.xlu0 %v1706
        %v1708 = vpop.xlane.xlu0 %1707
        %v1709 = vsel %vm1145, %v1704, -inf
        %1710 = vmax.xlane.f32.xlu0 %v1709
        %v1711 = vpop.xlane.xlu0 %1710
        %v1712 = vsub.f32 %v1702, %v1708
        %v1713 = vsub.f32 %v1704, %v1711
        %v1714 = vmul.f32 %v1712, 1.442695
        %v1715 = vpow.pop %v1714
        %v1716 = vmul.f32 %v1713, 1.442695
        %v1717 = vpow.pop %v1716
        %v1718 = vsel %vm1145, %v1715, 0.0
        %1719 = vadd.xlane.f32.xlu0 %v1718
        %v1720 = vpop.xlane.xlu0 %1719
        %v1721 = vsel %vm1145, %v1717, 0.0
        %1722 = vadd.xlane.f32.xlu0 %v1721
        %v1723 = vpop.xlane.xlu0 %1722
        %v1724 = vrcp.pop %v1720
        %v1725 = vrcp.pop %v1723
        %v1726 = vmul.f32 %v1715, %v1724
        %v1727 = vmul.f32 %v1717, %v1725
        %v1728 = vpack.c.bf16 %v1727, %v1726
        %1729 = vrot.lane.b32.xlu0 %v1193, 16
        %v1730 = vpop.permute.xlu0 %1729
        %v1733 = vsel %vm1145, %v1728, 0
        %1735 = vmatpush.bf16.msra.mxu0 0
        %1736 = vmatpush.bf16.msra.mxu0 0
        %1737 = vmatpush.bf16.msra.mxu0 0
        %1738 = vmatpush.bf16.msra.mxu0 0
        %1739 = vmatpush.bf16.msra.mxu0 0
        %1740 = vmatpush.bf16.msra.mxu0 0
        %1741 = vmatpush.bf16.msra.mxu0 0
        %1742 = vmatpush.bf16.msra.mxu0 %v1730
        %1743 = vmatmul.bf16.gmra.mxu0 %v1733
        %v1744 = vpop.f32.mrf.mxu0
        %v1745 = vadd.f32 0.0, %v1744
        %v1746 = vpop.f32.mrf.mxu0
        %v1747 = vadd.f32 0.0, %v1746
        %1748 = vdwg.mxu0
        %1751 = vrot.lane.b32.xlu0 %v1745, 112
        %v1752 = vpop.permute.xlu0 %1751
        %1753 = vrot.lane.b32.xlu0 %v1747, 112
        %v1754 = vpop.permute.xlu0 %1753
        %vm1757 = vcmask 1048448
        %1758 = vst.msk [vmem:[#allocation2] sm:$0xff] %vm1757, %v1752
        %1759 = vst.msk [vmem:[#allocation2 + $0x8] sm:$0xff] %vm1757, %v1754
        %v1760 = vld [vmem:[#allocation2] sm:$0xff]
        %v1761 = vld [vmem:[#allocation2 + $0x8] sm:$0xff]
        %v1762 = vpack.c.bf16 %v1761, %v1760
        %v1763 = vld [vmem:[#allocation15] sm:$0xf]
        %v1764 = vld [vmem:[#allocation15 + $0x4] sm:$0xf]
        %v1765 = vld [vmem:[#allocation15 + $0x8] sm:$0xf]
        %v1766 = vld [vmem:[#allocation15 + $0xc] sm:$0xf]
        %v1767 = vld [vmem:[#allocation15 + $0x10] sm:$0xf]
        %v1768 = vld [vmem:[#allocation15 + $0x14] sm:$0xf]
        %v1769 = vld [vmem:[#allocation15 + $0x18] sm:$0xf]
        %v1770 = vld [vmem:[#allocation15 + $0x1c] sm:$0xf]
        %v1771 = vld [vmem:[#allocation15 + $0x20] sm:$0xf]
        %v1772 = vld [vmem:[#allocation15 + $0x24] sm:$0xf]
        %v1773 = vld [vmem:[#allocation15 + $0x28] sm:$0xf]
        %v1774 = vld [vmem:[#allocation15 + $0x2c] sm:$0xf]
        %v1775 = vld [vmem:[#allocation15 + $0x30] sm:$0xf]
        %v1776 = vld [vmem:[#allocation15 + $0x34] sm:$0xf]
        %v1777 = vld [vmem:[#allocation15 + $0x38] sm:$0xf]
        %v1778 = vld [vmem:[#allocation15 + $0x3c] sm:$0xf]
        %v1779 = vld [vmem:[%s8] sm:$0x1]
        %v1781 = vperm.slane %v1779, 0
        %v1799 = vunpack.c.l.b16 %v1763
        %v1800 = vunpack.c.l.b16 %v1764
        %v1801 = vunpack.c.l.b16 %v1765
        %v1802 = vunpack.c.l.b16 %v1766
        %v1803 = vunpack.c.l.b16 %v1767
        %v1804 = vunpack.c.l.b16 %v1768
        %v1805 = vunpack.c.l.b16 %v1769
        %v1806 = vunpack.c.l.b16 %v1770
        %v1807 = vunpack.c.l.b16 %v1771
        %v1808 = vunpack.c.l.b16 %v1772
        %v1809 = vunpack.c.l.b16 %v1773
        %v1810 = vunpack.c.l.b16 %v1774
        %v1811 = vunpack.c.l.b16 %v1775
        %v1812 = vunpack.c.l.b16 %v1776
        %v1813 = vunpack.c.l.b16 %v1777
        %v1814 = vunpack.c.l.b16 %v1778
        %v1815 = vpack.c.b16 %v1800, %v1799
        %v1816 = vpack.c.b16 %v1802, %v1801
        %v1817 = vpack.c.b16 %v1804, %v1803
        %v1818 = vpack.c.b16 %v1806, %v1805
        %v1819 = vpack.c.b16 %v1808, %v1807
        %v1820 = vpack.c.b16 %v1810, %v1809
        %v1821 = vpack.c.b16 %v1812, %v1811
        %v1822 = vpack.c.b16 %v1814, %v1813
        %1831 = vmatpush.bf16.msra.mxu0 %v1822
        %1832 = vmatpush.bf16.msra.mxu0 %v1821
        %1833 = vmatpush.bf16.msra.mxu0 %v1820
        %1834 = vmatpush.bf16.msra.mxu0 %v1819
        %1835 = vmatpush.bf16.msra.mxu0 %v1818
        %1836 = vmatpush.bf16.msra.mxu0 %v1817
        %1837 = vmatpush.bf16.msra.mxu0 %v1816
        %1838 = vmatpush.bf16.msra.mxu0 %v1815
        %1839 = vmatmul.bf16.gmra.mxu0 %v1762
        %v1840 = vpop.f32.mrf.mxu0
        %v1841 = vadd.f32 %v1781, %v1840
        %v1842 = vpop.f32.mrf.mxu0
        %v1843 = vadd.f32 %v1781, %v1842
        %1844 = vdwg.mxu0
        %v1845 = vadd.f32 %v869, %v1841
        %v1846 = vadd.f32 %v870, %v1843
        %v1847 = vld [vmem:[%s9] sm:$0x1]
        %v1848 = vld [vmem:[#allocation17] sm:$0x1]
        %1849 = vadd.xlane.f32.xlu0 %v1845
        %v1850 = vpop.xlane.xlu0 %1849
        %1851 = vadd.xlane.f32.xlu0 %v1846
        %v1852 = vpop.xlane.xlu0 %1851
        %v1853 = vrcp.pop 128.0
        %v1854 = vmul.f32 128.0, %v1853
        %v1855 = vsub.f32 1.0, %v1854
        %v1856 = vmul.f32 %v1853, %v1855
        %v1857 = vadd.f32 %v1853, %v1856
        %vm1858 = vweird.f32 %v1853
        %v1859 = vsel %vm1858, %v1853, %v1857
        %v1860 = vmul.f32 %v1850, %v1859
        %v1861 = vmul.f32 %v1852, %v1859
        %v1862 = vsub.f32 %v1845, %v1860
        %v1863 = vsub.f32 %v1846, %v1861
        %v1864 = vmul.f32 %v1862, %v1862
        %v1865 = vmul.f32 %v1863, %v1863
        %1866 = vadd.xlane.f32.xlu0 %v1864
        %v1867 = vpop.xlane.xlu0 %1866
        %1868 = vadd.xlane.f32.xlu0 %v1865
        %v1869 = vpop.xlane.xlu0 %1868
        %v1870 = vmul.f32 %v1867, %v1859
        %v1871 = vmul.f32 %v1869, %v1859
        %v1872 = vadd.f32 %v1870, 1e-05
        %v1873 = vadd.f32 %v1871, 1e-05
        %v1874 = vrsqrt.pop %v1872
        %v1875 = vmul.f32 %v1874, %v1872
        %v1876 = vmul.f32 %v1875, %v1874
        %v1877 = vmul.f32 0.5, %v1876
        %v1878 = vsub.f32 1.5, %v1877
        %v1879 = vmul.f32 %v1874, %v1878
        %vm1880 = vweird.f32 %v1872
        %vm1881 = vweird.f32 %v1874
        %vm1882 = vmor %vm1880, %vm1881
        %v1883 = vsel %vm1882, %v1874, %v1879
        %v1884 = vrsqrt.pop %v1873
        %v1885 = vmul.f32 %v1884, %v1873
        %v1886 = vmul.f32 %v1885, %v1884
        %v1887 = vmul.f32 0.5, %v1886
        %v1888 = vsub.f32 1.5, %v1887
        %v1889 = vmul.f32 %v1884, %v1888
        %vm1890 = vweird.f32 %v1873
        %vm1891 = vweird.f32 %v1884
        %vm1892 = vmor %vm1890, %vm1891
        %v1893 = vsel %vm1892, %v1884, %v1889
        %v1894 = vmul.f32 %v1862, %v1883
        %v1895 = vmul.f32 %v1863, %v1893
        %v1897 = vperm.slane %v1847, 0
        %v1899 = vmul.f32 %v1894, %v1897
        %v1900 = vmul.f32 %v1895, %v1897
        %v1902 = vperm.slane %v1848, 0
        %v1904 = vadd.f32 %v1899, %v1902
        %v1905 = vadd.f32 %v1900, %v1902
        %v1906 = vpack.c.bf16 %v873, %v873
        %s1907 = scalar_lea.vmem [#allocation12], 192
        %v1908 = vld [vmem:[%s1907] sm:$0xf]
        %v1909 = vld [vmem:[%s1907 + $0xc] sm:$0xf]
        %v1910 = vld [vmem:[%s1907 + $0x18] sm:$0xf]
        %v1911 = vld [vmem:[%s1907 + $0x24] sm:$0xf]
        %v1912 = vld [vmem:[%s1907 + $0x30] sm:$0xf]
        %v1913 = vld [vmem:[%s1907 + $0x3c] sm:$0xf]
        %v1914 = vld [vmem:[%s1907 + $0x48] sm:$0xf]
        %v1915 = vld [vmem:[%s1907 + $0x54] sm:$0xf]
        %v1916 = vld [vmem:[%s1907 + $0x60] sm:$0xf]
        %v1917 = vld [vmem:[%s1907 + $0x6c] sm:$0xf]
        %v1918 = vld [vmem:[%s1907 + $0x78] sm:$0xf]
        %v1919 = vld [vmem:[%s1907 + $0x84] sm:$0xf]
        %v1920 = vld [vmem:[%s1907 + $0x90] sm:$0xf]
        %v1921 = vld [vmem:[%s1907 + $0x9c] sm:$0xf]
        %v1922 = vld [vmem:[%s1907 + $0xa8] sm:$0xf]
        %v1923 = vld [vmem:[%s1907 + $0xb4] sm:$0xf]
        %s1924 = scalar_lea.vmem [#allocation14], 3
        %v1925 = vld [vmem:[%s1924] sm:$0x1]
        %v1927 = vperm.slane %v1925, 0
        %v1945 = vunpack.c.l.b16 %v1908
        %v1946 = vunpack.c.l.b16 %v1909
        %v1947 = vunpack.c.l.b16 %v1910
        %v1948 = vunpack.c.l.b16 %v1911
        %v1949 = vunpack.c.l.b16 %v1912
        %v1950 = vunpack.c.l.b16 %v1913
        %v1951 = vunpack.c.l.b16 %v1914
        %v1952 = vunpack.c.l.b16 %v1915
        %v1953 = vunpack.c.l.b16 %v1916
        %v1954 = vunpack.c.l.b16 %v1917
        %v1955 = vunpack.c.l.b16 %v1918
        %v1956 = vunpack.c.l.b16 %v1919
        %v1957 = vunpack.c.l.b16 %v1920
        %v1958 = vunpack.c.l.b16 %v1921
        %v1959 = vunpack.c.l.b16 %v1922
        %v1960 = vunpack.c.l.b16 %v1923
        %v1961 = vpack.c.b16 %v1946, %v1945
        %v1962 = vpack.c.b16 %v1948, %v1947
        %v1963 = vpack.c.b16 %v1950, %v1949
        %v1964 = vpack.c.b16 %v1952, %v1951
        %v1965 = vpack.c.b16 %v1954, %v1953
        %v1966 = vpack.c.b16 %v1956, %v1955
        %v1967 = vpack.c.b16 %v1958, %v1957
        %v1968 = vpack.c.b16 %v1960, %v1959
        %1977 = vmatpush.bf16.msra.mxu0 %v1968
        %1978 = vmatpush.bf16.msra.mxu0 %v1967
        %1979 = vmatpush.bf16.msra.mxu0 %v1966
        %1980 = vmatpush.bf16.msra.mxu0 %v1965
        %1981 = vmatpush.bf16.msra.mxu0 %v1964
        %1982 = vmatpush.bf16.msra.mxu0 %v1963
        %1983 = vmatpush.bf16.msra.mxu0 %v1962
        %1984 = vmatpush.bf16.msra.mxu0 %v1961
        %1985 = vmatmul.bf16.gmra.mxu0 %v1906
        %v1986 = vpop.f32.mrf.mxu0
        %v1987 = vadd.f32 %v1927, %v1986
        %v1988 = vpop.f32.mrf.mxu0
        %1989 = vdwg.mxu0
        %v1990 = vpack.c.bf16 %v1987, %v1987
        %v1991 = vld [vmem:[%s1907 + $0x4] sm:$0xf]
        %v1992 = vld [vmem:[%s1907 + $0x10] sm:$0xf]
        %v1993 = vld [vmem:[%s1907 + $0x1c] sm:$0xf]
        %v1994 = vld [vmem:[%s1907 + $0x28] sm:$0xf]
        %v1995 = vld [vmem:[%s1907 + $0x34] sm:$0xf]
        %v1996 = vld [vmem:[%s1907 + $0x40] sm:$0xf]
        %v1997 = vld [vmem:[%s1907 + $0x4c] sm:$0xf]
        %v1998 = vld [vmem:[%s1907 + $0x58] sm:$0xf]
        %v1999 = vld [vmem:[%s1907 + $0x64] sm:$0xf]
        %v2000 = vld [vmem:[%s1907 + $0x70] sm:$0xf]
        %v2001 = vld [vmem:[%s1907 + $0x7c] sm:$0xf]
        %v2002 = vld [vmem:[%s1907 + $0x88] sm:$0xf]
        %v2003 = vld [vmem:[%s1907 + $0x94] sm:$0xf]
        %v2004 = vld [vmem:[%s1907 + $0xa0] sm:$0xf]
        %v2005 = vld [vmem:[%s1907 + $0xac] sm:$0xf]
        %v2006 = vld [vmem:[%s1907 + $0xb8] sm:$0xf]
        %v2007 = vld [vmem:[%s1924 + $0x1] sm:$0x1]
        %v2009 = vperm.slane %v2007, 0
        %v2027 = vunpack.c.l.b16 %v1991
        %v2028 = vunpack.c.l.b16 %v1992
        %v2029 = vunpack.c.l.b16 %v1993
        %v2030 = vunpack.c.l.b16 %v1994
        %v2031 = vunpack.c.l.b16 %v1995
        %v2032 = vunpack.c.l.b16 %v1996
        %v2033 = vunpack.c.l.b16 %v1997
        %v2034 = vunpack.c.l.b16 %v1998
        %v2035 = vunpack.c.l.b16 %v1999
        %v2036 = vunpack.c.l.b16 %v2000
        %v2037 = vunpack.c.l.b16 %v2001
        %v2038 = vunpack.c.l.b16 %v2002
        %v2039 = vunpack.c.l.b16 %v2003
        %v2040 = vunpack.c.l.b16 %v2004
        %v2041 = vunpack.c.l.b16 %v2005
        %v2042 = vunpack.c.l.b16 %v2006
        %v2043 = vpack.c.b16 %v2028, %v2027
        %v2044 = vpack.c.b16 %v2030, %v2029
        %v2045 = vpack.c.b16 %v2032, %v2031
        %v2046 = vpack.c.b16 %v2034, %v2033
        %v2047 = vpack.c.b16 %v2036, %v2035
        %v2048 = vpack.c.b16 %v2038, %v2037
        %v2049 = vpack.c.b16 %v2040, %v2039
        %v2050 = vpack.c.b16 %v2042, %v2041
        %2059 = vmatpush.bf16.msra.mxu0 %v2050
        %2060 = vmatpush.bf16.msra.mxu0 %v2049
        %2061 = vmatpush.bf16.msra.mxu0 %v2048
        %2062 = vmatpush.bf16.msra.mxu0 %v2047
        %2063 = vmatpush.bf16.msra.mxu0 %v2046
        %2064 = vmatpush.bf16.msra.mxu0 %v2045
        %2065 = vmatpush.bf16.msra.mxu0 %v2044
        %2066 = vmatpush.bf16.msra.mxu0 %v2043
        %2067 = vmatmul.bf16.gmra.mxu0 %v1906
        %v2068 = vpop.f32.mrf.mxu0
        %v2069 = vadd.f32 %v2009, %v2068
        %v2070 = vpop.f32.mrf.mxu0
        %2071 = vdwg.mxu0
        %v2072 = vpack.c.bf16 %v2069, %v2069
        %v2073 = vld [vmem:[%s1907 + $0x8] sm:$0xf]
        %v2074 = vld [vmem:[%s1907 + $0x14] sm:$0xf]
        %v2075 = vld [vmem:[%s1907 + $0x20] sm:$0xf]
        %v2076 = vld [vmem:[%s1907 + $0x2c] sm:$0xf]
        %v2077 = vld [vmem:[%s1907 + $0x38] sm:$0xf]
        %v2078 = vld [vmem:[%s1907 + $0x44] sm:$0xf]
        %v2079 = vld [vmem:[%s1907 + $0x50] sm:$0xf]
        %v2080 = vld [vmem:[%s1907 + $0x5c] sm:$0xf]
        %v2081 = vld [vmem:[%s1907 + $0x68] sm:$0xf]
        %v2082 = vld [vmem:[%s1907 + $0x74] sm:$0xf]
        %v2083 = vld [vmem:[%s1907 + $0x80] sm:$0xf]
        %v2084 = vld [vmem:[%s1907 + $0x8c] sm:$0xf]
        %v2085 = vld [vmem:[%s1907 + $0x98] sm:$0xf]
        %v2086 = vld [vmem:[%s1907 + $0xa4] sm:$0xf]
        %v2087 = vld [vmem:[%s1907 + $0xb0] sm:$0xf]
        %v2088 = vld [vmem:[%s1907 + $0xbc] sm:$0xf]
        %v2089 = vld [vmem:[%s1924 + $0x2] sm:$0x1]
        %v2091 = vperm.slane %v2089, 0
        %v2109 = vunpack.c.l.b16 %v2073
        %v2110 = vunpack.c.l.b16 %v2074
        %v2111 = vunpack.c.l.b16 %v2075
        %v2112 = vunpack.c.l.b16 %v2076
        %v2113 = vunpack.c.l.b16 %v2077
        %v2114 = vunpack.c.l.b16 %v2078
        %v2115 = vunpack.c.l.b16 %v2079
        %v2116 = vunpack.c.l.b16 %v2080
        %v2117 = vunpack.c.l.b16 %v2081
        %v2118 = vunpack.c.l.b16 %v2082
        %v2119 = vunpack.c.l.b16 %v2083
        %v2120 = vunpack.c.l.b16 %v2084
        %v2121 = vunpack.c.l.b16 %v2085
        %v2122 = vunpack.c.l.b16 %v2086
        %v2123 = vunpack.c.l.b16 %v2087
        %v2124 = vunpack.c.l.b16 %v2088
        %v2125 = vpack.c.b16 %v2110, %v2109
        %v2126 = vpack.c.b16 %v2112, %v2111
        %v2127 = vpack.c.b16 %v2114, %v2113
        %v2128 = vpack.c.b16 %v2116, %v2115
        %v2129 = vpack.c.b16 %v2118, %v2117
        %v2130 = vpack.c.b16 %v2120, %v2119
        %v2131 = vpack.c.b16 %v2122, %v2121
        %v2132 = vpack.c.b16 %v2124, %v2123
        %2141 = vmatpush.bf16.msra.mxu0 %v2132
        %2142 = vmatpush.bf16.msra.mxu0 %v2131
        %2143 = vmatpush.bf16.msra.mxu0 %v2130
        %2144 = vmatpush.bf16.msra.mxu0 %v2129
        %2145 = vmatpush.bf16.msra.mxu0 %v2128
        %2146 = vmatpush.bf16.msra.mxu0 %v2127
        %2147 = vmatpush.bf16.msra.mxu0 %v2126
        %2148 = vmatpush.bf16.msra.mxu0 %v2125
        %2149 = vmatmul.bf16.gmra.mxu0 %v1906
        %v2150 = vpop.f32.mrf.mxu0
        %v2151 = vadd.f32 %v2091, %v2150
        %v2152 = vpop.f32.mrf.mxu0
        %2153 = vdwg.mxu0
        %v2154 = vpack.c.bf16 %v2151, %v2151
        %v2156 = vperm.slane %v875, 0
        %v2159 = vsel %vm1145, %v1990, 0
        %v2162 = vsel %vm1145, %v2072, 0
        %2164 = vmatpush.bf16.xpose.msra.mxu0 0
        %2165 = vmatpush.bf16.xpose.msra.mxu0 0
        %2166 = vmatpush.bf16.xpose.msra.mxu0 0
        %2167 = vmatpush.bf16.xpose.msra.mxu0 0
        %2168 = vmatpush.bf16.xpose.msra.mxu0 0
        %2169 = vmatpush.bf16.xpose.msra.mxu0 0
        %2170 = vmatpush.bf16.xpose.msra.mxu0 0
        %2171 = vmatpush.bf16.xpose.msra.mxu0 %v2162
        %2172 = vmatmul.bf16.gmra.mxu0 %v2159
        %v2173 = vpop.f32.mrf.mxu0
        %v2174 = vadd.f32 %v2156, %v2173
        %v2175 = vpop.f32.mrf.mxu0
        %2176 = vdwg.mxu0
        %vm2177 = vcmask 64512
        %v2178 = vsel %vm2177, %v2174, -inf
        %2179 = vmax.xlane.f32.xlu0 %v2178
        %v2180 = vpop.xlane.xlu0 %2179
        %v2181 = vsub.f32 %v2174, %v2180
        %v2182 = vmul.f32 %v2181, 1.442695
        %v2183 = vpow.pop %v2182
        %v2184 = vsel %vm2177, %v2183, 0.0
        %2185 = vadd.xlane.f32.xlu0 %v2184
        %v2186 = vpop.xlane.xlu0 %2185
        %v2187 = vrcp.pop %v2186
        %v2188 = vmul.f32 %v2183, %v2187
        %v2189 = vpack.c.bf16 %v2188, %v2188
        %v2191 = vsel %vm2177, %v2189, 0
        %vm2193 = vcmask 1043456
        %v2195 = vsel %vm2193, %v2154, 0
        %2197 = vmatpush.bf16.msra.mxu0 0
        %2198 = vmatpush.bf16.msra.mxu0 0
        %2199 = vmatpush.bf16.msra.mxu0 0
        %2200 = vmatpush.bf16.msra.mxu0 0
        %2201 = vmatpush.bf16.msra.mxu0 0
        %2202 = vmatpush.bf16.msra.mxu0 0
        %2203 = vmatpush.bf16.msra.mxu0 0
        %2204 = vmatpush.bf16.msra.mxu0 %v2195
        %2205 = vmatmul.bf16.gmra.mxu0 %v2191
        %v2206 = vpop.f32.mrf.mxu0
        %v2207 = vadd.f32 0.0, %v2206
        %v2208 = vpop.f32.mrf.mxu0
        %2209 = vdwg.mxu0
        %2210 = vst.msk [vmem:[#allocation2] sm:$0xff] %vm1145, %v2207
        %v2212 = vunpack.c.l.b16 %v1990
        %v2213 = vpack.c.b16 %v2212, %v2212
        %2214 = vrot.lane.b32.xlu0 %v2213, 112
        %v2215 = vpop.permute.xlu0 %2214
        %v2217 = vunpack.c.l.b16 %v2072
        %v2218 = vpack.c.b16 %v2217, %v2217
        %2219 = vrot.lane.b32.xlu0 %v2218, 112
        %v2220 = vpop.permute.xlu0 %2219
        %v2222 = vsel %vm1145, %v2215, 0
        %v2225 = vsel %vm1145, %v2220, 0
        %2227 = vmatpush.bf16.xpose.msra.mxu0 0
        %2228 = vmatpush.bf16.xpose.msra.mxu0 0
        %2229 = vmatpush.bf16.xpose.msra.mxu0 0
        %2230 = vmatpush.bf16.xpose.msra.mxu0 0
        %2231 = vmatpush.bf16.xpose.msra.mxu0 0
        %2232 = vmatpush.bf16.xpose.msra.mxu0 0
        %2233 = vmatpush.bf16.xpose.msra.mxu0 0
        %2234 = vmatpush.bf16.xpose.msra.mxu0 %v2225
        %2235 = vmatmul.bf16.gmra.mxu0 %v2222
        %v2236 = vpop.f32.mrf.mxu0
        %v2237 = vadd.f32 %v2156, %v2236
        %v2238 = vpop.f32.mrf.mxu0
        %2239 = vdwg.mxu0
        %v2240 = vsel %vm2177, %v2237, -inf
        %2241 = vmax.xlane.f32.xlu0 %v2240
        %v2242 = vpop.xlane.xlu0 %2241
        %v2243 = vsub.f32 %v2237, %v2242
        %v2244 = vmul.f32 %v2243, 1.442695
        %v2245 = vpow.pop %v2244
        %v2246 = vsel %vm2177, %v2245, 0.0
        %2247 = vadd.xlane.f32.xlu0 %v2246
        %v2248 = vpop.xlane.xlu0 %2247
        %v2249 = vrcp.pop %v2248
        %v2250 = vmul.f32 %v2245, %v2249
        %v2251 = vpack.c.bf16 %v2250, %v2250
        %v2253 = vunpack.c.l.b16 %v2154
        %v2254 = vpack.c.b16 %v2253, %v2253
        %2255 = vrot.lane.b32.xlu0 %v2254, 112
        %v2256 = vpop.permute.xlu0 %2255
        %v2258 = vsel %vm2177, %v2251, 0
        %v2261 = vsel %vm2193, %v2256, 0
        %2263 = vmatpush.bf16.msra.mxu0 0
        %2264 = vmatpush.bf16.msra.mxu0 0
        %2265 = vmatpush.bf16.msra.mxu0 0
        %2266 = vmatpush.bf16.msra.mxu0 0
        %2267 = vmatpush.bf16.msra.mxu0 0
        %2268 = vmatpush.bf16.msra.mxu0 0
        %2269 = vmatpush.bf16.msra.mxu0 0
        %2270 = vmatpush.bf16.msra.mxu0 %v2261
        %2271 = vmatmul.bf16.gmra.mxu0 %v2258
        %v2272 = vpop.f32.mrf.mxu0
        %v2273 = vadd.f32 0.0, %v2272
        %v2274 = vpop.f32.mrf.mxu0
        %2275 = vdwg.mxu0
        %2277 = vrot.lane.b32.xlu0 %v2273, 16
        %v2278 = vpop.permute.xlu0 %2277
        %2280 = vst.msk [vmem:[#allocation2] sm:$0xff] %vm1289, %v2278
        %2281 = vrot.lane.b32.xlu0 %v2213, 96
        %v2282 = vpop.permute.xlu0 %2281
        %2283 = vrot.lane.b32.xlu0 %v2218, 96
        %v2284 = vpop.permute.xlu0 %2283
        %v2286 = vsel %vm1145, %v2282, 0
        %v2289 = vsel %vm1145, %v2284, 0
        %2291 = vmatpush.bf16.xpose.msra.mxu0 0
        %2292 = vmatpush.bf16.xpose.msra.mxu0 0
        %2293 = vmatpush.bf16.xpose.msra.mxu0 0
        %2294 = vmatpush.bf16.xpose.msra.mxu0 0
        %2295 = vmatpush.bf16.xpose.msra.mxu0 0
        %2296 = vmatpush.bf16.xpose.msra.mxu0 0
        %2297 = vmatpush.bf16.xpose.msra.mxu0 0
        %2298 = vmatpush.bf16.xpose.msra.mxu0 %v2289
        %2299 = vmatmul.bf16.gmra.mxu0 %v2286
        %v2300 = vpop.f32.mrf.mxu0
        %v2301 = vadd.f32 %v2156, %v2300
        %v2302 = vpop.f32.mrf.mxu0
        %2303 = vdwg.mxu0
        %v2304 = vsel %vm2177, %v2301, -inf
        %2305 = vmax.xlane.f32.xlu0 %v2304
        %v2306 = vpop.xlane.xlu0 %2305
        %v2307 = vsub.f32 %v2301, %v2306
        %v2308 = vmul.f32 %v2307, 1.442695
        %v2309 = vpow.pop %v2308
        %v2310 = vsel %vm2177, %v2309, 0.0
        %2311 = vadd.xlane.f32.xlu0 %v2310
        %v2312 = vpop.xlane.xlu0 %2311
        %v2313 = vrcp.pop %v2312
        %v2314 = vmul.f32 %v2309, %v2313
        %v2315 = vpack.c.bf16 %v2314, %v2314
        %2316 = vrot.lane.b32.xlu0 %v2254, 96
        %v2317 = vpop.permute.xlu0 %2316
        %v2319 = vsel %vm2177, %v2315, 0
        %v2322 = vsel %vm2193, %v2317, 0
        %2324 = vmatpush.bf16.msra.mxu0 0
        %2325 = vmatpush.bf16.msra.mxu0 0
        %2326 = vmatpush.bf16.msra.mxu0 0
        %2327 = vmatpush.bf16.msra.mxu0 0
        %2328 = vmatpush.bf16.msra.mxu0 0
        %2329 = vmatpush.bf16.msra.mxu0 0
        %2330 = vmatpush.bf16.msra.mxu0 0
        %2331 = vmatpush.bf16.msra.mxu0 %v2322
        %2332 = vmatmul.bf16.gmra.mxu0 %v2319
        %v2333 = vpop.f32.mrf.mxu0
        %v2334 = vadd.f32 0.0, %v2333
        %v2335 = vpop.f32.mrf.mxu0
        %2336 = vdwg.mxu0
        %2338 = vrot.lane.b32.xlu0 %v2334, 32
        %v2339 = vpop.permute.xlu0 %2338
        %2341 = vst.msk [vmem:[#allocation2] sm:$0xff] %vm1367, %v2339
        %2342 = vrot.lane.b32.xlu0 %v2213, 80
        %v2343 = vpop.permute.xlu0 %2342
        %2344 = vrot.lane.b32.xlu0 %v2218, 80
        %v2345 = vpop.permute.xlu0 %2344
        %v2347 = vsel %vm1145, %v2343, 0
        %v2350 = vsel %vm1145, %v2345, 0
        %2352 = vmatpush.bf16.xpose.msra.mxu0 0
        %2353 = vmatpush.bf16.xpose.msra.mxu0 0
        %2354 = vmatpush.bf16.xpose.msra.mxu0 0
        %2355 = vmatpush.bf16.xpose.msra.mxu0 0
        %2356 = vmatpush.bf16.xpose.msra.mxu0 0
        %2357 = vmatpush.bf16.xpose.msra.mxu0 0
        %2358 = vmatpush.bf16.xpose.msra.mxu0 0
        %2359 = vmatpush.bf16.xpose.msra.mxu0 %v2350
        %2360 = vmatmul.bf16.gmra.mxu0 %v2347
        %v2361 = vpop.f32.mrf.mxu0
        %v2362 = vadd.f32 %v2156, %v2361
        %v2363 = vpop.f32.mrf.mxu0
        %2364 = vdwg.mxu0
        %v2365 = vsel %vm2177, %v2362, -inf
        %2366 = vmax.xlane.f32.xlu0 %v2365
        %v2367 = vpop.xlane.xlu0 %2366
        %v2368 = vsub.f32 %v2362, %v2367
        %v2369 = vmul.f32 %v2368, 1.442695
        %v2370 = vpow.pop %v2369
        %v2371 = vsel %vm2177, %v2370, 0.0
        %2372 = vadd.xlane.f32.xlu0 %v2371
        %v2373 = vpop.xlane.xlu0 %2372
        %v2374 = vrcp.pop %v2373
        %v2375 = vmul.f32 %v2370, %v2374
        %v2376 = vpack.c.bf16 %v2375, %v2375
        %2377 = vrot.lane.b32.xlu0 %v2254, 80
        %v2378 = vpop.permute.xlu0 %2377
        %v2380 = vsel %vm2177, %v2376, 0
        %v2383 = vsel %vm2193, %v2378, 0
        %2385 = vmatpush.bf16.msra.mxu0 0
        %2386 = vmatpush.bf16.msra.mxu0 0
        %2387 = vmatpush.bf16.msra.mxu0 0
        %2388 = vmatpush.bf16.msra.mxu0 0
        %2389 = vmatpush.bf16.msra.mxu0 0
        %2390 = vmatpush.bf16.msra.mxu0 0
        %2391 = vmatpush.bf16.msra.mxu0 0
        %2392 = vmatpush.bf16.msra.mxu0 %v2383
        %2393 = vmatmul.bf16.gmra.mxu0 %v2380
        %v2394 = vpop.f32.mrf.mxu0
        %v2395 = vadd.f32 0.0, %v2394
        %v2396 = vpop.f32.mrf.mxu0
        %2397 = vdwg.mxu0
        %2399 = vrot.lane.b32.xlu0 %v2395, 48
        %v2400 = vpop.permute.xlu0 %2399
        %2402 = vst.msk [vmem:[#allocation2] sm:$0xff] %vm1445, %v2400
        %2403 = vrot.lane.b32.xlu0 %v2213, 64
        %v2404 = vpop.permute.xlu0 %2403
        %2405 = vrot.lane.b32.xlu0 %v2218, 64
        %v2406 = vpop.permute.xlu0 %2405
        %v2408 = vsel %vm1145, %v2404, 0
        %v2411 = vsel %vm1145, %v2406, 0
        %2413 = vmatpush.bf16.xpose.msra.mxu0 0
        %2414 = vmatpush.bf16.xpose.msra.mxu0 0
        %2415 = vmatpush.bf16.xpose.msra.mxu0 0
        %2416 = vmatpush.bf16.xpose.msra.mxu0 0
        %2417 = vmatpush.bf16.xpose.msra.mxu0 0
        %2418 = vmatpush.bf16.xpose.msra.mxu0 0
        %2419 = vmatpush.bf16.xpose.msra.mxu0 0
        %2420 = vmatpush.bf16.xpose.msra.mxu0 %v2411
        %2421 = vmatmul.bf16.gmra.mxu0 %v2408
        %v2422 = vpop.f32.mrf.mxu0
        %v2423 = vadd.f32 %v2156, %v2422
        %v2424 = vpop.f32.mrf.mxu0
        %2425 = vdwg.mxu0
        %v2426 = vsel %vm2177, %v2423, -inf
        %2427 = vmax.xlane.f32.xlu0 %v2426
        %v2428 = vpop.xlane.xlu0 %2427
        %v2429 = vsub.f32 %v2423, %v2428
        %v2430 = vmul.f32 %v2429, 1.442695
        %v2431 = vpow.pop %v2430
        %v2432 = vsel %vm2177, %v2431, 0.0
        %2433 = vadd.xlane.f32.xlu0 %v2432
        %v2434 = vpop.xlane.xlu0 %2433
        %v2435 = vrcp.pop %v2434
        %v2436 = vmul.f32 %v2431, %v2435
        %v2437 = vpack.c.bf16 %v2436, %v2436
        %2438 = vrot.lane.b32.xlu0 %v2254, 64
        %v2439 = vpop.permute.xlu0 %2438
        %v2441 = vsel %vm2177, %v2437, 0
        %v2444 = vsel %vm2193, %v2439, 0
        %2446 = vmatpush.bf16.msra.mxu0 0
        %2447 = vmatpush.bf16.msra.mxu0 0
        %2448 = vmatpush.bf16.msra.mxu0 0
        %2449 = vmatpush.bf16.msra.mxu0 0
        %2450 = vmatpush.bf16.msra.mxu0 0
        %2451 = vmatpush.bf16.msra.mxu0 0
        %2452 = vmatpush.bf16.msra.mxu0 0
        %2453 = vmatpush.bf16.msra.mxu0 %v2444
        %2454 = vmatmul.bf16.gmra.mxu0 %v2441
        %v2455 = vpop.f32.mrf.mxu0
        %v2456 = vadd.f32 0.0, %v2455
        %v2457 = vpop.f32.mrf.mxu0
        %2458 = vdwg.mxu0
        %2460 = vrot.lane.b32.xlu0 %v2456, 64
        %v2461 = vpop.permute.xlu0 %2460
        %2463 = vst.msk [vmem:[#allocation2] sm:$0xff] %vm1523, %v2461
        %2464 = vrot.lane.b32.xlu0 %v2213, 48
        %v2465 = vpop.permute.xlu0 %2464
        %2466 = vrot.lane.b32.xlu0 %v2218, 48
        %v2467 = vpop.permute.xlu0 %2466
        %v2469 = vsel %vm1145, %v2465, 0
        %v2472 = vsel %vm1145, %v2467, 0
        %2474 = vmatpush.bf16.xpose.msra.mxu0 0
        %2475 = vmatpush.bf16.xpose.msra.mxu0 0
        %2476 = vmatpush.bf16.xpose.msra.mxu0 0
        %2477 = vmatpush.bf16.xpose.msra.mxu0 0
        %2478 = vmatpush.bf16.xpose.msra.mxu0 0
        %2479 = vmatpush.bf16.xpose.msra.mxu0 0
        %2480 = vmatpush.bf16.xpose.msra.mxu0 0
        %2481 = vmatpush.bf16.xpose.msra.mxu0 %v2472
        %2482 = vmatmul.bf16.gmra.mxu0 %v2469
        %v2483 = vpop.f32.mrf.mxu0
        %v2484 = vadd.f32 %v2156, %v2483
        %v2485 = vpop.f32.mrf.mxu0
        %2486 = vdwg.mxu0
        %v2487 = vsel %vm2177, %v2484, -inf
        %2488 = vmax.xlane.f32.xlu0 %v2487
        %v2489 = vpop.xlane.xlu0 %2488
        %v2490 = vsub.f32 %v2484, %v2489
        %v2491 = vmul.f32 %v2490, 1.442695
        %v2492 = vpow.pop %v2491
        %v2493 = vsel %vm2177, %v2492, 0.0
        %2494 = vadd.xlane.f32.xlu0 %v2493
        %v2495 = vpop.xlane.xlu0 %2494
        %v2496 = vrcp.pop %v2495
        %v2497 = vmul.f32 %v2492, %v2496
        %v2498 = vpack.c.bf16 %v2497, %v2497
        %2499 = vrot.lane.b32.xlu0 %v2254, 48
        %v2500 = vpop.permute.xlu0 %2499
        %v2502 = vsel %vm2177, %v2498, 0
        %v2505 = vsel %vm2193, %v2500, 0
        %2507 = vmatpush.bf16.msra.mxu0 0
        %2508 = vmatpush.bf16.msra.mxu0 0
        %2509 = vmatpush.bf16.msra.mxu0 0
        %2510 = vmatpush.bf16.msra.mxu0 0
        %2511 = vmatpush.bf16.msra.mxu0 0
        %2512 = vmatpush.bf16.msra.mxu0 0
        %2513 = vmatpush.bf16.msra.mxu0 0
        %2514 = vmatpush.bf16.msra.mxu0 %v2505
        %2515 = vmatmul.bf16.gmra.mxu0 %v2502
        %v2516 = vpop.f32.mrf.mxu0
        %v2517 = vadd.f32 0.0, %v2516
        %v2518 = vpop.f32.mrf.mxu0
        %2519 = vdwg.mxu0
        %2521 = vrot.lane.b32.xlu0 %v2517, 80
        %v2522 = vpop.permute.xlu0 %2521
        %2524 = vst.msk [vmem:[#allocation2] sm:$0xff] %vm1601, %v2522
        %2525 = vrot.lane.b32.xlu0 %v2213, 32
        %v2526 = vpop.permute.xlu0 %2525
        %2527 = vrot.lane.b32.xlu0 %v2218, 32
        %v2528 = vpop.permute.xlu0 %2527
        %v2530 = vsel %vm1145, %v2526, 0
        %v2533 = vsel %vm1145, %v2528, 0
        %2535 = vmatpush.bf16.xpose.msra.mxu0 0
        %2536 = vmatpush.bf16.xpose.msra.mxu0 0
        %2537 = vmatpush.bf16.xpose.msra.mxu0 0
        %2538 = vmatpush.bf16.xpose.msra.mxu0 0
        %2539 = vmatpush.bf16.xpose.msra.mxu0 0
        %2540 = vmatpush.bf16.xpose.msra.mxu0 0
        %2541 = vmatpush.bf16.xpose.msra.mxu0 0
        %2542 = vmatpush.bf16.xpose.msra.mxu0 %v2533
        %2543 = vmatmul.bf16.gmra.mxu0 %v2530
        %v2544 = vpop.f32.mrf.mxu0
        %v2545 = vadd.f32 %v2156, %v2544
        %v2546 = vpop.f32.mrf.mxu0
        %2547 = vdwg.mxu0
        %v2548 = vsel %vm2177, %v2545, -inf
        %2549 = vmax.xlane.f32.xlu0 %v2548
        %v2550 = vpop.xlane.xlu0 %2549
        %v2551 = vsub.f32 %v2545, %v2550
        %v2552 = vmul.f32 %v2551, 1.442695
        %v2553 = vpow.pop %v2552
        %v2554 = vsel %vm2177, %v2553, 0.0
        %2555 = vadd.xlane.f32.xlu0 %v2554
        %v2556 = vpop.xlane.xlu0 %2555
        %v2557 = vrcp.pop %v2556
        %v2558 = vmul.f32 %v2553, %v2557
        %v2559 = vpack.c.bf16 %v2558, %v2558
        %2560 = vrot.lane.b32.xlu0 %v2254, 32
        %v2561 = vpop.permute.xlu0 %2560
        %v2563 = vsel %vm2177, %v2559, 0
        %v2566 = vsel %vm2193, %v2561, 0
        %2568 = vmatpush.bf16.msra.mxu0 0
        %2569 = vmatpush.bf16.msra.mxu0 0
        %2570 = vmatpush.bf16.msra.mxu0 0
        %2571 = vmatpush.bf16.msra.mxu0 0
        %2572 = vmatpush.bf16.msra.mxu0 0
        %2573 = vmatpush.bf16.msra.mxu0 0
        %2574 = vmatpush.bf16.msra.mxu0 0
        %2575 = vmatpush.bf16.msra.mxu0 %v2566
        %2576 = vmatmul.bf16.gmra.mxu0 %v2563
        %v2577 = vpop.f32.mrf.mxu0
        %v2578 = vadd.f32 0.0, %v2577
        %v2579 = vpop.f32.mrf.mxu0
        %2580 = vdwg.mxu0
        %2582 = vrot.lane.b32.xlu0 %v2578, 96
        %v2583 = vpop.permute.xlu0 %2582
        %2585 = vst.msk [vmem:[#allocation2] sm:$0xff] %vm1679, %v2583
        %2586 = vrot.lane.b32.xlu0 %v2213, 16
        %v2587 = vpop.permute.xlu0 %2586
        %2588 = vrot.lane.b32.xlu0 %v2218, 16
        %v2589 = vpop.permute.xlu0 %2588
        %v2591 = vsel %vm1145, %v2587, 0
        %v2594 = vsel %vm1145, %v2589, 0
        %2596 = vmatpush.bf16.xpose.msra.mxu0 0
        %2597 = vmatpush.bf16.xpose.msra.mxu0 0
        %2598 = vmatpush.bf16.xpose.msra.mxu0 0
        %2599 = vmatpush.bf16.xpose.msra.mxu0 0
        %2600 = vmatpush.bf16.xpose.msra.mxu0 0
        %2601 = vmatpush.bf16.xpose.msra.mxu0 0
        %2602 = vmatpush.bf16.xpose.msra.mxu0 0
        %2603 = vmatpush.bf16.xpose.msra.mxu0 %v2594
        %2604 = vmatmul.bf16.gmra.mxu0 %v2591
        %v2605 = vpop.f32.mrf.mxu0
        %v2606 = vadd.f32 %v2156, %v2605
        %v2607 = vpop.f32.mrf.mxu0
        %2608 = vdwg.mxu0
        %v2609 = vsel %vm2177, %v2606, -inf
        %2610 = vmax.xlane.f32.xlu0 %v2609
        %v2611 = vpop.xlane.xlu0 %2610
        %v2612 = vsub.f32 %v2606, %v2611
        %v2613 = vmul.f32 %v2612, 1.442695
        %v2614 = vpow.pop %v2613
        %v2615 = vsel %vm2177, %v2614, 0.0
        %2616 = vadd.xlane.f32.xlu0 %v2615
        %v2617 = vpop.xlane.xlu0 %2616
        %v2618 = vrcp.pop %v2617
        %v2619 = vmul.f32 %v2614, %v2618
        %v2620 = vpack.c.bf16 %v2619, %v2619
        %2621 = vrot.lane.b32.xlu0 %v2254, 16
        %v2622 = vpop.permute.xlu0 %2621
        %v2624 = vsel %vm2177, %v2620, 0
        %v2627 = vsel %vm2193, %v2622, 0
        %2629 = vmatpush.bf16.msra.mxu0 0
        %2630 = vmatpush.bf16.msra.mxu0 0
        %2631 = vmatpush.bf16.msra.mxu0 0
        %2632 = vmatpush.bf16.msra.mxu0 0
        %2633 = vmatpush.bf16.msra.mxu0 0
        %2634 = vmatpush.bf16.msra.mxu0 0
        %2635 = vmatpush.bf16.msra.mxu0 0
        %2636 = vmatpush.bf16.msra.mxu0 %v2627
        %2637 = vmatmul.bf16.gmra.mxu0 %v2624
        %v2638 = vpop.f32.mrf.mxu0
        %v2639 = vadd.f32 0.0, %v2638
        %v2640 = vpop.f32.mrf.mxu0
        %2641 = vdwg.mxu0
        %2643 = vrot.lane.b32.xlu0 %v2639, 112
        %v2644 = vpop.permute.xlu0 %2643
        %2646 = vst.msk [vmem:[#allocation2] sm:$0xff] %vm1757, %v2644
        %v2647 = vld [vmem:[#allocation2] sm:$0xff]
        %v2648 = vpack.c.bf16 %v2647, %v2647
        %s2649 = scalar_lea.vmem [#allocation15], 64
        %v2650 = vld [vmem:[%s2649] sm:$0xf]
        %v2651 = vld [vmem:[%s2649 + $0x4] sm:$0xf]
        %v2652 = vld [vmem:[%s2649 + $0x8] sm:$0xf]
        %v2653 = vld [vmem:[%s2649 + $0xc] sm:$0xf]
        %v2654 = vld [vmem:[%s2649 + $0x10] sm:$0xf]
        %v2655 = vld [vmem:[%s2649 + $0x14] sm:$0xf]
        %v2656 = vld [vmem:[%s2649 + $0x18] sm:$0xf]
        %v2657 = vld [vmem:[%s2649 + $0x1c] sm:$0xf]
        %v2658 = vld [vmem:[%s2649 + $0x20] sm:$0xf]
        %v2659 = vld [vmem:[%s2649 + $0x24] sm:$0xf]
        %v2660 = vld [vmem:[%s2649 + $0x28] sm:$0xf]
        %v2661 = vld [vmem:[%s2649 + $0x2c] sm:$0xf]
        %v2662 = vld [vmem:[%s2649 + $0x30] sm:$0xf]
        %v2663 = vld [vmem:[%s2649 + $0x34] sm:$0xf]
        %v2664 = vld [vmem:[%s2649 + $0x38] sm:$0xf]
        %v2665 = vld [vmem:[%s2649 + $0x3c] sm:$0xf]
        %s2666 = scalar_lea.vmem %s8, 1
        %v2667 = vld [vmem:[%s2666] sm:$0x1]
        %v2669 = vperm.slane %v2667, 0
        %v2687 = vunpack.c.l.b16 %v2650
        %v2688 = vunpack.c.l.b16 %v2651
        %v2689 = vunpack.c.l.b16 %v2652
        %v2690 = vunpack.c.l.b16 %v2653
        %v2691 = vunpack.c.l.b16 %v2654
        %v2692 = vunpack.c.l.b16 %v2655
        %v2693 = vunpack.c.l.b16 %v2656
        %v2694 = vunpack.c.l.b16 %v2657
        %v2695 = vunpack.c.l.b16 %v2658
        %v2696 = vunpack.c.l.b16 %v2659
        %v2697 = vunpack.c.l.b16 %v2660
        %v2698 = vunpack.c.l.b16 %v2661
        %v2699 = vunpack.c.l.b16 %v2662
        %v2700 = vunpack.c.l.b16 %v2663
        %v2701 = vunpack.c.l.b16 %v2664
        %v2702 = vunpack.c.l.b16 %v2665
        %v2703 = vpack.c.b16 %v2688, %v2687
        %v2704 = vpack.c.b16 %v2690, %v2689
        %v2705 = vpack.c.b16 %v2692, %v2691
        %v2706 = vpack.c.b16 %v2694, %v2693
        %v2707 = vpack.c.b16 %v2696, %v2695
        %v2708 = vpack.c.b16 %v2698, %v2697
        %v2709 = vpack.c.b16 %v2700, %v2699
        %v2710 = vpack.c.b16 %v2702, %v2701
        %2719 = vmatpush.bf16.msra.mxu0 %v2710
        %2720 = vmatpush.bf16.msra.mxu0 %v2709
        %2721 = vmatpush.bf16.msra.mxu0 %v2708
        %2722 = vmatpush.bf16.msra.mxu0 %v2707
        %2723 = vmatpush.bf16.msra.mxu0 %v2706
        %2724 = vmatpush.bf16.msra.mxu0 %v2705
        %2725 = vmatpush.bf16.msra.mxu0 %v2704
        %2726 = vmatpush.bf16.msra.mxu0 %v2703
        %2727 = vmatmul.bf16.gmra.mxu0 %v2648
        %v2728 = vpop.f32.mrf.mxu0
        %v2729 = vadd.f32 %v2669, %v2728
        %v2730 = vpop.f32.mrf.mxu0
        %2731 = vdwg.mxu0
        %v2732 = vadd.f32 %v873, %v2729
        %s2733 = scalar_lea.vmem %s9, 1
        %v2734 = vld [vmem:[%s2733] sm:$0x1]
        %s2735 = scalar_lea.vmem [#allocation17], 1
        %v2736 = vld [vmem:[%s2735] sm:$0x1]
        %2737 = vadd.xlane.f32.xlu0 %v2732
        %v2738 = vpop.xlane.xlu0 %2737
        %v2739 = vmul.f32 %v2738, %v1859
        %v2740 = vsub.f32 %v2732, %v2739
        %v2741 = vmul.f32 %v2740, %v2740
        %2742 = vadd.xlane.f32.xlu0 %v2741
        %v2743 = vpop.xlane.xlu0 %2742
        %v2744 = vmul.f32 %v2743, %v1859
        %v2745 = vadd.f32 %v2744, 1e-05
        %v2746 = vrsqrt.pop %v2745
        %v2747 = vmul.f32 %v2746, %v2745
        %v2748 = vmul.f32 %v2747, %v2746
        %v2749 = vmul.f32 0.5, %v2748
        %v2750 = vsub.f32 1.5, %v2749
        %v2751 = vmul.f32 %v2746, %v2750
        %vm2752 = vweird.f32 %v2745
        %vm2753 = vweird.f32 %v2746
        %vm2754 = vmor %vm2752, %vm2753
        %v2755 = vsel %vm2754, %v2746, %v2751
        %v2756 = vmul.f32 %v2740, %v2755
        %v2758 = vperm.slane %v2734, 0
        %v2760 = vmul.f32 %v2756, %v2758
        %v2762 = vperm.slane %v2736, 0
        %v2764 = vadd.f32 %v2760, %v2762
        %v2765 = vadd.f32 %v1904, %v871
        %v2766 = vadd.f32 %v1905, %v872
        %v2767 = vpack.c.bf16 %v2764, %v2764
        %v2768 = vpack.c.bf16 %v1905, %v1904
        %s2769 = scalar_lea.vmem [#allocation12], 384
        %v2770 = vld [vmem:[%s2769] sm:$0xf]
        %v2771 = vld [vmem:[%s2769 + $0xc] sm:$0xf]
        %v2772 = vld [vmem:[%s2769 + $0x18] sm:$0xf]
        %v2773 = vld [vmem:[%s2769 + $0x24] sm:$0xf]
        %v2774 = vld [vmem:[%s2769 + $0x30] sm:$0xf]
        %v2775 = vld [vmem:[%s2769 + $0x3c] sm:$0xf]
        %v2776 = vld [vmem:[%s2769 + $0x48] sm:$0xf]
        %v2777 = vld [vmem:[%s2769 + $0x54] sm:$0xf]
        %v2778 = vld [vmem:[%s2769 + $0x60] sm:$0xf]
        %v2779 = vld [vmem:[%s2769 + $0x6c] sm:$0xf]
        %v2780 = vld [vmem:[%s2769 + $0x78] sm:$0xf]
        %v2781 = vld [vmem:[%s2769 + $0x84] sm:$0xf]
        %v2782 = vld [vmem:[%s2769 + $0x90] sm:$0xf]
        %v2783 = vld [vmem:[%s2769 + $0x9c] sm:$0xf]
        %v2784 = vld [vmem:[%s2769 + $0xa8] sm:$0xf]
        %v2785 = vld [vmem:[%s2769 + $0xb4] sm:$0xf]
        %s2786 = scalar_lea.vmem [#allocation14], 6
        %v2787 = vld [vmem:[%s2786] sm:$0x1]
        %v2789 = vperm.slane %v2787, 0
        %v2807 = vunpack.c.l.b16 %v2770
        %v2808 = vunpack.c.l.b16 %v2771
        %v2809 = vunpack.c.l.b16 %v2772
        %v2810 = vunpack.c.l.b16 %v2773
        %v2811 = vunpack.c.l.b16 %v2774
        %v2812 = vunpack.c.l.b16 %v2775
        %v2813 = vunpack.c.l.b16 %v2776
        %v2814 = vunpack.c.l.b16 %v2777
        %v2815 = vunpack.c.l.b16 %v2778
        %v2816 = vunpack.c.l.b16 %v2779
        %v2817 = vunpack.c.l.b16 %v2780
        %v2818 = vunpack.c.l.b16 %v2781
        %v2819 = vunpack.c.l.b16 %v2782
        %v2820 = vunpack.c.l.b16 %v2783
        %v2821 = vunpack.c.l.b16 %v2784
        %v2822 = vunpack.c.l.b16 %v2785
        %v2823 = vpack.c.b16 %v2808, %v2807
        %v2824 = vpack.c.b16 %v2810, %v2809
        %v2825 = vpack.c.b16 %v2812, %v2811
        %v2826 = vpack.c.b16 %v2814, %v2813
        %v2827 = vpack.c.b16 %v2816, %v2815
        %v2828 = vpack.c.b16 %v2818, %v2817
        %v2829 = vpack.c.b16 %v2820, %v2819
        %v2830 = vpack.c.b16 %v2822, %v2821
        %2839 = vmatpush.bf16.msra.mxu0 %v2830
        %2840 = vmatpush.bf16.msra.mxu0 %v2829
        %2841 = vmatpush.bf16.msra.mxu0 %v2828
        %2842 = vmatpush.bf16.msra.mxu0 %v2827
        %2843 = vmatpush.bf16.msra.mxu0 %v2826
        %2844 = vmatpush.bf16.msra.mxu0 %v2825
        %2845 = vmatpush.bf16.msra.mxu0 %v2824
        %2846 = vmatpush.bf16.msra.mxu0 %v2823
        %2847 = vmatmul.bf16.gmra.mxu0 %v2767
        %v2848 = vpop.f32.mrf.mxu0
        %v2849 = vadd.f32 %v2789, %v2848
        %v2850 = vpop.f32.mrf.mxu0
        %2851 = vdwg.mxu0
        %v2852 = vpack.c.bf16 %v2849, %v2849
        %v2853 = vld [vmem:[%s2769 + $0x4] sm:$0xf]
        %v2854 = vld [vmem:[%s2769 + $0x10] sm:$0xf]
        %v2855 = vld [vmem:[%s2769 + $0x1c] sm:$0xf]
        %v2856 = vld [vmem:[%s2769 + $0x28] sm:$0xf]
        %v2857 = vld [vmem:[%s2769 + $0x34] sm:$0xf]
        %v2858 = vld [vmem:[%s2769 + $0x40] sm:$0xf]
        %v2859 = vld [vmem:[%s2769 + $0x4c] sm:$0xf]
        %v2860 = vld [vmem:[%s2769 + $0x58] sm:$0xf]
        %v2861 = vld [vmem:[%s2769 + $0x64] sm:$0xf]
        %v2862 = vld [vmem:[%s2769 + $0x70] sm:$0xf]
        %v2863 = vld [vmem:[%s2769 + $0x7c] sm:$0xf]
        %v2864 = vld [vmem:[%s2769 + $0x88] sm:$0xf]
        %v2865 = vld [vmem:[%s2769 + $0x94] sm:$0xf]
        %v2866 = vld [vmem:[%s2769 + $0xa0] sm:$0xf]
        %v2867 = vld [vmem:[%s2769 + $0xac] sm:$0xf]
        %v2868 = vld [vmem:[%s2769 + $0xb8] sm:$0xf]
        %v2869 = vld [vmem:[%s2786 + $0x1] sm:$0x1]
        %v2871 = vperm.slane %v2869, 0
        %v2889 = vunpack.c.l.b16 %v2853
        %v2890 = vunpack.c.l.b16 %v2854
        %v2891 = vunpack.c.l.b16 %v2855
        %v2892 = vunpack.c.l.b16 %v2856
        %v2893 = vunpack.c.l.b16 %v2857
        %v2894 = vunpack.c.l.b16 %v2858
        %v2895 = vunpack.c.l.b16 %v2859
        %v2896 = vunpack.c.l.b16 %v2860
        %v2897 = vunpack.c.l.b16 %v2861
        %v2898 = vunpack.c.l.b16 %v2862
        %v2899 = vunpack.c.l.b16 %v2863
        %v2900 = vunpack.c.l.b16 %v2864
        %v2901 = vunpack.c.l.b16 %v2865
        %v2902 = vunpack.c.l.b16 %v2866
        %v2903 = vunpack.c.l.b16 %v2867
        %v2904 = vunpack.c.l.b16 %v2868
        %v2905 = vpack.c.b16 %v2890, %v2889
        %v2906 = vpack.c.b16 %v2892, %v2891
        %v2907 = vpack.c.b16 %v2894, %v2893
        %v2908 = vpack.c.b16 %v2896, %v2895
        %v2909 = vpack.c.b16 %v2898, %v2897
        %v2910 = vpack.c.b16 %v2900, %v2899
        %v2911 = vpack.c.b16 %v2902, %v2901
        %v2912 = vpack.c.b16 %v2904, %v2903
        %2921 = vmatpush.bf16.msra.mxu0 %v2912
        %2922 = vmatpush.bf16.msra.mxu0 %v2911
        %2923 = vmatpush.bf16.msra.mxu0 %v2910
        %2924 = vmatpush.bf16.msra.mxu0 %v2909
        %2925 = vmatpush.bf16.msra.mxu0 %v2908
        %2926 = vmatpush.bf16.msra.mxu0 %v2907
        %2927 = vmatpush.bf16.msra.mxu0 %v2906
        %2928 = vmatpush.bf16.msra.mxu0 %v2905
        %2929 = vmatmul.bf16.gmra.mxu0 %v2768
        %v2930 = vpop.f32.mrf.mxu0
        %v2931 = vadd.f32 %v2871, %v2930
        %v2932 = vpop.f32.mrf.mxu0
        %v2933 = vadd.f32 %v2871, %v2932
        %2934 = vdwg.mxu0
        %v2935 = vpack.c.bf16 %v2931, %v2931
        %v2936 = vpack.c.bf16 %v2933, %v2933
        %v2937 = vld [vmem:[%s2769 + $0x8] sm:$0xf]
        %v2938 = vld [vmem:[%s2769 + $0x14] sm:$0xf]
        %v2939 = vld [vmem:[%s2769 + $0x20] sm:$0xf]
        %v2940 = vld [vmem:[%s2769 + $0x2c] sm:$0xf]
        %v2941 = vld [vmem:[%s2769 + $0x38] sm:$0xf]
        %v2942 = vld [vmem:[%s2769 + $0x44] sm:$0xf]
        %v2943 = vld [vmem:[%s2769 + $0x50] sm:$0xf]
        %v2944 = vld [vmem:[%s2769 + $0x5c] sm:$0xf]
        %v2945 = vld [vmem:[%s2769 + $0x68] sm:$0xf]
        %v2946 = vld [vmem:[%s2769 + $0x74] sm:$0xf]
        %v2947 = vld [vmem:[%s2769 + $0x80] sm:$0xf]
        %v2948 = vld [vmem:[%s2769 + $0x8c] sm:$0xf]
        %v2949 = vld [vmem:[%s2769 + $0x98] sm:$0xf]
        %v2950 = vld [vmem:[%s2769 + $0xa4] sm:$0xf]
        %v2951 = vld [vmem:[%s2769 + $0xb0] sm:$0xf]
        %v2952 = vld [vmem:[%s2769 + $0xbc] sm:$0xf]
        %v2953 = vld [vmem:[%s2786 + $0x2] sm:$0x1]
        %v2955 = vperm.slane %v2953, 0
        %v2973 = vunpack.c.l.b16 %v2937
        %v2974 = vunpack.c.l.b16 %v2938
        %v2975 = vunpack.c.l.b16 %v2939
        %v2976 = vunpack.c.l.b16 %v2940
        %v2977 = vunpack.c.l.b16 %v2941
        %v2978 = vunpack.c.l.b16 %v2942
        %v2979 = vunpack.c.l.b16 %v2943
        %v2980 = vunpack.c.l.b16 %v2944
        %v2981 = vunpack.c.l.b16 %v2945
        %v2982 = vunpack.c.l.b16 %v2946
        %v2983 = vunpack.c.l.b16 %v2947
        %v2984 = vunpack.c.l.b16 %v2948
        %v2985 = vunpack.c.l.b16 %v2949
        %v2986 = vunpack.c.l.b16 %v2950
        %v2987 = vunpack.c.l.b16 %v2951
        %v2988 = vunpack.c.l.b16 %v2952
        %v2989 = vpack.c.b16 %v2974, %v2973
        %v2990 = vpack.c.b16 %v2976, %v2975
        %v2991 = vpack.c.b16 %v2978, %v2977
        %v2992 = vpack.c.b16 %v2980, %v2979
        %v2993 = vpack.c.b16 %v2982, %v2981
        %v2994 = vpack.c.b16 %v2984, %v2983
        %v2995 = vpack.c.b16 %v2986, %v2985
        %v2996 = vpack.c.b16 %v2988, %v2987
        %3005 = vmatpush.bf16.msra.mxu0 %v2996
        %3006 = vmatpush.bf16.msra.mxu0 %v2995
        %3007 = vmatpush.bf16.msra.mxu0 %v2994
        %3008 = vmatpush.bf16.msra.mxu0 %v2993
        %3009 = vmatpush.bf16.msra.mxu0 %v2992
        %3010 = vmatpush.bf16.msra.mxu0 %v2991
        %3011 = vmatpush.bf16.msra.mxu0 %v2990
        %3012 = vmatpush.bf16.msra.mxu0 %v2989
        %3013 = vmatmul.bf16.gmra.mxu0 %v2768
        %v3014 = vpop.f32.mrf.mxu0
        %v3015 = vadd.f32 %v2955, %v3014
        %v3016 = vpop.f32.mrf.mxu0
        %v3017 = vadd.f32 %v2955, %v3016
        %3018 = vdwg.mxu0
        %v3019 = vpack.c.bf16 %v3015, %v3015
        %v3020 = vpack.c.bf16 %v3017, %v3017
        %v3023 = vunpack.c.l.b16 %v2935
        %v3024 = vunpack.c.l.b16 %v2936
        %v3025 = vpack.c.b16 %v3024, %v3023
        %v3027 = vsel %vm1145, %v2852, 0
        %v3030 = vsel %vm1145, %v3025, 0
        %3032 = vmatpush.bf16.xpose.msra.mxu0 0
        %3033 = vmatpush.bf16.xpose.msra.mxu0 0
        %3034 = vmatpush.bf16.xpose.msra.mxu0 0
        %3035 = vmatpush.bf16.xpose.msra.mxu0 0
        %3036 = vmatpush.bf16.xpose.msra.mxu0 0
        %3037 = vmatpush.bf16.xpose.msra.mxu0 0
        %3038 = vmatpush.bf16.xpose.msra.mxu0 0
        %3039 = vmatpush.bf16.xpose.msra.mxu0 %v3030
        %3040 = vmatmul.bf16.gmra.mxu0 %v3027
        %v3041 = vpop.f32.mrf.mxu0
        %v3042 = vadd.f32 %v1133, %v3041
        %v3043 = vpop.f32.mrf.mxu0
        %3044 = vdwg.mxu0
        %v3045 = vsel %vm1145, %v3042, -inf
        %3046 = vmax.xlane.f32.xlu0 %v3045
        %v3047 = vpop.xlane.xlu0 %3046
        %v3048 = vsub.f32 %v3042, %v3047
        %v3049 = vmul.f32 %v3048, 1.442695
        %v3050 = vpow.pop %v3049
        %v3051 = vsel %vm1145, %v3050, 0.0
        %3052 = vadd.xlane.f32.xlu0 %v3051
        %v3053 = vpop.xlane.xlu0 %3052
        %v3054 = vrcp.pop %v3053
        %v3055 = vmul.f32 %v3050, %v3054
        %v3056 = vpack.c.bf16 %v3055, %v3055
        %v3059 = vunpack.c.l.b16 %v3019
        %v3060 = vunpack.c.l.b16 %v3020
        %v3061 = vpack.c.b16 %v3060, %v3059
        %v3064 = vsel %vm1145, %v3056, 0
        %3066 = vmatpush.bf16.msra.mxu0 0
        %3067 = vmatpush.bf16.msra.mxu0 0
        %3068 = vmatpush.bf16.msra.mxu0 0
        %3069 = vmatpush.bf16.msra.mxu0 0
        %3070 = vmatpush.bf16.msra.mxu0 0
        %3071 = vmatpush.bf16.msra.mxu0 0
        %3072 = vmatpush.bf16.msra.mxu0 0
        %3073 = vmatpush.bf16.msra.mxu0 %v3061
        %3074 = vmatmul.bf16.gmra.mxu0 %v3064
        %v3075 = vpop.f32.mrf.mxu0
        %v3076 = vadd.f32 0.0, %v3075
        %v3077 = vpop.f32.mrf.mxu0
        %3078 = vdwg.mxu0
        %3079 = vst.msk [vmem:[#allocation2] sm:$0xff] %vm1145, %v3076
        %v3081 = vunpack.c.l.b16 %v2852
        %v3082 = vpack.c.b16 %v3081, %v3081
        %3083 = vrot.lane.b32.xlu0 %v3082, 112
        %v3084 = vpop.permute.xlu0 %3083
        %3085 = vrot.lane.b32.xlu0 %v3025, 112
        %v3086 = vpop.permute.xlu0 %3085
        %v3088 = vsel %vm1145, %v3084, 0
        %v3091 = vsel %vm1145, %v3086, 0
        %3093 = vmatpush.bf16.xpose.msra.mxu0 0
        %3094 = vmatpush.bf16.xpose.msra.mxu0 0
        %3095 = vmatpush.bf16.xpose.msra.mxu0 0
        %3096 = vmatpush.bf16.xpose.msra.mxu0 0
        %3097 = vmatpush.bf16.xpose.msra.mxu0 0
        %3098 = vmatpush.bf16.xpose.msra.mxu0 0
        %3099 = vmatpush.bf16.xpose.msra.mxu0 0
        %3100 = vmatpush.bf16.xpose.msra.mxu0 %v3091
        %3101 = vmatmul.bf16.gmra.mxu0 %v3088
        %v3102 = vpop.f32.mrf.mxu0
        %v3103 = vadd.f32 %v1133, %v3102
        %v3104 = vpop.f32.mrf.mxu0
        %3105 = vdwg.mxu0
        %v3106 = vsel %vm1145, %v3103, -inf
        %3107 = vmax.xlane.f32.xlu0 %v3106
        %v3108 = vpop.xlane.xlu0 %3107
        %v3109 = vsub.f32 %v3103, %v3108
        %v3110 = vmul.f32 %v3109, 1.442695
        %v3111 = vpow.pop %v3110
        %v3112 = vsel %vm1145, %v3111, 0.0
        %3113 = vadd.xlane.f32.xlu0 %v3112
        %v3114 = vpop.xlane.xlu0 %3113
        %v3115 = vrcp.pop %v3114
        %v3116 = vmul.f32 %v3111, %v3115
        %v3117 = vpack.c.bf16 %v3116, %v3116
        %3118 = vrot.lane.b32.xlu0 %v3061, 112
        %v3119 = vpop.permute.xlu0 %3118
        %v3122 = vsel %vm1145, %v3117, 0
        %3124 = vmatpush.bf16.msra.mxu0 0
        %3125 = vmatpush.bf16.msra.mxu0 0
        %3126 = vmatpush.bf16.msra.mxu0 0
        %3127 = vmatpush.bf16.msra.mxu0 0
        %3128 = vmatpush.bf16.msra.mxu0 0
        %3129 = vmatpush.bf16.msra.mxu0 0
        %3130 = vmatpush.bf16.msra.mxu0 0
        %3131 = vmatpush.bf16.msra.mxu0 %v3119
        %3132 = vmatmul.bf16.gmra.mxu0 %v3122
        %v3133 = vpop.f32.mrf.mxu0
        %v3134 = vadd.f32 0.0, %v3133
        %v3135 = vpop.f32.mrf.mxu0
        %3136 = vdwg.mxu0
        %3138 = vrot.lane.b32.xlu0 %v3134, 16
        %v3139 = vpop.permute.xlu0 %3138
        %3141 = vst.msk [vmem:[#allocation2] sm:$0xff] %vm1289, %v3139
        %3142 = vrot.lane.b32.xlu0 %v3082, 96
        %v3143 = vpop.permute.xlu0 %3142
        %3144 = vrot.lane.b32.xlu0 %v3025, 96
        %v3145 = vpop.permute.xlu0 %3144
        %v3147 = vsel %vm1145, %v3143, 0
        %v3150 = vsel %vm1145, %v3145, 0
        %3152 = vmatpush.bf16.xpose.msra.mxu0 0
        %3153 = vmatpush.bf16.xpose.msra.mxu0 0
        %3154 = vmatpush.bf16.xpose.msra.mxu0 0
        %3155 = vmatpush.bf16.xpose.msra.mxu0 0
        %3156 = vmatpush.bf16.xpose.msra.mxu0 0
        %3157 = vmatpush.bf16.xpose.msra.mxu0 0
        %3158 = vmatpush.bf16.xpose.msra.mxu0 0
        %3159 = vmatpush.bf16.xpose.msra.mxu0 %v3150
        %3160 = vmatmul.bf16.gmra.mxu0 %v3147
        %v3161 = vpop.f32.mrf.mxu0
        %v3162 = vadd.f32 %v1133, %v3161
        %v3163 = vpop.f32.mrf.mxu0
        %3164 = vdwg.mxu0
        %v3165 = vsel %vm1145, %v3162, -inf
        %3166 = vmax.xlane.f32.xlu0 %v3165
        %v3167 = vpop.xlane.xlu0 %3166
        %v3168 = vsub.f32 %v3162, %v3167
        %v3169 = vmul.f32 %v3168, 1.442695
        %v3170 = vpow.pop %v3169
        %v3171 = vsel %vm1145, %v3170, 0.0
        %3172 = vadd.xlane.f32.xlu0 %v3171
        %v3173 = vpop.xlane.xlu0 %3172
        %v3174 = vrcp.pop %v3173
        %v3175 = vmul.f32 %v3170, %v3174
        %v3176 = vpack.c.bf16 %v3175, %v3175
        %3177 = vrot.lane.b32.xlu0 %v3061, 96
        %v3178 = vpop.permute.xlu0 %3177
        %v3181 = vsel %vm1145, %v3176, 0
        %3183 = vmatpush.bf16.msra.mxu0 0
        %3184 = vmatpush.bf16.msra.mxu0 0
        %3185 = vmatpush.bf16.msra.mxu0 0
        %3186 = vmatpush.bf16.msra.mxu0 0
        %3187 = vmatpush.bf16.msra.mxu0 0
        %3188 = vmatpush.bf16.msra.mxu0 0
        %3189 = vmatpush.bf16.msra.mxu0 0
        %3190 = vmatpush.bf16.msra.mxu0 %v3178
        %3191 = vmatmul.bf16.gmra.mxu0 %v3181
        %v3192 = vpop.f32.mrf.mxu0
        %v3193 = vadd.f32 0.0, %v3192
        %v3194 = vpop.f32.mrf.mxu0
        %3195 = vdwg.mxu0
        %3197 = vrot.lane.b32.xlu0 %v3193, 32
        %v3198 = vpop.permute.xlu0 %3197
        %3200 = vst.msk [vmem:[#allocation2] sm:$0xff] %vm1367, %v3198
        %3201 = vrot.lane.b32.xlu0 %v3082, 80
        %v3202 = vpop.permute.xlu0 %3201
        %3203 = vrot.lane.b32.xlu0 %v3025, 80
        %v3204 = vpop.permute.xlu0 %3203
        %v3206 = vsel %vm1145, %v3202, 0
        %v3209 = vsel %vm1145, %v3204, 0
        %3211 = vmatpush.bf16.xpose.msra.mxu0 0
        %3212 = vmatpush.bf16.xpose.msra.mxu0 0
        %3213 = vmatpush.bf16.xpose.msra.mxu0 0
        %3214 = vmatpush.bf16.xpose.msra.mxu0 0
        %3215 = vmatpush.bf16.xpose.msra.mxu0 0
        %3216 = vmatpush.bf16.xpose.msra.mxu0 0
        %3217 = vmatpush.bf16.xpose.msra.mxu0 0
        %3218 = vmatpush.bf16.xpose.msra.mxu0 %v3209
        %3219 = vmatmul.bf16.gmra.mxu0 %v3206
        %v3220 = vpop.f32.mrf.mxu0
        %v3221 = vadd.f32 %v1133, %v3220
        %v3222 = vpop.f32.mrf.mxu0
        %3223 = vdwg.mxu0
        %v3224 = vsel %vm1145, %v3221, -inf
        %3225 = vmax.xlane.f32.xlu0 %v3224
        %v3226 = vpop.xlane.xlu0 %3225
        %v3227 = vsub.f32 %v3221, %v3226
        %v3228 = vmul.f32 %v3227, 1.442695
        %v3229 = vpow.pop %v3228
        %v3230 = vsel %vm1145, %v3229, 0.0
        %3231 = vadd.xlane.f32.xlu0 %v3230
        %v3232 = vpop.xlane.xlu0 %3231
        %v3233 = vrcp.pop %v3232
        %v3234 = vmul.f32 %v3229, %v3233
        %v3235 = vpack.c.bf16 %v3234, %v3234
        %3236 = vrot.lane.b32.xlu0 %v3061, 80
        %v3237 = vpop.permute.xlu0 %3236
        %v3240 = vsel %vm1145, %v3235, 0
        %3242 = vmatpush.bf16.msra.mxu0 0
        %3243 = vmatpush.bf16.msra.mxu0 0
        %3244 = vmatpush.bf16.msra.mxu0 0
        %3245 = vmatpush.bf16.msra.mxu0 0
        %3246 = vmatpush.bf16.msra.mxu0 0
        %3247 = vmatpush.bf16.msra.mxu0 0
        %3248 = vmatpush.bf16.msra.mxu0 0
        %3249 = vmatpush.bf16.msra.mxu0 %v3237
        %3250 = vmatmul.bf16.gmra.mxu0 %v3240
        %v3251 = vpop.f32.mrf.mxu0
        %v3252 = vadd.f32 0.0, %v3251
        %v3253 = vpop.f32.mrf.mxu0
        %3254 = vdwg.mxu0
        %3256 = vrot.lane.b32.xlu0 %v3252, 48
        %v3257 = vpop.permute.xlu0 %3256
        %3259 = vst.msk [vmem:[#allocation2] sm:$0xff] %vm1445, %v3257
        %3260 = vrot.lane.b32.xlu0 %v3082, 64
        %v3261 = vpop.permute.xlu0 %3260
        %3262 = vrot.lane.b32.xlu0 %v3025, 64
        %v3263 = vpop.permute.xlu0 %3262
        %v3265 = vsel %vm1145, %v3261, 0
        %v3268 = vsel %vm1145, %v3263, 0
        %3270 = vmatpush.bf16.xpose.msra.mxu0 0
        %3271 = vmatpush.bf16.xpose.msra.mxu0 0
        %3272 = vmatpush.bf16.xpose.msra.mxu0 0
        %3273 = vmatpush.bf16.xpose.msra.mxu0 0
        %3274 = vmatpush.bf16.xpose.msra.mxu0 0
        %3275 = vmatpush.bf16.xpose.msra.mxu0 0
        %3276 = vmatpush.bf16.xpose.msra.mxu0 0
        %3277 = vmatpush.bf16.xpose.msra.mxu0 %v3268
        %3278 = vmatmul.bf16.gmra.mxu0 %v3265
        %v3279 = vpop.f32.mrf.mxu0
        %v3280 = vadd.f32 %v1133, %v3279
        %v3281 = vpop.f32.mrf.mxu0
        %3282 = vdwg.mxu0
        %v3283 = vsel %vm1145, %v3280, -inf
        %3284 = vmax.xlane.f32.xlu0 %v3283
        %v3285 = vpop.xlane.xlu0 %3284
        %v3286 = vsub.f32 %v3280, %v3285
        %v3287 = vmul.f32 %v3286, 1.442695
        %v3288 = vpow.pop %v3287
        %v3289 = vsel %vm1145, %v3288, 0.0
        %3290 = vadd.xlane.f32.xlu0 %v3289
        %v3291 = vpop.xlane.xlu0 %3290
        %v3292 = vrcp.pop %v3291
        %v3293 = vmul.f32 %v3288, %v3292
        %v3294 = vpack.c.bf16 %v3293, %v3293
        %3295 = vrot.lane.b32.xlu0 %v3061, 64
        %v3296 = vpop.permute.xlu0 %3295
        %v3299 = vsel %vm1145, %v3294, 0
        %3301 = vmatpush.bf16.msra.mxu0 0
        %3302 = vmatpush.bf16.msra.mxu0 0
        %3303 = vmatpush.bf16.msra.mxu0 0
        %3304 = vmatpush.bf16.msra.mxu0 0
        %3305 = vmatpush.bf16.msra.mxu0 0
        %3306 = vmatpush.bf16.msra.mxu0 0
        %3307 = vmatpush.bf16.msra.mxu0 0
        %3308 = vmatpush.bf16.msra.mxu0 %v3296
        %3309 = vmatmul.bf16.gmra.mxu0 %v3299
        %v3310 = vpop.f32.mrf.mxu0
        %v3311 = vadd.f32 0.0, %v3310
        %v3312 = vpop.f32.mrf.mxu0
        %3313 = vdwg.mxu0
        %3315 = vrot.lane.b32.xlu0 %v3311, 64
        %v3316 = vpop.permute.xlu0 %3315
        %3318 = vst.msk [vmem:[#allocation2] sm:$0xff] %vm1523, %v3316
        %3319 = vrot.lane.b32.xlu0 %v3082, 48
        %v3320 = vpop.permute.xlu0 %3319
        %3321 = vrot.lane.b32.xlu0 %v3025, 48
        %v3322 = vpop.permute.xlu0 %3321
        %v3324 = vsel %vm1145, %v3320, 0
        %v3327 = vsel %vm1145, %v3322, 0
        %3329 = vmatpush.bf16.xpose.msra.mxu0 0
        %3330 = vmatpush.bf16.xpose.msra.mxu0 0
        %3331 = vmatpush.bf16.xpose.msra.mxu0 0
        %3332 = vmatpush.bf16.xpose.msra.mxu0 0
        %3333 = vmatpush.bf16.xpose.msra.mxu0 0
        %3334 = vmatpush.bf16.xpose.msra.mxu0 0
        %3335 = vmatpush.bf16.xpose.msra.mxu0 0
        %3336 = vmatpush.bf16.xpose.msra.mxu0 %v3327
        %3337 = vmatmul.bf16.gmra.mxu0 %v3324
        %v3338 = vpop.f32.mrf.mxu0
        %v3339 = vadd.f32 %v1133, %v3338
        %v3340 = vpop.f32.mrf.mxu0
        %3341 = vdwg.mxu0
        %v3342 = vsel %vm1145, %v3339, -inf
        %3343 = vmax.xlane.f32.xlu0 %v3342
        %v3344 = vpop.xlane.xlu0 %3343
        %v3345 = vsub.f32 %v3339, %v3344
        %v3346 = vmul.f32 %v3345, 1.442695
        %v3347 = vpow.pop %v3346
        %v3348 = vsel %vm1145, %v3347, 0.0
        %3349 = vadd.xlane.f32.xlu0 %v3348
        %v3350 = vpop.xlane.xlu0 %3349
        %v3351 = vrcp.pop %v3350
        %v3352 = vmul.f32 %v3347, %v3351
        %v3353 = vpack.c.bf16 %v3352, %v3352
        %3354 = vrot.lane.b32.xlu0 %v3061, 48
        %v3355 = vpop.permute.xlu0 %3354
        %v3358 = vsel %vm1145, %v3353, 0
        %3360 = vmatpush.bf16.msra.mxu0 0
        %3361 = vmatpush.bf16.msra.mxu0 0
        %3362 = vmatpush.bf16.msra.mxu0 0
        %3363 = vmatpush.bf16.msra.mxu0 0
        %3364 = vmatpush.bf16.msra.mxu0 0
        %3365 = vmatpush.bf16.msra.mxu0 0
        %3366 = vmatpush.bf16.msra.mxu0 0
        %3367 = vmatpush.bf16.msra.mxu0 %v3355
        %3368 = vmatmul.bf16.gmra.mxu0 %v3358
        %v3369 = vpop.f32.mrf.mxu0
        %v3370 = vadd.f32 0.0, %v3369
        %v3371 = vpop.f32.mrf.mxu0
        %3372 = vdwg.mxu0
        %3374 = vrot.lane.b32.xlu0 %v3370, 80
        %v3375 = vpop.permute.xlu0 %3374
        %3377 = vst.msk [vmem:[#allocation2] sm:$0xff] %vm1601, %v3375
        %3378 = vrot.lane.b32.xlu0 %v3082, 32
        %v3379 = vpop.permute.xlu0 %3378
        %3380 = vrot.lane.b32.xlu0 %v3025, 32
        %v3381 = vpop.permute.xlu0 %3380
        %v3383 = vsel %vm1145, %v3379, 0
        %v3386 = vsel %vm1145, %v3381, 0
        %3388 = vmatpush.bf16.xpose.msra.mxu0 0
        %3389 = vmatpush.bf16.xpose.msra.mxu0 0
        %3390 = vmatpush.bf16.xpose.msra.mxu0 0
        %3391 = vmatpush.bf16.xpose.msra.mxu0 0
        %3392 = vmatpush.bf16.xpose.msra.mxu0 0
        %3393 = vmatpush.bf16.xpose.msra.mxu0 0
        %3394 = vmatpush.bf16.xpose.msra.mxu0 0
        %3395 = vmatpush.bf16.xpose.msra.mxu0 %v3386
        %3396 = vmatmul.bf16.gmra.mxu0 %v3383
        %v3397 = vpop.f32.mrf.mxu0
        %v3398 = vadd.f32 %v1133, %v3397
        %v3399 = vpop.f32.mrf.mxu0
        %3400 = vdwg.mxu0
        %v3401 = vsel %vm1145, %v3398, -inf
        %3402 = vmax.xlane.f32.xlu0 %v3401
        %v3403 = vpop.xlane.xlu0 %3402
        %v3404 = vsub.f32 %v3398, %v3403
        %v3405 = vmul.f32 %v3404, 1.442695
        %v3406 = vpow.pop %v3405
        %v3407 = vsel %vm1145, %v3406, 0.0
        %3408 = vadd.xlane.f32.xlu0 %v3407
        %v3409 = vpop.xlane.xlu0 %3408
        %v3410 = vrcp.pop %v3409
        %v3411 = vmul.f32 %v3406, %v3410
        %v3412 = vpack.c.bf16 %v3411, %v3411
        %3413 = vrot.lane.b32.xlu0 %v3061, 32
        %v3414 = vpop.permute.xlu0 %3413
        %v3417 = vsel %vm1145, %v3412, 0
        %3419 = vmatpush.bf16.msra.mxu0 0
        %3420 = vmatpush.bf16.msra.mxu0 0
        %3421 = vmatpush.bf16.msra.mxu0 0
        %3422 = vmatpush.bf16.msra.mxu0 0
        %3423 = vmatpush.bf16.msra.mxu0 0
        %3424 = vmatpush.bf16.msra.mxu0 0
        %3425 = vmatpush.bf16.msra.mxu0 0
        %3426 = vmatpush.bf16.msra.mxu0 %v3414
        %3427 = vmatmul.bf16.gmra.mxu0 %v3417
        %v3428 = vpop.f32.mrf.mxu0
        %v3429 = vadd.f32 0.0, %v3428
        %v3430 = vpop.f32.mrf.mxu0
        %3431 = vdwg.mxu0
        %3433 = vrot.lane.b32.xlu0 %v3429, 96
        %v3434 = vpop.permute.xlu0 %3433
        %3436 = vst.msk [vmem:[#allocation2] sm:$0xff] %vm1679, %v3434
        %3437 = vrot.lane.b32.xlu0 %v3082, 16
        %v3438 = vpop.permute.xlu0 %3437
        %3439 = vrot.lane.b32.xlu0 %v3025, 16
        %v3440 = vpop.permute.xlu0 %3439
        %v3442 = vsel %vm1145, %v3438, 0
        %v3445 = vsel %vm1145, %v3440, 0
        %3447 = vmatpush.bf16.xpose.msra.mxu0 0
        %3448 = vmatpush.bf16.xpose.msra.mxu0 0
        %3449 = vmatpush.bf16.xpose.msra.mxu0 0
        %3450 = vmatpush.bf16.xpose.msra.mxu0 0
        %3451 = vmatpush.bf16.xpose.msra.mxu0 0
        %3452 = vmatpush.bf16.xpose.msra.mxu0 0
        %3453 = vmatpush.bf16.xpose.msra.mxu0 0
        %3454 = vmatpush.bf16.xpose.msra.mxu0 %v3445
        %3455 = vmatmul.bf16.gmra.mxu0 %v3442
        %v3456 = vpop.f32.mrf.mxu0
        %v3457 = vadd.f32 %v1133, %v3456
        %v3458 = vpop.f32.mrf.mxu0
        %3459 = vdwg.mxu0
        %v3460 = vsel %vm1145, %v3457, -inf
        %3461 = vmax.xlane.f32.xlu0 %v3460
        %v3462 = vpop.xlane.xlu0 %3461
        %v3463 = vsub.f32 %v3457, %v3462
        %v3464 = vmul.f32 %v3463, 1.442695
        %v3465 = vpow.pop %v3464
        %v3466 = vsel %vm1145, %v3465, 0.0
        %3467 = vadd.xlane.f32.xlu0 %v3466
        %v3468 = vpop.xlane.xlu0 %3467
        %v3469 = vrcp.pop %v3468
        %v3470 = vmul.f32 %v3465, %v3469
        %v3471 = vpack.c.bf16 %v3470, %v3470
        %3472 = vrot.lane.b32.xlu0 %v3061, 16
        %v3473 = vpop.permute.xlu0 %3472
        %v3476 = vsel %vm1145, %v3471, 0
        %3478 = vmatpush.bf16.msra.mxu0 0
        %3479 = vmatpush.bf16.msra.mxu0 0
        %3480 = vmatpush.bf16.msra.mxu0 0
        %3481 = vmatpush.bf16.msra.mxu0 0
        %3482 = vmatpush.bf16.msra.mxu0 0
        %3483 = vmatpush.bf16.msra.mxu0 0
        %3484 = vmatpush.bf16.msra.mxu0 0
        %3485 = vmatpush.bf16.msra.mxu0 %v3473
        %3486 = vmatmul.bf16.gmra.mxu0 %v3476
        %v3487 = vpop.f32.mrf.mxu0
        %v3488 = vadd.f32 0.0, %v3487
        %v3489 = vpop.f32.mrf.mxu0
        %3490 = vdwg.mxu0
        %3492 = vrot.lane.b32.xlu0 %v3488, 112
        %v3493 = vpop.permute.xlu0 %3492
        %3495 = vst.msk [vmem:[#allocation2] sm:$0xff] %vm1757, %v3493
        %v3496 = vld [vmem:[#allocation2] sm:$0xff]
        %v3497 = vpack.c.bf16 %v3496, %v3496
        %s3498 = scalar_lea.vmem [#allocation15], 128
        %v3499 = vld [vmem:[%s3498] sm:$0xf]
        %v3500 = vld [vmem:[%s3498 + $0x4] sm:$0xf]
        %v3501 = vld [vmem:[%s3498 + $0x8] sm:$0xf]
        %v3502 = vld [vmem:[%s3498 + $0xc] sm:$0xf]
        %v3503 = vld [vmem:[%s3498 + $0x10] sm:$0xf]
        %v3504 = vld [vmem:[%s3498 + $0x14] sm:$0xf]
        %v3505 = vld [vmem:[%s3498 + $0x18] sm:$0xf]
        %v3506 = vld [vmem:[%s3498 + $0x1c] sm:$0xf]
        %v3507 = vld [vmem:[%s3498 + $0x20] sm:$0xf]
        %v3508 = vld [vmem:[%s3498 + $0x24] sm:$0xf]
        %v3509 = vld [vmem:[%s3498 + $0x28] sm:$0xf]
        %v3510 = vld [vmem:[%s3498 + $0x2c] sm:$0xf]
        %v3511 = vld [vmem:[%s3498 + $0x30] sm:$0xf]
        %v3512 = vld [vmem:[%s3498 + $0x34] sm:$0xf]
        %v3513 = vld [vmem:[%s3498 + $0x38] sm:$0xf]
        %v3514 = vld [vmem:[%s3498 + $0x3c] sm:$0xf]
        %s3515 = scalar_lea.vmem %s8, 2
        %v3516 = vld [vmem:[%s3515] sm:$0x1]
        %v3518 = vperm.slane %v3516, 0
        %v3536 = vunpack.c.l.b16 %v3499
        %v3537 = vunpack.c.l.b16 %v3500
        %v3538 = vunpack.c.l.b16 %v3501
        %v3539 = vunpack.c.l.b16 %v3502
        %v3540 = vunpack.c.l.b16 %v3503
        %v3541 = vunpack.c.l.b16 %v3504
        %v3542 = vunpack.c.l.b16 %v3505
        %v3543 = vunpack.c.l.b16 %v3506
        %v3544 = vunpack.c.l.b16 %v3507
        %v3545 = vunpack.c.l.b16 %v3508
        %v3546 = vunpack.c.l.b16 %v3509
        %v3547 = vunpack.c.l.b16 %v3510
        %v3548 = vunpack.c.l.b16 %v3511
        %v3549 = vunpack.c.l.b16 %v3512
        %v3550 = vunpack.c.l.b16 %v3513
        %v3551 = vunpack.c.l.b16 %v3514
        %v3552 = vpack.c.b16 %v3537, %v3536
        %v3553 = vpack.c.b16 %v3539, %v3538
        %v3554 = vpack.c.b16 %v3541, %v3540
        %v3555 = vpack.c.b16 %v3543, %v3542
        %v3556 = vpack.c.b16 %v3545, %v3544
        %v3557 = vpack.c.b16 %v3547, %v3546
        %v3558 = vpack.c.b16 %v3549, %v3548
        %v3559 = vpack.c.b16 %v3551, %v3550
        %3568 = vmatpush.bf16.msra.mxu0 %v3559
        %3569 = vmatpush.bf16.msra.mxu0 %v3558
        %3570 = vmatpush.bf16.msra.mxu0 %v3557
        %3571 = vmatpush.bf16.msra.mxu0 %v3556
        %3572 = vmatpush.bf16.msra.mxu0 %v3555
        %3573 = vmatpush.bf16.msra.mxu0 %v3554
        %3574 = vmatpush.bf16.msra.mxu0 %v3553
        %3575 = vmatpush.bf16.msra.mxu0 %v3552
        %3576 = vmatmul.bf16.gmra.mxu0 %v3497
        %v3577 = vpop.f32.mrf.mxu0
        %v3578 = vadd.f32 %v3518, %v3577
        %v3579 = vpop.f32.mrf.mxu0
        %3580 = vdwg.mxu0
        %v3581 = vadd.f32 %v2764, %v3578
        %s3582 = scalar_lea.vmem %s9, 2
        %v3583 = vld [vmem:[%s3582] sm:$0x1]
        %s3584 = scalar_lea.vmem [#allocation17], 2
        %v3585 = vld [vmem:[%s3584] sm:$0x1]
        %3586 = vadd.xlane.f32.xlu0 %v3581
        %v3587 = vpop.xlane.xlu0 %3586
        %v3588 = vmul.f32 %v3587, %v1859
        %v3589 = vsub.f32 %v3581, %v3588
        %v3590 = vmul.f32 %v3589, %v3589
        %3591 = vadd.xlane.f32.xlu0 %v3590
        %v3592 = vpop.xlane.xlu0 %3591
        %v3593 = vmul.f32 %v3592, %v1859
        %v3594 = vadd.f32 %v3593, 1e-05
        %v3595 = vrsqrt.pop %v3594
        %v3596 = vmul.f32 %v3595, %v3594
        %v3597 = vmul.f32 %v3596, %v3595
        %v3598 = vmul.f32 0.5, %v3597
        %v3599 = vsub.f32 1.5, %v3598
        %v3600 = vmul.f32 %v3595, %v3599
        %vm3601 = vweird.f32 %v3594
        %vm3602 = vweird.f32 %v3595
        %vm3603 = vmor %vm3601, %vm3602
        %v3604 = vsel %vm3603, %v3595, %v3600
        %v3605 = vmul.f32 %v3589, %v3604
        %v3607 = vperm.slane %v3583, 0
        %v3609 = vmul.f32 %v3605, %v3607
        %v3611 = vperm.slane %v3585, 0
        %v3613 = vadd.f32 %v3609, %v3611
        %v3614 = vpack.c.bf16 %v3613, %v3613
        %v3615 = vld [vmem:[#allocation18] sm:$0xf]
        %v3616 = vld [vmem:[#allocation18 + $0x4] sm:$0xf]
        %v3617 = vld [vmem:[#allocation18 + $0x8] sm:$0xf]
        %v3618 = vld [vmem:[#allocation18 + $0xc] sm:$0xf]
        %v3619 = vld [vmem:[#allocation18 + $0x10] sm:$0xf]
        %v3620 = vld [vmem:[#allocation18 + $0x14] sm:$0xf]
        %v3621 = vld [vmem:[#allocation18 + $0x18] sm:$0xf]
        %v3622 = vld [vmem:[#allocation18 + $0x1c] sm:$0xf]
        %v3623 = vld [vmem:[#allocation18 + $0x20] sm:$0xf]
        %v3624 = vld [vmem:[#allocation18 + $0x24] sm:$0xf]
        %v3625 = vld [vmem:[#allocation18 + $0x28] sm:$0xf]
        %v3626 = vld [vmem:[#allocation18 + $0x2c] sm:$0xf]
        %v3627 = vld [vmem:[#allocation18 + $0x30] sm:$0xf]
        %v3628 = vld [vmem:[#allocation18 + $0x34] sm:$0xf]
        %v3629 = vld [vmem:[#allocation18 + $0x38] sm:$0xf]
        %v3630 = vld [vmem:[#allocation18 + $0x3c] sm:$0xf]
        %v3631 = vld [vmem:[%s12] sm:$0x1]
        %v3633 = vperm.slane %v3631, 0
        %v3651 = vunpack.c.l.b16 %v3615
        %v3652 = vunpack.c.l.b16 %v3616
        %v3653 = vunpack.c.l.b16 %v3617
        %v3654 = vunpack.c.l.b16 %v3618
        %v3655 = vunpack.c.l.b16 %v3619
        %v3656 = vunpack.c.l.b16 %v3620
        %v3657 = vunpack.c.l.b16 %v3621
        %v3658 = vunpack.c.l.b16 %v3622
        %v3659 = vunpack.c.l.b16 %v3623
        %v3660 = vunpack.c.l.b16 %v3624
        %v3661 = vunpack.c.l.b16 %v3625
        %v3662 = vunpack.c.l.b16 %v3626
        %v3663 = vunpack.c.l.b16 %v3627
        %v3664 = vunpack.c.l.b16 %v3628
        %v3665 = vunpack.c.l.b16 %v3629
        %v3666 = vunpack.c.l.b16 %v3630
        %v3667 = vpack.c.b16 %v3652, %v3651
        %v3668 = vpack.c.b16 %v3654, %v3653
        %v3669 = vpack.c.b16 %v3656, %v3655
        %v3670 = vpack.c.b16 %v3658, %v3657
        %v3671 = vpack.c.b16 %v3660, %v3659
        %v3672 = vpack.c.b16 %v3662, %v3661
        %v3673 = vpack.c.b16 %v3664, %v3663
        %v3674 = vpack.c.b16 %v3666, %v3665
        %3683 = vmatpush.bf16.msra.mxu0 %v3674
        %3684 = vmatpush.bf16.msra.mxu0 %v3673
        %3685 = vmatpush.bf16.msra.mxu0 %v3672
        %3686 = vmatpush.bf16.msra.mxu0 %v3671
        %3687 = vmatpush.bf16.msra.mxu0 %v3670
        %3688 = vmatpush.bf16.msra.mxu0 %v3669
        %3689 = vmatpush.bf16.msra.mxu0 %v3668
        %3690 = vmatpush.bf16.msra.mxu0 %v3667
        %3691 = vmatmul.bf16.gmra.mxu0 %v3614
        %v3692 = vpop.f32.mrf.mxu0
        %v3693 = vadd.f32 %v3633, %v3692
        %v3694 = vpop.f32.mrf.mxu0
        %3695 = vdwg.mxu0
        %v3696 = vmax.f32 %v3693, 0.0
        %v3697 = vpack.c.bf16 %v3696, %v3696
        %v3698 = vld [vmem:[#allocation20] sm:$0xf]
        %v3699 = vld [vmem:[#allocation20 + $0x4] sm:$0xf]
        %v3700 = vld [vmem:[#allocation20 + $0x8] sm:$0xf]
        %v3701 = vld [vmem:[#allocation20 + $0xc] sm:$0xf]
        %v3702 = vld [vmem:[#allocation20 + $0x10] sm:$0xf]
        %v3703 = vld [vmem:[#allocation20 + $0x14] sm:$0xf]
        %v3704 = vld [vmem:[#allocation20 + $0x18] sm:$0xf]
        %v3705 = vld [vmem:[#allocation20 + $0x1c] sm:$0xf]
        %v3706 = vld [vmem:[#allocation20 + $0x20] sm:$0xf]
        %v3707 = vld [vmem:[#allocation20 + $0x24] sm:$0xf]
        %v3708 = vld [vmem:[#allocation20 + $0x28] sm:$0xf]
        %v3709 = vld [vmem:[#allocation20 + $0x2c] sm:$0xf]
        %v3710 = vld [vmem:[#allocation20 + $0x30] sm:$0xf]
        %v3711 = vld [vmem:[#allocation20 + $0x34] sm:$0xf]
        %v3712 = vld [vmem:[#allocation20 + $0x38] sm:$0xf]
        %v3713 = vld [vmem:[#allocation20 + $0x3c] sm:$0xf]
        %v3714 = vld [vmem:[%s14] sm:$0x1]
        %v3716 = vperm.slane %v3714, 0
        %v3734 = vunpack.c.l.b16 %v3698
        %v3735 = vunpack.c.l.b16 %v3699
        %v3736 = vunpack.c.l.b16 %v3700
        %v3737 = vunpack.c.l.b16 %v3701
        %v3738 = vunpack.c.l.b16 %v3702
        %v3739 = vunpack.c.l.b16 %v3703
        %v3740 = vunpack.c.l.b16 %v3704
        %v3741 = vunpack.c.l.b16 %v3705
        %v3742 = vunpack.c.l.b16 %v3706
        %v3743 = vunpack.c.l.b16 %v3707
        %v3744 = vunpack.c.l.b16 %v3708
        %v3745 = vunpack.c.l.b16 %v3709
        %v3746 = vunpack.c.l.b16 %v3710
        %v3747 = vunpack.c.l.b16 %v3711
        %v3748 = vunpack.c.l.b16 %v3712
        %v3749 = vunpack.c.l.b16 %v3713
        %v3750 = vpack.c.b16 %v3735, %v3734
        %v3751 = vpack.c.b16 %v3737, %v3736
        %v3752 = vpack.c.b16 %v3739, %v3738
        %v3753 = vpack.c.b16 %v3741, %v3740
        %v3754 = vpack.c.b16 %v3743, %v3742
        %v3755 = vpack.c.b16 %v3745, %v3744
        %v3756 = vpack.c.b16 %v3747, %v3746
        %v3757 = vpack.c.b16 %v3749, %v3748
        %3766 = vmatpush.bf16.msra.mxu0 %v3757
        %3767 = vmatpush.bf16.msra.mxu0 %v3756
        %3768 = vmatpush.bf16.msra.mxu0 %v3755
        %3769 = vmatpush.bf16.msra.mxu0 %v3754
        %3770 = vmatpush.bf16.msra.mxu0 %v3753
        %3771 = vmatpush.bf16.msra.mxu0 %v3752
        %3772 = vmatpush.bf16.msra.mxu0 %v3751
        %3773 = vmatpush.bf16.msra.mxu0 %v3750
        %3774 = vmatmul.bf16.gmra.mxu0 %v3697
        %v3775 = vpop.f32.mrf.mxu0
        %v3776 = vadd.f32 %v3716, %v3775
        %v3777 = vpop.f32.mrf.mxu0
        %3778 = vdwg.mxu0
        %v3779 = vadd.f32 %v3613, %v3776
        %v3780 = vld [vmem:[%s15] sm:$0x1]
        %v3781 = vld [vmem:[#allocation21] sm:$0x1]
        %3782 = vadd.xlane.f32.xlu0 %v3779
        %v3783 = vpop.xlane.xlu0 %3782
        %v3784 = vmul.f32 %v3783, %v1859
        %v3785 = vsub.f32 %v3779, %v3784
        %v3786 = vmul.f32 %v3785, %v3785
        %3787 = vadd.xlane.f32.xlu0 %v3786
        %v3788 = vpop.xlane.xlu0 %3787
        %v3789 = vmul.f32 %v3788, %v1859
        %v3790 = vadd.f32 %v3789, 1e-05
        %v3791 = vrsqrt.pop %v3790
        %v3792 = vmul.f32 %v3791, %v3790
        %v3793 = vmul.f32 %v3792, %v3791
        %v3794 = vmul.f32 0.5, %v3793
        %v3795 = vsub.f32 1.5, %v3794
        %v3796 = vmul.f32 %v3791, %v3795
        %vm3797 = vweird.f32 %v3790
        %vm3798 = vweird.f32 %v3791
        %vm3799 = vmor %vm3797, %vm3798
        %v3800 = vsel %vm3799, %v3791, %v3796
        %v3801 = vmul.f32 %v3785, %v3800
        %v3803 = vperm.slane %v3780, 0
        %v3805 = vmul.f32 %v3801, %v3803
        %v3807 = vperm.slane %v3781, 0
        %v3809 = vadd.f32 %v3805, %v3807
        %v3810 = vpack.c.bf16 %v2766, %v2765
        %s3811 = scalar_lea.vmem [#allocation12], 576
        %v3812 = vld [vmem:[%s3811] sm:$0xf]
        %v3813 = vld [vmem:[%s3811 + $0xc] sm:$0xf]
        %v3814 = vld [vmem:[%s3811 + $0x18] sm:$0xf]
        %v3815 = vld [vmem:[%s3811 + $0x24] sm:$0xf]
        %v3816 = vld [vmem:[%s3811 + $0x30] sm:$0xf]
        %v3817 = vld [vmem:[%s3811 + $0x3c] sm:$0xf]
        %v3818 = vld [vmem:[%s3811 + $0x48] sm:$0xf]
        %v3819 = vld [vmem:[%s3811 + $0x54] sm:$0xf]
        %v3820 = vld [vmem:[%s3811 + $0x60] sm:$0xf]
        %v3821 = vld [vmem:[%s3811 + $0x6c] sm:$0xf]
        %v3822 = vld [vmem:[%s3811 + $0x78] sm:$0xf]
        %v3823 = vld [vmem:[%s3811 + $0x84] sm:$0xf]
        %v3824 = vld [vmem:[%s3811 + $0x90] sm:$0xf]
        %v3825 = vld [vmem:[%s3811 + $0x9c] sm:$0xf]
        %v3826 = vld [vmem:[%s3811 + $0xa8] sm:$0xf]
        %v3827 = vld [vmem:[%s3811 + $0xb4] sm:$0xf]
        %s3828 = scalar_lea.vmem [#allocation14], 9
        %v3829 = vld [vmem:[%s3828] sm:$0x1]
        %v3831 = vperm.slane %v3829, 0
        %v3849 = vunpack.c.l.b16 %v3812
        %v3850 = vunpack.c.l.b16 %v3813
        %v3851 = vunpack.c.l.b16 %v3814
        %v3852 = vunpack.c.l.b16 %v3815
        %v3853 = vunpack.c.l.b16 %v3816
        %v3854 = vunpack.c.l.b16 %v3817
        %v3855 = vunpack.c.l.b16 %v3818
        %v3856 = vunpack.c.l.b16 %v3819
        %v3857 = vunpack.c.l.b16 %v3820
        %v3858 = vunpack.c.l.b16 %v3821
        %v3859 = vunpack.c.l.b16 %v3822
        %v3860 = vunpack.c.l.b16 %v3823
        %v3861 = vunpack.c.l.b16 %v3824
        %v3862 = vunpack.c.l.b16 %v3825
        %v3863 = vunpack.c.l.b16 %v3826
        %v3864 = vunpack.c.l.b16 %v3827
        %v3865 = vpack.c.b16 %v3850, %v3849
        %v3866 = vpack.c.b16 %v3852, %v3851
        %v3867 = vpack.c.b16 %v3854, %v3853
        %v3868 = vpack.c.b16 %v3856, %v3855
        %v3869 = vpack.c.b16 %v3858, %v3857
        %v3870 = vpack.c.b16 %v3860, %v3859
        %v3871 = vpack.c.b16 %v3862, %v3861
        %v3872 = vpack.c.b16 %v3864, %v3863
        %3881 = vmatpush.bf16.msra.mxu0 %v3872
        %3882 = vmatpush.bf16.msra.mxu0 %v3871
        %3883 = vmatpush.bf16.msra.mxu0 %v3870
        %3884 = vmatpush.bf16.msra.mxu0 %v3869
        %3885 = vmatpush.bf16.msra.mxu0 %v3868
        %3886 = vmatpush.bf16.msra.mxu0 %v3867
        %3887 = vmatpush.bf16.msra.mxu0 %v3866
        %3888 = vmatpush.bf16.msra.mxu0 %v3865
        %3889 = vmatmul.bf16.gmra.mxu0 %v3810
        %v3890 = vpop.f32.mrf.mxu0
        %v3891 = vadd.f32 %v3831, %v3890
        %v3892 = vpop.f32.mrf.mxu0
        %v3893 = vadd.f32 %v3831, %v3892
        %3894 = vdwg.mxu0
        %v3895 = vpack.c.bf16 %v3891, %v3891
        %v3896 = vpack.c.bf16 %v3893, %v3893
        %v3897 = vld [vmem:[%s3811 + $0x4] sm:$0xf]
        %v3898 = vld [vmem:[%s3811 + $0x10] sm:$0xf]
        %v3899 = vld [vmem:[%s3811 + $0x1c] sm:$0xf]
        %v3900 = vld [vmem:[%s3811 + $0x28] sm:$0xf]
        %v3901 = vld [vmem:[%s3811 + $0x34] sm:$0xf]
        %v3902 = vld [vmem:[%s3811 + $0x40] sm:$0xf]
        %v3903 = vld [vmem:[%s3811 + $0x4c] sm:$0xf]
        %v3904 = vld [vmem:[%s3811 + $0x58] sm:$0xf]
        %v3905 = vld [vmem:[%s3811 + $0x64] sm:$0xf]
        %v3906 = vld [vmem:[%s3811 + $0x70] sm:$0xf]
        %v3907 = vld [vmem:[%s3811 + $0x7c] sm:$0xf]
        %v3908 = vld [vmem:[%s3811 + $0x88] sm:$0xf]
        %v3909 = vld [vmem:[%s3811 + $0x94] sm:$0xf]
        %v3910 = vld [vmem:[%s3811 + $0xa0] sm:$0xf]
        %v3911 = vld [vmem:[%s3811 + $0xac] sm:$0xf]
        %v3912 = vld [vmem:[%s3811 + $0xb8] sm:$0xf]
        %v3913 = vld [vmem:[%s3828 + $0x1] sm:$0x1]
        %v3915 = vperm.slane %v3913, 0
        %v3933 = vunpack.c.l.b16 %v3897
        %v3934 = vunpack.c.l.b16 %v3898
        %v3935 = vunpack.c.l.b16 %v3899
        %v3936 = vunpack.c.l.b16 %v3900
        %v3937 = vunpack.c.l.b16 %v3901
        %v3938 = vunpack.c.l.b16 %v3902
        %v3939 = vunpack.c.l.b16 %v3903
        %v3940 = vunpack.c.l.b16 %v3904
        %v3941 = vunpack.c.l.b16 %v3905
        %v3942 = vunpack.c.l.b16 %v3906
        %v3943 = vunpack.c.l.b16 %v3907
        %v3944 = vunpack.c.l.b16 %v3908
        %v3945 = vunpack.c.l.b16 %v3909
        %v3946 = vunpack.c.l.b16 %v3910
        %v3947 = vunpack.c.l.b16 %v3911
        %v3948 = vunpack.c.l.b16 %v3912
        %v3949 = vpack.c.b16 %v3934, %v3933
        %v3950 = vpack.c.b16 %v3936, %v3935
        %v3951 = vpack.c.b16 %v3938, %v3937
        %v3952 = vpack.c.b16 %v3940, %v3939
        %v3953 = vpack.c.b16 %v3942, %v3941
        %v3954 = vpack.c.b16 %v3944, %v3943
        %v3955 = vpack.c.b16 %v3946, %v3945
        %v3956 = vpack.c.b16 %v3948, %v3947
        %3965 = vmatpush.bf16.msra.mxu0 %v3956
        %3966 = vmatpush.bf16.msra.mxu0 %v3955
        %3967 = vmatpush.bf16.msra.mxu0 %v3954
        %3968 = vmatpush.bf16.msra.mxu0 %v3953
        %3969 = vmatpush.bf16.msra.mxu0 %v3952
        %3970 = vmatpush.bf16.msra.mxu0 %v3951
        %3971 = vmatpush.bf16.msra.mxu0 %v3950
        %3972 = vmatpush.bf16.msra.mxu0 %v3949
        %3973 = vmatmul.bf16.gmra.mxu0 %v2767
        %v3974 = vpop.f32.mrf.mxu0
        %v3975 = vadd.f32 %v3915, %v3974
        %v3976 = vpop.f32.mrf.mxu0
        %3977 = vdwg.mxu0
        %v3978 = vpack.c.bf16 %v3975, %v3975
        %v3979 = vld [vmem:[%s3811 + $0x8] sm:$0xf]
        %v3980 = vld [vmem:[%s3811 + $0x14] sm:$0xf]
        %v3981 = vld [vmem:[%s3811 + $0x20] sm:$0xf]
        %v3982 = vld [vmem:[%s3811 + $0x2c] sm:$0xf]
        %v3983 = vld [vmem:[%s3811 + $0x38] sm:$0xf]
        %v3984 = vld [vmem:[%s3811 + $0x44] sm:$0xf]
        %v3985 = vld [vmem:[%s3811 + $0x50] sm:$0xf]
        %v3986 = vld [vmem:[%s3811 + $0x5c] sm:$0xf]
        %v3987 = vld [vmem:[%s3811 + $0x68] sm:$0xf]
        %v3988 = vld [vmem:[%s3811 + $0x74] sm:$0xf]
        %v3989 = vld [vmem:[%s3811 + $0x80] sm:$0xf]
        %v3990 = vld [vmem:[%s3811 + $0x8c] sm:$0xf]
        %v3991 = vld [vmem:[%s3811 + $0x98] sm:$0xf]
        %v3992 = vld [vmem:[%s3811 + $0xa4] sm:$0xf]
        %v3993 = vld [vmem:[%s3811 + $0xb0] sm:$0xf]
        %v3994 = vld [vmem:[%s3811 + $0xbc] sm:$0xf]
        %v3995 = vld [vmem:[%s3828 + $0x2] sm:$0x1]
        %v3997 = vperm.slane %v3995, 0
        %v4015 = vunpack.c.l.b16 %v3979
        %v4016 = vunpack.c.l.b16 %v3980
        %v4017 = vunpack.c.l.b16 %v3981
        %v4018 = vunpack.c.l.b16 %v3982
        %v4019 = vunpack.c.l.b16 %v3983
        %v4020 = vunpack.c.l.b16 %v3984
        %v4021 = vunpack.c.l.b16 %v3985
        %v4022 = vunpack.c.l.b16 %v3986
        %v4023 = vunpack.c.l.b16 %v3987
        %v4024 = vunpack.c.l.b16 %v3988
        %v4025 = vunpack.c.l.b16 %v3989
        %v4026 = vunpack.c.l.b16 %v3990
        %v4027 = vunpack.c.l.b16 %v3991
        %v4028 = vunpack.c.l.b16 %v3992
        %v4029 = vunpack.c.l.b16 %v3993
        %v4030 = vunpack.c.l.b16 %v3994
        %v4031 = vpack.c.b16 %v4016, %v4015
        %v4032 = vpack.c.b16 %v4018, %v4017
        %v4033 = vpack.c.b16 %v4020, %v4019
        %v4034 = vpack.c.b16 %v4022, %v4021
        %v4035 = vpack.c.b16 %v4024, %v4023
        %v4036 = vpack.c.b16 %v4026, %v4025
        %v4037 = vpack.c.b16 %v4028, %v4027
        %v4038 = vpack.c.b16 %v4030, %v4029
        %4047 = vmatpush.bf16.msra.mxu0 %v4038
        %4048 = vmatpush.bf16.msra.mxu0 %v4037
        %4049 = vmatpush.bf16.msra.mxu0 %v4036
        %4050 = vmatpush.bf16.msra.mxu0 %v4035
        %4051 = vmatpush.bf16.msra.mxu0 %v4034
        %4052 = vmatpush.bf16.msra.mxu0 %v4033
        %4053 = vmatpush.bf16.msra.mxu0 %v4032
        %4054 = vmatpush.bf16.msra.mxu0 %v4031
        %4055 = vmatmul.bf16.gmra.mxu0 %v2767
        %v4056 = vpop.f32.mrf.mxu0
        %v4057 = vadd.f32 %v3997, %v4056
        %v4058 = vpop.f32.mrf.mxu0
        %4059 = vdwg.mxu0
        %v4060 = vpack.c.bf16 %v4057, %v4057
        %v4063 = vunpack.c.l.b16 %v3895
        %v4064 = vunpack.c.l.b16 %v3896
        %v4065 = vpack.c.b16 %v4064, %v4063
        %v4067 = vsel %vm1145, %v4065, 0
        %v4070 = vsel %vm1145, %v3978, 0
        %4072 = vmatpush.bf16.xpose.msra.mxu0 0
        %4073 = vmatpush.bf16.xpose.msra.mxu0 0
        %4074 = vmatpush.bf16.xpose.msra.mxu0 0
        %4075 = vmatpush.bf16.xpose.msra.mxu0 0
        %4076 = vmatpush.bf16.xpose.msra.mxu0 0
        %4077 = vmatpush.bf16.xpose.msra.mxu0 0
        %4078 = vmatpush.bf16.xpose.msra.mxu0 0
        %4079 = vmatpush.bf16.xpose.msra.mxu0 %v4070
        %4080 = vmatmul.bf16.gmra.mxu0 %v4067
        %v4081 = vpop.f32.mrf.mxu0
        %v4082 = vadd.f32 %v2156, %v4081
        %v4083 = vpop.f32.mrf.mxu0
        %v4084 = vadd.f32 %v2156, %v4083
        %4085 = vdwg.mxu0
        %v4086 = vsel %vm2177, %v4082, -inf
        %4087 = vmax.xlane.f32.xlu0 %v4086
        %v4088 = vpop.xlane.xlu0 %4087
        %v4089 = vsel %vm2177, %v4084, -inf
        %4090 = vmax.xlane.f32.xlu0 %v4089
        %v4091 = vpop.xlane.xlu0 %4090
        %v4092 = vsub.f32 %v4082, %v4088
        %v4093 = vsub.f32 %v4084, %v4091
        %v4094 = vmul.f32 %v4092, 1.442695
        %v4095 = vpow.pop %v4094
        %v4096 = vmul.f32 %v4093, 1.442695
        %v4097 = vpow.pop %v4096
        %v4098 = vsel %vm2177, %v4095, 0.0
        %4099 = vadd.xlane.f32.xlu0 %v4098
        %v4100 = vpop.xlane.xlu0 %4099
        %v4101 = vsel %vm2177, %v4097, 0.0
        %4102 = vadd.xlane.f32.xlu0 %v4101
        %v4103 = vpop.xlane.xlu0 %4102
        %v4104 = vrcp.pop %v4100
        %v4105 = vrcp.pop %v4103
        %v4106 = vmul.f32 %v4095, %v4104
        %v4107 = vmul.f32 %v4097, %v4105
        %v4108 = vpack.c.bf16 %v4107, %v4106
        %v4110 = vsel %vm2177, %v4108, 0
        %v4113 = vsel %vm2193, %v4060, 0
        %4115 = vmatpush.bf16.msra.mxu0 0
        %4116 = vmatpush.bf16.msra.mxu0 0
        %4117 = vmatpush.bf16.msra.mxu0 0
        %4118 = vmatpush.bf16.msra.mxu0 0
        %4119 = vmatpush.bf16.msra.mxu0 0
        %4120 = vmatpush.bf16.msra.mxu0 0
        %4121 = vmatpush.bf16.msra.mxu0 0
        %4122 = vmatpush.bf16.msra.mxu0 %v4113
        %4123 = vmatmul.bf16.gmra.mxu0 %v4110
        %v4124 = vpop.f32.mrf.mxu0
        %v4125 = vadd.f32 0.0, %v4124
        %v4126 = vpop.f32.mrf.mxu0
        %v4127 = vadd.f32 0.0, %v4126
        %4128 = vdwg.mxu0
        %4129 = vst.msk [vmem:[#allocation2] sm:$0xff] %vm1145, %v4125
        %4130 = vst.msk [vmem:[#allocation2 + $0x8] sm:$0xff] %vm1145, %v4127
        %4131 = vrot.lane.b32.xlu0 %v4065, 112
        %v4132 = vpop.permute.xlu0 %4131
        %v4134 = vunpack.c.l.b16 %v3978
        %v4135 = vpack.c.b16 %v4134, %v4134
        %4136 = vrot.lane.b32.xlu0 %v4135, 112
        %v4137 = vpop.permute.xlu0 %4136
        %v4139 = vsel %vm1145, %v4132, 0
        %v4142 = vsel %vm1145, %v4137, 0
        %4144 = vmatpush.bf16.xpose.msra.mxu0 0
        %4145 = vmatpush.bf16.xpose.msra.mxu0 0
        %4146 = vmatpush.bf16.xpose.msra.mxu0 0
        %4147 = vmatpush.bf16.xpose.msra.mxu0 0
        %4148 = vmatpush.bf16.xpose.msra.mxu0 0
        %4149 = vmatpush.bf16.xpose.msra.mxu0 0
        %4150 = vmatpush.bf16.xpose.msra.mxu0 0
        %4151 = vmatpush.bf16.xpose.msra.mxu0 %v4142
        %4152 = vmatmul.bf16.gmra.mxu0 %v4139
        %v4153 = vpop.f32.mrf.mxu0
        %v4154 = vadd.f32 %v2156, %v4153
        %v4155 = vpop.f32.mrf.mxu0
        %v4156 = vadd.f32 %v2156, %v4155
        %4157 = vdwg.mxu0
        %v4158 = vsel %vm2177, %v4154, -inf
        %4159 = vmax.xlane.f32.xlu0 %v4158
        %v4160 = vpop.xlane.xlu0 %4159
        %v4161 = vsel %vm2177, %v4156, -inf
        %4162 = vmax.xlane.f32.xlu0 %v4161
        %v4163 = vpop.xlane.xlu0 %4162
        %v4164 = vsub.f32 %v4154, %v4160
        %v4165 = vsub.f32 %v4156, %v4163
        %v4166 = vmul.f32 %v4164, 1.442695
        %v4167 = vpow.pop %v4166
        %v4168 = vmul.f32 %v4165, 1.442695
        %v4169 = vpow.pop %v4168
        %v4170 = vsel %vm2177, %v4167, 0.0
        %4171 = vadd.xlane.f32.xlu0 %v4170
        %v4172 = vpop.xlane.xlu0 %4171
        %v4173 = vsel %vm2177, %v4169, 0.0
        %4174 = vadd.xlane.f32.xlu0 %v4173
        %v4175 = vpop.xlane.xlu0 %4174
        %v4176 = vrcp.pop %v4172
        %v4177 = vrcp.pop %v4175
        %v4178 = vmul.f32 %v4167, %v4176
        %v4179 = vmul.f32 %v4169, %v4177
        %v4180 = vpack.c.bf16 %v4179, %v4178
        %v4182 = vunpack.c.l.b16 %v4060
        %v4183 = vpack.c.b16 %v4182, %v4182
        %4184 = vrot.lane.b32.xlu0 %v4183, 112
        %v4185 = vpop.permute.xlu0 %4184
        %v4187 = vsel %vm2177, %v4180, 0
        %v4190 = vsel %vm2193, %v4185, 0
        %4192 = vmatpush.bf16.msra.mxu0 0
        %4193 = vmatpush.bf16.msra.mxu0 0
        %4194 = vmatpush.bf16.msra.mxu0 0
        %4195 = vmatpush.bf16.msra.mxu0 0
        %4196 = vmatpush.bf16.msra.mxu0 0
        %4197 = vmatpush.bf16.msra.mxu0 0
        %4198 = vmatpush.bf16.msra.mxu0 0
        %4199 = vmatpush.bf16.msra.mxu0 %v4190
        %4200 = vmatmul.bf16.gmra.mxu0 %v4187
        %v4201 = vpop.f32.mrf.mxu0
        %v4202 = vadd.f32 0.0, %v4201
        %v4203 = vpop.f32.mrf.mxu0
        %v4204 = vadd.f32 0.0, %v4203
        %4205 = vdwg.mxu0
        %4208 = vrot.lane.b32.xlu0 %v4202, 16
        %v4209 = vpop.permute.xlu0 %4208
        %4210 = vrot.lane.b32.xlu0 %v4204, 16
        %v4211 = vpop.permute.xlu0 %4210
        %4214 = vst.msk [vmem:[#allocation2] sm:$0xff] %vm1289, %v4209
        %4215 = vst.msk [vmem:[#allocation2 + $0x8] sm:$0xff] %vm1289, %v4211
        %4216 = vrot.lane.b32.xlu0 %v4065, 96
        %v4217 = vpop.permute.xlu0 %4216
        %4218 = vrot.lane.b32.xlu0 %v4135, 96
        %v4219 = vpop.permute.xlu0 %4218
        %v4221 = vsel %vm1145, %v4217, 0
        %v4224 = vsel %vm1145, %v4219, 0
        %4226 = vmatpush.bf16.xpose.msra.mxu0 0
        %4227 = vmatpush.bf16.xpose.msra.mxu0 0
        %4228 = vmatpush.bf16.xpose.msra.mxu0 0
        %4229 = vmatpush.bf16.xpose.msra.mxu0 0
        %4230 = vmatpush.bf16.xpose.msra.mxu0 0
        %4231 = vmatpush.bf16.xpose.msra.mxu0 0
        %4232 = vmatpush.bf16.xpose.msra.mxu0 0
        %4233 = vmatpush.bf16.xpose.msra.mxu0 %v4224
        %4234 = vmatmul.bf16.gmra.mxu0 %v4221
        %v4235 = vpop.f32.mrf.mxu0
        %v4236 = vadd.f32 %v2156, %v4235
        %v4237 = vpop.f32.mrf.mxu0
        %v4238 = vadd.f32 %v2156, %v4237
        %4239 = vdwg.mxu0
        %v4240 = vsel %vm2177, %v4236, -inf
        %4241 = vmax.xlane.f32.xlu0 %v4240
        %v4242 = vpop.xlane.xlu0 %4241
        %v4243 = vsel %vm2177, %v4238, -inf
        %4244 = vmax.xlane.f32.xlu0 %v4243
        %v4245 = vpop.xlane.xlu0 %4244
        %v4246 = vsub.f32 %v4236, %v4242
        %v4247 = vsub.f32 %v4238, %v4245
        %v4248 = vmul.f32 %v4246, 1.442695
        %v4249 = vpow.pop %v4248
        %v4250 = vmul.f32 %v4247, 1.442695
        %v4251 = vpow.pop %v4250
        %v4252 = vsel %vm2177, %v4249, 0.0
        %4253 = vadd.xlane.f32.xlu0 %v4252
        %v4254 = vpop.xlane.xlu0 %4253
        %v4255 = vsel %vm2177, %v4251, 0.0
        %4256 = vadd.xlane.f32.xlu0 %v4255
        %v4257 = vpop.xlane.xlu0 %4256
        %v4258 = vrcp.pop %v4254
        %v4259 = vrcp.pop %v4257
        %v4260 = vmul.f32 %v4249, %v4258
        %v4261 = vmul.f32 %v4251, %v4259
        %v4262 = vpack.c.bf16 %v4261, %v4260
        %4263 = vrot.lane.b32.xlu0 %v4183, 96
        %v4264 = vpop.permute.xlu0 %4263
        %v4266 = vsel %vm2177, %v4262, 0
        %v4269 = vsel %vm2193, %v4264, 0
        %4271 = vmatpush.bf16.msra.mxu0 0
        %4272 = vmatpush.bf16.msra.mxu0 0
        %4273 = vmatpush.bf16.msra.mxu0 0
        %4274 = vmatpush.bf16.msra.mxu0 0
        %4275 = vmatpush.bf16.msra.mxu0 0
        %4276 = vmatpush.bf16.msra.mxu0 0
        %4277 = vmatpush.bf16.msra.mxu0 0
        %4278 = vmatpush.bf16.msra.mxu0 %v4269
        %4279 = vmatmul.bf16.gmra.mxu0 %v4266
        %v4280 = vpop.f32.mrf.mxu0
        %v4281 = vadd.f32 0.0, %v4280
        %v4282 = vpop.f32.mrf.mxu0
        %v4283 = vadd.f32 0.0, %v4282
        %4284 = vdwg.mxu0
        %4287 = vrot.lane.b32.xlu0 %v4281, 32
        %v4288 = vpop.permute.xlu0 %4287
        %4289 = vrot.lane.b32.xlu0 %v4283, 32
        %v4290 = vpop.permute.xlu0 %4289
        %4293 = vst.msk [vmem:[#allocation2] sm:$0xff] %vm1367, %v4288
        %4294 = vst.msk [vmem:[#allocation2 + $0x8] sm:$0xff] %vm1367, %v4290
        %4295 = vrot.lane.b32.xlu0 %v4065, 80
        %v4296 = vpop.permute.xlu0 %4295
        %4297 = vrot.lane.b32.xlu0 %v4135, 80
        %v4298 = vpop.permute.xlu0 %4297
        %v4300 = vsel %vm1145, %v4296, 0
        %v4303 = vsel %vm1145, %v4298, 0
        %4305 = vmatpush.bf16.xpose.msra.mxu0 0
        %4306 = vmatpush.bf16.xpose.msra.mxu0 0
        %4307 = vmatpush.bf16.xpose.msra.mxu0 0
        %4308 = vmatpush.bf16.xpose.msra.mxu0 0
        %4309 = vmatpush.bf16.xpose.msra.mxu0 0
        %4310 = vmatpush.bf16.xpose.msra.mxu0 0
        %4311 = vmatpush.bf16.xpose.msra.mxu0 0
        %4312 = vmatpush.bf16.xpose.msra.mxu0 %v4303
        %4313 = vmatmul.bf16.gmra.mxu0 %v4300
        %v4314 = vpop.f32.mrf.mxu0
        %v4315 = vadd.f32 %v2156, %v4314
        %v4316 = vpop.f32.mrf.mxu0
        %v4317 = vadd.f32 %v2156, %v4316
        %4318 = vdwg.mxu0
        %v4319 = vsel %vm2177, %v4315, -inf
        %4320 = vmax.xlane.f32.xlu0 %v4319
        %v4321 = vpop.xlane.xlu0 %4320
        %v4322 = vsel %vm2177, %v4317, -inf
        %4323 = vmax.xlane.f32.xlu0 %v4322
        %v4324 = vpop.xlane.xlu0 %4323
        %v4325 = vsub.f32 %v4315, %v4321
        %v4326 = vsub.f32 %v4317, %v4324
        %v4327 = vmul.f32 %v4325, 1.442695
        %v4328 = vpow.pop %v4327
        %v4329 = vmul.f32 %v4326, 1.442695
        %v4330 = vpow.pop %v4329
        %v4331 = vsel %vm2177, %v4328, 0.0
        %4332 = vadd.xlane.f32.xlu0 %v4331
        %v4333 = vpop.xlane.xlu0 %4332
        %v4334 = vsel %vm2177, %v4330, 0.0
        %4335 = vadd.xlane.f32.xlu0 %v4334
        %v4336 = vpop.xlane.xlu0 %4335
        %v4337 = vrcp.pop %v4333
        %v4338 = vrcp.pop %v4336
        %v4339 = vmul.f32 %v4328, %v4337
        %v4340 = vmul.f32 %v4330, %v4338
        %v4341 = vpack.c.bf16 %v4340, %v4339
        %4342 = vrot.lane.b32.xlu0 %v4183, 80
        %v4343 = vpop.permute.xlu0 %4342
        %v4345 = vsel %vm2177, %v4341, 0
        %v4348 = vsel %vm2193, %v4343, 0
        %4350 = vmatpush.bf16.msra.mxu0 0
        %4351 = vmatpush.bf16.msra.mxu0 0
        %4352 = vmatpush.bf16.msra.mxu0 0
        %4353 = vmatpush.bf16.msra.mxu0 0
        %4354 = vmatpush.bf16.msra.mxu0 0
        %4355 = vmatpush.bf16.msra.mxu0 0
        %4356 = vmatpush.bf16.msra.mxu0 0
        %4357 = vmatpush.bf16.msra.mxu0 %v4348
        %4358 = vmatmul.bf16.gmra.mxu0 %v4345
        %v4359 = vpop.f32.mrf.mxu0
        %v4360 = vadd.f32 0.0, %v4359
        %v4361 = vpop.f32.mrf.mxu0
        %v4362 = vadd.f32 0.0, %v4361
        %4363 = vdwg.mxu0
        %4366 = vrot.lane.b32.xlu0 %v4360, 48
        %v4367 = vpop.permute.xlu0 %4366
        %4368 = vrot.lane.b32.xlu0 %v4362, 48
        %v4369 = vpop.permute.xlu0 %4368
        %4372 = vst.msk [vmem:[#allocation2] sm:$0xff] %vm1445, %v4367
        %4373 = vst.msk [vmem:[#allocation2 + $0x8] sm:$0xff] %vm1445, %v4369
        %4374 = vrot.lane.b32.xlu0 %v4065, 64
        %v4375 = vpop.permute.xlu0 %4374
        %4376 = vrot.lane.b32.xlu0 %v4135, 64
        %v4377 = vpop.permute.xlu0 %4376
        %v4379 = vsel %vm1145, %v4375, 0
        %v4382 = vsel %vm1145, %v4377, 0
        %4384 = vmatpush.bf16.xpose.msra.mxu0 0
        %4385 = vmatpush.bf16.xpose.msra.mxu0 0
        %4386 = vmatpush.bf16.xpose.msra.mxu0 0
        %4387 = vmatpush.bf16.xpose.msra.mxu0 0
        %4388 = vmatpush.bf16.xpose.msra.mxu0 0
        %4389 = vmatpush.bf16.xpose.msra.mxu0 0
        %4390 = vmatpush.bf16.xpose.msra.mxu0 0
        %4391 = vmatpush.bf16.xpose.msra.mxu0 %v4382
        %4392 = vmatmul.bf16.gmra.mxu0 %v4379
        %v4393 = vpop.f32.mrf.mxu0
        %v4394 = vadd.f32 %v2156, %v4393
        %v4395 = vpop.f32.mrf.mxu0
        %v4396 = vadd.f32 %v2156, %v4395
        %4397 = vdwg.mxu0
        %v4398 = vsel %vm2177, %v4394, -inf
        %4399 = vmax.xlane.f32.xlu0 %v4398
        %v4400 = vpop.xlane.xlu0 %4399
        %v4401 = vsel %vm2177, %v4396, -inf
        %4402 = vmax.xlane.f32.xlu0 %v4401
        %v4403 = vpop.xlane.xlu0 %4402
        %v4404 = vsub.f32 %v4394, %v4400
        %v4405 = vsub.f32 %v4396, %v4403
        %v4406 = vmul.f32 %v4404, 1.442695
        %v4407 = vpow.pop %v4406
        %v4408 = vmul.f32 %v4405, 1.442695
        %v4409 = vpow.pop %v4408
        %v4410 = vsel %vm2177, %v4407, 0.0
        %4411 = vadd.xlane.f32.xlu0 %v4410
        %v4412 = vpop.xlane.xlu0 %4411
        %v4413 = vsel %vm2177, %v4409, 0.0
        %4414 = vadd.xlane.f32.xlu0 %v4413
        %v4415 = vpop.xlane.xlu0 %4414
        %v4416 = vrcp.pop %v4412
        %v4417 = vrcp.pop %v4415
        %v4418 = vmul.f32 %v4407, %v4416
        %v4419 = vmul.f32 %v4409, %v4417
        %v4420 = vpack.c.bf16 %v4419, %v4418
        %4421 = vrot.lane.b32.xlu0 %v4183, 64
        %v4422 = vpop.permute.xlu0 %4421
        %v4424 = vsel %vm2177, %v4420, 0
        %v4427 = vsel %vm2193, %v4422, 0
        %4429 = vmatpush.bf16.msra.mxu0 0
        %4430 = vmatpush.bf16.msra.mxu0 0
        %4431 = vmatpush.bf16.msra.mxu0 0
        %4432 = vmatpush.bf16.msra.mxu0 0
        %4433 = vmatpush.bf16.msra.mxu0 0
        %4434 = vmatpush.bf16.msra.mxu0 0
        %4435 = vmatpush.bf16.msra.mxu0 0
        %4436 = vmatpush.bf16.msra.mxu0 %v4427
        %4437 = vmatmul.bf16.gmra.mxu0 %v4424
        %v4438 = vpop.f32.mrf.mxu0
        %v4439 = vadd.f32 0.0, %v4438
        %v4440 = vpop.f32.mrf.mxu0
        %v4441 = vadd.f32 0.0, %v4440
        %4442 = vdwg.mxu0
        %4445 = vrot.lane.b32.xlu0 %v4439, 64
        %v4446 = vpop.permute.xlu0 %4445
        %4447 = vrot.lane.b32.xlu0 %v4441, 64
        %v4448 = vpop.permute.xlu0 %4447
        %4451 = vst.msk [vmem:[#allocation2] sm:$0xff] %vm1523, %v4446
        %4452 = vst.msk [vmem:[#allocation2 + $0x8] sm:$0xff] %vm1523, %v4448
        %4453 = vrot.lane.b32.xlu0 %v4065, 48
        %v4454 = vpop.permute.xlu0 %4453
        %4455 = vrot.lane.b32.xlu0 %v4135, 48
        %v4456 = vpop.permute.xlu0 %4455
        %v4458 = vsel %vm1145, %v4454, 0
        %v4461 = vsel %vm1145, %v4456, 0
        %4463 = vmatpush.bf16.xpose.msra.mxu0 0
        %4464 = vmatpush.bf16.xpose.msra.mxu0 0
        %4465 = vmatpush.bf16.xpose.msra.mxu0 0
        %4466 = vmatpush.bf16.xpose.msra.mxu0 0
        %4467 = vmatpush.bf16.xpose.msra.mxu0 0
        %4468 = vmatpush.bf16.xpose.msra.mxu0 0
        %4469 = vmatpush.bf16.xpose.msra.mxu0 0
        %4470 = vmatpush.bf16.xpose.msra.mxu0 %v4461
        %4471 = vmatmul.bf16.gmra.mxu0 %v4458
        %v4472 = vpop.f32.mrf.mxu0
        %v4473 = vadd.f32 %v2156, %v4472
        %v4474 = vpop.f32.mrf.mxu0
        %v4475 = vadd.f32 %v2156, %v4474
        %4476 = vdwg.mxu0
        %v4477 = vsel %vm2177, %v4473, -inf
        %4478 = vmax.xlane.f32.xlu0 %v4477
        %v4479 = vpop.xlane.xlu0 %4478
        %v4480 = vsel %vm2177, %v4475, -inf
        %4481 = vmax.xlane.f32.xlu0 %v4480
        %v4482 = vpop.xlane.xlu0 %4481
        %v4483 = vsub.f32 %v4473, %v4479
        %v4484 = vsub.f32 %v4475, %v4482
        %v4485 = vmul.f32 %v4483, 1.442695
        %v4486 = vpow.pop %v4485
        %v4487 = vmul.f32 %v4484, 1.442695
        %v4488 = vpow.pop %v4487
        %v4489 = vsel %vm2177, %v4486, 0.0
        %4490 = vadd.xlane.f32.xlu0 %v4489
        %v4491 = vpop.xlane.xlu0 %4490
        %v4492 = vsel %vm2177, %v4488, 0.0
        %4493 = vadd.xlane.f32.xlu0 %v4492
        %v4494 = vpop.xlane.xlu0 %4493
        %v4495 = vrcp.pop %v4491
        %v4496 = vrcp.pop %v4494
        %v4497 = vmul.f32 %v4486, %v4495
        %v4498 = vmul.f32 %v4488, %v4496
        %v4499 = vpack.c.bf16 %v4498, %v4497
        %4500 = vrot.lane.b32.xlu0 %v4183, 48
        %v4501 = vpop.permute.xlu0 %4500
        %v4503 = vsel %vm2177, %v4499, 0
        %v4506 = vsel %vm2193, %v4501, 0
        %4508 = vmatpush.bf16.msra.mxu0 0
        %4509 = vmatpush.bf16.msra.mxu0 0
        %4510 = vmatpush.bf16.msra.mxu0 0
        %4511 = vmatpush.bf16.msra.mxu0 0
        %4512 = vmatpush.bf16.msra.mxu0 0
        %4513 = vmatpush.bf16.msra.mxu0 0
        %4514 = vmatpush.bf16.msra.mxu0 0
        %4515 = vmatpush.bf16.msra.mxu0 %v4506
        %4516 = vmatmul.bf16.gmra.mxu0 %v4503
        %v4517 = vpop.f32.mrf.mxu0
        %v4518 = vadd.f32 0.0, %v4517
        %v4519 = vpop.f32.mrf.mxu0
        %v4520 = vadd.f32 0.0, %v4519
        %4521 = vdwg.mxu0
        %4524 = vrot.lane.b32.xlu0 %v4518, 80
        %v4525 = vpop.permute.xlu0 %4524
        %4526 = vrot.lane.b32.xlu0 %v4520, 80
        %v4527 = vpop.permute.xlu0 %4526
        %4530 = vst.msk [vmem:[#allocation2] sm:$0xff] %vm1601, %v4525
        %4531 = vst.msk [vmem:[#allocation2 + $0x8] sm:$0xff] %vm1601, %v4527
        %4532 = vrot.lane.b32.xlu0 %v4065, 32
        %v4533 = vpop.permute.xlu0 %4532
        %4534 = vrot.lane.b32.xlu0 %v4135, 32
        %v4535 = vpop.permute.xlu0 %4534
        %v4537 = vsel %vm1145, %v4533, 0
        %v4540 = vsel %vm1145, %v4535, 0
        %4542 = vmatpush.bf16.xpose.msra.mxu0 0
        %4543 = vmatpush.bf16.xpose.msra.mxu0 0
        %4544 = vmatpush.bf16.xpose.msra.mxu0 0
        %4545 = vmatpush.bf16.xpose.msra.mxu0 0
        %4546 = vmatpush.bf16.xpose.msra.mxu0 0
        %4547 = vmatpush.bf16.xpose.msra.mxu0 0
        %4548 = vmatpush.bf16.xpose.msra.mxu0 0
        %4549 = vmatpush.bf16.xpose.msra.mxu0 %v4540
        %4550 = vmatmul.bf16.gmra.mxu0 %v4537
        %v4551 = vpop.f32.mrf.mxu0
        %v4552 = vadd.f32 %v2156, %v4551
        %v4553 = vpop.f32.mrf.mxu0
        %v4554 = vadd.f32 %v2156, %v4553
        %4555 = vdwg.mxu0
        %v4556 = vsel %vm2177, %v4552, -inf
        %4557 = vmax.xlane.f32.xlu0 %v4556
        %v4558 = vpop.xlane.xlu0 %4557
        %v4559 = vsel %vm2177, %v4554, -inf
        %4560 = vmax.xlane.f32.xlu0 %v4559
        %v4561 = vpop.xlane.xlu0 %4560
        %v4562 = vsub.f32 %v4552, %v4558
        %v4563 = vsub.f32 %v4554, %v4561
        %v4564 = vmul.f32 %v4562, 1.442695
        %v4565 = vpow.pop %v4564
        %v4566 = vmul.f32 %v4563, 1.442695
        %v4567 = vpow.pop %v4566
        %v4568 = vsel %vm2177, %v4565, 0.0
        %4569 = vadd.xlane.f32.xlu0 %v4568
        %v4570 = vpop.xlane.xlu0 %4569
        %v4571 = vsel %vm2177, %v4567, 0.0
        %4572 = vadd.xlane.f32.xlu0 %v4571
        %v4573 = vpop.xlane.xlu0 %4572
        %v4574 = vrcp.pop %v4570
        %v4575 = vrcp.pop %v4573
        %v4576 = vmul.f32 %v4565, %v4574
        %v4577 = vmul.f32 %v4567, %v4575
        %v4578 = vpack.c.bf16 %v4577, %v4576
        %4579 = vrot.lane.b32.xlu0 %v4183, 32
        %v4580 = vpop.permute.xlu0 %4579
        %v4582 = vsel %vm2177, %v4578, 0
        %v4585 = vsel %vm2193, %v4580, 0
        %4587 = vmatpush.bf16.msra.mxu0 0
        %4588 = vmatpush.bf16.msra.mxu0 0
        %4589 = vmatpush.bf16.msra.mxu0 0
        %4590 = vmatpush.bf16.msra.mxu0 0
        %4591 = vmatpush.bf16.msra.mxu0 0
        %4592 = vmatpush.bf16.msra.mxu0 0
        %4593 = vmatpush.bf16.msra.mxu0 0
        %4594 = vmatpush.bf16.msra.mxu0 %v4585
        %4595 = vmatmul.bf16.gmra.mxu0 %v4582
        %v4596 = vpop.f32.mrf.mxu0
        %v4597 = vadd.f32 0.0, %v4596
        %v4598 = vpop.f32.mrf.mxu0
        %v4599 = vadd.f32 0.0, %v4598
        %4600 = vdwg.mxu0
        %4603 = vrot.lane.b32.xlu0 %v4597, 96
        %v4604 = vpop.permute.xlu0 %4603
        %4605 = vrot.lane.b32.xlu0 %v4599, 96
        %v4606 = vpop.permute.xlu0 %4605
        %4609 = vst.msk [vmem:[#allocation2] sm:$0xff] %vm1679, %v4604
        %4610 = vst.msk [vmem:[#allocation2 + $0x8] sm:$0xff] %vm1679, %v4606
        %4611 = vrot.lane.b32.xlu0 %v4065, 16
        %v4612 = vpop.permute.xlu0 %4611
        %4613 = vrot.lane.b32.xlu0 %v4135, 16
        %v4614 = vpop.permute.xlu0 %4613
        %v4616 = vsel %vm1145, %v4612, 0
        %v4619 = vsel %vm1145, %v4614, 0
        %4621 = vmatpush.bf16.xpose.msra.mxu0 0
        %4622 = vmatpush.bf16.xpose.msra.mxu0 0
        %4623 = vmatpush.bf16.xpose.msra.mxu0 0
        %4624 = vmatpush.bf16.xpose.msra.mxu0 0
        %4625 = vmatpush.bf16.xpose.msra.mxu0 0
        %4626 = vmatpush.bf16.xpose.msra.mxu0 0
        %4627 = vmatpush.bf16.xpose.msra.mxu0 0
        %4628 = vmatpush.bf16.xpose.msra.mxu0 %v4619
        %4629 = vmatmul.bf16.gmra.mxu0 %v4616
        %v4630 = vpop.f32.mrf.mxu0
        %v4631 = vadd.f32 %v2156, %v4630
        %v4632 = vpop.f32.mrf.mxu0
        %v4633 = vadd.f32 %v2156, %v4632
        %4634 = vdwg.mxu0
        %v4635 = vsel %vm2177, %v4631, -inf
        %4636 = vmax.xlane.f32.xlu0 %v4635
        %v4637 = vpop.xlane.xlu0 %4636
        %v4638 = vsel %vm2177, %v4633, -inf
        %4639 = vmax.xlane.f32.xlu0 %v4638
        %v4640 = vpop.xlane.xlu0 %4639
        %v4641 = vsub.f32 %v4631, %v4637
        %v4642 = vsub.f32 %v4633, %v4640
        %v4643 = vmul.f32 %v4641, 1.442695
        %v4644 = vpow.pop %v4643
        %v4645 = vmul.f32 %v4642, 1.442695
        %v4646 = vpow.pop %v4645
        %v4647 = vsel %vm2177, %v4644, 0.0
        %4648 = vadd.xlane.f32.xlu0 %v4647
        %v4649 = vpop.xlane.xlu0 %4648
        %v4650 = vsel %vm2177, %v4646, 0.0
        %4651 = vadd.xlane.f32.xlu0 %v4650
        %v4652 = vpop.xlane.xlu0 %4651
        %v4653 = vrcp.pop %v4649
        %v4654 = vrcp.pop %v4652
        %v4655 = vmul.f32 %v4644, %v4653
        %v4656 = vmul.f32 %v4646, %v4654
        %v4657 = vpack.c.bf16 %v4656, %v4655
        %4658 = vrot.lane.b32.xlu0 %v4183, 16
        %v4659 = vpop.permute.xlu0 %4658
        %v4661 = vsel %vm2177, %v4657, 0
        %v4664 = vsel %vm2193, %v4659, 0
        %4666 = vmatpush.bf16.msra.mxu0 0
        %4667 = vmatpush.bf16.msra.mxu0 0
        %4668 = vmatpush.bf16.msra.mxu0 0
        %4669 = vmatpush.bf16.msra.mxu0 0
        %4670 = vmatpush.bf16.msra.mxu0 0
        %4671 = vmatpush.bf16.msra.mxu0 0
        %4672 = vmatpush.bf16.msra.mxu0 0
        %4673 = vmatpush.bf16.msra.mxu0 %v4664
        %4674 = vmatmul.bf16.gmra.mxu0 %v4661
        %v4675 = vpop.f32.mrf.mxu0
        %v4676 = vadd.f32 0.0, %v4675
        %v4677 = vpop.f32.mrf.mxu0
        %v4678 = vadd.f32 0.0, %v4677
        %4679 = vdwg.mxu0
        %4682 = vrot.lane.b32.xlu0 %v4676, 112
        %v4683 = vpop.permute.xlu0 %4682
        %4684 = vrot.lane.b32.xlu0 %v4678, 112
        %v4685 = vpop.permute.xlu0 %4684
        %4688 = vst.msk [vmem:[#allocation2] sm:$0xff] %vm1757, %v4683
        %4689 = vst.msk [vmem:[#allocation2 + $0x8] sm:$0xff] %vm1757, %v4685
        %v4690 = vld [vmem:[#allocation2] sm:$0xff]
        %v4691 = vld [vmem:[#allocation2 + $0x8] sm:$0xff]
        %v4692 = vpack.c.bf16 %v4691, %v4690
        %s4693 = scalar_lea.vmem [#allocation15], 192
        %v4694 = vld [vmem:[%s4693] sm:$0xf]
        %v4695 = vld [vmem:[%s4693 + $0x4] sm:$0xf]
        %v4696 = vld [vmem:[%s4693 + $0x8] sm:$0xf]
        %v4697 = vld [vmem:[%s4693 + $0xc] sm:$0xf]
        %v4698 = vld [vmem:[%s4693 + $0x10] sm:$0xf]
        %v4699 = vld [vmem:[%s4693 + $0x14] sm:$0xf]
        %v4700 = vld [vmem:[%s4693 + $0x18] sm:$0xf]
        %v4701 = vld [vmem:[%s4693 + $0x1c] sm:$0xf]
        %v4702 = vld [vmem:[%s4693 + $0x20] sm:$0xf]
        %v4703 = vld [vmem:[%s4693 + $0x24] sm:$0xf]
        %v4704 = vld [vmem:[%s4693 + $0x28] sm:$0xf]
        %v4705 = vld [vmem:[%s4693 + $0x2c] sm:$0xf]
        %v4706 = vld [vmem:[%s4693 + $0x30] sm:$0xf]
        %v4707 = vld [vmem:[%s4693 + $0x34] sm:$0xf]
        %v4708 = vld [vmem:[%s4693 + $0x38] sm:$0xf]
        %v4709 = vld [vmem:[%s4693 + $0x3c] sm:$0xf]
        %s4710 = scalar_lea.vmem %s8, 3
        %v4711 = vld [vmem:[%s4710] sm:$0x1]
        %v4713 = vperm.slane %v4711, 0
        %v4731 = vunpack.c.l.b16 %v4694
        %v4732 = vunpack.c.l.b16 %v4695
        %v4733 = vunpack.c.l.b16 %v4696
        %v4734 = vunpack.c.l.b16 %v4697
        %v4735 = vunpack.c.l.b16 %v4698
        %v4736 = vunpack.c.l.b16 %v4699
        %v4737 = vunpack.c.l.b16 %v4700
        %v4738 = vunpack.c.l.b16 %v4701
        %v4739 = vunpack.c.l.b16 %v4702
        %v4740 = vunpack.c.l.b16 %v4703
        %v4741 = vunpack.c.l.b16 %v4704
        %v4742 = vunpack.c.l.b16 %v4705
        %v4743 = vunpack.c.l.b16 %v4706
        %v4744 = vunpack.c.l.b16 %v4707
        %v4745 = vunpack.c.l.b16 %v4708
        %v4746 = vunpack.c.l.b16 %v4709
        %v4747 = vpack.c.b16 %v4732, %v4731
        %v4748 = vpack.c.b16 %v4734, %v4733
        %v4749 = vpack.c.b16 %v4736, %v4735
        %v4750 = vpack.c.b16 %v4738, %v4737
        %v4751 = vpack.c.b16 %v4740, %v4739
        %v4752 = vpack.c.b16 %v4742, %v4741
        %v4753 = vpack.c.b16 %v4744, %v4743
        %v4754 = vpack.c.b16 %v4746, %v4745
        %4763 = vmatpush.bf16.msra.mxu0 %v4754
        %4764 = vmatpush.bf16.msra.mxu0 %v4753
        %4765 = vmatpush.bf16.msra.mxu0 %v4752
        %4766 = vmatpush.bf16.msra.mxu0 %v4751
        %4767 = vmatpush.bf16.msra.mxu0 %v4750
        %4768 = vmatpush.bf16.msra.mxu0 %v4749
        %4769 = vmatpush.bf16.msra.mxu0 %v4748
        %4770 = vmatpush.bf16.msra.mxu0 %v4747
        %4771 = vmatmul.bf16.gmra.mxu0 %v4692
        %v4772 = vpop.f32.mrf.mxu0
        %v4773 = vadd.f32 %v4713, %v4772
        %v4774 = vpop.f32.mrf.mxu0
        %v4775 = vadd.f32 %v4713, %v4774
        %4776 = vdwg.mxu0
        %v4777 = vadd.f32 %v1904, %v4773
        %v4778 = vadd.f32 %v1905, %v4775
        %s4779 = scalar_lea.vmem %s9, 3
        %v4780 = vld [vmem:[%s4779] sm:$0x1]
        %s4781 = scalar_lea.vmem [#allocation17], 3
        %v4782 = vld [vmem:[%s4781] sm:$0x1]
        %4783 = vadd.xlane.f32.xlu0 %v4777
        %v4784 = vpop.xlane.xlu0 %4783
        %4785 = vadd.xlane.f32.xlu0 %v4778
        %v4786 = vpop.xlane.xlu0 %4785
        %v4787 = vmul.f32 %v4784, %v1859
        %v4788 = vmul.f32 %v4786, %v1859
        %v4789 = vsub.f32 %v4777, %v4787
        %v4790 = vsub.f32 %v4778, %v4788
        %v4791 = vmul.f32 %v4789, %v4789
        %v4792 = vmul.f32 %v4790, %v4790
        %4793 = vadd.xlane.f32.xlu0 %v4791
        %v4794 = vpop.xlane.xlu0 %4793
        %4795 = vadd.xlane.f32.xlu0 %v4792
        %v4796 = vpop.xlane.xlu0 %4795
        %v4797 = vmul.f32 %v4794, %v1859
        %v4798 = vmul.f32 %v4796, %v1859
        %v4799 = vadd.f32 %v4797, 1e-05
        %v4800 = vadd.f32 %v4798, 1e-05
        %v4801 = vrsqrt.pop %v4799
        %v4802 = vmul.f32 %v4801, %v4799
        %v4803 = vmul.f32 %v4802, %v4801
        %v4804 = vmul.f32 0.5, %v4803
        %v4805 = vsub.f32 1.5, %v4804
        %v4806 = vmul.f32 %v4801, %v4805
        %vm4807 = vweird.f32 %v4799
        %vm4808 = vweird.f32 %v4801
        %vm4809 = vmor %vm4807, %vm4808
        %v4810 = vsel %vm4809, %v4801, %v4806
        %v4811 = vrsqrt.pop %v4800
        %v4812 = vmul.f32 %v4811, %v4800
        %v4813 = vmul.f32 %v4812, %v4811
        %v4814 = vmul.f32 0.5, %v4813
        %v4815 = vsub.f32 1.5, %v4814
        %v4816 = vmul.f32 %v4811, %v4815
        %vm4817 = vweird.f32 %v4800
        %vm4818 = vweird.f32 %v4811
        %vm4819 = vmor %vm4817, %vm4818
        %v4820 = vsel %vm4819, %v4811, %v4816
        %v4821 = vmul.f32 %v4789, %v4810
        %v4822 = vmul.f32 %v4790, %v4820
        %v4824 = vperm.slane %v4780, 0
        %v4826 = vmul.f32 %v4821, %v4824
        %v4827 = vmul.f32 %v4822, %v4824
        %v4829 = vperm.slane %v4782, 0
        %v4831 = vadd.f32 %v4826, %v4829
        %v4832 = vadd.f32 %v4827, %v4829
        %v4833 = vpack.c.bf16 %v4832, %v4831
        %s4834 = scalar_lea.vmem [#allocation18], 64
        %v4835 = vld [vmem:[%s4834] sm:$0xf]
        %v4836 = vld [vmem:[%s4834 + $0x4] sm:$0xf]
        %v4837 = vld [vmem:[%s4834 + $0x8] sm:$0xf]
        %v4838 = vld [vmem:[%s4834 + $0xc] sm:$0xf]
        %v4839 = vld [vmem:[%s4834 + $0x10] sm:$0xf]
        %v4840 = vld [vmem:[%s4834 + $0x14] sm:$0xf]
        %v4841 = vld [vmem:[%s4834 + $0x18] sm:$0xf]
        %v4842 = vld [vmem:[%s4834 + $0x1c] sm:$0xf]
        %v4843 = vld [vmem:[%s4834 + $0x20] sm:$0xf]
        %v4844 = vld [vmem:[%s4834 + $0x24] sm:$0xf]
        %v4845 = vld [vmem:[%s4834 + $0x28] sm:$0xf]
        %v4846 = vld [vmem:[%s4834 + $0x2c] sm:$0xf]
        %v4847 = vld [vmem:[%s4834 + $0x30] sm:$0xf]
        %v4848 = vld [vmem:[%s4834 + $0x34] sm:$0xf]
        %v4849 = vld [vmem:[%s4834 + $0x38] sm:$0xf]
        %v4850 = vld [vmem:[%s4834 + $0x3c] sm:$0xf]
        %s4851 = scalar_lea.vmem %s12, 1
        %v4852 = vld [vmem:[%s4851] sm:$0x1]
        %v4854 = vperm.slane %v4852, 0
        %v4872 = vunpack.c.l.b16 %v4835
        %v4873 = vunpack.c.l.b16 %v4836
        %v4874 = vunpack.c.l.b16 %v4837
        %v4875 = vunpack.c.l.b16 %v4838
        %v4876 = vunpack.c.l.b16 %v4839
        %v4877 = vunpack.c.l.b16 %v4840
        %v4878 = vunpack.c.l.b16 %v4841
        %v4879 = vunpack.c.l.b16 %v4842
        %v4880 = vunpack.c.l.b16 %v4843
        %v4881 = vunpack.c.l.b16 %v4844
        %v4882 = vunpack.c.l.b16 %v4845
        %v4883 = vunpack.c.l.b16 %v4846
        %v4884 = vunpack.c.l.b16 %v4847
        %v4885 = vunpack.c.l.b16 %v4848
        %v4886 = vunpack.c.l.b16 %v4849
        %v4887 = vunpack.c.l.b16 %v4850
        %v4888 = vpack.c.b16 %v4873, %v4872
        %v4889 = vpack.c.b16 %v4875, %v4874
        %v4890 = vpack.c.b16 %v4877, %v4876
        %v4891 = vpack.c.b16 %v4879, %v4878
        %v4892 = vpack.c.b16 %v4881, %v4880
        %v4893 = vpack.c.b16 %v4883, %v4882
        %v4894 = vpack.c.b16 %v4885, %v4884
        %v4895 = vpack.c.b16 %v4887, %v4886
        %4904 = vmatpush.bf16.msra.mxu0 %v4895
        %4905 = vmatpush.bf16.msra.mxu0 %v4894
        %4906 = vmatpush.bf16.msra.mxu0 %v4893
        %4907 = vmatpush.bf16.msra.mxu0 %v4892
        %4908 = vmatpush.bf16.msra.mxu0 %v4891
        %4909 = vmatpush.bf16.msra.mxu0 %v4890
        %4910 = vmatpush.bf16.msra.mxu0 %v4889
        %4911 = vmatpush.bf16.msra.mxu0 %v4888
        %4912 = vmatmul.bf16.gmra.mxu0 %v4833
        %v4913 = vpop.f32.mrf.mxu0
        %v4914 = vadd.f32 %v4854, %v4913
        %v4915 = vpop.f32.mrf.mxu0
        %v4916 = vadd.f32 %v4854, %v4915
        %4917 = vdwg.mxu0
        %v4918 = vmax.f32 %v4914, 0.0
        %v4919 = vmax.f32 %v4916, 0.0
        %v4920 = vpack.c.bf16 %v4919, %v4918
        %s4921 = scalar_lea.vmem [#allocation20], 64
        %v4922 = vld [vmem:[%s4921] sm:$0xf]
        %v4923 = vld [vmem:[%s4921 + $0x4] sm:$0xf]
        %v4924 = vld [vmem:[%s4921 + $0x8] sm:$0xf]
        %v4925 = vld [vmem:[%s4921 + $0xc] sm:$0xf]
        %v4926 = vld [vmem:[%s4921 + $0x10] sm:$0xf]
        %v4927 = vld [vmem:[%s4921 + $0x14] sm:$0xf]
        %v4928 = vld [vmem:[%s4921 + $0x18] sm:$0xf]
        %v4929 = vld [vmem:[%s4921 + $0x1c] sm:$0xf]
        %v4930 = vld [vmem:[%s4921 + $0x20] sm:$0xf]
        %v4931 = vld [vmem:[%s4921 + $0x24] sm:$0xf]
        %v4932 = vld [vmem:[%s4921 + $0x28] sm:$0xf]
        %v4933 = vld [vmem:[%s4921 + $0x2c] sm:$0xf]
        %v4934 = vld [vmem:[%s4921 + $0x30] sm:$0xf]
        %v4935 = vld [vmem:[%s4921 + $0x34] sm:$0xf]
        %v4936 = vld [vmem:[%s4921 + $0x38] sm:$0xf]
        %v4937 = vld [vmem:[%s4921 + $0x3c] sm:$0xf]
        %s4938 = scalar_lea.vmem %s14, 1
        %v4939 = vld [vmem:[%s4938] sm:$0x1]
        %v4941 = vperm.slane %v4939, 0
        %v4959 = vunpack.c.l.b16 %v4922
        %v4960 = vunpack.c.l.b16 %v4923
        %v4961 = vunpack.c.l.b16 %v4924
        %v4962 = vunpack.c.l.b16 %v4925
        %v4963 = vunpack.c.l.b16 %v4926
        %v4964 = vunpack.c.l.b16 %v4927
        %v4965 = vunpack.c.l.b16 %v4928
        %v4966 = vunpack.c.l.b16 %v4929
        %v4967 = vunpack.c.l.b16 %v4930
        %v4968 = vunpack.c.l.b16 %v4931
        %v4969 = vunpack.c.l.b16 %v4932
        %v4970 = vunpack.c.l.b16 %v4933
        %v4971 = vunpack.c.l.b16 %v4934
        %v4972 = vunpack.c.l.b16 %v4935
        %v4973 = vunpack.c.l.b16 %v4936
        %v4974 = vunpack.c.l.b16 %v4937
        %v4975 = vpack.c.b16 %v4960, %v4959
        %v4976 = vpack.c.b16 %v4962, %v4961
        %v4977 = vpack.c.b16 %v4964, %v4963
        %v4978 = vpack.c.b16 %v4966, %v4965
        %v4979 = vpack.c.b16 %v4968, %v4967
        %v4980 = vpack.c.b16 %v4970, %v4969
        %v4981 = vpack.c.b16 %v4972, %v4971
        %v4982 = vpack.c.b16 %v4974, %v4973
        %4991 = vmatpush.bf16.msra.mxu0 %v4982
        %4992 = vmatpush.bf16.msra.mxu0 %v4981
        %4993 = vmatpush.bf16.msra.mxu0 %v4980
        %4994 = vmatpush.bf16.msra.mxu0 %v4979
        %4995 = vmatpush.bf16.msra.mxu0 %v4978
        %4996 = vmatpush.bf16.msra.mxu0 %v4977
        %4997 = vmatpush.bf16.msra.mxu0 %v4976
        %4998 = vmatpush.bf16.msra.mxu0 %v4975
        %4999 = vmatmul.bf16.gmra.mxu0 %v4920
        %v5000 = vpop.f32.mrf.mxu0
        %v5001 = vadd.f32 %v4941, %v5000
        %v5002 = vpop.f32.mrf.mxu0
        %v5003 = vadd.f32 %v4941, %v5002
        %5004 = vdwg.mxu0
        %v5005 = vadd.f32 %v4831, %v5001
        %v5006 = vadd.f32 %v4832, %v5003
        %s5007 = scalar_lea.vmem %s15, 1
        %v5008 = vld [vmem:[%s5007] sm:$0x1]
        %s5009 = scalar_lea.vmem [#allocation21], 1
        %v5010 = vld [vmem:[%s5009] sm:$0x1]
        %5011 = vadd.xlane.f32.xlu0 %v5005
        %v5012 = vpop.xlane.xlu0 %5011
        %5013 = vadd.xlane.f32.xlu0 %v5006
        %v5014 = vpop.xlane.xlu0 %5013
        %v5015 = vmul.f32 %v5012, %v1859
        %v5016 = vmul.f32 %v5014, %v1859
        %v5017 = vsub.f32 %v5005, %v5015
        %v5018 = vsub.f32 %v5006, %v5016
        %v5019 = vmul.f32 %v5017, %v5017
        %v5020 = vmul.f32 %v5018, %v5018
        %5021 = vadd.xlane.f32.xlu0 %v5019
        %v5022 = vpop.xlane.xlu0 %5021
        %5023 = vadd.xlane.f32.xlu0 %v5020
        %v5024 = vpop.xlane.xlu0 %5023
        %v5025 = vmul.f32 %v5022, %v1859
        %v5026 = vmul.f32 %v5024, %v1859
        %v5027 = vadd.f32 %v5025, 1e-05
        %v5028 = vadd.f32 %v5026, 1e-05
        %v5029 = vrsqrt.pop %v5027
        %v5030 = vmul.f32 %v5029, %v5027
        %v5031 = vmul.f32 %v5030, %v5029
        %v5032 = vmul.f32 0.5, %v5031
        %v5033 = vsub.f32 1.5, %v5032
        %v5034 = vmul.f32 %v5029, %v5033
        %vm5035 = vweird.f32 %v5027
        %vm5036 = vweird.f32 %v5029
        %vm5037 = vmor %vm5035, %vm5036
        %v5038 = vsel %vm5037, %v5029, %v5034
        %v5039 = vrsqrt.pop %v5028
        %v5040 = vmul.f32 %v5039, %v5028
        %v5041 = vmul.f32 %v5040, %v5039
        %v5042 = vmul.f32 0.5, %v5041
        %v5043 = vsub.f32 1.5, %v5042
        %v5044 = vmul.f32 %v5039, %v5043
        %vm5045 = vweird.f32 %v5028
        %vm5046 = vweird.f32 %v5039
        %vm5047 = vmor %vm5045, %vm5046
        %v5048 = vsel %vm5047, %v5039, %v5044
        %v5049 = vmul.f32 %v5017, %v5038
        %v5050 = vmul.f32 %v5018, %v5048
        %v5052 = vperm.slane %v5008, 0
        %v5054 = vmul.f32 %v5049, %v5052
        %v5055 = vmul.f32 %v5050, %v5052
        %v5057 = vperm.slane %v5010, 0
        %v5059 = vadd.f32 %v5054, %v5057
        %v5060 = vadd.f32 %v5055, %v5057
        %5061 = vst [vmem:[%s860] sm:$0xff] %v5059
        %5062 = vst [vmem:[%s860 + $0x8] sm:$0xff] %v5060
        %5063 = vst [vmem:[%s867] sm:$0xff] %v3809
        %s5064 = sand.u32 %s439, 1
        %s5065 = scalar_lea.sflag [#allocation5], %s5064
        %s5066 = sand.u32 %s439, 1
        %s5067 = smul.addr %s5066, 16
        %s5068 = scalar_lea.vmem [#allocation23], %s5067
        %s5069 = sand.u32 %s465, 1
        %s5070 = scalar_lea.sflag [#allocation25], %s5069
        %s5071 = sand.u32 %s465, 1
        %s5072 = smul.addr %s5071, 8
        %s5073 = scalar_lea.vmem [#allocation24], %s5072
        // Predicated region
        $region137: #{tpu_custom_call.1} parent=87 // pred_check
          %p5074 = pneg %p449
        $region138: #{tpu_custom_call.1} parent=87 // pred_check_branch
          %5076 = sbr.rel (%p5074) target = $region140
        $region139: #{tpu_custom_call.1} parent=87 // pred_region
          %5078 = vsyncadd %s5065, 0
          %s5079 = smul.addr %s49, 2
          %s5080 = smul.addr %s5079, 8
          %s5081 = scalar_lea.hbm %s17, %s5080
          %s5082 = sshll.u32 %s5068, 4
          %s5083 = int_to_ptr.vmem [resolvable:$true] %s5082
          %s5084 = sshll.u32 %s5081, 4
          %s5085 = int_to_ptr.hbm [resolvable:$true] %s5084
          %5090 = dma.vmem_to_hbm [thread:$0]  %s5083, 256, %s5085, %s5065, 128, 128, 8
        $region140: #{tpu_custom_call.1} parent=87 // pred_fallthru
          _
        // Predicated region
        $region141: #{tpu_custom_call.1} parent=87 // pred_check
          %p5091 = pneg %p475
        $region142: #{tpu_custom_call.1} parent=87 // pred_check_branch
          %5093 = sbr.rel (%p5091) target = $region144
        $region143: #{tpu_custom_call.1} parent=87 // pred_region
          %5095 = vsyncadd %s5070, 0
          %s5096 = smul.addr %s49, 8
          %s5097 = scalar_lea.hbm %s18, %s5096
          %s5099 = sshll.u32 %s5073, 4
          %s5100 = int_to_ptr.vmem [resolvable:$true] %s5099
          %s5101 = sshll.u32 %s5097, 4
          %s5102 = int_to_ptr.hbm [resolvable:$true] %s5101
          %5104 = dma.vmem_to_hbm [thread:$0]  %s5100, 128, %s5102, %s5070
        $region144: #{tpu_custom_call.1} parent=87 // pred_fallthru
          _
      $region88: #{tpu_custom_call.1} parent=5 // pred_fallthru
        _
      %p5105 = scmp.le.s32.totalorder 2, %s44
      // Predicated region
      $region145: #{tpu_custom_call.1} parent=5 // pred_check
        %p5106 = pneg %p5105
      $region146: #{tpu_custom_call.1} parent=5 // pred_check_branch
        %5108 = sbr.rel (%p5106) target = $region148
      $region147: #{tpu_custom_call.1} parent=5 // pred_region
        %s5109 = ssub.s32 %s44, 2
        // Predicated region
        $region149: #{tpu_custom_call.1} parent=147 // pred_check
          %p5110 = pneg %p455
        $region150: #{tpu_custom_call.1} parent=147 // pred_check_branch
          %5112 = sbr.rel (%p5110) target = $region152
        $region151: #{tpu_custom_call.1} parent=147 // pred_region
          %s5113 = sand.u32 %s440, 1
          %s5114 = scalar_lea.sflag [#allocation5], %s5113
          %s5115 = sand.u32 %s440, 1
          %s5116 = smul.addr %s5115, 16
          %s5117 = scalar_lea.vmem [#allocation23], %s5116
          %5119 = dma.done %s5114, 256
        $region152: #{tpu_custom_call.1} parent=147 // pred_fallthru
          _
        // Predicated region
        $region153: #{tpu_custom_call.1} parent=147 // pred_check
          %p5120 = pneg %p481
        $region154: #{tpu_custom_call.1} parent=147 // pred_check_branch
          %5122 = sbr.rel (%p5120) target = $region156
        $region155: #{tpu_custom_call.1} parent=147 // pred_region
          %s5123 = sand.u32 %s466, 1
          %s5124 = scalar_lea.sflag [#allocation25], %s5123
          %s5125 = sand.u32 %s466, 1
          %s5126 = smul.addr %s5125, 8
          %s5127 = scalar_lea.vmem [#allocation24], %s5126
          %5129 = dma.done %s5124, 128
        $region156: #{tpu_custom_call.1} parent=147 // pred_fallthru
          _
      $region148: #{tpu_custom_call.1} parent=5 // pred_fallthru
        _
    $region6: #{tpu_custom_call.1} parent=1 // loop_footer
      %s48 = sadd.s32 1, %s44
    $region7: #{tpu_custom_call.1} parent=1 // loop_footer_branch
      %43 = sbr.rel target = $region3
    $region8: #{tpu_custom_call.1} parent=1 // loop_exit
      _
    %5130 = vsyncpa [#allocation4], 1
    %s5131 = scalar_lea.sflag [#allocation4], 1
    %5132 = vsyncpa %s5131, 1
    %5133 = vsyncpa [#allocation7], 1
    %s5134 = scalar_lea.sflag [#allocation7], 1
    %5135 = vsyncpa %s5134, 1
    %5136 = vsyncpa [#allocation10], 1
    %s5137 = scalar_lea.sflag [#allocation10], 1
    %5138 = vsyncpa %s5137, 1
    %5139 = vsyncpa [#allocation13], 1
    %5140 = vsyncpa [#allocation16], 1
    %5141 = vsyncpa [#allocation19], 1
    %5142 = vsyncpa [#allocation22], 1
    %5143 = vsyncpa [#allocation5], 1
    %s5144 = scalar_lea.sflag [#allocation5], 1
    %5145 = vsyncpa %s5144, 1
    %5146 = vsyncpa [#allocation25], 1
    %s5147 = scalar_lea.sflag [#allocation25], 1
    %5148 = vsyncpa %s5147, 1

</llo_original>
